<compile_context>
chip_gen: v7x
topology: tpu7x:2x2x1
jax: 0.10.0
libtpu: 0.0.40
codegen_flags: <defaults>
</compile_context>

<pallas_src>
import numpy as np
import jax
import jax.numpy as jnp
from jax import lax
from jax.experimental import pallas as pl
from jax.experimental.pallas import tpu as pltpu

LANE = 128
SUBLANE = 8
NCLS_PAD = 128  # decoder output padded to a lane-dense width, sliced to 2 outside


def _round_up(x, m):
    return ((x + m - 1) // m) * m


def _vmem_limit_bytes():
    """Generation-aware scoped VMEM limit: ~3/4 of physical, capped with headroom."""
    cap = 64 * 1024 * 1024
    try:
        if hasattr(pltpu, "get_tpu_info"):
            info = pltpu.get_tpu_info()
            cap = int(getattr(info, "vmem_capacity_bytes", cap) or cap)
    except Exception:
        pass
    return int(min(cap * 3 // 4, 100 * 1024 * 1024))


_VMEM_LIMIT = _vmem_limit_bytes()


def _choose_time_chunk(T, target=128):
    """(t_chunk, T_pad): prefer an exact divisor of T in [target//2, target];
    otherwise pad T up (extra steps are masked in-kernel)."""
    for c in range(min(T, target), max(0, target // 2 - 1), -1):
        if T % c == 0:
            return c, T
    tc = min(_round_up(T, SUBLANE), 64)
    return tc, _round_up(T, tc)


def _row_to_col(v):
    """(1, n) -> (n, 1) using only elementwise + reduce ops (no transpose op)."""
    n = v.shape[-1]
    eye = (lax.broadcasted_iota(jnp.int32, (n, n), 0)
           == lax.broadcasted_iota(jnp.int32, (n, n), 1)).astype(v.dtype)
    return jnp.sum(eye * v, axis=-1, keepdims=True)


# ----------------------------------------------------------------------------
# Fused Conv1d branches (same padding) + bias + ReLU.
# K-tap MXU accumulation, in-kernel zero padding, time-major bf16 output.
# ----------------------------------------------------------------------------
def conv_relu_fused(x, w_pack, b_pack, kmax, t_pad):
    """x: (B_pad, T, Cin) bf16 -> (T_pad, B_pad, Cpad) bf16 (time-major)."""
    b_p, T, cin = x.shape
    rows, c_pad = w_pack.shape
    cin_p = rows // kmax
    halo = (kmax - 1) // 2
    n_groups = b_p // SUBLANE

    def kernel(x_ref, w_ref, b_ref, out_ref, xp_ref):
        # Zero the padded staging buffer once; the data window is rewritten per row.
        xp_ref[...] = jnp.zeros_like(xp_ref)
        bias = b_ref[...]
        for bi in range(SUBLANE):                          # static unroll over batch group
            xp_ref[halo:halo + T, :cin] = x_ref[bi]        # in-kernel time/channel pad
            acc = jnp.zeros((t_pad, c_pad), jnp.float32)
            # K-tap accumulation (no im2col buffer).  Contraction depth = cin_p per tap;
            # on v6e/v7x two taps could be paired for a 256-deep contraction.
            for k in range(kmax):
                acc += jnp.dot(xp_ref[k:k + t_pad, :],
                               w_ref[k * cin_p:(k + 1) * cin_p, :],
                               preferred_element_type=jnp.float32)
            out = jnp.maximum(acc + bias, 0.0).astype(out_ref.dtype)
            out_ref[:, bi:bi + 1, :] = out[:, None, :]     # time-major store, lane-dense

    return pl.pallas_call(
        kernel,
        out_shape=jax.ShapeDtypeStruct((t_pad, b_p, c_pad), jnp.bfloat16),
        grid_spec=pltpu.PrefetchScalarGridSpec(
            num_scalar_prefetch=0,
            grid=(n_groups,),
            in_specs=[
                pl.BlockSpec((SUBLANE, T, cin), lambda g: (g, 0, 0)),
                pl.BlockSpec((kmax * cin_p, c_pad), lambda g: (0, 0)),
                pl.BlockSpec((1, c_pad), lambda g: (0, 0)),
            ],
            out_specs=pl.BlockSpec((t_pad, SUBLANE, c_pad), lambda g: (0, g, 0)),
            scratch_shapes=[pltpu.VMEM((t_pad + kmax - 1, cin_p), jnp.bfloat16)],
        ),
        compiler_params=pltpu.CompilerParams(
            dimension_semantics=("parallel",),
            vmem_limit_bytes=_VMEM_LIMIT,
        ),
    )(x, w_pack, b_pack)


# ----------------------------------------------------------------------------
# Bidirectional LSTM layer (PyTorch gate order i, f, g, o), time-major, bf16 I/O.
# grid = (direction, time-chunk); direction is "parallel" (one TC each on v7x),
# time-chunk is "arbitrary" with (h, c) carried in VMEM scratch.
# ----------------------------------------------------------------------------
def bilstm_layer(x, wih, whh, b, t_chunk, t_real):
    """x: (T_pad, B_pad, Ip) bf16 -> (T_pad, B_pad, 2*Hp) bf16 ([fw | bw] last dim)."""
    t_total, b_p, i_p = x.shape
    h_p = whh.shape[1]
    gdim = wih.shape[2]                                    # 4*Hp
    n_tc = t_total // t_chunk
    needs_mask = t_total != t_real

    def kernel(x_ref, wih_ref, whh_ref, b_ref, out_ref, xw_ref, h_ref, c_ref):
        tc = x_ref.shape[0]
        d = pl.program_id(0)                               # 0 = forward, 1 = backward
        j = pl.program_id(1)
        chunk = d * (n_tc - 1) + (1 - 2 * d) * j           # time-chunk this block covers

        @pl.when(j == 0)
        def _():                                           # reset state at sequence start
            h_ref[...] = jnp.zeros_like(h_ref)
            c_ref[...] = jnp.zeros_like(c_ref)

        # Hoisted input projection: one large bf16 MXU matmul per chunk (bias folded in),
        # off the sequential critical path.
        x2d = x_ref[...].reshape(tc * b_p, i_p)
        xw = jnp.dot(x2d, wih_ref[0], preferred_element_type=jnp.float32) + b_ref[0]
        xw_ref[...] = xw.reshape(tc, b_p, gdim)

        whh_b = whh_ref[0]                                 # (Hp, 4Hp) bf16, loop-hoisted

        def step(t, carry):
            t_eff = d * (tc - 1) + (1 - 2 * d) * t         # in-kernel time reversal
            gates = xw_ref[t_eff] + jnp.dot(h_ref[...], whh_b,
                                            preferred_element_type=jnp.float32)
            i_g = jax.nn.sigmoid(gates[:, 0 * h_p:1 * h_p])
            f_g = jax.nn.sigmoid(gates[:, 1 * h_p:2 * h_p])
            g_g = jnp.tanh(gates[:, 2 * h_p:3 * h_p])
            o_g = jax.nn.sigmoid(gates[:, 3 * h_p:4 * h_p])
            c_new = f_g * c_ref[...] + i_g * g_g
            h_new = o_g * jnp.tanh(c_new)
            h_out = h_new
            if needs_mask:                                 # static: only when T was padded
                valid = (chunk * tc + t_eff) < t_real
                c_new = jnp.where(valid, c_new, c_ref[...])
                h_out = jnp.where(valid, h_new, 0.0)
                h_new = jnp.where(valid, h_new, h_ref[...].astype(jnp.float32))
            c_ref[...] = c_new
            h_ref[...] = h_new.astype(h_ref.dtype)         # bf16 carry: MXU-ready next step
            out_ref[t_eff] = h_out.astype(out_ref.dtype)
            return carry

        lax.fori_loop(0, tc, step, 0, unroll=2)

    def x_map(d, j):
        return (d * (n_tc - 1) + (1 - 2 * d) * j, 0, 0)

    def w_map(d, j):
        return (d, 0, 0)

    def o_map(d, j):
        return (d * (n_tc - 1) + (1 - 2 * d) * j, 0, d)

    return pl.pallas_call(
        kernel,
        out_shape=jax.ShapeDtypeStruct((t_total, b_p, 2 * h_p), jnp.bfloat16),
        grid_spec=pltpu.PrefetchScalarGridSpec(
            num_scalar_prefetch=0,
            grid=(2, n_tc),
            in_specs=[
                pl.BlockSpec((t_chunk, b_p, i_p), x_map),
                pl.BlockSpec((1, i_p, gdim), w_map),
                pl.BlockSpec((1, h_p, gdim), w_map),
                pl.BlockSpec((1, 1, gdim), w_map),
            ],
            out_specs=pl.BlockSpec((t_chunk, b_p, h_p), o_map),
            scratch_shapes=[
                pltpu.VMEM((t_chunk, b_p, gdim), jnp.float32),   # hoisted xW per chunk
                pltpu.VMEM((b_p, h_p), jnp.bfloat16),            # h carry (bf16)
                pltpu.VMEM((b_p, h_p), jnp.float32),             # c carry (f32)
            ],
        ),
        compiler_params=pltpu.CompilerParams(
            dimension_semantics=("parallel", "arbitrary"),
            vmem_limit_bytes=_VMEM_LIMIT,
        ),
    )(x, wih, whh, b)


# ----------------------------------------------------------------------------
# Attention pooling (online softmax, tiled over T) + decoder head.
# grid = (batch-group-of-8, time-chunk); running stats live in VMEM scratch.
# ----------------------------------------------------------------------------
def attn_decoder(h, attn_w, attn_b, dec_w, dec_b, t_chunk, t_real):
    t_total, b_p, d_p = h.shape
    n_t = t_total // t_chunk
    n_groups = b_p // SUBLANE
    needs_mask = t_total != t_real

    def kernel(h_ref, aw_ref, ab_ref, dw_ref, db_ref, out_ref, m_ref, l_ref, acc_ref):
        t_idx = pl.program_id(1)

        @pl.when(t_idx == 0)
        def _():
            m_ref[...] = jnp.full_like(m_ref, -jnp.inf)
            l_ref[...] = jnp.zeros_like(l_ref)
            acc_ref[...] = jnp.zeros_like(acc_ref)

        hb = h_ref[...].astype(jnp.float32)                       # (tA, 8, Dp)
        s = jnp.sum(hb * aw_ref[...], axis=-1) + ab_ref[...]      # (tA, 8) scores
        if needs_mask:                                            # mask padded time rows
            row = t_idx * t_chunk + lax.broadcasted_iota(jnp.int32, (t_chunk, 1), 0)
            s = jnp.where(row < t_real, s, -jnp.inf)

        m_new = jnp.maximum(m_ref[...], jnp.max(s, axis=0, keepdims=True))   # (1, 8)
        alpha = jnp.exp(m_ref[...] - m_new)                                  # (1, 8)
        p = jnp.exp(s - m_new)                                               # (tA, 8)
        l_ref[...] = alpha * l_ref[...] + jnp.sum(p, axis=0, keepdims=True)
        acc_ref[...] = (_row_to_col(alpha) * acc_ref[...]
                        + jnp.sum(p[:, :, None] * hb, axis=0))               # (8, Dp)
        m_ref[...] = m_new

        @pl.when(t_idx == n_t - 1)
        def _():
            inv_l = _row_to_col(pl.reciprocal(l_ref[...], approx=True))      # (8, 1)
            ctx = acc_ref[...] * inv_l                                       # (8, Dp)
            logits = jnp.dot(ctx.astype(jnp.bfloat16), dw_ref[...],
                             preferred_element_type=jnp.float32) + db_ref[...]
            out_ref[...] = logits

    return pl.pallas_call(
        kernel,
        out_shape=jax.ShapeDtypeStruct((b_p, NCLS_PAD), jnp.float32),
        grid_spec=pltpu.PrefetchScalarGridSpec(
            num_scalar_prefetch=0,
            grid=(n_groups, n_t),
            in_specs=[
                pl.BlockSpec((t_chunk, SUBLANE, d_p), lambda g, t: (t, g, 0)),
                pl.BlockSpec((1, d_p), lambda g, t: (0, 0)),
                pl.BlockSpec((1, 1), lambda g, t: (0, 0)),
                pl.BlockSpec((d_p, NCLS_PAD), lambda g, t: (0, 0)),
                pl.BlockSpec((1, NCLS_PAD), lambda g, t: (0, 0)),
            ],
            out_specs=pl.BlockSpec((SUBLANE, NCLS_PAD), lambda g, t: (g, 0)),
            scratch_shapes=[
                pltpu.VMEM((1, SUBLANE), jnp.float32),    # running max
                pltpu.VMEM((1, SUBLANE), jnp.float32),    # running denom
                pltpu.VMEM((SUBLANE, d_p), jnp.float32),  # running sum of p * h
            ],
        ),
        compiler_params=pltpu.CompilerParams(
            dimension_semantics=("parallel", "arbitrary"),
            vmem_limit_bytes=_VMEM_LIMIT,
        ),
    )(h, attn_w, attn_b, dec_w, dec_b)


# ----------------------------------------------------------------------------
# Full forward pass.
# ----------------------------------------------------------------------------
def hybrid_cnn_rnn_forward(tokens, p):
    B, T = tokens.shape
    b_pad = _round_up(B, SUBLANE)
    if b_pad != B:                                        # padded rows discarded at the end
        tokens = jnp.pad(tokens, ((0, b_pad - B), (0, 0)))

    emb = jnp.take(p["emb"], tokens, axis=0)              # (B_pad, T, E) bf16
    cemb = jnp.take(p["cemb"], tokens, axis=0)            # (B_pad, T, E) bf16
    x = jnp.concatenate([emb, cemb], axis=-1)             # (B_pad, T, 2E) bf16
    # nn.Dropout -> identity in eval-mode forward.

    t_chunk, t_pad = _choose_time_chunk(T)

    # Conv emits time-major bf16 directly: no XLA transpose, no wrapper jnp.pad.
    h = conv_relu_fused(x, p["conv_w"], p["conv_b"], p["kmax"], t_pad)
    for layer in p["lstm"]:
        h = bilstm_layer(h, layer["wih"], layer["whh"], layer["b"], t_chunk, T)

    logits = attn_decoder(h, p["attn_w"], p["attn_b"], p["dec_w"], p["dec_b"], t_chunk, T)
    return logits[:B, :2]                                  # drop batch / lane padding


# ----------------------------------------------------------------------------
# Deterministic "logical" parameters (mirror the PyTorch module structure).
# ----------------------------------------------------------------------------
def init_logical_params(key, vocab, E, kernel_sizes, num_channels, H, num_layers):
    n_keys = 2 + 2 * len(kernel_sizes) + num_layers * 2 * 3 + 4
    keys = iter(jax.random.split(key, n_keys))

    def nrm(shape, scale=0.1):
        return (scale * jax.random.normal(next(keys), shape)).astype(jnp.float32)

    p = {"emb": nrm((vocab, E)), "cemb": nrm((vocab, E))}
    cin = 2 * E
    p["convs"] = [(nrm((k, cin, c)), nrm((c,)))            # weight layout (K, Cin, Cout)
                  for c, k in zip(num_channels, kernel_sizes)]

    lstm = []
    in_size = sum(num_channels)
    for _ in range(num_layers):
        layer = {}
        for d in ("fw", "bw"):
            layer[d] = (nrm((in_size, 4 * H)),              # W_ih
                        nrm((H, 4 * H)),                    # W_hh
                        nrm((4 * H,)))                      # b_ih + b_hh combined
        lstm.append(layer)
        in_size = 2 * H
    p["lstm"] = lstm

    p["attn_w"] = nrm((2 * H, 1))
    p["attn_b"] = nrm((1,))
    p["dec_w"] = nrm((2 * H, 2))
    p["dec_b"] = nrm((2,))
    return p


# ----------------------------------------------------------------------------
# Pack / pad parameters for the kernels (lane-dense layouts, bf16 MXU weights).
# Zero padding is placed so that padded lanes stay exactly zero end-to-end.
# ----------------------------------------------------------------------------
def pack_params(lp, E, kernel_sizes, num_channels, H, num_layers):
    cin = 2 * E
    cin_p = _round_up(cin, LANE)
    kmax = max(kernel_sizes)
    pad_max = (kmax - 1) // 2
    csum = sum(num_channels)
    c_pad = _round_up(csum, LANE)
    h_p = _round_up(H, LANE)
    gdim = 4 * h_p

    packed = {
        "emb": jnp.asarray(lp["emb"], jnp.bfloat16),
        "cemb": jnp.asarray(lp["cemb"], jnp.bfloat16),
        "kmax": kmax,
    }

    # --- conv: all branches packed into one (kmax*Cin_p, Cpad) matmul slab ------
    wpack = np.zeros((kmax * cin_p, c_pad), np.float32)
    bpack = np.zeros((1, c_pad), np.float32)
    col = 0
    for (w, b), k, c in zip(lp["convs"], kernel_sizes, num_channels):
        off = pad_max - (k - 1) // 2                        # tap offset inside max padding
        w = np.asarray(w)                                   # (k, Cin, c)
        for j in range(k):
            r0 = (off + j) * cin_p
            wpack[r0:r0 + cin, col:col + c] = w[j]
        bpack[0, col:col + c] = np.asarray(b)
        col += c
    packed["conv_w"] = jnp.asarray(wpack, jnp.bfloat16)
    packed["conv_b"] = jnp.asarray(bpack, jnp.float32)

    # --- LSTM layers (gate order i,f,g,o; per-gate columns padded to Hp) --------
    def gate_pad_cols(w):
        out = np.zeros((w.shape[0], gdim), np.float32)
        for g in range(4):
            out[:, g * h_p:g * h_p + H] = w[:, g * H:(g + 1) * H]
        return out

    def row_pad(w, row_map, ip):
        out = np.zeros((ip, w.shape[1]), np.float32)
        out[row_map] = w
        return out

    bi_row_map = np.concatenate([np.arange(H), h_p + np.arange(H)])
    lstm_packed = []
    for l in range(num_layers):
        if l == 0:
            ip, row_map = c_pad, np.arange(csum)
        else:
            ip, row_map = 2 * h_p, bi_row_map
        wih_l, whh_l, b_l = [], [], []
        for d in ("fw", "bw"):
            wih, whh, b = lp["lstm"][l][d]
            wih_l.append(row_pad(gate_pad_cols(np.asarray(wih)), row_map, ip))
            whh_l.append(row_pad(gate_pad_cols(np.asarray(whh)), np.arange(H), h_p))
            bp = np.zeros((1, gdim), np.float32)
            bnp = np.asarray(b)
            for g in range(4):
                bp[0, g * h_p:g * h_p + H] = bnp[g * H:(g + 1) * H]
            b_l.append(bp)
        lstm_packed.append({
            "wih": jnp.asarray(np.stack(wih_l), jnp.bfloat16),   # (2, Ip, 4Hp)
            "whh": jnp.asarray(np.stack(whh_l), jnp.bfloat16),   # (2, Hp, 4Hp)
            "b": jnp.asarray(np.stack(b_l), jnp.float32),        # (2, 1, 4Hp)
        })
    packed["lstm"] = lstm_packed

    # --- attention + decoder ----------------------------------------------------
    d_p = 2 * h_p
    aw = np.zeros((1, d_p), np.float32)
    aw[0, bi_row_map] = np.asarray(lp["attn_w"])[:, 0]
    packed["attn_w"] = jnp.asarray(aw)
    packed["attn_b"] = jnp.asarray(np.asarray(lp["attn_b"]).reshape(1, 1), jnp.float32)

    dw = np.zeros((d_p, NCLS_PAD), np.float32)
    dw[bi_row_map, :2] = np.asarray(lp["dec_w"])
    packed["dec_w"] = jnp.asarray(dw, jnp.bfloat16)
    db = np.zeros((1, NCLS_PAD), np.float32)
    db[0, :2] = np.asarray(lp["dec_b"])
    packed["dec_b"] = jnp.asarray(db)

    return packed


if __name__ == "__main__":
    # Small shapes consistent with the module structure.
    B, T = 2, 16
    VOCAB, E = 50, 16
    KERNEL_SIZES = [3, 5, 7]
    NUM_CHANNELS = [8, 8, 8]
    H = 16
    NUM_LAYERS = 2

    key = jax.random.PRNGKey(0)
    k_inp, k_par = jax.random.split(key)
    tokens = jax.random.randint(k_inp, (B, T), 0, VOCAB, dtype=jnp.int32)
    logical = init_logical_params(k_par, VOCAB, E, KERNEL_SIZES, NUM_CHANNELS,
                                  H, NUM_LAYERS)
    params = pack_params(logical, E, KERNEL_SIZES, NUM_CHANNELS, H, NUM_LAYERS)

    out = hybrid_cnn_rnn_forward(tokens, params)
    out = jax.block_until_ready(out)
    assert out.shape == (B, 2) and out.dtype == jnp.float32
    print("KERNEL_OK")
</pallas_src>

<mosaic_0001>
module attributes {stable_mosaic.version = 11 : i64} {
  func.func @kernel(%arg0: i32, %arg1: memref<8x16x32xbf16, #tpu.memory_space<vmem>>, %arg2: memref<896x128xbf16, #tpu.memory_space<vmem>>, %arg3: memref<1x128xf32, #tpu.memory_space<vmem>>, %arg4: memref<16x8x128xbf16, #tpu.memory_space<vmem>>, %arg5: memref<22x128xbf16, #tpu.memory_space<vmem>>) attributes {dimension_semantics = [#tpu.dimension_semantics<parallel>], iteration_bounds = array<i64: 1>, scalar_prefetch = 0 : i64, scratch_operands = 1 : i64, tpu.core_type = #tpu.core_type<tc>, window_params = [{transform_indices = @transform_0, window_bounds = array<i64: 8, 16, 32>}, {pipeline_mode = #tpu.pipeline_mode<synchronous>, transform_indices = @transform_1, window_bounds = array<i64: 896, 128>}, {pipeline_mode = #tpu.pipeline_mode<synchronous>, transform_indices = @transform_2, window_bounds = array<i64: 1, 128>}, {transform_indices = @transform_3, window_bounds = array<i64: 16, 8, 128>}]} {
    %cst = arith.constant 0.000000e+00 : bf16
    %0 = vector.broadcast %cst : bf16 to vector<22x128xbf16>
    %c0 = arith.constant 0 : index
    %c0_0 = arith.constant 0 : index
    %1 = vector.load %arg5[%c0, %c0_0] : memref<22x128xbf16, #tpu.memory_space<vmem>>, vector<22x128xbf16>
    tpu.vector_store %arg5[%c0, %c0_0], %0 {strides = array<i32>} : memref<22x128xbf16, #tpu.memory_space<vmem>>, vector<22x128xbf16>,
    %c0_1 = arith.constant 0 : index
    %c0_2 = arith.constant 0 : index
    %2 = vector.load %arg3[%c0_1, %c0_2] : memref<1x128xf32, #tpu.memory_space<vmem>>, vector<1x128xf32>
    %c0_3 = arith.constant 0 : index
    %c0_4 = arith.constant 0 : index
    %c0_5 = arith.constant 0 : index
    %3 = vector.load %arg1[%c0_3, %c0_4, %c0_5] : memref<8x16x32xbf16, #tpu.memory_space<vmem>>, vector<1x16x32xbf16>
    %4 = vector.shape_cast %3 : vector<1x16x32xbf16> to vector<16x32xbf16>
    %c3 = arith.constant 3 : index
    %c0_6 = arith.constant 0 : index
    %5 = vector.load %arg5[%c3, %c0_6] : memref<22x128xbf16, #tpu.memory_space<vmem>>, vector<16x32xbf16>
    tpu.vector_store %arg5[%c3, %c0_6], %4 {strides = array<i32>} : memref<22x128xbf16, #tpu.memory_space<vmem>>, vector<16x32xbf16>,
    %cst_7 = arith.constant 0.000000e+00 : f32
    %6 = vector.broadcast %cst_7 : f32 to vector<16x128xf32>
    %c0_8 = arith.constant 0 : index
    %c0_9 = arith.constant 0 : index
    %7 = vector.load %arg5[%c0_8, %c0_9] : memref<22x128xbf16, #tpu.memory_space<vmem>>, vector<16x128xbf16>
    %c0_10 = arith.constant 0 : index
    %c0_11 = arith.constant 0 : index
    %8 = vector.load %arg2[%c0_10, %c0_11] : memref<896x128xbf16, #tpu.memory_space<vmem>>, vector<128x128xbf16>
    %cst_12 = arith.constant dense<0.000000e+00> : vector<16x128xf32>
    %9 = tpu.matmul %7, %8, %cst_12 {dimension_numbers = #tpu.dot_dimension_numbers<[1], [0], [0], [1], [0, 0, 1, 1], [], []>} : vector<16x128xbf16>, vector<128x128xbf16>, vector<16x128xf32> -> vector<16x128xf32>
    %10 = arith.addf %6, %9 : vector<16x128xf32>
    %c1 = arith.constant 1 : index
    %c0_13 = arith.constant 0 : index
    %11 = vector.load %arg5[%c1, %c0_13] : memref<22x128xbf16, #tpu.memory_space<vmem>>, vector<16x128xbf16>
    %c128 = arith.constant 128 : index
    %c0_14 = arith.constant 0 : index
    %12 = vector.load %arg2[%c128, %c0_14] : memref<896x128xbf16, #tpu.memory_space<vmem>>, vector<128x128xbf16>
    %cst_15 = arith.constant dense<0.000000e+00> : vector<16x128xf32>
    %13 = tpu.matmul %11, %12, %cst_15 {dimension_numbers = #tpu.dot_dimension_numbers<[1], [0], [0], [1], [0, 0, 1, 1], [], []>} : vector<16x128xbf16>, vector<128x128xbf16>, vector<16x128xf32> -> vector<16x128xf32>
    %14 = arith.addf %10, %13 : vector<16x128xf32>
    %c2 = arith.constant 2 : index
    %c0_16 = arith.constant 0 : index
    %15 = vector.load %arg5[%c2, %c0_16] : memref<22x128xbf16, #tpu.memory_space<vmem>>, vector<16x128xbf16>
    %c256 = arith.constant 256 : index
    %c0_17 = arith.constant 0 : index
    %16 = vector.load %arg2[%c256, %c0_17] : memref<896x128xbf16, #tpu.memory_space<vmem>>, vector<128x128xbf16>
    %cst_18 = arith.constant dense<0.000000e+00> : vector<16x128xf32>
    %17 = tpu.matmul %15, %16, %cst_18 {dimension_numbers = #tpu.dot_dimension_numbers<[1], [0], [0], [1], [0, 0, 1, 1], [], []>} : vector<16x128xbf16>, vector<128x128xbf16>, vector<16x128xf32> -> vector<16x128xf32>
    %18 = arith.addf %14, %17 : vector<16x128xf32>
    %c3_19 = arith.constant 3 : index
    %c0_20 = arith.constant 0 : index
    %19 = vector.load %arg5[%c3_19, %c0_20] : memref<22x128xbf16, #tpu.memory_space<vmem>>, vector<16x128xbf16>
    %c384 = arith.constant 384 : index
    %c0_21 = arith.constant 0 : index
    %20 = vector.load %arg2[%c384, %c0_21] : memref<896x128xbf16, #tpu.memory_space<vmem>>, vector<128x128xbf16>
    %cst_22 = arith.constant dense<0.000000e+00> : vector<16x128xf32>
    %21 = tpu.matmul %19, %20, %cst_22 {dimension_numbers = #tpu.dot_dimension_numbers<[1], [0], [0], [1], [0, 0, 1, 1], [], []>} : vector<16x128xbf16>, vector<128x128xbf16>, vector<16x128xf32> -> vector<16x128xf32>
    %22 = arith.addf %18, %21 : vector<16x128xf32>
    %c4 = arith.constant 4 : index
    %c0_23 = arith.constant 0 : index
    %23 = vector.load %arg5[%c4, %c0_23] : memref<22x128xbf16, #tpu.memory_space<vmem>>, vector<16x128xbf16>
    %c512 = arith.constant 512 : index
    %c0_24 = arith.constant 0 : index
    %24 = vector.load %arg2[%c512, %c0_24] : memref<896x128xbf16, #tpu.memory_space<vmem>>, vector<128x128xbf16>
    %cst_25 = arith.constant dense<0.000000e+00> : vector<16x128xf32>
    %25 = tpu.matmul %23, %24, %cst_25 {dimension_numbers = #tpu.dot_dimension_numbers<[1], [0], [0], [1], [0, 0, 1, 1], [], []>} : vector<16x128xbf16>, vector<128x128xbf16>, vector<16x128xf32> -> vector<16x128xf32>
    %26 = arith.addf %22, %25 : vector<16x128xf32>
    %c5 = arith.constant 5 : index
    %c0_26 = arith.constant 0 : index
    %27 = vector.load %arg5[%c5, %c0_26] : memref<22x128xbf16, #tpu.memory_space<vmem>>, vector<16x128xbf16>
    %c640 = arith.constant 640 : index
    %c0_27 = arith.constant 0 : index
    %28 = vector.load %arg2[%c640, %c0_27] : memref<896x128xbf16, #tpu.memory_space<vmem>>, vector<128x128xbf16>
    %cst_28 = arith.constant dense<0.000000e+00> : vector<16x128xf32>
    %29 = tpu.matmul %27, %28, %cst_28 {dimension_numbers = #tpu.dot_dimension_numbers<[1], [0], [0], [1], [0, 0, 1, 1], [], []>} : vector<16x128xbf16>, vector<128x128xbf16>, vector<16x128xf32> -> vector<16x128xf32>
    %30 = arith.addf %26, %29 : vector<16x128xf32>
    %c6 = arith.constant 6 : index
    %c0_29 = arith.constant 0 : index
    %31 = vector.load %arg5[%c6, %c0_29] : memref<22x128xbf16, #tpu.memory_space<vmem>>, vector<16x128xbf16>
    %c768 = arith.constant 768 : index
    %c0_30 = arith.constant 0 : index
    %32 = vector.load %arg2[%c768, %c0_30] : memref<896x128xbf16, #tpu.memory_space<vmem>>, vector<128x128xbf16>
    %cst_31 = arith.constant dense<0.000000e+00> : vector<16x128xf32>
    %33 = tpu.matmul %31, %32, %cst_31 {dimension_numbers = #tpu.dot_dimension_numbers<[1], [0], [0], [1], [0, 0, 1, 1], [], []>} : vector<16x128xbf16>, vector<128x128xbf16>, vector<16x128xf32> -> vector<16x128xf32>
    %34 = arith.addf %30, %33 : vector<16x128xf32>
    %35 = vector.broadcast %2 : vector<1x128xf32> to vector<16x128xf32>
    %36 = arith.addf %34, %35 : vector<16x128xf32>
    %cst_32 = arith.constant 0.000000e+00 : f32
    %37 = vector.broadcast %cst_32 : f32 to vector<16x128xf32>
    %38 = arith.maximumf %36, %37 : vector<16x128xf32>
    %39 = arith.truncf %38 : vector<16x128xf32> to vector<16x128xbf16>
    %40 = vector.shape_cast %39 : vector<16x128xbf16> to vector<16x1x128xbf16>
    %c0_33 = arith.constant 0 : index
    %c0_34 = arith.constant 0 : index
    %c0_35 = arith.constant 0 : index
    %41 = vector.load %arg4[%c0_33, %c0_34, %c0_35] : memref<16x8x128xbf16, #tpu.memory_space<vmem>>, vector<16x1x128xbf16>
    tpu.vector_store %arg4[%c0_33, %c0_34, %c0_35], %40 {strides = array<i32>} : memref<16x8x128xbf16, #tpu.memory_space<vmem>>, vector<16x1x128xbf16>,
    %c1_36 = arith.constant 1 : index
    %c0_37 = arith.constant 0 : index
    %c0_38 = arith.constant 0 : index
    %42 = vector.load %arg1[%c1_36, %c0_37, %c0_38] : memref<8x16x32xbf16, #tpu.memory_space<vmem>>, vector<1x16x32xbf16>
    %43 = vector.shape_cast %42 : vector<1x16x32xbf16> to vector<16x32xbf16>
    %c3_39 = arith.constant 3 : index
    %c0_40 = arith.constant 0 : index
    %44 = vector.load %arg5[%c3_39, %c0_40] : memref<22x128xbf16, #tpu.memory_space<vmem>>, vector<16x32xbf16>
    tpu.vector_store %arg5[%c3_39, %c0_40], %43 {strides = array<i32>} : memref<22x128xbf16, #tpu.memory_space<vmem>>, vector<16x32xbf16>,
    %cst_41 = arith.constant 0.000000e+00 : f32
    %45 = vector.broadcast %cst_41 : f32 to vector<16x128xf32>
    %c0_42 = arith.constant 0 : index
    %c0_43 = arith.constant 0 : index
    %46 = vector.load %arg5[%c0_42, %c0_43] : memref<22x128xbf16, #tpu.memory_space<vmem>>, vector<16x128xbf16>
    %c0_44 = arith.constant 0 : index
    %c0_45 = arith.constant 0 : index
    %47 = vector.load %arg2[%c0_44, %c0_45] : memref<896x128xbf16, #tpu.memory_space<vmem>>, vector<128x128xbf16>
    %cst_46 = arith.constant dense<0.000000e+00> : vector<16x128xf32>
    %48 = tpu.matmul %46, %47, %cst_46 {dimension_numbers = #tpu.dot_dimension_numbers<[1], [0], [0], [1], [0, 0, 1, 1], [], []>} : vector<16x128xbf16>, vector<128x128xbf16>, vector<16x128xf32> -> vector<16x128xf32>
    %49 = arith.addf %45, %48 : vector<16x128xf32>
    %c1_47 = arith.constant 1 : index
    %c0_48 = arith.constant 0 : index
    %50 = vector.load %arg5[%c1_47, %c0_48] : memref<22x128xbf16, #tpu.memory_space<vmem>>, vector<16x128xbf16>
    %c128_49 = arith.constant 128 : index
    %c0_50 = arith.constant 0 : index
    %51 = vector.load %arg2[%c128_49, %c0_50] : memref<896x128xbf16, #tpu.memory_space<vmem>>, vector<128x128xbf16>
    %cst_51 = arith.constant dense<0.000000e+00> : vector<16x128xf32>
    %52 = tpu.matmul %50, %51, %cst_51 {dimension_numbers = #tpu.dot_dimension_numbers<[1], [0], [0], [1], [0, 0, 1, 1], [], []>} : vector<16x128xbf16>, vector<128x128xbf16>, vector<16x128xf32> -> vector<16x128xf32>
    %53 = arith.addf %49, %52 : vector<16x128xf32>
    %c2_52 = arith.constant 2 : index
    %c0_53 = arith.constant 0 : index
    %54 = vector.load %arg5[%c2_52, %c0_53] : memref<22x128xbf16, #tpu.memory_space<vmem>>, vector<16x128xbf16>
    %c256_54 = arith.constant 256 : index
    %c0_55 = arith.constant 0 : index
    %55 = vector.load %arg2[%c256_54, %c0_55] : memref<896x128xbf16, #tpu.memory_space<vmem>>, vector<128x128xbf16>
    %cst_56 = arith.constant dense<0.000000e+00> : vector<16x128xf32>
    %56 = tpu.matmul %54, %55, %cst_56 {dimension_numbers = #tpu.dot_dimension_numbers<[1], [0], [0], [1], [0, 0, 1, 1], [], []>} : vector<16x128xbf16>, vector<128x128xbf16>, vector<16x128xf32> -> vector<16x128xf32>
    %57 = arith.addf %53, %56 : vector<16x128xf32>
    %c3_57 = arith.constant 3 : index
    %c0_58 = arith.constant 0 : index
    %58 = vector.load %arg5[%c3_57, %c0_58] : memref<22x128xbf16, #tpu.memory_space<vmem>>, vector<16x128xbf16>
    %c384_59 = arith.constant 384 : index
    %c0_60 = arith.constant 0 : index
    %59 = vector.load %arg2[%c384_59, %c0_60] : memref<896x128xbf16, #tpu.memory_space<vmem>>, vector<128x128xbf16>
    %cst_61 = arith.constant dense<0.000000e+00> : vector<16x128xf32>
    %60 = tpu.matmul %58, %59, %cst_61 {dimension_numbers = #tpu.dot_dimension_numbers<[1], [0], [0], [1], [0, 0, 1, 1], [], []>} : vector<16x128xbf16>, vector<128x128xbf16>, vector<16x128xf32> -> vector<16x128xf32>
    %61 = arith.addf %57, %60 : vector<16x128xf32>
    %c4_62 = arith.constant 4 : index
    %c0_63 = arith.constant 0 : index
    %62 = vector.load %arg5[%c4_62, %c0_63] : memref<22x128xbf16, #tpu.memory_space<vmem>>, vector<16x128xbf16>
    %c512_64 = arith.constant 512 : index
    %c0_65 = arith.constant 0 : index
    %63 = vector.load %arg2[%c512_64, %c0_65] : memref<896x128xbf16, #tpu.memory_space<vmem>>, vector<128x128xbf16>
    %cst_66 = arith.constant dense<0.000000e+00> : vector<16x128xf32>
    %64 = tpu.matmul %62, %63, %cst_66 {dimension_numbers = #tpu.dot_dimension_numbers<[1], [0], [0], [1], [0, 0, 1, 1], [], []>} : vector<16x128xbf16>, vector<128x128xbf16>, vector<16x128xf32> -> vector<16x128xf32>
    %65 = arith.addf %61, %64 : vector<16x128xf32>
    %c5_67 = arith.constant 5 : index
    %c0_68 = arith.constant 0 : index
    %66 = vector.load %arg5[%c5_67, %c0_68] : memref<22x128xbf16, #tpu.memory_space<vmem>>, vector<16x128xbf16>
    %c640_69 = arith.constant 640 : index
    %c0_70 = arith.constant 0 : index
    %67 = vector.load %arg2[%c640_69, %c0_70] : memref<896x128xbf16, #tpu.memory_space<vmem>>, vector<128x128xbf16>
    %cst_71 = arith.constant dense<0.000000e+00> : vector<16x128xf32>
    %68 = tpu.matmul %66, %67, %cst_71 {dimension_numbers = #tpu.dot_dimension_numbers<[1], [0], [0], [1], [0, 0, 1, 1], [], []>} : vector<16x128xbf16>, vector<128x128xbf16>, vector<16x128xf32> -> vector<16x128xf32>
    %69 = arith.addf %65, %68 : vector<16x128xf32>
    %c6_72 = arith.constant 6 : index
    %c0_73 = arith.constant 0 : index
    %70 = vector.load %arg5[%c6_72, %c0_73] : memref<22x128xbf16, #tpu.memory_space<vmem>>, vector<16x128xbf16>
    %c768_74 = arith.constant 768 : index
    %c0_75 = arith.constant 0 : index
    %71 = vector.load %arg2[%c768_74, %c0_75] : memref<896x128xbf16, #tpu.memory_space<vmem>>, vector<128x128xbf16>
    %cst_76 = arith.constant dense<0.000000e+00> : vector<16x128xf32>
    %72 = tpu.matmul %70, %71, %cst_76 {dimension_numbers = #tpu.dot_dimension_numbers<[1], [0], [0], [1], [0, 0, 1, 1], [], []>} : vector<16x128xbf16>, vector<128x128xbf16>, vector<16x128xf32> -> vector<16x128xf32>
    %73 = arith.addf %69, %72 : vector<16x128xf32>
    %74 = vector.broadcast %2 : vector<1x128xf32> to vector<16x128xf32>
    %75 = arith.addf %73, %74 : vector<16x128xf32>
    %cst_77 = arith.constant 0.000000e+00 : f32
    %76 = vector.broadcast %cst_77 : f32 to vector<16x128xf32>
    %77 = arith.maximumf %75, %76 : vector<16x128xf32>
    %78 = arith.truncf %77 : vector<16x128xf32> to vector<16x128xbf16>
    %79 = vector.shape_cast %78 : vector<16x128xbf16> to vector<16x1x128xbf16>
    %c0_78 = arith.constant 0 : index
    %c1_79 = arith.constant 1 : index
    %c0_80 = arith.constant 0 : index
    %80 = vector.load %arg4[%c0_78, %c1_79, %c0_80] : memref<16x8x128xbf16, #tpu.memory_space<vmem>>, vector<16x1x128xbf16>
    tpu.vector_store %arg4[%c0_78, %c1_79, %c0_80], %79 {strides = array<i32>} : memref<16x8x128xbf16, #tpu.memory_space<vmem>>, vector<16x1x128xbf16>,
    %c2_81 = arith.constant 2 : index
    %c0_82 = arith.constant 0 : index
    %c0_83 = arith.constant 0 : index
    %81 = vector.load %arg1[%c2_81, %c0_82, %c0_83] : memref<8x16x32xbf16, #tpu.memory_space<vmem>>, vector<1x16x32xbf16>
    %82 = vector.shape_cast %81 : vector<1x16x32xbf16> to vector<16x32xbf16>
    %c3_84 = arith.constant 3 : index
    %c0_85 = arith.constant 0 : index
    %83 = vector.load %arg5[%c3_84, %c0_85] : memref<22x128xbf16, #tpu.memory_space<vmem>>, vector<16x32xbf16>
    tpu.vector_store %arg5[%c3_84, %c0_85], %82 {strides = array<i32>} : memref<22x128xbf16, #tpu.memory_space<vmem>>, vector<16x32xbf16>,
    %cst_86 = arith.constant 0.000000e+00 : f32
    %84 = vector.broadcast %cst_86 : f32 to vector<16x128xf32>
    %c0_87 = arith.constant 0 : index
    %c0_88 = arith.constant 0 : index
    %85 = vector.load %arg5[%c0_87, %c0_88] : memref<22x128xbf16, #tpu.memory_space<vmem>>, vector<16x128xbf16>
    %c0_89 = arith.constant 0 : index
    %c0_90 = arith.constant 0 : index
    %86 = vector.load %arg2[%c0_89, %c0_90] : memref<896x128xbf16, #tpu.memory_space<vmem>>, vector<128x128xbf16>
    %cst_91 = arith.constant dense<0.000000e+00> : vector<16x128xf32>
    %87 = tpu.matmul %85, %86, %cst_91 {dimension_numbers = #tpu.dot_dimension_numbers<[1], [0], [0], [1], [0, 0, 1, 1], [], []>} : vector<16x128xbf16>, vector<128x128xbf16>, vector<16x128xf32> -> vector<16x128xf32>
    %88 = arith.addf %84, %87 : vector<16x128xf32>
    %c1_92 = arith.constant 1 : index
    %c0_93 = arith.constant 0 : index
    %89 = vector.load %arg5[%c1_92, %c0_93] : memref<22x128xbf16, #tpu.memory_space<vmem>>, vector<16x128xbf16>
    %c128_94 = arith.constant 128 : index
    %c0_95 = arith.constant 0 : index
    %90 = vector.load %arg2[%c128_94, %c0_95] : memref<896x128xbf16, #tpu.memory_space<vmem>>, vector<128x128xbf16>
    %cst_96 = arith.constant dense<0.000000e+00> : vector<16x128xf32>
    %91 = tpu.matmul %89, %90, %cst_96 {dimension_numbers = #tpu.dot_dimension_numbers<[1], [0], [0], [1], [0, 0, 1, 1], [], []>} : vector<16x128xbf16>, vector<128x128xbf16>, vector<16x128xf32> -> vector<16x128xf32>
    %92 = arith.addf %88, %91 : vector<16x128xf32>
    %c2_97 = arith.constant 2 : index
    %c0_98 = arith.constant 0 : index
    %93 = vector.load %arg5[%c2_97, %c0_98] : memref<22x128xbf16, #tpu.memory_space<vmem>>, vector<16x128xbf16>
    %c256_99 = arith.constant 256 : index
    %c0_100 = arith.constant 0 : index
    %94 = vector.load %arg2[%c256_99, %c0_100] : memref<896x128xbf16, #tpu.memory_space<vmem>>, vector<128x128xbf16>
    %cst_101 = arith.constant dense<0.000000e+00> : vector<16x128xf32>
    %95 = tpu.matmul %93, %94, %cst_101 {dimension_numbers = #tpu.dot_dimension_numbers<[1], [0], [0], [1], [0, 0, 1, 1], [], []>} : vector<16x128xbf16>, vector<128x128xbf16>, vector<16x128xf32> -> vector<16x128xf32>
    %96 = arith.addf %92, %95 : vector<16x128xf32>
    %c3_102 = arith.constant 3 : index
    %c0_103 = arith.constant 0 : index
    %97 = vector.load %arg5[%c3_102, %c0_103] : memref<22x128xbf16, #tpu.memory_space<vmem>>, vector<16x128xbf16>
    %c384_104 = arith.constant 384 : index
    %c0_105 = arith.constant 0 : index
    %98 = vector.load %arg2[%c384_104, %c0_105] : memref<896x128xbf16, #tpu.memory_space<vmem>>, vector<128x128xbf16>
    %cst_106 = arith.constant dense<0.000000e+00> : vector<16x128xf32>
    %99 = tpu.matmul %97, %98, %cst_106 {dimension_numbers = #tpu.dot_dimension_numbers<[1], [0], [0], [1], [0, 0, 1, 1], [], []>} : vector<16x128xbf16>, vector<128x128xbf16>, vector<16x128xf32> -> vector<16x128xf32>
    %100 = arith.addf %96, %99 : vector<16x128xf32>
    %c4_107 = arith.constant 4 : index
    %c0_108 = arith.constant 0 : index
    %101 = vector.load %arg5[%c4_107, %c0_108] : memref<22x128xbf16, #tpu.memory_space<vmem>>, vector<16x128xbf16>
    %c512_109 = arith.constant 512 : index
    %c0_110 = arith.constant 0 : index
    %102 = vector.load %arg2[%c512_109, %c0_110] : memref<896x128xbf16, #tpu.memory_space<vmem>>, vector<128x128xbf16>
    %cst_111 = arith.constant dense<0.000000e+00> : vector<16x128xf32>
    %103 = tpu.matmul %101, %102, %cst_111 {dimension_numbers = #tpu.dot_dimension_numbers<[1], [0], [0], [1], [0, 0, 1, 1], [], []>} : vector<16x128xbf16>, vector<128x128xbf16>, vector<16x128xf32> -> vector<16x128xf32>
    %104 = arith.addf %100, %103 : vector<16x128xf32>
    %c5_112 = arith.constant 5 : index
    %c0_113 = arith.constant 0 : index
    %105 = vector.load %arg5[%c5_112, %c0_113] : memref<22x128xbf16, #tpu.memory_space<vmem>>, vector<16x128xbf16>
    %c640_114 = arith.constant 640 : index
    %c0_115 = arith.constant 0 : index
    %106 = vector.load %arg2[%c640_114, %c0_115] : memref<896x128xbf16, #tpu.memory_space<vmem>>, vector<128x128xbf16>
    %cst_116 = arith.constant dense<0.000000e+00> : vector<16x128xf32>
    %107 = tpu.matmul %105, %106, %cst_116 {dimension_numbers = #tpu.dot_dimension_numbers<[1], [0], [0], [1], [0, 0, 1, 1], [], []>} : vector<16x128xbf16>, vector<128x128xbf16>, vector<16x128xf32> -> vector<16x128xf32>
    %108 = arith.addf %104, %107 : vector<16x128xf32>
    %c6_117 = arith.constant 6 : index
    %c0_118 = arith.constant 0 : index
    %109 = vector.load %arg5[%c6_117, %c0_118] : memref<22x128xbf16, #tpu.memory_space<vmem>>, vector<16x128xbf16>
    %c768_119 = arith.constant 768 : index
    %c0_120 = arith.constant 0 : index
    %110 = vector.load %arg2[%c768_119, %c0_120] : memref<896x128xbf16, #tpu.memory_space<vmem>>, vector<128x128xbf16>
    %cst_121 = arith.constant dense<0.000000e+00> : vector<16x128xf32>
    %111 = tpu.matmul %109, %110, %cst_121 {dimension_numbers = #tpu.dot_dimension_numbers<[1], [0], [0], [1], [0, 0, 1, 1], [], []>} : vector<16x128xbf16>, vector<128x128xbf16>, vector<16x128xf32> -> vector<16x128xf32>
    %112 = arith.addf %108, %111 : vector<16x128xf32>
    %113 = vector.broadcast %2 : vector<1x128xf32> to vector<16x128xf32>
    %114 = arith.addf %112, %113 : vector<16x128xf32>
    %cst_122 = arith.constant 0.000000e+00 : f32
    %115 = vector.broadcast %cst_122 : f32 to vector<16x128xf32>
    %116 = arith.maximumf %114, %115 : vector<16x128xf32>
    %117 = arith.truncf %116 : vector<16x128xf32> to vector<16x128xbf16>
    %118 = vector.shape_cast %117 : vector<16x128xbf16> to vector<16x1x128xbf16>
    %c0_123 = arith.constant 0 : index
    %c2_124 = arith.constant 2 : index
    %c0_125 = arith.constant 0 : index
    %119 = vector.load %arg4[%c0_123, %c2_124, %c0_125] : memref<16x8x128xbf16, #tpu.memory_space<vmem>>, vector<16x1x128xbf16>
    tpu.vector_store %arg4[%c0_123, %c2_124, %c0_125], %118 {strides = array<i32>} : memref<16x8x128xbf16, #tpu.memory_space<vmem>>, vector<16x1x128xbf16>,
    %c3_126 = arith.constant 3 : index
    %c0_127 = arith.constant 0 : index
    %c0_128 = arith.constant 0 : index
    %120 = vector.load %arg1[%c3_126, %c0_127, %c0_128] : memref<8x16x32xbf16, #tpu.memory_space<vmem>>, vector<1x16x32xbf16>
    %121 = vector.shape_cast %120 : vector<1x16x32xbf16> to vector<16x32xbf16>
    %c3_129 = arith.constant 3 : index
    %c0_130 = arith.constant 0 : index
    %122 = vector.load %arg5[%c3_129, %c0_130] : memref<22x128xbf16, #tpu.memory_space<vmem>>, vector<16x32xbf16>
    tpu.vector_store %arg5[%c3_129, %c0_130], %121 {strides = array<i32>} : memref<22x128xbf16, #tpu.memory_space<vmem>>, vector<16x32xbf16>,
    %cst_131 = arith.constant 0.000000e+00 : f32
    %123 = vector.broadcast %cst_131 : f32 to vector<16x128xf32>
    %c0_132 = arith.constant 0 : index
    %c0_133 = arith.constant 0 : index
    %124 = vector.load %arg5[%c0_132, %c0_133] : memref<22x128xbf16, #tpu.memory_space<vmem>>, vector<16x128xbf16>
    %c0_134 = arith.constant 0 : index
    %c0_135 = arith.constant 0 : index
    %125 = vector.load %arg2[%c0_134, %c0_135] : memref<896x128xbf16, #tpu.memory_space<vmem>>, vector<128x128xbf16>
    %cst_136 = arith.constant dense<0.000000e+00> : vector<16x128xf32>
    %126 = tpu.matmul %124, %125, %cst_136 {dimension_numbers = #tpu.dot_dimension_numbers<[1], [0], [0], [1], [0, 0, 1, 1], [], []>} : vector<16x128xbf16>, vector<128x128xbf16>, vector<16x128xf32> -> vector<16x128xf32>
    %127 = arith.addf %123, %126 : vector<16x128xf32>
    %c1_137 = arith.constant 1 : index
    %c0_138 = arith.constant 0 : index
    %128 = vector.load %arg5[%c1_137, %c0_138] : memref<22x128xbf16, #tpu.memory_space<vmem>>, vector<16x128xbf16>
    %c128_139 = arith.constant 128 : index
    %c0_140 = arith.constant 0 : index
    %129 = vector.load %arg2[%c128_139, %c0_140] : memref<896x128xbf16, #tpu.memory_space<vmem>>, vector<128x128xbf16>
    %cst_141 = arith.constant dense<0.000000e+00> : vector<16x128xf32>
    %130 = tpu.matmul %128, %129, %cst_141 {dimension_numbers = #tpu.dot_dimension_numbers<[1], [0], [0], [1], [0, 0, 1, 1], [], []>} : vector<16x128xbf16>, vector<128x128xbf16>, vector<16x128xf32> -> vector<16x128xf32>
    %131 = arith.addf %127, %130 : vector<16x128xf32>
    %c2_142 = arith.constant 2 : index
    %c0_143 = arith.constant 0 : index
    %132 = vector.load %arg5[%c2_142, %c0_143] : memref<22x128xbf16, #tpu.memory_space<vmem>>, vector<16x128xbf16>
    %c256_144 = arith.constant 256 : index
    %c0_145 = arith.constant 0 : index
    %133 = vector.load %arg2[%c256_144, %c0_145] : memref<896x128xbf16, #tpu.memory_space<vmem>>, vector<128x128xbf16>
    %cst_146 = arith.constant dense<0.000000e+00> : vector<16x128xf32>
    %134 = tpu.matmul %132, %133, %cst_146 {dimension_numbers = #tpu.dot_dimension_numbers<[1], [0], [0], [1], [0, 0, 1, 1], [], []>} : vector<16x128xbf16>, vector<128x128xbf16>, vector<16x128xf32> -> vector<16x128xf32>
    %135 = arith.addf %131, %134 : vector<16x128xf32>
    %c3_147 = arith.constant 3 : index
    %c0_148 = arith.constant 0 : index
    %136 = vector.load %arg5[%c3_147, %c0_148] : memref<22x128xbf16, #tpu.memory_space<vmem>>, vector<16x128xbf16>
    %c384_149 = arith.constant 384 : index
    %c0_150 = arith.constant 0 : index
    %137 = vector.load %arg2[%c384_149, %c0_150] : memref<896x128xbf16, #tpu.memory_space<vmem>>, vector<128x128xbf16>
    %cst_151 = arith.constant dense<0.000000e+00> : vector<16x128xf32>
    %138 = tpu.matmul %136, %137, %cst_151 {dimension_numbers = #tpu.dot_dimension_numbers<[1], [0], [0], [1], [0, 0, 1, 1], [], []>} : vector<16x128xbf16>, vector<128x128xbf16>, vector<16x128xf32> -> vector<16x128xf32>
    %139 = arith.addf %135, %138 : vector<16x128xf32>
    %c4_152 = arith.constant 4 : index
    %c0_153 = arith.constant 0 : index
    %140 = vector.load %arg5[%c4_152, %c0_153] : memref<22x128xbf16, #tpu.memory_space<vmem>>, vector<16x128xbf16>
    %c512_154 = arith.constant 512 : index
    %c0_155 = arith.constant 0 : index
    %141 = vector.load %arg2[%c512_154, %c0_155] : memref<896x128xbf16, #tpu.memory_space<vmem>>, vector<128x128xbf16>
    %cst_156 = arith.constant dense<0.000000e+00> : vector<16x128xf32>
    %142 = tpu.matmul %140, %141, %cst_156 {dimension_numbers = #tpu.dot_dimension_numbers<[1], [0], [0], [1], [0, 0, 1, 1], [], []>} : vector<16x128xbf16>, vector<128x128xbf16>, vector<16x128xf32> -> vector<16x128xf32>
    %143 = arith.addf %139, %142 : vector<16x128xf32>
    %c5_157 = arith.constant 5 : index
    %c0_158 = arith.constant 0 : index
    %144 = vector.load %arg5[%c5_157, %c0_158] : memref<22x128xbf16, #tpu.memory_space<vmem>>, vector<16x128xbf16>
    %c640_159 = arith.constant 640 : index
    %c0_160 = arith.constant 0 : index
    %145 = vector.load %arg2[%c640_159, %c0_160] : memref<896x128xbf16, #tpu.memory_space<vmem>>, vector<128x128xbf16>
    %cst_161 = arith.constant dense<0.000000e+00> : vector<16x128xf32>
    %146 = tpu.matmul %144, %145, %cst_161 {dimension_numbers = #tpu.dot_dimension_numbers<[1], [0], [0], [1], [0, 0, 1, 1], [], []>} : vector<16x128xbf16>, vector<128x128xbf16>, vector<16x128xf32> -> vector<16x128xf32>
    %147 = arith.addf %143, %146 : vector<16x128xf32>
    %c6_162 = arith.constant 6 : index
    %c0_163 = arith.constant 0 : index
    %148 = vector.load %arg5[%c6_162, %c0_163] : memref<22x128xbf16, #tpu.memory_space<vmem>>, vector<16x128xbf16>
    %c768_164 = arith.constant 768 : index
    %c0_165 = arith.constant 0 : index
    %149 = vector.load %arg2[%c768_164, %c0_165] : memref<896x128xbf16, #tpu.memory_space<vmem>>, vector<128x128xbf16>
    %cst_166 = arith.constant dense<0.000000e+00> : vector<16x128xf32>
    %150 = tpu.matmul %148, %149, %cst_166 {dimension_numbers = #tpu.dot_dimension_numbers<[1], [0], [0], [1], [0, 0, 1, 1], [], []>} : vector<16x128xbf16>, vector<128x128xbf16>, vector<16x128xf32> -> vector<16x128xf32>
    %151 = arith.addf %147, %150 : vector<16x128xf32>
    %152 = vector.broadcast %2 : vector<1x128xf32> to vector<16x128xf32>
    %153 = arith.addf %151, %152 : vector<16x128xf32>
    %cst_167 = arith.constant 0.000000e+00 : f32
    %154 = vector.broadcast %cst_167 : f32 to vector<16x128xf32>
    %155 = arith.maximumf %153, %154 : vector<16x128xf32>
    %156 = arith.truncf %155 : vector<16x128xf32> to vector<16x128xbf16>
    %157 = vector.shape_cast %156 : vector<16x128xbf16> to vector<16x1x128xbf16>
    %c0_168 = arith.constant 0 : index
    %c3_169 = arith.constant 3 : index
    %c0_170 = arith.constant 0 : index
    %158 = vector.load %arg4[%c0_168, %c3_169, %c0_170] : memref<16x8x128xbf16, #tpu.memory_space<vmem>>, vector<16x1x128xbf16>
    tpu.vector_store %arg4[%c0_168, %c3_169, %c0_170], %157 {strides = array<i32>} : memref<16x8x128xbf16, #tpu.memory_space<vmem>>, vector<16x1x128xbf16>,
    %c4_171 = arith.constant 4 : index
    %c0_172 = arith.constant 0 : index
    %c0_173 = arith.constant 0 : index
    %159 = vector.load %arg1[%c4_171, %c0_172, %c0_173] : memref<8x16x32xbf16, #tpu.memory_space<vmem>>, vector<1x16x32xbf16>
    %160 = vector.shape_cast %159 : vector<1x16x32xbf16> to vector<16x32xbf16>
    %c3_174 = arith.constant 3 : index
    %c0_175 = arith.constant 0 : index
    %161 = vector.load %arg5[%c3_174, %c0_175] : memref<22x128xbf16, #tpu.memory_space<vmem>>, vector<16x32xbf16>
    tpu.vector_store %arg5[%c3_174, %c0_175], %160 {strides = array<i32>} : memref<22x128xbf16, #tpu.memory_space<vmem>>, vector<16x32xbf16>,
    %cst_176 = arith.constant 0.000000e+00 : f32
    %162 = vector.broadcast %cst_176 : f32 to vector<16x128xf32>
    %c0_177 = arith.constant 0 : index
    %c0_178 = arith.constant 0 : index
    %163 = vector.load %arg5[%c0_177, %c0_178] : memref<22x128xbf16, #tpu.memory_space<vmem>>, vector<16x128xbf16>
    %c0_179 = arith.constant 0 : index
    %c0_180 = arith.constant 0 : index
    %164 = vector.load %arg2[%c0_179, %c0_180] : memref<896x128xbf16, #tpu.memory_space<vmem>>, vector<128x128xbf16>
    %cst_181 = arith.constant dense<0.000000e+00> : vector<16x128xf32>
    %165 = tpu.matmul %163, %164, %cst_181 {dimension_numbers = #tpu.dot_dimension_numbers<[1], [0], [0], [1], [0, 0, 1, 1], [], []>} : vector<16x128xbf16>, vector<128x128xbf16>, vector<16x128xf32> -> vector<16x128xf32>
    %166 = arith.addf %162, %165 : vector<16x128xf32>
    %c1_182 = arith.constant 1 : index
    %c0_183 = arith.constant 0 : index
    %167 = vector.load %arg5[%c1_182, %c0_183] : memref<22x128xbf16, #tpu.memory_space<vmem>>, vector<16x128xbf16>
    %c128_184 = arith.constant 128 : index
    %c0_185 = arith.constant 0 : index
    %168 = vector.load %arg2[%c128_184, %c0_185] : memref<896x128xbf16, #tpu.memory_space<vmem>>, vector<128x128xbf16>
    %cst_186 = arith.constant dense<0.000000e+00> : vector<16x128xf32>
    %169 = tpu.matmul %167, %168, %cst_186 {dimension_numbers = #tpu.dot_dimension_numbers<[1], [0], [0], [1], [0, 0, 1, 1], [], []>} : vector<16x128xbf16>, vector<128x128xbf16>, vector<16x128xf32> -> vector<16x128xf32>
    %170 = arith.addf %166, %169 : vector<16x128xf32>
    %c2_187 = arith.constant 2 : index
    %c0_188 = arith.constant 0 : index
    %171 = vector.load %arg5[%c2_187, %c0_188] : memref<22x128xbf16, #tpu.memory_space<vmem>>, vector<16x128xbf16>
    %c256_189 = arith.constant 256 : index
    %c0_190 = arith.constant 0 : index
    %172 = vector.load %arg2[%c256_189, %c0_190] : memref<896x128xbf16, #tpu.memory_space<vmem>>, vector<128x128xbf16>
    %cst_191 = arith.constant dense<0.000000e+00> : vector<16x128xf32>
    %173 = tpu.matmul %171, %172, %cst_191 {dimension_numbers = #tpu.dot_dimension_numbers<[1], [0], [0], [1], [0, 0, 1, 1], [], []>} : vector<16x128xbf16>, vector<128x128xbf16>, vector<16x128xf32> -> vector<16x128xf32>
    %174 = arith.addf %170, %173 : vector<16x128xf32>
    %c3_192 = arith.constant 3 : index
    %c0_193 = arith.constant 0 : index
    %175 = vector.load %arg5[%c3_192, %c0_193] : memref<22x128xbf16, #tpu.memory_space<vmem>>, vector<16x128xbf16>
    %c384_194 = arith.constant 384 : index
    %c0_195 = arith.constant 0 : index
    %176 = vector.load %arg2[%c384_194, %c0_195] : memref<896x128xbf16, #tpu.memory_space<vmem>>, vector<128x128xbf16>
    %cst_196 = arith.constant dense<0.000000e+00> : vector<16x128xf32>
    %177 = tpu.matmul %175, %176, %cst_196 {dimension_numbers = #tpu.dot_dimension_numbers<[1], [0], [0], [1], [0, 0, 1, 1], [], []>} : vector<16x128xbf16>, vector<128x128xbf16>, vector<16x128xf32> -> vector<16x128xf32>
    %178 = arith.addf %174, %177 : vector<16x128xf32>
    %c4_197 = arith.constant 4 : index
    %c0_198 = arith.constant 0 : index
    %179 = vector.load %arg5[%c4_197, %c0_198] : memref<22x128xbf16, #tpu.memory_space<vmem>>, vector<16x128xbf16>
    %c512_199 = arith.constant 512 : index
    %c0_200 = arith.constant 0 : index
    %180 = vector.load %arg2[%c512_199, %c0_200] : memref<896x128xbf16, #tpu.memory_space<vmem>>, vector<128x128xbf16>
    %cst_201 = arith.constant dense<0.000000e+00> : vector<16x128xf32>
    %181 = tpu.matmul %179, %180, %cst_201 {dimension_numbers = #tpu.dot_dimension_numbers<[1], [0], [0], [1], [0, 0, 1, 1], [], []>} : vector<16x128xbf16>, vector<128x128xbf16>, vector<16x128xf32> -> vector<16x128xf32>
    %182 = arith.addf %178, %181 : vector<16x128xf32>
    %c5_202 = arith.constant 5 : index
    %c0_203 = arith.constant 0 : index
    %183 = vector.load %arg5[%c5_202, %c0_203] : memref<22x128xbf16, #tpu.memory_space<vmem>>, vector<16x128xbf16>
    %c640_204 = arith.constant 640 : index
    %c0_205 = arith.constant 0 : index
    %184 = vector.load %arg2[%c640_204, %c0_205] : memref<896x128xbf16, #tpu.memory_space<vmem>>, vector<128x128xbf16>
    %cst_206 = arith.constant dense<0.000000e+00> : vector<16x128xf32>
    %185 = tpu.matmul %183, %184, %cst_206 {dimension_numbers = #tpu.dot_dimension_numbers<[1], [0], [0], [1], [0, 0, 1, 1], [], []>} : vector<16x128xbf16>, vector<128x128xbf16>, vector<16x128xf32> -> vector<16x128xf32>
    %186 = arith.addf %182, %185 : vector<16x128xf32>
    %c6_207 = arith.constant 6 : index
    %c0_208 = arith.constant 0 : index
    %187 = vector.load %arg5[%c6_207, %c0_208] : memref<22x128xbf16, #tpu.memory_space<vmem>>, vector<16x128xbf16>
    %c768_209 = arith.constant 768 : index
    %c0_210 = arith.constant 0 : index
    %188 = vector.load %arg2[%c768_209, %c0_210] : memref<896x128xbf16, #tpu.memory_space<vmem>>, vector<128x128xbf16>
    %cst_211 = arith.constant dense<0.000000e+00> : vector<16x128xf32>
    %189 = tpu.matmul %187, %188, %cst_211 {dimension_numbers = #tpu.dot_dimension_numbers<[1], [0], [0], [1], [0, 0, 1, 1], [], []>} : vector<16x128xbf16>, vector<128x128xbf16>, vector<16x128xf32> -> vector<16x128xf32>
    %190 = arith.addf %186, %189 : vector<16x128xf32>
    %191 = vector.broadcast %2 : vector<1x128xf32> to vector<16x128xf32>
    %192 = arith.addf %190, %191 : vector<16x128xf32>
    %cst_212 = arith.constant 0.000000e+00 : f32
    %193 = vector.broadcast %cst_212 : f32 to vector<16x128xf32>
    %194 = arith.maximumf %192, %193 : vector<16x128xf32>
    %195 = arith.truncf %194 : vector<16x128xf32> to vector<16x128xbf16>
    %196 = vector.shape_cast %195 : vector<16x128xbf16> to vector<16x1x128xbf16>
    %c0_213 = arith.constant 0 : index
    %c4_214 = arith.constant 4 : index
    %c0_215 = arith.constant 0 : index
    %197 = vector.load %arg4[%c0_213, %c4_214, %c0_215] : memref<16x8x128xbf16, #tpu.memory_space<vmem>>, vector<16x1x128xbf16>
    tpu.vector_store %arg4[%c0_213, %c4_214, %c0_215], %196 {strides = array<i32>} : memref<16x8x128xbf16, #tpu.memory_space<vmem>>, vector<16x1x128xbf16>,
    %c5_216 = arith.constant 5 : index
    %c0_217 = arith.constant 0 : index
    %c0_218 = arith.constant 0 : index
    %198 = vector.load %arg1[%c5_216, %c0_217, %c0_218] : memref<8x16x32xbf16, #tpu.memory_space<vmem>>, vector<1x16x32xbf16>
    %199 = vector.shape_cast %198 : vector<1x16x32xbf16> to vector<16x32xbf16>
    %c3_219 = arith.constant 3 : index
    %c0_220 = arith.constant 0 : index
    %200 = vector.load %arg5[%c3_219, %c0_220] : memref<22x128xbf16, #tpu.memory_space<vmem>>, vector<16x32xbf16>
    tpu.vector_store %arg5[%c3_219, %c0_220], %199 {strides = array<i32>} : memref<22x128xbf16, #tpu.memory_space<vmem>>, vector<16x32xbf16>,
    %cst_221 = arith.constant 0.000000e+00 : f32
    %201 = vector.broadcast %cst_221 : f32 to vector<16x128xf32>
    %c0_222 = arith.constant 0 : index
    %c0_223 = arith.constant 0 : index
    %202 = vector.load %arg5[%c0_222, %c0_223] : memref<22x128xbf16, #tpu.memory_space<vmem>>, vector<16x128xbf16>
    %c0_224 = arith.constant 0 : index
    %c0_225 = arith.constant 0 : index
    %203 = vector.load %arg2[%c0_224, %c0_225] : memref<896x128xbf16, #tpu.memory_space<vmem>>, vector<128x128xbf16>
    %cst_226 = arith.constant dense<0.000000e+00> : vector<16x128xf32>
    %204 = tpu.matmul %202, %203, %cst_226 {dimension_numbers = #tpu.dot_dimension_numbers<[1], [0], [0], [1], [0, 0, 1, 1], [], []>} : vector<16x128xbf16>, vector<128x128xbf16>, vector<16x128xf32> -> vector<16x128xf32>
    %205 = arith.addf %201, %204 : vector<16x128xf32>
    %c1_227 = arith.constant 1 : index
    %c0_228 = arith.constant 0 : index
    %206 = vector.load %arg5[%c1_227, %c0_228] : memref<22x128xbf16, #tpu.memory_space<vmem>>, vector<16x128xbf16>
    %c128_229 = arith.constant 128 : index
    %c0_230 = arith.constant 0 : index
    %207 = vector.load %arg2[%c128_229, %c0_230] : memref<896x128xbf16, #tpu.memory_space<vmem>>, vector<128x128xbf16>
    %cst_231 = arith.constant dense<0.000000e+00> : vector<16x128xf32>
    %208 = tpu.matmul %206, %207, %cst_231 {dimension_numbers = #tpu.dot_dimension_numbers<[1], [0], [0], [1], [0, 0, 1, 1], [], []>} : vector<16x128xbf16>, vector<128x128xbf16>, vector<16x128xf32> -> vector<16x128xf32>
    %209 = arith.addf %205, %208 : vector<16x128xf32>
    %c2_232 = arith.constant 2 : index
    %c0_233 = arith.constant 0 : index
    %210 = vector.load %arg5[%c2_232, %c0_233] : memref<22x128xbf16, #tpu.memory_space<vmem>>, vector<16x128xbf16>
    %c256_234 = arith.constant 256 : index
    %c0_235 = arith.constant 0 : index
    %211 = vector.load %arg2[%c256_234, %c0_235] : memref<896x128xbf16, #tpu.memory_space<vmem>>, vector<128x128xbf16>
    %cst_236 = arith.constant dense<0.000000e+00> : vector<16x128xf32>
    %212 = tpu.matmul %210, %211, %cst_236 {dimension_numbers = #tpu.dot_dimension_numbers<[1], [0], [0], [1], [0, 0, 1, 1], [], []>} : vector<16x128xbf16>, vector<128x128xbf16>, vector<16x128xf32> -> vector<16x128xf32>
    %213 = arith.addf %209, %212 : vector<16x128xf32>
    %c3_237 = arith.constant 3 : index
    %c0_238 = arith.constant 0 : index
    %214 = vector.load %arg5[%c3_237, %c0_238] : memref<22x128xbf16, #tpu.memory_space<vmem>>, vector<16x128xbf16>
    %c384_239 = arith.constant 384 : index
    %c0_240 = arith.constant 0 : index
    %215 = vector.load %arg2[%c384_239, %c0_240] : memref<896x128xbf16, #tpu.memory_space<vmem>>, vector<128x128xbf16>
    %cst_241 = arith.constant dense<0.000000e+00> : vector<16x128xf32>
    %216 = tpu.matmul %214, %215, %cst_241 {dimension_numbers = #tpu.dot_dimension_numbers<[1], [0], [0], [1], [0, 0, 1, 1], [], []>} : vector<16x128xbf16>, vector<128x128xbf16>, vector<16x128xf32> -> vector<16x128xf32>
    %217 = arith.addf %213, %216 : vector<16x128xf32>
    %c4_242 = arith.constant 4 : index
    %c0_243 = arith.constant 0 : index
    %218 = vector.load %arg5[%c4_242, %c0_243] : memref<22x128xbf16, #tpu.memory_space<vmem>>, vector<16x128xbf16>
    %c512_244 = arith.constant 512 : index
    %c0_245 = arith.constant 0 : index
    %219 = vector.load %arg2[%c512_244, %c0_245] : memref<896x128xbf16, #tpu.memory_space<vmem>>, vector<128x128xbf16>
    %cst_246 = arith.constant dense<0.000000e+00> : vector<16x128xf32>
    %220 = tpu.matmul %218, %219, %cst_246 {dimension_numbers = #tpu.dot_dimension_numbers<[1], [0], [0], [1], [0, 0, 1, 1], [], []>} : vector<16x128xbf16>, vector<128x128xbf16>, vector<16x128xf32> -> vector<16x128xf32>
    %221 = arith.addf %217, %220 : vector<16x128xf32>
    %c5_247 = arith.constant 5 : index
    %c0_248 = arith.constant 0 : index
    %222 = vector.load %arg5[%c5_247, %c0_248] : memref<22x128xbf16, #tpu.memory_space<vmem>>, vector<16x128xbf16>
    %c640_249 = arith.constant 640 : index
    %c0_250 = arith.constant 0 : index
    %223 = vector.load %arg2[%c640_249, %c0_250] : memref<896x128xbf16, #tpu.memory_space<vmem>>, vector<128x128xbf16>
    %cst_251 = arith.constant dense<0.000000e+00> : vector<16x128xf32>
    %224 = tpu.matmul %222, %223, %cst_251 {dimension_numbers = #tpu.dot_dimension_numbers<[1], [0], [0], [1], [0, 0, 1, 1], [], []>} : vector<16x128xbf16>, vector<128x128xbf16>, vector<16x128xf32> -> vector<16x128xf32>
    %225 = arith.addf %221, %224 : vector<16x128xf32>
    %c6_252 = arith.constant 6 : index
    %c0_253 = arith.constant 0 : index
    %226 = vector.load %arg5[%c6_252, %c0_253] : memref<22x128xbf16, #tpu.memory_space<vmem>>, vector<16x128xbf16>
    %c768_254 = arith.constant 768 : index
    %c0_255 = arith.constant 0 : index
    %227 = vector.load %arg2[%c768_254, %c0_255] : memref<896x128xbf16, #tpu.memory_space<vmem>>, vector<128x128xbf16>
    %cst_256 = arith.constant dense<0.000000e+00> : vector<16x128xf32>
    %228 = tpu.matmul %226, %227, %cst_256 {dimension_numbers = #tpu.dot_dimension_numbers<[1], [0], [0], [1], [0, 0, 1, 1], [], []>} : vector<16x128xbf16>, vector<128x128xbf16>, vector<16x128xf32> -> vector<16x128xf32>
    %229 = arith.addf %225, %228 : vector<16x128xf32>
    %230 = vector.broadcast %2 : vector<1x128xf32> to vector<16x128xf32>
    %231 = arith.addf %229, %230 : vector<16x128xf32>
    %cst_257 = arith.constant 0.000000e+00 : f32
    %232 = vector.broadcast %cst_257 : f32 to vector<16x128xf32>
    %233 = arith.maximumf %231, %232 : vector<16x128xf32>
    %234 = arith.truncf %233 : vector<16x128xf32> to vector<16x128xbf16>
    %235 = vector.shape_cast %234 : vector<16x128xbf16> to vector<16x1x128xbf16>
    %c0_258 = arith.constant 0 : index
    %c5_259 = arith.constant 5 : index
    %c0_260 = arith.constant 0 : index
    %236 = vector.load %arg4[%c0_258, %c5_259, %c0_260] : memref<16x8x128xbf16, #tpu.memory_space<vmem>>, vector<16x1x128xbf16>
    tpu.vector_store %arg4[%c0_258, %c5_259, %c0_260], %235 {strides = array<i32>} : memref<16x8x128xbf16, #tpu.memory_space<vmem>>, vector<16x1x128xbf16>,
    %c6_261 = arith.constant 6 : index
    %c0_262 = arith.constant 0 : index
    %c0_263 = arith.constant 0 : index
    %237 = vector.load %arg1[%c6_261, %c0_262, %c0_263] : memref<8x16x32xbf16, #tpu.memory_space<vmem>>, vector<1x16x32xbf16>
    %238 = vector.shape_cast %237 : vector<1x16x32xbf16> to vector<16x32xbf16>
    %c3_264 = arith.constant 3 : index
    %c0_265 = arith.constant 0 : index
    %239 = vector.load %arg5[%c3_264, %c0_265] : memref<22x128xbf16, #tpu.memory_space<vmem>>, vector<16x32xbf16>
    tpu.vector_store %arg5[%c3_264, %c0_265], %238 {strides = array<i32>} : memref<22x128xbf16, #tpu.memory_space<vmem>>, vector<16x32xbf16>,
    %cst_266 = arith.constant 0.000000e+00 : f32
    %240 = vector.broadcast %cst_266 : f32 to vector<16x128xf32>
    %c0_267 = arith.constant 0 : index
    %c0_268 = arith.constant 0 : index
    %241 = vector.load %arg5[%c0_267, %c0_268] : memref<22x128xbf16, #tpu.memory_space<vmem>>, vector<16x128xbf16>
    %c0_269 = arith.constant 0 : index
    %c0_270 = arith.constant 0 : index
    %242 = vector.load %arg2[%c0_269, %c0_270] : memref<896x128xbf16, #tpu.memory_space<vmem>>, vector<128x128xbf16>
    %cst_271 = arith.constant dense<0.000000e+00> : vector<16x128xf32>
    %243 = tpu.matmul %241, %242, %cst_271 {dimension_numbers = #tpu.dot_dimension_numbers<[1], [0], [0], [1], [0, 0, 1, 1], [], []>} : vector<16x128xbf16>, vector<128x128xbf16>, vector<16x128xf32> -> vector<16x128xf32>
    %244 = arith.addf %240, %243 : vector<16x128xf32>
    %c1_272 = arith.constant 1 : index
    %c0_273 = arith.constant 0 : index
    %245 = vector.load %arg5[%c1_272, %c0_273] : memref<22x128xbf16, #tpu.memory_space<vmem>>, vector<16x128xbf16>
    %c128_274 = arith.constant 128 : index
    %c0_275 = arith.constant 0 : index
    %246 = vector.load %arg2[%c128_274, %c0_275] : memref<896x128xbf16, #tpu.memory_space<vmem>>, vector<128x128xbf16>
    %cst_276 = arith.constant dense<0.000000e+00> : vector<16x128xf32>
    %247 = tpu.matmul %245, %246, %cst_276 {dimension_numbers = #tpu.dot_dimension_numbers<[1], [0], [0], [1], [0, 0, 1, 1], [], []>} : vector<16x128xbf16>, vector<128x128xbf16>, vector<16x128xf32> -> vector<16x128xf32>
    %248 = arith.addf %244, %247 : vector<16x128xf32>
    %c2_277 = arith.constant 2 : index
    %c0_278 = arith.constant 0 : index
    %249 = vector.load %arg5[%c2_277, %c0_278] : memref<22x128xbf16, #tpu.memory_space<vmem>>, vector<16x128xbf16>
    %c256_279 = arith.constant 256 : index
    %c0_280 = arith.constant 0 : index
    %250 = vector.load %arg2[%c256_279, %c0_280] : memref<896x128xbf16, #tpu.memory_space<vmem>>, vector<128x128xbf16>
    %cst_281 = arith.constant dense<0.000000e+00> : vector<16x128xf32>
    %251 = tpu.matmul %249, %250, %cst_281 {dimension_numbers = #tpu.dot_dimension_numbers<[1], [0], [0], [1], [0, 0, 1, 1], [], []>} : vector<16x128xbf16>, vector<128x128xbf16>, vector<16x128xf32> -> vector<16x128xf32>
    %252 = arith.addf %248, %251 : vector<16x128xf32>
    %c3_282 = arith.constant 3 : index
    %c0_283 = arith.constant 0 : index
    %253 = vector.load %arg5[%c3_282, %c0_283] : memref<22x128xbf16, #tpu.memory_space<vmem>>, vector<16x128xbf16>
    %c384_284 = arith.constant 384 : index
    %c0_285 = arith.constant 0 : index
    %254 = vector.load %arg2[%c384_284, %c0_285] : memref<896x128xbf16, #tpu.memory_space<vmem>>, vector<128x128xbf16>
    %cst_286 = arith.constant dense<0.000000e+00> : vector<16x128xf32>
    %255 = tpu.matmul %253, %254, %cst_286 {dimension_numbers = #tpu.dot_dimension_numbers<[1], [0], [0], [1], [0, 0, 1, 1], [], []>} : vector<16x128xbf16>, vector<128x128xbf16>, vector<16x128xf32> -> vector<16x128xf32>
    %256 = arith.addf %252, %255 : vector<16x128xf32>
    %c4_287 = arith.constant 4 : index
    %c0_288 = arith.constant 0 : index
    %257 = vector.load %arg5[%c4_287, %c0_288] : memref<22x128xbf16, #tpu.memory_space<vmem>>, vector<16x128xbf16>
    %c512_289 = arith.constant 512 : index
    %c0_290 = arith.constant 0 : index
    %258 = vector.load %arg2[%c512_289, %c0_290] : memref<896x128xbf16, #tpu.memory_space<vmem>>, vector<128x128xbf16>
    %cst_291 = arith.constant dense<0.000000e+00> : vector<16x128xf32>
    %259 = tpu.matmul %257, %258, %cst_291 {dimension_numbers = #tpu.dot_dimension_numbers<[1], [0], [0], [1], [0, 0, 1, 1], [], []>} : vector<16x128xbf16>, vector<128x128xbf16>, vector<16x128xf32> -> vector<16x128xf32>
    %260 = arith.addf %256, %259 : vector<16x128xf32>
    %c5_292 = arith.constant 5 : index
    %c0_293 = arith.constant 0 : index
    %261 = vector.load %arg5[%c5_292, %c0_293] : memref<22x128xbf16, #tpu.memory_space<vmem>>, vector<16x128xbf16>
    %c640_294 = arith.constant 640 : index
    %c0_295 = arith.constant 0 : index
    %262 = vector.load %arg2[%c640_294, %c0_295] : memref<896x128xbf16, #tpu.memory_space<vmem>>, vector<128x128xbf16>
    %cst_296 = arith.constant dense<0.000000e+00> : vector<16x128xf32>
    %263 = tpu.matmul %261, %262, %cst_296 {dimension_numbers = #tpu.dot_dimension_numbers<[1], [0], [0], [1], [0, 0, 1, 1], [], []>} : vector<16x128xbf16>, vector<128x128xbf16>, vector<16x128xf32> -> vector<16x128xf32>
    %264 = arith.addf %260, %263 : vector<16x128xf32>
    %c6_297 = arith.constant 6 : index
    %c0_298 = arith.constant 0 : index
    %265 = vector.load %arg5[%c6_297, %c0_298] : memref<22x128xbf16, #tpu.memory_space<vmem>>, vector<16x128xbf16>
    %c768_299 = arith.constant 768 : index
    %c0_300 = arith.constant 0 : index
    %266 = vector.load %arg2[%c768_299, %c0_300] : memref<896x128xbf16, #tpu.memory_space<vmem>>, vector<128x128xbf16>
    %cst_301 = arith.constant dense<0.000000e+00> : vector<16x128xf32>
    %267 = tpu.matmul %265, %266, %cst_301 {dimension_numbers = #tpu.dot_dimension_numbers<[1], [0], [0], [1], [0, 0, 1, 1], [], []>} : vector<16x128xbf16>, vector<128x128xbf16>, vector<16x128xf32> -> vector<16x128xf32>
    %268 = arith.addf %264, %267 : vector<16x128xf32>
    %269 = vector.broadcast %2 : vector<1x128xf32> to vector<16x128xf32>
    %270 = arith.addf %268, %269 : vector<16x128xf32>
    %cst_302 = arith.constant 0.000000e+00 : f32
    %271 = vector.broadcast %cst_302 : f32 to vector<16x128xf32>
    %272 = arith.maximumf %270, %271 : vector<16x128xf32>
    %273 = arith.truncf %272 : vector<16x128xf32> to vector<16x128xbf16>
    %274 = vector.shape_cast %273 : vector<16x128xbf16> to vector<16x1x128xbf16>
    %c0_303 = arith.constant 0 : index
    %c6_304 = arith.constant 6 : index
    %c0_305 = arith.constant 0 : index
    %275 = vector.load %arg4[%c0_303, %c6_304, %c0_305] : memref<16x8x128xbf16, #tpu.memory_space<vmem>>, vector<16x1x128xbf16>
    tpu.vector_store %arg4[%c0_303, %c6_304, %c0_305], %274 {strides = array<i32>} : memref<16x8x128xbf16, #tpu.memory_space<vmem>>, vector<16x1x128xbf16>,
    %c7 = arith.constant 7 : index
    %c0_306 = arith.constant 0 : index
    %c0_307 = arith.constant 0 : index
    %276 = vector.load %arg1[%c7, %c0_306, %c0_307] : memref<8x16x32xbf16, #tpu.memory_space<vmem>>, vector<1x16x32xbf16>
    %277 = vector.shape_cast %276 : vector<1x16x32xbf16> to vector<16x32xbf16>
    %c3_308 = arith.constant 3 : index
    %c0_309 = arith.constant 0 : index
    %278 = vector.load %arg5[%c3_308, %c0_309] : memref<22x128xbf16, #tpu.memory_space<vmem>>, vector<16x32xbf16>
    tpu.vector_store %arg5[%c3_308, %c0_309], %277 {strides = array<i32>} : memref<22x128xbf16, #tpu.memory_space<vmem>>, vector<16x32xbf16>,
    %cst_310 = arith.constant 0.000000e+00 : f32
    %279 = vector.broadcast %cst_310 : f32 to vector<16x128xf32>
    %c0_311 = arith.constant 0 : index
    %c0_312 = arith.constant 0 : index
    %280 = vector.load %arg5[%c0_311, %c0_312] : memref<22x128xbf16, #tpu.memory_space<vmem>>, vector<16x128xbf16>
    %c0_313 = arith.constant 0 : index
    %c0_314 = arith.constant 0 : index
    %281 = vector.load %arg2[%c0_313, %c0_314] : memref<896x128xbf16, #tpu.memory_space<vmem>>, vector<128x128xbf16>
    %cst_315 = arith.constant dense<0.000000e+00> : vector<16x128xf32>
    %282 = tpu.matmul %280, %281, %cst_315 {dimension_numbers = #tpu.dot_dimension_numbers<[1], [0], [0], [1], [0, 0, 1, 1], [], []>} : vector<16x128xbf16>, vector<128x128xbf16>, vector<16x128xf32> -> vector<16x128xf32>
    %283 = arith.addf %279, %282 : vector<16x128xf32>
    %c1_316 = arith.constant 1 : index
    %c0_317 = arith.constant 0 : index
    %284 = vector.load %arg5[%c1_316, %c0_317] : memref<22x128xbf16, #tpu.memory_space<vmem>>, vector<16x128xbf16>
    %c128_318 = arith.constant 128 : index
    %c0_319 = arith.constant 0 : index
    %285 = vector.load %arg2[%c128_318, %c0_319] : memref<896x128xbf16, #tpu.memory_space<vmem>>, vector<128x128xbf16>
    %cst_320 = arith.constant dense<0.000000e+00> : vector<16x128xf32>
    %286 = tpu.matmul %284, %285, %cst_320 {dimension_numbers = #tpu.dot_dimension_numbers<[1], [0], [0], [1], [0, 0, 1, 1], [], []>} : vector<16x128xbf16>, vector<128x128xbf16>, vector<16x128xf32> -> vector<16x128xf32>
    %287 = arith.addf %283, %286 : vector<16x128xf32>
    %c2_321 = arith.constant 2 : index
    %c0_322 = arith.constant 0 : index
    %288 = vector.load %arg5[%c2_321, %c0_322] : memref<22x128xbf16, #tpu.memory_space<vmem>>, vector<16x128xbf16>
    %c256_323 = arith.constant 256 : index
    %c0_324 = arith.constant 0 : index
    %289 = vector.load %arg2[%c256_323, %c0_324] : memref<896x128xbf16, #tpu.memory_space<vmem>>, vector<128x128xbf16>
    %cst_325 = arith.constant dense<0.000000e+00> : vector<16x128xf32>
    %290 = tpu.matmul %288, %289, %cst_325 {dimension_numbers = #tpu.dot_dimension_numbers<[1], [0], [0], [1], [0, 0, 1, 1], [], []>} : vector<16x128xbf16>, vector<128x128xbf16>, vector<16x128xf32> -> vector<16x128xf32>
    %291 = arith.addf %287, %290 : vector<16x128xf32>
    %c3_326 = arith.constant 3 : index
    %c0_327 = arith.constant 0 : index
    %292 = vector.load %arg5[%c3_326, %c0_327] : memref<22x128xbf16, #tpu.memory_space<vmem>>, vector<16x128xbf16>
    %c384_328 = arith.constant 384 : index
    %c0_329 = arith.constant 0 : index
    %293 = vector.load %arg2[%c384_328, %c0_329] : memref<896x128xbf16, #tpu.memory_space<vmem>>, vector<128x128xbf16>
    %cst_330 = arith.constant dense<0.000000e+00> : vector<16x128xf32>
    %294 = tpu.matmul %292, %293, %cst_330 {dimension_numbers = #tpu.dot_dimension_numbers<[1], [0], [0], [1], [0, 0, 1, 1], [], []>} : vector<16x128xbf16>, vector<128x128xbf16>, vector<16x128xf32> -> vector<16x128xf32>
    %295 = arith.addf %291, %294 : vector<16x128xf32>
    %c4_331 = arith.constant 4 : index
    %c0_332 = arith.constant 0 : index
    %296 = vector.load %arg5[%c4_331, %c0_332] : memref<22x128xbf16, #tpu.memory_space<vmem>>, vector<16x128xbf16>
    %c512_333 = arith.constant 512 : index
    %c0_334 = arith.constant 0 : index
    %297 = vector.load %arg2[%c512_333, %c0_334] : memref<896x128xbf16, #tpu.memory_space<vmem>>, vector<128x128xbf16>
    %cst_335 = arith.constant dense<0.000000e+00> : vector<16x128xf32>
    %298 = tpu.matmul %296, %297, %cst_335 {dimension_numbers = #tpu.dot_dimension_numbers<[1], [0], [0], [1], [0, 0, 1, 1], [], []>} : vector<16x128xbf16>, vector<128x128xbf16>, vector<16x128xf32> -> vector<16x128xf32>
    %299 = arith.addf %295, %298 : vector<16x128xf32>
    %c5_336 = arith.constant 5 : index
    %c0_337 = arith.constant 0 : index
    %300 = vector.load %arg5[%c5_336, %c0_337] : memref<22x128xbf16, #tpu.memory_space<vmem>>, vector<16x128xbf16>
    %c640_338 = arith.constant 640 : index
    %c0_339 = arith.constant 0 : index
    %301 = vector.load %arg2[%c640_338, %c0_339] : memref<896x128xbf16, #tpu.memory_space<vmem>>, vector<128x128xbf16>
    %cst_340 = arith.constant dense<0.000000e+00> : vector<16x128xf32>
    %302 = tpu.matmul %300, %301, %cst_340 {dimension_numbers = #tpu.dot_dimension_numbers<[1], [0], [0], [1], [0, 0, 1, 1], [], []>} : vector<16x128xbf16>, vector<128x128xbf16>, vector<16x128xf32> -> vector<16x128xf32>
    %303 = arith.addf %299, %302 : vector<16x128xf32>
    %c6_341 = arith.constant 6 : index
    %c0_342 = arith.constant 0 : index
    %304 = vector.load %arg5[%c6_341, %c0_342] : memref<22x128xbf16, #tpu.memory_space<vmem>>, vector<16x128xbf16>
    %c768_343 = arith.constant 768 : index
    %c0_344 = arith.constant 0 : index
    %305 = vector.load %arg2[%c768_343, %c0_344] : memref<896x128xbf16, #tpu.memory_space<vmem>>, vector<128x128xbf16>
    %cst_345 = arith.constant dense<0.000000e+00> : vector<16x128xf32>
    %306 = tpu.matmul %304, %305, %cst_345 {dimension_numbers = #tpu.dot_dimension_numbers<[1], [0], [0], [1], [0, 0, 1, 1], [], []>} : vector<16x128xbf16>, vector<128x128xbf16>, vector<16x128xf32> -> vector<16x128xf32>
    %307 = arith.addf %303, %306 : vector<16x128xf32>
    %308 = vector.broadcast %2 : vector<1x128xf32> to vector<16x128xf32>
    %309 = arith.addf %307, %308 : vector<16x128xf32>
    %cst_346 = arith.constant 0.000000e+00 : f32
    %310 = vector.broadcast %cst_346 : f32 to vector<16x128xf32>
    %311 = arith.maximumf %309, %310 : vector<16x128xf32>
    %312 = arith.truncf %311 : vector<16x128xf32> to vector<16x128xbf16>
    %313 = vector.shape_cast %312 : vector<16x128xbf16> to vector<16x1x128xbf16>
    %c0_347 = arith.constant 0 : index
    %c7_348 = arith.constant 7 : index
    %c0_349 = arith.constant 0 : index
    %314 = vector.load %arg4[%c0_347, %c7_348, %c0_349] : memref<16x8x128xbf16, #tpu.memory_space<vmem>>, vector<16x1x128xbf16>
    tpu.vector_store %arg4[%c0_347, %c7_348, %c0_349], %313 {strides = array<i32>} : memref<16x8x128xbf16, #tpu.memory_space<vmem>>, vector<16x1x128xbf16>,
    return
  }
  func.func @transform_0(%arg0: i32) -> (i32, i32, i32) {
    %c0_i32 = arith.constant 0 : i32
    %c0_i32_0 = arith.constant 0 : i32
    %c0_i32_1 = arith.constant 0 : i32
    return %arg0, %c0_i32, %c0_i32_0 : i32, i32, i32
  }
  func.func @transform_1(%arg0: i32) -> (i32, i32) {
    %c0_i32 = arith.constant 0 : i32
    %c0_i32_0 = arith.constant 0 : i32
    %c0_i32_1 = arith.constant 0 : i32
    return %c0_i32, %c0_i32_0 : i32, i32
  }
  func.func @transform_2(%arg0: i32) -> (i32, i32) {
    %c0_i32 = arith.constant 0 : i32
    %c0_i32_0 = arith.constant 0 : i32
    %c0_i32_1 = arith.constant 0 : i32
    return %c0_i32, %c0_i32_0 : i32, i32
  }
  func.func @transform_3(%arg0: i32) -> (i32, i32, i32) {
    %c0_i32 = arith.constant 0 : i32
    %c0_i32_0 = arith.constant 0 : i32
    %c0_i32_1 = arith.constant 0 : i32
    return %c0_i32, %arg0, %c0_i32_0 : i32, i32, i32
  }
}

</mosaic_0001>

<llo_original>
// kernel: tpu_custom_call.1
$region0: #{tpu_custom_call.1}
  #allocation0 [shape = 'u32[]', space=smem, size = 0x4, offset = 0x4, fixed_abs, tag = 'smem constant byte address 0x4 - core index']
  #allocation1 [shape = 'u32[144,128]{1,0:T(1,128)}', space=vmem, size = 0x12000, scoped, tag = 'internal scratch']
  #allocation2 [shape = 'bf16[22,128]{1,0:T(8,128)(2,1)}', space=vmem, size = 0x1800, scoped, tag = 'scratch operand']
  %s0 = inlined_call_operand.hbm [shape: bf16[8,16,32], index: 0, kind: input, shape index: {}]
  %s1 = inlined_call_operand.hbm [shape: bf16[896,128], index: 1, kind: input, shape index: {}]
  %s2 = inlined_call_operand.vmem [shape: f32[1,128], index: 2, kind: input, shape index: {}]
  %s3 = inlined_call_operand.hbm [shape: bf16[16,8,128], index: 3, kind: output, shape index: {}]
  %s4 = sld [smem:[#allocation0]]
  $region30: #{tpu_custom_call.1} parent=0
    _
  %s6 = ssub.s32 1, %s4
  %s7 = scalar_select 0, %s6, %s4
  $region1: #{tpu_custom_call.1} parent=0
    #allocation3 [shape = 'u8[32768]{0}', space=vmem, size = 0x8000, scoped, tag = 'input window, operand 0, single buffered']
    #allocation4 [shape = 's32[1]{0}', space=sflag, size = 0x4, scoped, tag = 'scoped memory for tpu_custom_call.1']
    #allocation5 [shape = 's32[1]{0}', space=sflag, size = 0x4, scoped, tag = 'scoped memory for tpu_custom_call.1']
    #allocation6 [shape = 'u8[229376]{0}', space=vmem, size = 0x38000, scoped, tag = 'input window, operand 1, single buffered']
    #allocation7 [shape = 's32[1]{0}', space=sflag, size = 0x4, scoped, tag = 'scoped memory for tpu_custom_call.1']
    #allocation8 [shape = 'u8[32768]{0}', space=vmem, size = 0x8000, scoped, tag = 'output window, operand 0, single buffered']
    %8 = vsyncpa [#allocation4], 0
    %9 = vsyncpa [#allocation7], 0
    %10 = vsyncpa [#allocation5], 0
    // Predicated region
    $region2: #{tpu_custom_call.1} parent=1 // pred_check
      _
    $region3: #{tpu_custom_call.1} parent=1 // pred_check_branch
      %12 = sbr.rel (0) target = $region5
    $region4: #{tpu_custom_call.1} parent=1 // pred_region
      %s14 = ssub.s32 1024, 1024
      %15 = vsyncadd [#allocation4], %s14
      %s16 = sshll.u32 [#allocation3], 4
      %s17 = int_to_ptr.vmem [resolvable:$true] %s16
      %22 = dma.hbm_to_vmem [thread:$0]  %s0, 1024, %s17, [#allocation4], 64, 64, 4
    $region5: #{tpu_custom_call.1} parent=1 // pred_fallthru
      _
    // Predicated region
    $region6: #{tpu_custom_call.1} parent=1 // pred_check
      _
    $region7: #{tpu_custom_call.1} parent=1 // pred_check_branch
      %24 = sbr.rel (0) target = $region9
    $region8: #{tpu_custom_call.1} parent=1 // pred_region
      %s26 = ssub.s32 7168, 7168
      %27 = vsyncadd [#allocation7], %s26
      %s28 = sshll.u32 [#allocation6], 4
      %s29 = int_to_ptr.vmem [resolvable:$true] %s28
      %34 = dma.hbm_to_vmem [thread:$0]  %s1, 7168, %s29, [#allocation7], 64, 64, 4
    $region9: #{tpu_custom_call.1} parent=1 // pred_fallthru
      _
    // Predicated region
    $region10: #{tpu_custom_call.1} parent=1 // pred_check
      _
    $region11: #{tpu_custom_call.1} parent=1 // pred_check_branch
      %36 = sbr.rel (0) target = $region13
    $region12: #{tpu_custom_call.1} parent=1 // pred_region
      _
    $region13: #{tpu_custom_call.1} parent=1 // pred_fallthru
      _
    // Predicated region
    $region14: #{tpu_custom_call.1} parent=1 // pred_check
      _
    $region15: #{tpu_custom_call.1} parent=1 // pred_check_branch
      %38 = sbr.rel (0) target = $region17
    $region16: #{tpu_custom_call.1} parent=1 // pred_region
      %39 = dma.done [#allocation4], 1024
    $region17: #{tpu_custom_call.1} parent=1 // pred_fallthru
      _
    // Predicated region
    $region18: #{tpu_custom_call.1} parent=1 // pred_check
      _
    $region19: #{tpu_custom_call.1} parent=1 // pred_check_branch
      %41 = sbr.rel (0) target = $region21
    $region20: #{tpu_custom_call.1} parent=1 // pred_region
      %42 = dma.done [#allocation7], 7168
    $region21: #{tpu_custom_call.1} parent=1 // pred_fallthru
      _
    %44 = vst [vmem:[#allocation2] sm:$0xf] 0
    %45 = vst [vmem:[#allocation2 + $0x4] sm:$0xf] 0
    %46 = vst [vmem:[#allocation2 + $0x8] sm:$0x7] 0
    %v47 = vld [vmem:[%s2] sm:$0x1]
    %v48 = vld [vmem:[#allocation3] sm:$0xf]
    %v49 = vld [vmem:[#allocation3 + $0x4] sm:$0xf]
    %vm50 = vsmask.f32 1280
    %vm51 = vsmask.f32 5392
    %vm52 = vmor %vm50, %vm51
    %v54 = vshrl.u32 %v48, 16
    %v56 = vrot.slane %v54, 6
    %v57 = vshll.u32 %v48, 16
    %v59 = vrot.slane %v57, 7
    %v60 = vor.u32 %v56, %v59
    %v61 = vrot.slane %v60, 4
    %v63 = vshrl.u32 %v49, 16
    %v65 = vrot.slane %v63, 6
    %v66 = vshll.u32 %v49, 16
    %v68 = vrot.slane %v66, 7
    %v69 = vor.u32 %v65, %v68
    %v70 = vsel %vm52, %v61, %v69
    %v71 = vrot.slane %v69, 4
    %vm75 = vcmask 257025
    %vm76 = vsmask.f32 7942
    %vm77 = vmand %vm75, %vm76
    %v78 = vld [vmem:[#allocation2] sm:$0xe]
    %v79 = vsel %vm77, %v60, %v78
    %80 = vst [vmem:[#allocation2] sm:$0xe] %v79
    %vm81 = vcmask 257024
    %82 = vst.msk [vmem:[#allocation2 + $0x4] sm:$0xf] %vm81, %v70
    %vm83 = vcmask 254976
    %vm84 = vmand %vm83, %vm50
    %v85 = vld [vmem:[#allocation2 + $0x8] sm:$0x3]
    %v86 = vsel %vm84, %v71, %v85
    %87 = vst [vmem:[#allocation2 + $0x8] sm:$0x3] %v86
    %v88 = vld [vmem:[#allocation2] sm:$0xf]
    %v89 = vld [vmem:[#allocation2 + $0x4] sm:$0xf]
    %v90 = vld [vmem:[#allocation6] sm:$0xf]
    %v91 = vld [vmem:[#allocation6 + $0x4] sm:$0xf]
    %v92 = vld [vmem:[#allocation6 + $0x8] sm:$0xf]
    %v93 = vld [vmem:[#allocation6 + $0xc] sm:$0xf]
    %v94 = vld [vmem:[#allocation6 + $0x10] sm:$0xf]
    %v95 = vld [vmem:[#allocation6 + $0x14] sm:$0xf]
    %v96 = vld [vmem:[#allocation6 + $0x18] sm:$0xf]
    %v97 = vld [vmem:[#allocation6 + $0x1c] sm:$0xf]
    %v98 = vld [vmem:[#allocation6 + $0x20] sm:$0xf]
    %v99 = vld [vmem:[#allocation6 + $0x24] sm:$0xf]
    %v100 = vld [vmem:[#allocation6 + $0x28] sm:$0xf]
    %v101 = vld [vmem:[#allocation6 + $0x2c] sm:$0xf]
    %v102 = vld [vmem:[#allocation6 + $0x30] sm:$0xf]
    %v103 = vld [vmem:[#allocation6 + $0x34] sm:$0xf]
    %v104 = vld [vmem:[#allocation6 + $0x38] sm:$0xf]
    %v105 = vld [vmem:[#allocation6 + $0x3c] sm:$0xf]
    %v106 = vld [vmem:[#allocation2 + $0x8] sm:$0x1]
    %v107 = vld [vmem:[#allocation6 + $0x40] sm:$0xf]
    %v108 = vld [vmem:[#allocation6 + $0x44] sm:$0xf]
    %v109 = vld [vmem:[#allocation6 + $0x48] sm:$0xf]
    %v110 = vld [vmem:[#allocation6 + $0x4c] sm:$0xf]
    %v111 = vld [vmem:[#allocation6 + $0x50] sm:$0xf]
    %v112 = vld [vmem:[#allocation6 + $0x54] sm:$0xf]
    %v113 = vld [vmem:[#allocation6 + $0x58] sm:$0xf]
    %v114 = vld [vmem:[#allocation6 + $0x5c] sm:$0xf]
    %v115 = vld [vmem:[#allocation6 + $0x60] sm:$0xf]
    %v116 = vld [vmem:[#allocation6 + $0x64] sm:$0xf]
    %v117 = vld [vmem:[#allocation6 + $0x68] sm:$0xf]
    %v118 = vld [vmem:[#allocation6 + $0x6c] sm:$0xf]
    %v119 = vld [vmem:[#allocation6 + $0x70] sm:$0xf]
    %v120 = vld [vmem:[#allocation6 + $0x74] sm:$0xf]
    %v121 = vld [vmem:[#allocation6 + $0x78] sm:$0xf]
    %v122 = vld [vmem:[#allocation6 + $0x7c] sm:$0xf]
    %v126 = vunpack.c.l.b16 %v88
    %v127 = vunpack.c.l.b16 %v89
    %v128 = vunpack.c.l.b16 %v106
    %v129 = vpack.c.b16 %v127, %v126
    %v130 = vpack.c.b16 %v128, %v128
    %vm131 = vsmask.f32 7424
    %v133 = vshrl.u32 %v129, 16
    %v135 = vshll.u32 %v129, 16
    %v137 = vrot.slane %v135, 1
    %v138 = vor.u32 %v133, %v137
    %v140 = vshll.u32 %v130, 16
    %v142 = vrot.slane %v140, 1
    %v143 = vsel %vm131, %v138, %v142
    %v161 = vunpack.c.l.b16 %v107
    %v162 = vunpack.c.l.b16 %v108
    %v163 = vunpack.c.l.b16 %v109
    %v164 = vunpack.c.l.b16 %v110
    %v165 = vunpack.c.l.b16 %v111
    %v166 = vunpack.c.l.b16 %v112
    %v167 = vunpack.c.l.b16 %v113
    %v168 = vunpack.c.l.b16 %v114
    %v169 = vunpack.c.l.b16 %v115
    %v170 = vunpack.c.l.b16 %v116
    %v171 = vunpack.c.l.b16 %v117
    %v172 = vunpack.c.l.b16 %v118
    %v173 = vunpack.c.l.b16 %v119
    %v174 = vunpack.c.l.b16 %v120
    %v175 = vunpack.c.l.b16 %v121
    %v176 = vunpack.c.l.b16 %v122
    %v177 = vpack.c.b16 %v162, %v161
    %v178 = vpack.c.b16 %v164, %v163
    %v179 = vpack.c.b16 %v166, %v165
    %v180 = vpack.c.b16 %v168, %v167
    %v181 = vpack.c.b16 %v170, %v169
    %v182 = vpack.c.b16 %v172, %v171
    %v183 = vpack.c.b16 %v174, %v173
    %v184 = vpack.c.b16 %v176, %v175
    %193 = vmatprep.subr.bf16.mxu0 0
    %194 = vmatpush1.bf16.msra.mxu0 %v177
    %195 = vmatprep.subr.bf16.mxu0 0
    %196 = vmatpush1.bf16.msra.mxu0 %v178
    %197 = vmatprep.subr.bf16.mxu0 0
    %198 = vmatpush1.bf16.msra.mxu0 %v179
    %199 = vmatprep.subr.bf16.mxu0 0
    %200 = vmatpush1.bf16.msra.mxu0 %v180
    %201 = vmatprep.subr.bf16.mxu0 0
    %202 = vmatpush1.bf16.msra.mxu0 %v181
    %203 = vmatprep.subr.bf16.mxu0 0
    %204 = vmatpush1.bf16.msra.mxu0 %v182
    %205 = vmatprep.subr.bf16.mxu0 0
    %206 = vmatpush1.bf16.msra.mxu0 %v183
    %207 = vmatprep.subr.bf16.mxu0 0
    %208 = vmatpush1.bf16.msra.mxu0 %v184
    %209 = vmatprep.subr.bf16.mxu0 0
    %210 = vmatpush1.bf16.msra.mxu0 0
    %211 = vmatprep.subr.bf16.mxu0 0
    %212 = vmatpush1.bf16.msra.mxu0 0
    %213 = vmatprep.subr.bf16.mxu0 0
    %214 = vmatpush1.bf16.msra.mxu0 0
    %215 = vmatprep.subr.bf16.mxu0 0
    %216 = vmatpush1.bf16.msra.mxu0 0
    %217 = vmatprep.subr.bf16.mxu0 0
    %218 = vmatpush1.bf16.msra.mxu0 0
    %219 = vmatprep.subr.bf16.mxu0 0
    %220 = vmatpush1.bf16.msra.mxu0 0
    %221 = vmatprep.subr.bf16.mxu0 0
    %222 = vmatpush1.bf16.msra.mxu0 0
    %223 = vmatprep.subr.bf16.mxu0 0
    %224 = vmatpush1.bf16.msra.mxu0 0
    %225 = vmatprep.mubr.bf16.mxu0 0
    %226 = vmatmul.mubr.bf16.gmra.mrb[0].mxu0 %v143
    %v227 = vpop.f32.mrb[0].mxu0
    %v228 = vadd.f32 0.0, %v227
    %v229 = vpop.f32.mrb[0].mxu0
    %v230 = vpop.f32.mrb[0].mxu0
    %v231 = vadd.f32 0.0, %v230
    %v232 = vpop.f32.mrb[0].mxu0
    %233 = vdwg.mxu0
    %v251 = vunpack.c.l.b16 %v90
    %v252 = vunpack.c.l.b16 %v91
    %v253 = vunpack.c.l.b16 %v92
    %v254 = vunpack.c.l.b16 %v93
    %v255 = vunpack.c.l.b16 %v94
    %v256 = vunpack.c.l.b16 %v95
    %v257 = vunpack.c.l.b16 %v96
    %v258 = vunpack.c.l.b16 %v97
    %v259 = vunpack.c.l.b16 %v98
    %v260 = vunpack.c.l.b16 %v99
    %v261 = vunpack.c.l.b16 %v100
    %v262 = vunpack.c.l.b16 %v101
    %v263 = vunpack.c.l.b16 %v102
    %v264 = vunpack.c.l.b16 %v103
    %v265 = vunpack.c.l.b16 %v104
    %v266 = vunpack.c.l.b16 %v105
    %v267 = vpack.c.b16 %v252, %v251
    %v268 = vpack.c.b16 %v254, %v253
    %v269 = vpack.c.b16 %v256, %v255
    %v270 = vpack.c.b16 %v258, %v257
    %v271 = vpack.c.b16 %v260, %v259
    %v272 = vpack.c.b16 %v262, %v261
    %v273 = vpack.c.b16 %v264, %v263
    %v274 = vpack.c.b16 %v266, %v265
    %283 = vmatprep.subr.bf16.mxu0 0
    %284 = vmatpush1.bf16.msra.mxu0 %v267
    %285 = vmatprep.subr.bf16.mxu0 0
    %286 = vmatpush1.bf16.msra.mxu0 %v268
    %287 = vmatprep.subr.bf16.mxu0 0
    %288 = vmatpush1.bf16.msra.mxu0 %v269
    %289 = vmatprep.subr.bf16.mxu0 0
    %290 = vmatpush1.bf16.msra.mxu0 %v270
    %291 = vmatprep.subr.bf16.mxu0 0
    %292 = vmatpush1.bf16.msra.mxu0 %v271
    %293 = vmatprep.subr.bf16.mxu0 0
    %294 = vmatpush1.bf16.msra.mxu0 %v272
    %295 = vmatprep.subr.bf16.mxu0 0
    %296 = vmatpush1.bf16.msra.mxu0 %v273
    %297 = vmatprep.subr.bf16.mxu0 0
    %298 = vmatpush1.bf16.msra.mxu0 %v274
    %299 = vmatprep.subr.bf16.mxu0 0
    %300 = vmatpush1.bf16.msra.mxu0 0
    %301 = vmatprep.subr.bf16.mxu0 0
    %302 = vmatpush1.bf16.msra.mxu0 0
    %303 = vmatprep.subr.bf16.mxu0 0
    %304 = vmatpush1.bf16.msra.mxu0 0
    %305 = vmatprep.subr.bf16.mxu0 0
    %306 = vmatpush1.bf16.msra.mxu0 0
    %307 = vmatprep.subr.bf16.mxu0 0
    %308 = vmatpush1.bf16.msra.mxu0 0
    %309 = vmatprep.subr.bf16.mxu0 0
    %310 = vmatpush1.bf16.msra.mxu0 0
    %311 = vmatprep.subr.bf16.mxu0 0
    %312 = vmatpush1.bf16.msra.mxu0 0
    %313 = vmatprep.subr.bf16.mxu0 0
    %314 = vmatpush1.bf16.msra.mxu0 0
    %315 = vmatprep.mubr.bf16.mxu0 0
    %316 = vmatmul.mubr.bf16.gmra.mrb[0].mxu0 %v129
    %v317 = vpop.f32.mrb[0].mxu0
    %v318 = vadd.f32 %v228, %v317
    %v319 = vpop.f32.mrb[0].mxu0
    %v320 = vpop.f32.mrb[0].mxu0
    %v321 = vadd.f32 %v231, %v320
    %v322 = vpop.f32.mrb[0].mxu0
    %323 = vdwg.mxu0
    %v324 = vld [vmem:[#allocation2] sm:$0xe]
    %v325 = vld [vmem:[#allocation6 + $0x80] sm:$0xf]
    %v326 = vld [vmem:[#allocation6 + $0x84] sm:$0xf]
    %v327 = vld [vmem:[#allocation6 + $0x88] sm:$0xf]
    %v328 = vld [vmem:[#allocation6 + $0x8c] sm:$0xf]
    %v329 = vld [vmem:[#allocation6 + $0x90] sm:$0xf]
    %v330 = vld [vmem:[#allocation6 + $0x94] sm:$0xf]
    %v331 = vld [vmem:[#allocation6 + $0x98] sm:$0xf]
    %v332 = vld [vmem:[#allocation6 + $0x9c] sm:$0xf]
    %v333 = vld [vmem:[#allocation6 + $0xa0] sm:$0xf]
    %v334 = vld [vmem:[#allocation6 + $0xa4] sm:$0xf]
    %v335 = vld [vmem:[#allocation6 + $0xa8] sm:$0xf]
    %v336 = vld [vmem:[#allocation6 + $0xac] sm:$0xf]
    %v337 = vld [vmem:[#allocation6 + $0xb0] sm:$0xf]
    %v338 = vld [vmem:[#allocation6 + $0xb4] sm:$0xf]
    %v339 = vld [vmem:[#allocation6 + $0xb8] sm:$0xf]
    %v340 = vld [vmem:[#allocation6 + $0xbc] sm:$0xf]
    %v342 = vunpack.c.l.b16 %v324
    %v343 = vpack.c.b16 %v127, %v342
    %vm344 = vcmask 1046528
    %v345 = vrot.slane %v343, 1
    %v346 = vrot.slane %v130, 1
    %v347 = vsel %vm344, %v345, %v346
    %v365 = vunpack.c.l.b16 %v325
    %v366 = vunpack.c.l.b16 %v326
    %v367 = vunpack.c.l.b16 %v327
    %v368 = vunpack.c.l.b16 %v328
    %v369 = vunpack.c.l.b16 %v329
    %v370 = vunpack.c.l.b16 %v330
    %v371 = vunpack.c.l.b16 %v331
    %v372 = vunpack.c.l.b16 %v332
    %v373 = vunpack.c.l.b16 %v333
    %v374 = vunpack.c.l.b16 %v334
    %v375 = vunpack.c.l.b16 %v335
    %v376 = vunpack.c.l.b16 %v336
    %v377 = vunpack.c.l.b16 %v337
    %v378 = vunpack.c.l.b16 %v338
    %v379 = vunpack.c.l.b16 %v339
    %v380 = vunpack.c.l.b16 %v340
    %v381 = vpack.c.b16 %v366, %v365
    %v382 = vpack.c.b16 %v368, %v367
    %v383 = vpack.c.b16 %v370, %v369
    %v384 = vpack.c.b16 %v372, %v371
    %v385 = vpack.c.b16 %v374, %v373
    %v386 = vpack.c.b16 %v376, %v375
    %v387 = vpack.c.b16 %v378, %v377
    %v388 = vpack.c.b16 %v380, %v379
    %397 = vmatprep.subr.bf16.mxu0 0
    %398 = vmatpush1.bf16.msra.mxu0 %v381
    %399 = vmatprep.subr.bf16.mxu0 0
    %400 = vmatpush1.bf16.msra.mxu0 %v382
    %401 = vmatprep.subr.bf16.mxu0 0
    %402 = vmatpush1.bf16.msra.mxu0 %v383
    %403 = vmatprep.subr.bf16.mxu0 0
    %404 = vmatpush1.bf16.msra.mxu0 %v384
    %405 = vmatprep.subr.bf16.mxu0 0
    %406 = vmatpush1.bf16.msra.mxu0 %v385
    %407 = vmatprep.subr.bf16.mxu0 0
    %408 = vmatpush1.bf16.msra.mxu0 %v386
    %409 = vmatprep.subr.bf16.mxu0 0
    %410 = vmatpush1.bf16.msra.mxu0 %v387
    %411 = vmatprep.subr.bf16.mxu0 0
    %412 = vmatpush1.bf16.msra.mxu0 %v388
    %413 = vmatprep.subr.bf16.mxu0 0
    %414 = vmatpush1.bf16.msra.mxu0 0
    %415 = vmatprep.subr.bf16.mxu0 0
    %416 = vmatpush1.bf16.msra.mxu0 0
    %417 = vmatprep.subr.bf16.mxu0 0
    %418 = vmatpush1.bf16.msra.mxu0 0
    %419 = vmatprep.subr.bf16.mxu0 0
    %420 = vmatpush1.bf16.msra.mxu0 0
    %421 = vmatprep.subr.bf16.mxu0 0
    %422 = vmatpush1.bf16.msra.mxu0 0
    %423 = vmatprep.subr.bf16.mxu0 0
    %424 = vmatpush1.bf16.msra.mxu0 0
    %425 = vmatprep.subr.bf16.mxu0 0
    %426 = vmatpush1.bf16.msra.mxu0 0
    %427 = vmatprep.subr.bf16.mxu0 0
    %428 = vmatpush1.bf16.msra.mxu0 0
    %429 = vmatprep.mubr.bf16.mxu0 0
    %430 = vmatmul.mubr.bf16.gmra.mrb[0].mxu0 %v347
    %v431 = vpop.f32.mrb[0].mxu0
    %v432 = vadd.f32 0.0, %v431
    %v433 = vpop.f32.mrb[0].mxu0
    %v434 = vpop.f32.mrb[0].mxu0
    %v435 = vadd.f32 0.0, %v434
    %v436 = vpop.f32.mrb[0].mxu0
    %437 = vdwg.mxu0
    %v438 = vadd.f32 %v318, %v432
    %v439 = vadd.f32 %v321, %v435
    %v440 = vld [vmem:[#allocation2 + $0x8] sm:$0x3]
    %v441 = vld [vmem:[#allocation6 + $0xc0] sm:$0xf]
    %v442 = vld [vmem:[#allocation6 + $0xc4] sm:$0xf]
    %v443 = vld [vmem:[#allocation6 + $0xc8] sm:$0xf]
    %v444 = vld [vmem:[#allocation6 + $0xcc] sm:$0xf]
    %v445 = vld [vmem:[#allocation6 + $0xd0] sm:$0xf]
    %v446 = vld [vmem:[#allocation6 + $0xd4] sm:$0xf]
    %v447 = vld [vmem:[#allocation6 + $0xd8] sm:$0xf]
    %v448 = vld [vmem:[#allocation6 + $0xdc] sm:$0xf]
    %v449 = vld [vmem:[#allocation6 + $0xe0] sm:$0xf]
    %v450 = vld [vmem:[#allocation6 + $0xe4] sm:$0xf]
    %v451 = vld [vmem:[#allocation6 + $0xe8] sm:$0xf]
    %v452 = vld [vmem:[#allocation6 + $0xec] sm:$0xf]
    %v453 = vld [vmem:[#allocation6 + $0xf0] sm:$0xf]
    %v454 = vld [vmem:[#allocation6 + $0xf4] sm:$0xf]
    %v455 = vld [vmem:[#allocation6 + $0xf8] sm:$0xf]
    %v456 = vld [vmem:[#allocation6 + $0xfc] sm:$0xf]
    %v458 = vunpack.c.l.b16 %v440
    %v459 = vpack.c.b16 %v458, %v458
    %vm460 = vsmask.f32 6400
    %v462 = vshrl.u32 %v343, 16
    %v464 = vrot.slane %v462, 1
    %v465 = vshll.u32 %v343, 16
    %v467 = vrot.slane %v465, 2
    %v468 = vor.u32 %v464, %v467
    %v470 = vshrl.u32 %v459, 16
    %v472 = vrot.slane %v470, 1
    %v473 = vshll.u32 %v459, 16
    %v475 = vrot.slane %v473, 2
    %v476 = vor.u32 %v472, %v475
    %v477 = vsel %vm460, %v468, %v476
    %v495 = vunpack.c.l.b16 %v441
    %v496 = vunpack.c.l.b16 %v442
    %v497 = vunpack.c.l.b16 %v443
    %v498 = vunpack.c.l.b16 %v444
    %v499 = vunpack.c.l.b16 %v445
    %v500 = vunpack.c.l.b16 %v446
    %v501 = vunpack.c.l.b16 %v447
    %v502 = vunpack.c.l.b16 %v448
    %v503 = vunpack.c.l.b16 %v449
    %v504 = vunpack.c.l.b16 %v450
    %v505 = vunpack.c.l.b16 %v451
    %v506 = vunpack.c.l.b16 %v452
    %v507 = vunpack.c.l.b16 %v453
    %v508 = vunpack.c.l.b16 %v454
    %v509 = vunpack.c.l.b16 %v455
    %v510 = vunpack.c.l.b16 %v456
    %v511 = vpack.c.b16 %v496, %v495
    %v512 = vpack.c.b16 %v498, %v497
    %v513 = vpack.c.b16 %v500, %v499
    %v514 = vpack.c.b16 %v502, %v501
    %v515 = vpack.c.b16 %v504, %v503
    %v516 = vpack.c.b16 %v506, %v505
    %v517 = vpack.c.b16 %v508, %v507
    %v518 = vpack.c.b16 %v510, %v509
    %527 = vmatprep.subr.bf16.mxu0 0
    %528 = vmatpush1.bf16.msra.mxu0 %v511
    %529 = vmatprep.subr.bf16.mxu0 0
    %530 = vmatpush1.bf16.msra.mxu0 %v512
    %531 = vmatprep.subr.bf16.mxu0 0
    %532 = vmatpush1.bf16.msra.mxu0 %v513
    %533 = vmatprep.subr.bf16.mxu0 0
    %534 = vmatpush1.bf16.msra.mxu0 %v514
    %535 = vmatprep.subr.bf16.mxu0 0
    %536 = vmatpush1.bf16.msra.mxu0 %v515
    %537 = vmatprep.subr.bf16.mxu0 0
    %538 = vmatpush1.bf16.msra.mxu0 %v516
    %539 = vmatprep.subr.bf16.mxu0 0
    %540 = vmatpush1.bf16.msra.mxu0 %v517
    %541 = vmatprep.subr.bf16.mxu0 0
    %542 = vmatpush1.bf16.msra.mxu0 %v518
    %543 = vmatprep.subr.bf16.mxu0 0
    %544 = vmatpush1.bf16.msra.mxu0 0
    %545 = vmatprep.subr.bf16.mxu0 0
    %546 = vmatpush1.bf16.msra.mxu0 0
    %547 = vmatprep.subr.bf16.mxu0 0
    %548 = vmatpush1.bf16.msra.mxu0 0
    %549 = vmatprep.subr.bf16.mxu0 0
    %550 = vmatpush1.bf16.msra.mxu0 0
    %551 = vmatprep.subr.bf16.mxu0 0
    %552 = vmatpush1.bf16.msra.mxu0 0
    %553 = vmatprep.subr.bf16.mxu0 0
    %554 = vmatpush1.bf16.msra.mxu0 0
    %555 = vmatprep.subr.bf16.mxu0 0
    %556 = vmatpush1.bf16.msra.mxu0 0
    %557 = vmatprep.subr.bf16.mxu0 0
    %558 = vmatpush1.bf16.msra.mxu0 0
    %559 = vmatprep.mubr.bf16.mxu0 0
    %560 = vmatmul.mubr.bf16.gmra.mrb[0].mxu0 %v477
    %v561 = vpop.f32.mrb[0].mxu0
    %v562 = vadd.f32 0.0, %v561
    %v563 = vpop.f32.mrb[0].mxu0
    %v564 = vpop.f32.mrb[0].mxu0
    %v565 = vadd.f32 0.0, %v564
    %v566 = vpop.f32.mrb[0].mxu0
    %567 = vdwg.mxu0
    %v568 = vadd.f32 %v438, %v562
    %v569 = vadd.f32 %v439, %v565
    %v570 = vld [vmem:[#allocation2] sm:$0xc]
    %v571 = vld [vmem:[#allocation6 + $0x100] sm:$0xf]
    %v572 = vld [vmem:[#allocation6 + $0x104] sm:$0xf]
    %v573 = vld [vmem:[#allocation6 + $0x108] sm:$0xf]
    %v574 = vld [vmem:[#allocation6 + $0x10c] sm:$0xf]
    %v575 = vld [vmem:[#allocation6 + $0x110] sm:$0xf]
    %v576 = vld [vmem:[#allocation6 + $0x114] sm:$0xf]
    %v577 = vld [vmem:[#allocation6 + $0x118] sm:$0xf]
    %v578 = vld [vmem:[#allocation6 + $0x11c] sm:$0xf]
    %v579 = vld [vmem:[#allocation6 + $0x120] sm:$0xf]
    %v580 = vld [vmem:[#allocation6 + $0x124] sm:$0xf]
    %v581 = vld [vmem:[#allocation6 + $0x128] sm:$0xf]
    %v582 = vld [vmem:[#allocation6 + $0x12c] sm:$0xf]
    %v583 = vld [vmem:[#allocation6 + $0x130] sm:$0xf]
    %v584 = vld [vmem:[#allocation6 + $0x134] sm:$0xf]
    %v585 = vld [vmem:[#allocation6 + $0x138] sm:$0xf]
    %v586 = vld [vmem:[#allocation6 + $0x13c] sm:$0xf]
    %v588 = vunpack.c.l.b16 %v570
    %v589 = vpack.c.b16 %v127, %v588
    %vm590 = vcmask 1045504
    %v591 = vrot.slane %v589, 2
    %v592 = vrot.slane %v459, 2
    %v593 = vsel %vm590, %v591, %v592
    %v611 = vunpack.c.l.b16 %v571
    %v612 = vunpack.c.l.b16 %v572
    %v613 = vunpack.c.l.b16 %v573
    %v614 = vunpack.c.l.b16 %v574
    %v615 = vunpack.c.l.b16 %v575
    %v616 = vunpack.c.l.b16 %v576
    %v617 = vunpack.c.l.b16 %v577
    %v618 = vunpack.c.l.b16 %v578
    %v619 = vunpack.c.l.b16 %v579
    %v620 = vunpack.c.l.b16 %v580
    %v621 = vunpack.c.l.b16 %v581
    %v622 = vunpack.c.l.b16 %v582
    %v623 = vunpack.c.l.b16 %v583
    %v624 = vunpack.c.l.b16 %v584
    %v625 = vunpack.c.l.b16 %v585
    %v626 = vunpack.c.l.b16 %v586
    %v627 = vpack.c.b16 %v612, %v611
    %v628 = vpack.c.b16 %v614, %v613
    %v629 = vpack.c.b16 %v616, %v615
    %v630 = vpack.c.b16 %v618, %v617
    %v631 = vpack.c.b16 %v620, %v619
    %v632 = vpack.c.b16 %v622, %v621
    %v633 = vpack.c.b16 %v624, %v623
    %v634 = vpack.c.b16 %v626, %v625
    %643 = vmatprep.subr.bf16.mxu0 0
    %644 = vmatpush1.bf16.msra.mxu0 %v627
    %645 = vmatprep.subr.bf16.mxu0 0
    %646 = vmatpush1.bf16.msra.mxu0 %v628
    %647 = vmatprep.subr.bf16.mxu0 0
    %648 = vmatpush1.bf16.msra.mxu0 %v629
    %649 = vmatprep.subr.bf16.mxu0 0
    %650 = vmatpush1.bf16.msra.mxu0 %v630
    %651 = vmatprep.subr.bf16.mxu0 0
    %652 = vmatpush1.bf16.msra.mxu0 %v631
    %653 = vmatprep.subr.bf16.mxu0 0
    %654 = vmatpush1.bf16.msra.mxu0 %v632
    %655 = vmatprep.subr.bf16.mxu0 0
    %656 = vmatpush1.bf16.msra.mxu0 %v633
    %657 = vmatprep.subr.bf16.mxu0 0
    %658 = vmatpush1.bf16.msra.mxu0 %v634
    %659 = vmatprep.subr.bf16.mxu0 0
    %660 = vmatpush1.bf16.msra.mxu0 0
    %661 = vmatprep.subr.bf16.mxu0 0
    %662 = vmatpush1.bf16.msra.mxu0 0
    %663 = vmatprep.subr.bf16.mxu0 0
    %664 = vmatpush1.bf16.msra.mxu0 0
    %665 = vmatprep.subr.bf16.mxu0 0
    %666 = vmatpush1.bf16.msra.mxu0 0
    %667 = vmatprep.subr.bf16.mxu0 0
    %668 = vmatpush1.bf16.msra.mxu0 0
    %669 = vmatprep.subr.bf16.mxu0 0
    %670 = vmatpush1.bf16.msra.mxu0 0
    %671 = vmatprep.subr.bf16.mxu0 0
    %672 = vmatpush1.bf16.msra.mxu0 0
    %673 = vmatprep.subr.bf16.mxu0 0
    %674 = vmatpush1.bf16.msra.mxu0 0
    %675 = vmatprep.mubr.bf16.mxu0 0
    %676 = vmatmul.mubr.bf16.gmra.mrb[0].mxu0 %v593
    %v677 = vpop.f32.mrb[0].mxu0
    %v678 = vadd.f32 0.0, %v677
    %v679 = vpop.f32.mrb[0].mxu0
    %v680 = vpop.f32.mrb[0].mxu0
    %v681 = vadd.f32 0.0, %v680
    %v682 = vpop.f32.mrb[0].mxu0
    %683 = vdwg.mxu0
    %v684 = vadd.f32 %v568, %v678
    %v685 = vadd.f32 %v569, %v681
    %v686 = vld [vmem:[#allocation2 + $0x8] sm:$0x7]
    %v687 = vld [vmem:[#allocation6 + $0x140] sm:$0xf]
    %v688 = vld [vmem:[#allocation6 + $0x144] sm:$0xf]
    %v689 = vld [vmem:[#allocation6 + $0x148] sm:$0xf]
    %v690 = vld [vmem:[#allocation6 + $0x14c] sm:$0xf]
    %v691 = vld [vmem:[#allocation6 + $0x150] sm:$0xf]
    %v692 = vld [vmem:[#allocation6 + $0x154] sm:$0xf]
    %v693 = vld [vmem:[#allocation6 + $0x158] sm:$0xf]
    %v694 = vld [vmem:[#allocation6 + $0x15c] sm:$0xf]
    %v695 = vld [vmem:[#allocation6 + $0x160] sm:$0xf]
    %v696 = vld [vmem:[#allocation6 + $0x164] sm:$0xf]
    %v697 = vld [vmem:[#allocation6 + $0x168] sm:$0xf]
    %v698 = vld [vmem:[#allocation6 + $0x16c] sm:$0xf]
    %v699 = vld [vmem:[#allocation6 + $0x170] sm:$0xf]
    %v700 = vld [vmem:[#allocation6 + $0x174] sm:$0xf]
    %v701 = vld [vmem:[#allocation6 + $0x178] sm:$0xf]
    %v702 = vld [vmem:[#allocation6 + $0x17c] sm:$0xf]
    %v704 = vunpack.c.l.b16 %v686
    %v705 = vpack.c.b16 %v704, %v704
    %vm706 = vsmask.f32 5376
    %v708 = vshrl.u32 %v589, 16
    %v710 = vrot.slane %v708, 2
    %v711 = vshll.u32 %v589, 16
    %v713 = vrot.slane %v711, 3
    %v714 = vor.u32 %v710, %v713
    %v716 = vshrl.u32 %v705, 16
    %v718 = vrot.slane %v716, 2
    %v719 = vshll.u32 %v705, 16
    %v721 = vrot.slane %v719, 3
    %v722 = vor.u32 %v718, %v721
    %v723 = vsel %vm706, %v714, %v722
    %v741 = vunpack.c.l.b16 %v687
    %v742 = vunpack.c.l.b16 %v688
    %v743 = vunpack.c.l.b16 %v689
    %v744 = vunpack.c.l.b16 %v690
    %v745 = vunpack.c.l.b16 %v691
    %v746 = vunpack.c.l.b16 %v692
    %v747 = vunpack.c.l.b16 %v693
    %v748 = vunpack.c.l.b16 %v694
    %v749 = vunpack.c.l.b16 %v695
    %v750 = vunpack.c.l.b16 %v696
    %v751 = vunpack.c.l.b16 %v697
    %v752 = vunpack.c.l.b16 %v698
    %v753 = vunpack.c.l.b16 %v699
    %v754 = vunpack.c.l.b16 %v700
    %v755 = vunpack.c.l.b16 %v701
    %v756 = vunpack.c.l.b16 %v702
    %v757 = vpack.c.b16 %v742, %v741
    %v758 = vpack.c.b16 %v744, %v743
    %v759 = vpack.c.b16 %v746, %v745
    %v760 = vpack.c.b16 %v748, %v747
    %v761 = vpack.c.b16 %v750, %v749
    %v762 = vpack.c.b16 %v752, %v751
    %v763 = vpack.c.b16 %v754, %v753
    %v764 = vpack.c.b16 %v756, %v755
    %773 = vmatprep.subr.bf16.mxu0 0
    %774 = vmatpush1.bf16.msra.mxu0 %v757
    %775 = vmatprep.subr.bf16.mxu0 0
    %776 = vmatpush1.bf16.msra.mxu0 %v758
    %777 = vmatprep.subr.bf16.mxu0 0
    %778 = vmatpush1.bf16.msra.mxu0 %v759
    %779 = vmatprep.subr.bf16.mxu0 0
    %780 = vmatpush1.bf16.msra.mxu0 %v760
    %781 = vmatprep.subr.bf16.mxu0 0
    %782 = vmatpush1.bf16.msra.mxu0 %v761
    %783 = vmatprep.subr.bf16.mxu0 0
    %784 = vmatpush1.bf16.msra.mxu0 %v762
    %785 = vmatprep.subr.bf16.mxu0 0
    %786 = vmatpush1.bf16.msra.mxu0 %v763
    %787 = vmatprep.subr.bf16.mxu0 0
    %788 = vmatpush1.bf16.msra.mxu0 %v764
    %789 = vmatprep.subr.bf16.mxu0 0
    %790 = vmatpush1.bf16.msra.mxu0 0
    %791 = vmatprep.subr.bf16.mxu0 0
    %792 = vmatpush1.bf16.msra.mxu0 0
    %793 = vmatprep.subr.bf16.mxu0 0
    %794 = vmatpush1.bf16.msra.mxu0 0
    %795 = vmatprep.subr.bf16.mxu0 0
    %796 = vmatpush1.bf16.msra.mxu0 0
    %797 = vmatprep.subr.bf16.mxu0 0
    %798 = vmatpush1.bf16.msra.mxu0 0
    %799 = vmatprep.subr.bf16.mxu0 0
    %800 = vmatpush1.bf16.msra.mxu0 0
    %801 = vmatprep.subr.bf16.mxu0 0
    %802 = vmatpush1.bf16.msra.mxu0 0
    %803 = vmatprep.subr.bf16.mxu0 0
    %804 = vmatpush1.bf16.msra.mxu0 0
    %805 = vmatprep.mubr.bf16.mxu0 0
    %806 = vmatmul.mubr.bf16.gmra.mrb[0].mxu0 %v723
    %v807 = vpop.f32.mrb[0].mxu0
    %v808 = vadd.f32 0.0, %v807
    %v809 = vpop.f32.mrb[0].mxu0
    %v810 = vpop.f32.mrb[0].mxu0
    %v811 = vadd.f32 0.0, %v810
    %v812 = vpop.f32.mrb[0].mxu0
    %813 = vdwg.mxu0
    %v814 = vadd.f32 %v684, %v808
    %v815 = vadd.f32 %v685, %v811
    %v816 = vld [vmem:[#allocation2] sm:$0x8]
    %v817 = vld [vmem:[#allocation6 + $0x180] sm:$0xf]
    %v818 = vld [vmem:[#allocation6 + $0x184] sm:$0xf]
    %v819 = vld [vmem:[#allocation6 + $0x188] sm:$0xf]
    %v820 = vld [vmem:[#allocation6 + $0x18c] sm:$0xf]
    %v821 = vld [vmem:[#allocation6 + $0x190] sm:$0xf]
    %v822 = vld [vmem:[#allocation6 + $0x194] sm:$0xf]
    %v823 = vld [vmem:[#allocation6 + $0x198] sm:$0xf]
    %v824 = vld [vmem:[#allocation6 + $0x19c] sm:$0xf]
    %v825 = vld [vmem:[#allocation6 + $0x1a0] sm:$0xf]
    %v826 = vld [vmem:[#allocation6 + $0x1a4] sm:$0xf]
    %v827 = vld [vmem:[#allocation6 + $0x1a8] sm:$0xf]
    %v828 = vld [vmem:[#allocation6 + $0x1ac] sm:$0xf]
    %v829 = vld [vmem:[#allocation6 + $0x1b0] sm:$0xf]
    %v830 = vld [vmem:[#allocation6 + $0x1b4] sm:$0xf]
    %v831 = vld [vmem:[#allocation6 + $0x1b8] sm:$0xf]
    %v832 = vld [vmem:[#allocation6 + $0x1bc] sm:$0xf]
    %v834 = vunpack.c.l.b16 %v816
    %v835 = vpack.c.b16 %v127, %v834
    %vm836 = vcmask 1044480
    %v837 = vrot.slane %v835, 3
    %v838 = vrot.slane %v705, 3
    %v839 = vsel %vm836, %v837, %v838
    %v857 = vunpack.c.l.b16 %v817
    %v858 = vunpack.c.l.b16 %v818
    %v859 = vunpack.c.l.b16 %v819
    %v860 = vunpack.c.l.b16 %v820
    %v861 = vunpack.c.l.b16 %v821
    %v862 = vunpack.c.l.b16 %v822
    %v863 = vunpack.c.l.b16 %v823
    %v864 = vunpack.c.l.b16 %v824
    %v865 = vunpack.c.l.b16 %v825
    %v866 = vunpack.c.l.b16 %v826
    %v867 = vunpack.c.l.b16 %v827
    %v868 = vunpack.c.l.b16 %v828
    %v869 = vunpack.c.l.b16 %v829
    %v870 = vunpack.c.l.b16 %v830
    %v871 = vunpack.c.l.b16 %v831
    %v872 = vunpack.c.l.b16 %v832
    %v873 = vpack.c.b16 %v858, %v857
    %v874 = vpack.c.b16 %v860, %v859
    %v875 = vpack.c.b16 %v862, %v861
    %v876 = vpack.c.b16 %v864, %v863
    %v877 = vpack.c.b16 %v866, %v865
    %v878 = vpack.c.b16 %v868, %v867
    %v879 = vpack.c.b16 %v870, %v869
    %v880 = vpack.c.b16 %v872, %v871
    %889 = vmatprep.subr.bf16.mxu0 0
    %890 = vmatpush1.bf16.msra.mxu0 %v873
    %891 = vmatprep.subr.bf16.mxu0 0
    %892 = vmatpush1.bf16.msra.mxu0 %v874
    %893 = vmatprep.subr.bf16.mxu0 0
    %894 = vmatpush1.bf16.msra.mxu0 %v875
    %895 = vmatprep.subr.bf16.mxu0 0
    %896 = vmatpush1.bf16.msra.mxu0 %v876
    %897 = vmatprep.subr.bf16.mxu0 0
    %898 = vmatpush1.bf16.msra.mxu0 %v877
    %899 = vmatprep.subr.bf16.mxu0 0
    %900 = vmatpush1.bf16.msra.mxu0 %v878
    %901 = vmatprep.subr.bf16.mxu0 0
    %902 = vmatpush1.bf16.msra.mxu0 %v879
    %903 = vmatprep.subr.bf16.mxu0 0
    %904 = vmatpush1.bf16.msra.mxu0 %v880
    %905 = vmatprep.subr.bf16.mxu0 0
    %906 = vmatpush1.bf16.msra.mxu0 0
    %907 = vmatprep.subr.bf16.mxu0 0
    %908 = vmatpush1.bf16.msra.mxu0 0
    %909 = vmatprep.subr.bf16.mxu0 0
    %910 = vmatpush1.bf16.msra.mxu0 0
    %911 = vmatprep.subr.bf16.mxu0 0
    %912 = vmatpush1.bf16.msra.mxu0 0
    %913 = vmatprep.subr.bf16.mxu0 0
    %914 = vmatpush1.bf16.msra.mxu0 0
    %915 = vmatprep.subr.bf16.mxu0 0
    %916 = vmatpush1.bf16.msra.mxu0 0
    %917 = vmatprep.subr.bf16.mxu0 0
    %918 = vmatpush1.bf16.msra.mxu0 0
    %919 = vmatprep.subr.bf16.mxu0 0
    %920 = vmatpush1.bf16.msra.mxu0 0
    %921 = vmatprep.mubr.bf16.mxu0 0
    %922 = vmatmul.mubr.bf16.gmra.mrb[0].mxu0 %v839
    %v923 = vpop.f32.mrb[0].mxu0
    %v924 = vadd.f32 0.0, %v923
    %v925 = vpop.f32.mrb[0].mxu0
    %v926 = vpop.f32.mrb[0].mxu0
    %v927 = vadd.f32 0.0, %v926
    %v928 = vpop.f32.mrb[0].mxu0
    %929 = vdwg.mxu0
    %v930 = vadd.f32 %v814, %v924
    %v931 = vadd.f32 %v815, %v927
    %v933 = vlaneseq
    %v934 = vshrl.u32 %v933, 7
    %v935 = vsub.s32 0, %v934
    %v936 = vrot.slane %v47, %v935
    %v938 = vadd.f32 %v930, %v936
    %v939 = vadd.f32 %v931, %v936
    %v940 = vmax.f32 %v938, 0.0
    %v941 = vmax.f32 %v939, 0.0
    %v942 = vpack.c.bf16 %v941, %v940
    %v944 = vcombine.high %v942, %v942
    %v946 = vunpack.c.l.s4 1966171168
    %v947 = vunpack.c.0.s8 %v946
    %v948 = vlaneseq
    %v949 = vshrl.u32 %v948, 7
    %v950 = vsub.s32 %v947, %v949
    %v951 = vrot.slane %v942, %v950
    %v953 = vunpack.c.l.s4 1966171168
    %v954 = vunpack.c.0.s8 %v953
    %v955 = vlaneseq
    %v956 = vshrl.u32 %v955, 7
    %v957 = vsub.s32 %v954, %v956
    %v958 = vrot.slane %v944, %v957
    %v959 = vcombine.high %v951, %v951
    %v960 = vcombine.high %v958, %v958
    %v962 = vunpack.c.l.s4 1966171168
    %v963 = vunpack.c.0.s8 %v962
    %v964 = vlaneseq
    %v965 = vshrl.u32 %v964, 7
    %v966 = vsub.s32 %v963, %v965
    %v967 = vrot.slane %v951, %v966
    %v969 = vunpack.c.l.s4 1966171168
    %v970 = vunpack.c.0.s8 %v969
    %v971 = vlaneseq
    %v972 = vshrl.u32 %v971, 7
    %v973 = vsub.s32 %v970, %v972
    %v974 = vrot.slane %v958, %v973
    %v976 = vunpack.c.l.s4 1966171168
    %v977 = vunpack.c.0.s8 %v976
    %v978 = vlaneseq
    %v979 = vshrl.u32 %v978, 7
    %v980 = vsub.s32 %v977, %v979
    %v981 = vrot.slane %v959, %v980
    %v983 = vunpack.c.l.s4 1966171168
    %v984 = vunpack.c.0.s8 %v983
    %v985 = vlaneseq
    %v986 = vshrl.u32 %v985, 7
    %v987 = vsub.s32 %v984, %v986
    %v988 = vrot.slane %v960, %v987
    %v989 = vcombine.high %v967, %v967
    %v990 = vcombine.high %v974, %v974
    %v991 = vcombine.high %v981, %v981
    %v992 = vcombine.high %v988, %v988
    %v993 = vunpack.i.l.s16 %v967
    %v994 = vunpack.i.h.s16 %v967
    %v995 = vunpack.i.l.s16 %v981
    %v996 = vunpack.i.h.s16 %v981
    %v997 = vunpack.i.l.s16 %v989
    %v998 = vunpack.i.h.s16 %v989
    %v999 = vunpack.i.l.s16 %v991
    %v1000 = vunpack.i.h.s16 %v991
    %v1001 = vunpack.i.l.s16 %v974
    %v1002 = vunpack.i.h.s16 %v974
    %v1003 = vunpack.i.l.s16 %v988
    %v1004 = vunpack.i.h.s16 %v988
    %v1005 = vunpack.i.l.s16 %v990
    %v1006 = vunpack.i.h.s16 %v990
    %v1007 = vunpack.i.l.s16 %v992
    %v1008 = vunpack.i.h.s16 %v992
    %v1009 = vpack.i.b16 %v993, %v993
    %v1010 = vpack.i.b16 %v994, %v994
    %v1011 = vpack.i.b16 %v995, %v995
    %v1012 = vpack.i.b16 %v996, %v996
    %v1013 = vpack.i.b16 %v997, %v997
    %v1014 = vpack.i.b16 %v998, %v998
    %v1015 = vpack.i.b16 %v999, %v999
    %v1016 = vpack.i.b16 %v1000, %v1000
    %v1017 = vpack.i.b16 %v1001, %v1001
    %v1018 = vpack.i.b16 %v1002, %v1002
    %v1019 = vpack.i.b16 %v1003, %v1003
    %v1020 = vpack.i.b16 %v1004, %v1004
    %v1021 = vpack.i.b16 %v1005, %v1005
    %v1022 = vpack.i.b16 %v1006, %v1006
    %v1023 = vpack.i.b16 %v1007, %v1007
    %v1024 = vpack.i.b16 %v1008, %v1008
    %v1026 = vunpack.c.l.s4 286326784
    %v1027 = vunpack.c.0.s8 %v1026
    %v1028 = vlaneseq
    %v1029 = vshrl.u32 %v1028, 7
    %v1030 = vsub.s32 %v1027, %v1029
    %v1031 = vrot.slane %v1009, %v1030
    %v1033 = vunpack.c.l.s4 286326784
    %v1034 = vunpack.c.0.s8 %v1033
    %v1035 = vlaneseq
    %v1036 = vshrl.u32 %v1035, 7
    %v1037 = vsub.s32 %v1034, %v1036
    %v1038 = vrot.slane %v1010, %v1037
    %v1040 = vunpack.c.l.s4 286326784
    %v1041 = vunpack.c.0.s8 %v1040
    %v1042 = vlaneseq
    %v1043 = vshrl.u32 %v1042, 7
    %v1044 = vsub.s32 %v1041, %v1043
    %v1045 = vrot.slane %v1011, %v1044
    %v1047 = vunpack.c.l.s4 286326784
    %v1048 = vunpack.c.0.s8 %v1047
    %v1049 = vlaneseq
    %v1050 = vshrl.u32 %v1049, 7
    %v1051 = vsub.s32 %v1048, %v1050
    %v1052 = vrot.slane %v1012, %v1051
    %v1054 = vunpack.c.l.s4 286326784
    %v1055 = vunpack.c.0.s8 %v1054
    %v1056 = vlaneseq
    %v1057 = vshrl.u32 %v1056, 7
    %v1058 = vsub.s32 %v1055, %v1057
    %v1059 = vrot.slane %v1013, %v1058
    %v1061 = vunpack.c.l.s4 286326784
    %v1062 = vunpack.c.0.s8 %v1061
    %v1063 = vlaneseq
    %v1064 = vshrl.u32 %v1063, 7
    %v1065 = vsub.s32 %v1062, %v1064
    %v1066 = vrot.slane %v1014, %v1065
    %v1068 = vunpack.c.l.s4 286326784
    %v1069 = vunpack.c.0.s8 %v1068
    %v1070 = vlaneseq
    %v1071 = vshrl.u32 %v1070, 7
    %v1072 = vsub.s32 %v1069, %v1071
    %v1073 = vrot.slane %v1015, %v1072
    %v1075 = vunpack.c.l.s4 286326784
    %v1076 = vunpack.c.0.s8 %v1075
    %v1077 = vlaneseq
    %v1078 = vshrl.u32 %v1077, 7
    %v1079 = vsub.s32 %v1076, %v1078
    %v1080 = vrot.slane %v1016, %v1079
    %v1082 = vunpack.c.l.s4 286326784
    %v1083 = vunpack.c.0.s8 %v1082
    %v1084 = vlaneseq
    %v1085 = vshrl.u32 %v1084, 7
    %v1086 = vsub.s32 %v1083, %v1085
    %v1087 = vrot.slane %v1017, %v1086
    %v1089 = vunpack.c.l.s4 286326784
    %v1090 = vunpack.c.0.s8 %v1089
    %v1091 = vlaneseq
    %v1092 = vshrl.u32 %v1091, 7
    %v1093 = vsub.s32 %v1090, %v1092
    %v1094 = vrot.slane %v1018, %v1093
    %v1096 = vunpack.c.l.s4 286326784
    %v1097 = vunpack.c.0.s8 %v1096
    %v1098 = vlaneseq
    %v1099 = vshrl.u32 %v1098, 7
    %v1100 = vsub.s32 %v1097, %v1099
    %v1101 = vrot.slane %v1019, %v1100
    %v1103 = vunpack.c.l.s4 286326784
    %v1104 = vunpack.c.0.s8 %v1103
    %v1105 = vlaneseq
    %v1106 = vshrl.u32 %v1105, 7
    %v1107 = vsub.s32 %v1104, %v1106
    %v1108 = vrot.slane %v1020, %v1107
    %v1110 = vunpack.c.l.s4 286326784
    %v1111 = vunpack.c.0.s8 %v1110
    %v1112 = vlaneseq
    %v1113 = vshrl.u32 %v1112, 7
    %v1114 = vsub.s32 %v1111, %v1113
    %v1115 = vrot.slane %v1021, %v1114
    %v1117 = vunpack.c.l.s4 286326784
    %v1118 = vunpack.c.0.s8 %v1117
    %v1119 = vlaneseq
    %v1120 = vshrl.u32 %v1119, 7
    %v1121 = vsub.s32 %v1118, %v1120
    %v1122 = vrot.slane %v1022, %v1121
    %v1124 = vunpack.c.l.s4 286326784
    %v1125 = vunpack.c.0.s8 %v1124
    %v1126 = vlaneseq
    %v1127 = vshrl.u32 %v1126, 7
    %v1128 = vsub.s32 %v1125, %v1127
    %v1129 = vrot.slane %v1023, %v1128
    %v1131 = vunpack.c.l.s4 286326784
    %v1132 = vunpack.c.0.s8 %v1131
    %v1133 = vlaneseq
    %v1134 = vshrl.u32 %v1133, 7
    %v1135 = vsub.s32 %v1132, %v1134
    %v1136 = vrot.slane %v1024, %v1135
    %vm1153 = vcmask 1040384
    %vm1154 = vsmask.f32 256
    %vm1155 = vmand %vm1153, %vm1154
    %v1156 = vld [vmem:[#allocation8] sm:$0x1]
    %v1157 = vsel %vm1155, %v1031, %v1156
    %1158 = vst [vmem:[#allocation8] sm:$0x1] %v1157
    %v1159 = vld [vmem:[#allocation8 + $0x4] sm:$0x1]
    %v1160 = vsel %vm1155, %v1038, %v1159
    %1161 = vst [vmem:[#allocation8 + $0x4] sm:$0x1] %v1160
    %v1162 = vld [vmem:[#allocation8 + $0x8] sm:$0x1]
    %v1163 = vsel %vm1155, %v1045, %v1162
    %1164 = vst [vmem:[#allocation8 + $0x8] sm:$0x1] %v1163
    %v1165 = vld [vmem:[#allocation8 + $0xc] sm:$0x1]
    %v1166 = vsel %vm1155, %v1052, %v1165
    %1167 = vst [vmem:[#allocation8 + $0xc] sm:$0x1] %v1166
    %v1168 = vld [vmem:[#allocation8 + $0x10] sm:$0x1]
    %v1169 = vsel %vm1155, %v1059, %v1168
    %1170 = vst [vmem:[#allocation8 + $0x10] sm:$0x1] %v1169
    %v1171 = vld [vmem:[#allocation8 + $0x14] sm:$0x1]
    %v1172 = vsel %vm1155, %v1066, %v1171
    %1173 = vst [vmem:[#allocation8 + $0x14] sm:$0x1] %v1172
    %v1174 = vld [vmem:[#allocation8 + $0x18] sm:$0x1]
    %v1175 = vsel %vm1155, %v1073, %v1174
    %1176 = vst [vmem:[#allocation8 + $0x18] sm:$0x1] %v1175
    %v1177 = vld [vmem:[#allocation8 + $0x1c] sm:$0x1]
    %v1178 = vsel %vm1155, %v1080, %v1177
    %1179 = vst [vmem:[#allocation8 + $0x1c] sm:$0x1] %v1178
    %v1180 = vld [vmem:[#allocation8 + $0x20] sm:$0x1]
    %v1181 = vsel %vm1155, %v1087, %v1180
    %1182 = vst [vmem:[#allocation8 + $0x20] sm:$0x1] %v1181
    %v1183 = vld [vmem:[#allocation8 + $0x24] sm:$0x1]
    %v1184 = vsel %vm1155, %v1094, %v1183
    %1185 = vst [vmem:[#allocation8 + $0x24] sm:$0x1] %v1184
    %v1186 = vld [vmem:[#allocation8 + $0x28] sm:$0x1]
    %v1187 = vsel %vm1155, %v1101, %v1186
    %1188 = vst [vmem:[#allocation8 + $0x28] sm:$0x1] %v1187
    %v1189 = vld [vmem:[#allocation8 + $0x2c] sm:$0x1]
    %v1190 = vsel %vm1155, %v1108, %v1189
    %1191 = vst [vmem:[#allocation8 + $0x2c] sm:$0x1] %v1190
    %v1192 = vld [vmem:[#allocation8 + $0x30] sm:$0x1]
    %v1193 = vsel %vm1155, %v1115, %v1192
    %1194 = vst [vmem:[#allocation8 + $0x30] sm:$0x1] %v1193
    %v1195 = vld [vmem:[#allocation8 + $0x34] sm:$0x1]
    %v1196 = vsel %vm1155, %v1122, %v1195
    %1197 = vst [vmem:[#allocation8 + $0x34] sm:$0x1] %v1196
    %v1198 = vld [vmem:[#allocation8 + $0x38] sm:$0x1]
    %v1199 = vsel %vm1155, %v1129, %v1198
    %1200 = vst [vmem:[#allocation8 + $0x38] sm:$0x1] %v1199
    %v1201 = vld [vmem:[#allocation8 + $0x3c] sm:$0x1]
    %v1202 = vsel %vm1155, %v1136, %v1201
    %1203 = vst [vmem:[#allocation8 + $0x3c] sm:$0x1] %v1202
    %s1204 = scalar_lea.vmem [#allocation3], 8
    %v1205 = vld [vmem:[%s1204] sm:$0xf]
    %v1206 = vld [vmem:[%s1204 + $0x4] sm:$0xf]
    %v1208 = vshrl.u32 %v1205, 16
    %v1210 = vrot.slane %v1208, 6
    %v1211 = vshll.u32 %v1205, 16
    %v1213 = vrot.slane %v1211, 7
    %v1214 = vor.u32 %v1210, %v1213
    %v1215 = vrot.slane %v1214, 4
    %v1217 = vshrl.u32 %v1206, 16
    %v1219 = vrot.slane %v1217, 6
    %v1220 = vshll.u32 %v1206, 16
    %v1222 = vrot.slane %v1220, 7
    %v1223 = vor.u32 %v1219, %v1222
    %v1224 = vsel %vm52, %v1215, %v1223
    %v1225 = vrot.slane %v1223, 4
    %v1229 = vld [vmem:[#allocation2] sm:$0xe]
    %v1230 = vsel %vm77, %v1214, %v1229
    %1231 = vst [vmem:[#allocation2] sm:$0xe] %v1230
    %1232 = vst.msk [vmem:[#allocation2 + $0x4] sm:$0xf] %vm81, %v1224
    %v1233 = vld [vmem:[#allocation2 + $0x8] sm:$0x3]
    %v1234 = vsel %vm84, %v1225, %v1233
    %1235 = vst [vmem:[#allocation2 + $0x8] sm:$0x3] %v1234
    %v1236 = vld [vmem:[#allocation2] sm:$0xf]
    %v1237 = vld [vmem:[#allocation2 + $0x4] sm:$0xf]
    %v1238 = vld [vmem:[#allocation6] sm:$0xf]
    %v1239 = vld [vmem:[#allocation6 + $0x4] sm:$0xf]
    %v1240 = vld [vmem:[#allocation6 + $0x8] sm:$0xf]
    %v1241 = vld [vmem:[#allocation6 + $0xc] sm:$0xf]
    %v1242 = vld [vmem:[#allocation6 + $0x10] sm:$0xf]
    %v1243 = vld [vmem:[#allocation6 + $0x14] sm:$0xf]
    %v1244 = vld [vmem:[#allocation6 + $0x18] sm:$0xf]
    %v1245 = vld [vmem:[#allocation6 + $0x1c] sm:$0xf]
    %v1246 = vld [vmem:[#allocation6 + $0x20] sm:$0xf]
    %v1247 = vld [vmem:[#allocation6 + $0x24] sm:$0xf]
    %v1248 = vld [vmem:[#allocation6 + $0x28] sm:$0xf]
    %v1249 = vld [vmem:[#allocation6 + $0x2c] sm:$0xf]
    %v1250 = vld [vmem:[#allocation6 + $0x30] sm:$0xf]
    %v1251 = vld [vmem:[#allocation6 + $0x34] sm:$0xf]
    %v1252 = vld [vmem:[#allocation6 + $0x38] sm:$0xf]
    %v1253 = vld [vmem:[#allocation6 + $0x3c] sm:$0xf]
    %v1254 = vld [vmem:[#allocation2 + $0x8] sm:$0x1]
    %v1255 = vld [vmem:[#allocation6 + $0x40] sm:$0xf]
    %v1256 = vld [vmem:[#allocation6 + $0x44] sm:$0xf]
    %v1257 = vld [vmem:[#allocation6 + $0x48] sm:$0xf]
    %v1258 = vld [vmem:[#allocation6 + $0x4c] sm:$0xf]
    %v1259 = vld [vmem:[#allocation6 + $0x50] sm:$0xf]
    %v1260 = vld [vmem:[#allocation6 + $0x54] sm:$0xf]
    %v1261 = vld [vmem:[#allocation6 + $0x58] sm:$0xf]
    %v1262 = vld [vmem:[#allocation6 + $0x5c] sm:$0xf]
    %v1263 = vld [vmem:[#allocation6 + $0x60] sm:$0xf]
    %v1264 = vld [vmem:[#allocation6 + $0x64] sm:$0xf]
    %v1265 = vld [vmem:[#allocation6 + $0x68] sm:$0xf]
    %v1266 = vld [vmem:[#allocation6 + $0x6c] sm:$0xf]
    %v1267 = vld [vmem:[#allocation6 + $0x70] sm:$0xf]
    %v1268 = vld [vmem:[#allocation6 + $0x74] sm:$0xf]
    %v1269 = vld [vmem:[#allocation6 + $0x78] sm:$0xf]
    %v1270 = vld [vmem:[#allocation6 + $0x7c] sm:$0xf]
    %v1274 = vunpack.c.l.b16 %v1236
    %v1275 = vunpack.c.l.b16 %v1237
    %v1276 = vunpack.c.l.b16 %v1254
    %v1277 = vpack.c.b16 %v1275, %v1274
    %v1278 = vpack.c.b16 %v1276, %v1276
    %v1280 = vshrl.u32 %v1277, 16
    %v1282 = vshll.u32 %v1277, 16
    %v1284 = vrot.slane %v1282, 1
    %v1285 = vor.u32 %v1280, %v1284
    %v1287 = vshll.u32 %v1278, 16
    %v1289 = vrot.slane %v1287, 1
    %v1290 = vsel %vm131, %v1285, %v1289
    %v1308 = vunpack.c.l.b16 %v1255
    %v1309 = vunpack.c.l.b16 %v1256
    %v1310 = vunpack.c.l.b16 %v1257
    %v1311 = vunpack.c.l.b16 %v1258
    %v1312 = vunpack.c.l.b16 %v1259
    %v1313 = vunpack.c.l.b16 %v1260
    %v1314 = vunpack.c.l.b16 %v1261
    %v1315 = vunpack.c.l.b16 %v1262
    %v1316 = vunpack.c.l.b16 %v1263
    %v1317 = vunpack.c.l.b16 %v1264
    %v1318 = vunpack.c.l.b16 %v1265
    %v1319 = vunpack.c.l.b16 %v1266
    %v1320 = vunpack.c.l.b16 %v1267
    %v1321 = vunpack.c.l.b16 %v1268
    %v1322 = vunpack.c.l.b16 %v1269
    %v1323 = vunpack.c.l.b16 %v1270
    %v1324 = vpack.c.b16 %v1309, %v1308
    %v1325 = vpack.c.b16 %v1311, %v1310
    %v1326 = vpack.c.b16 %v1313, %v1312
    %v1327 = vpack.c.b16 %v1315, %v1314
    %v1328 = vpack.c.b16 %v1317, %v1316
    %v1329 = vpack.c.b16 %v1319, %v1318
    %v1330 = vpack.c.b16 %v1321, %v1320
    %v1331 = vpack.c.b16 %v1323, %v1322
    %1340 = vmatprep.subr.bf16.mxu0 0
    %1341 = vmatpush1.bf16.msra.mxu0 %v1324
    %1342 = vmatprep.subr.bf16.mxu0 0
    %1343 = vmatpush1.bf16.msra.mxu0 %v1325
    %1344 = vmatprep.subr.bf16.mxu0 0
    %1345 = vmatpush1.bf16.msra.mxu0 %v1326
    %1346 = vmatprep.subr.bf16.mxu0 0
    %1347 = vmatpush1.bf16.msra.mxu0 %v1327
    %1348 = vmatprep.subr.bf16.mxu0 0
    %1349 = vmatpush1.bf16.msra.mxu0 %v1328
    %1350 = vmatprep.subr.bf16.mxu0 0
    %1351 = vmatpush1.bf16.msra.mxu0 %v1329
    %1352 = vmatprep.subr.bf16.mxu0 0
    %1353 = vmatpush1.bf16.msra.mxu0 %v1330
    %1354 = vmatprep.subr.bf16.mxu0 0
    %1355 = vmatpush1.bf16.msra.mxu0 %v1331
    %1356 = vmatprep.subr.bf16.mxu0 0
    %1357 = vmatpush1.bf16.msra.mxu0 0
    %1358 = vmatprep.subr.bf16.mxu0 0
    %1359 = vmatpush1.bf16.msra.mxu0 0
    %1360 = vmatprep.subr.bf16.mxu0 0
    %1361 = vmatpush1.bf16.msra.mxu0 0
    %1362 = vmatprep.subr.bf16.mxu0 0
    %1363 = vmatpush1.bf16.msra.mxu0 0
    %1364 = vmatprep.subr.bf16.mxu0 0
    %1365 = vmatpush1.bf16.msra.mxu0 0
    %1366 = vmatprep.subr.bf16.mxu0 0
    %1367 = vmatpush1.bf16.msra.mxu0 0
    %1368 = vmatprep.subr.bf16.mxu0 0
    %1369 = vmatpush1.bf16.msra.mxu0 0
    %1370 = vmatprep.subr.bf16.mxu0 0
    %1371 = vmatpush1.bf16.msra.mxu0 0
    %1372 = vmatprep.mubr.bf16.mxu0 0
    %1373 = vmatmul.mubr.bf16.gmra.mrb[0].mxu0 %v1290
    %v1374 = vpop.f32.mrb[0].mxu0
    %v1375 = vadd.f32 0.0, %v1374
    %v1376 = vpop.f32.mrb[0].mxu0
    %v1377 = vpop.f32.mrb[0].mxu0
    %v1378 = vadd.f32 0.0, %v1377
    %v1379 = vpop.f32.mrb[0].mxu0
    %1380 = vdwg.mxu0
    %v1398 = vunpack.c.l.b16 %v1238
    %v1399 = vunpack.c.l.b16 %v1239
    %v1400 = vunpack.c.l.b16 %v1240
    %v1401 = vunpack.c.l.b16 %v1241
    %v1402 = vunpack.c.l.b16 %v1242
    %v1403 = vunpack.c.l.b16 %v1243
    %v1404 = vunpack.c.l.b16 %v1244
    %v1405 = vunpack.c.l.b16 %v1245
    %v1406 = vunpack.c.l.b16 %v1246
    %v1407 = vunpack.c.l.b16 %v1247
    %v1408 = vunpack.c.l.b16 %v1248
    %v1409 = vunpack.c.l.b16 %v1249
    %v1410 = vunpack.c.l.b16 %v1250
    %v1411 = vunpack.c.l.b16 %v1251
    %v1412 = vunpack.c.l.b16 %v1252
    %v1413 = vunpack.c.l.b16 %v1253
    %v1414 = vpack.c.b16 %v1399, %v1398
    %v1415 = vpack.c.b16 %v1401, %v1400
    %v1416 = vpack.c.b16 %v1403, %v1402
    %v1417 = vpack.c.b16 %v1405, %v1404
    %v1418 = vpack.c.b16 %v1407, %v1406
    %v1419 = vpack.c.b16 %v1409, %v1408
    %v1420 = vpack.c.b16 %v1411, %v1410
    %v1421 = vpack.c.b16 %v1413, %v1412
    %1430 = vmatprep.subr.bf16.mxu0 0
    %1431 = vmatpush1.bf16.msra.mxu0 %v1414
    %1432 = vmatprep.subr.bf16.mxu0 0
    %1433 = vmatpush1.bf16.msra.mxu0 %v1415
    %1434 = vmatprep.subr.bf16.mxu0 0
    %1435 = vmatpush1.bf16.msra.mxu0 %v1416
    %1436 = vmatprep.subr.bf16.mxu0 0
    %1437 = vmatpush1.bf16.msra.mxu0 %v1417
    %1438 = vmatprep.subr.bf16.mxu0 0
    %1439 = vmatpush1.bf16.msra.mxu0 %v1418
    %1440 = vmatprep.subr.bf16.mxu0 0
    %1441 = vmatpush1.bf16.msra.mxu0 %v1419
    %1442 = vmatprep.subr.bf16.mxu0 0
    %1443 = vmatpush1.bf16.msra.mxu0 %v1420
    %1444 = vmatprep.subr.bf16.mxu0 0
    %1445 = vmatpush1.bf16.msra.mxu0 %v1421
    %1446 = vmatprep.subr.bf16.mxu0 0
    %1447 = vmatpush1.bf16.msra.mxu0 0
    %1448 = vmatprep.subr.bf16.mxu0 0
    %1449 = vmatpush1.bf16.msra.mxu0 0
    %1450 = vmatprep.subr.bf16.mxu0 0
    %1451 = vmatpush1.bf16.msra.mxu0 0
    %1452 = vmatprep.subr.bf16.mxu0 0
    %1453 = vmatpush1.bf16.msra.mxu0 0
    %1454 = vmatprep.subr.bf16.mxu0 0
    %1455 = vmatpush1.bf16.msra.mxu0 0
    %1456 = vmatprep.subr.bf16.mxu0 0
    %1457 = vmatpush1.bf16.msra.mxu0 0
    %1458 = vmatprep.subr.bf16.mxu0 0
    %1459 = vmatpush1.bf16.msra.mxu0 0
    %1460 = vmatprep.subr.bf16.mxu0 0
    %1461 = vmatpush1.bf16.msra.mxu0 0
    %1462 = vmatprep.mubr.bf16.mxu0 0
    %1463 = vmatmul.mubr.bf16.gmra.mrb[0].mxu0 %v1277
    %v1464 = vpop.f32.mrb[0].mxu0
    %v1465 = vadd.f32 %v1375, %v1464
    %v1466 = vpop.f32.mrb[0].mxu0
    %v1467 = vpop.f32.mrb[0].mxu0
    %v1468 = vadd.f32 %v1378, %v1467
    %v1469 = vpop.f32.mrb[0].mxu0
    %1470 = vdwg.mxu0
    %v1471 = vld [vmem:[#allocation2] sm:$0xe]
    %v1472 = vld [vmem:[#allocation6 + $0x80] sm:$0xf]
    %v1473 = vld [vmem:[#allocation6 + $0x84] sm:$0xf]
    %v1474 = vld [vmem:[#allocation6 + $0x88] sm:$0xf]
    %v1475 = vld [vmem:[#allocation6 + $0x8c] sm:$0xf]
    %v1476 = vld [vmem:[#allocation6 + $0x90] sm:$0xf]
    %v1477 = vld [vmem:[#allocation6 + $0x94] sm:$0xf]
    %v1478 = vld [vmem:[#allocation6 + $0x98] sm:$0xf]
    %v1479 = vld [vmem:[#allocation6 + $0x9c] sm:$0xf]
    %v1480 = vld [vmem:[#allocation6 + $0xa0] sm:$0xf]
    %v1481 = vld [vmem:[#allocation6 + $0xa4] sm:$0xf]
    %v1482 = vld [vmem:[#allocation6 + $0xa8] sm:$0xf]
    %v1483 = vld [vmem:[#allocation6 + $0xac] sm:$0xf]
    %v1484 = vld [vmem:[#allocation6 + $0xb0] sm:$0xf]
    %v1485 = vld [vmem:[#allocation6 + $0xb4] sm:$0xf]
    %v1486 = vld [vmem:[#allocation6 + $0xb8] sm:$0xf]
    %v1487 = vld [vmem:[#allocation6 + $0xbc] sm:$0xf]
    %v1489 = vunpack.c.l.b16 %v1471
    %v1490 = vpack.c.b16 %v1275, %v1489
    %v1491 = vrot.slane %v1490, 1
    %v1492 = vrot.slane %v1278, 1
    %v1493 = vsel %vm344, %v1491, %v1492
    %v1511 = vunpack.c.l.b16 %v1472
    %v1512 = vunpack.c.l.b16 %v1473
    %v1513 = vunpack.c.l.b16 %v1474
    %v1514 = vunpack.c.l.b16 %v1475
    %v1515 = vunpack.c.l.b16 %v1476
    %v1516 = vunpack.c.l.b16 %v1477
    %v1517 = vunpack.c.l.b16 %v1478
    %v1518 = vunpack.c.l.b16 %v1479
    %v1519 = vunpack.c.l.b16 %v1480
    %v1520 = vunpack.c.l.b16 %v1481
    %v1521 = vunpack.c.l.b16 %v1482
    %v1522 = vunpack.c.l.b16 %v1483
    %v1523 = vunpack.c.l.b16 %v1484
    %v1524 = vunpack.c.l.b16 %v1485
    %v1525 = vunpack.c.l.b16 %v1486
    %v1526 = vunpack.c.l.b16 %v1487
    %v1527 = vpack.c.b16 %v1512, %v1511
    %v1528 = vpack.c.b16 %v1514, %v1513
    %v1529 = vpack.c.b16 %v1516, %v1515
    %v1530 = vpack.c.b16 %v1518, %v1517
    %v1531 = vpack.c.b16 %v1520, %v1519
    %v1532 = vpack.c.b16 %v1522, %v1521
    %v1533 = vpack.c.b16 %v1524, %v1523
    %v1534 = vpack.c.b16 %v1526, %v1525
    %1543 = vmatprep.subr.bf16.mxu0 0
    %1544 = vmatpush1.bf16.msra.mxu0 %v1527
    %1545 = vmatprep.subr.bf16.mxu0 0
    %1546 = vmatpush1.bf16.msra.mxu0 %v1528
    %1547 = vmatprep.subr.bf16.mxu0 0
    %1548 = vmatpush1.bf16.msra.mxu0 %v1529
    %1549 = vmatprep.subr.bf16.mxu0 0
    %1550 = vmatpush1.bf16.msra.mxu0 %v1530
    %1551 = vmatprep.subr.bf16.mxu0 0
    %1552 = vmatpush1.bf16.msra.mxu0 %v1531
    %1553 = vmatprep.subr.bf16.mxu0 0
    %1554 = vmatpush1.bf16.msra.mxu0 %v1532
    %1555 = vmatprep.subr.bf16.mxu0 0
    %1556 = vmatpush1.bf16.msra.mxu0 %v1533
    %1557 = vmatprep.subr.bf16.mxu0 0
    %1558 = vmatpush1.bf16.msra.mxu0 %v1534
    %1559 = vmatprep.subr.bf16.mxu0 0
    %1560 = vmatpush1.bf16.msra.mxu0 0
    %1561 = vmatprep.subr.bf16.mxu0 0
    %1562 = vmatpush1.bf16.msra.mxu0 0
    %1563 = vmatprep.subr.bf16.mxu0 0
    %1564 = vmatpush1.bf16.msra.mxu0 0
    %1565 = vmatprep.subr.bf16.mxu0 0
    %1566 = vmatpush1.bf16.msra.mxu0 0
    %1567 = vmatprep.subr.bf16.mxu0 0
    %1568 = vmatpush1.bf16.msra.mxu0 0
    %1569 = vmatprep.subr.bf16.mxu0 0
    %1570 = vmatpush1.bf16.msra.mxu0 0
    %1571 = vmatprep.subr.bf16.mxu0 0
    %1572 = vmatpush1.bf16.msra.mxu0 0
    %1573 = vmatprep.subr.bf16.mxu0 0
    %1574 = vmatpush1.bf16.msra.mxu0 0
    %1575 = vmatprep.mubr.bf16.mxu0 0
    %1576 = vmatmul.mubr.bf16.gmra.mrb[0].mxu0 %v1493
    %v1577 = vpop.f32.mrb[0].mxu0
    %v1578 = vadd.f32 0.0, %v1577
    %v1579 = vpop.f32.mrb[0].mxu0
    %v1580 = vpop.f32.mrb[0].mxu0
    %v1581 = vadd.f32 0.0, %v1580
    %v1582 = vpop.f32.mrb[0].mxu0
    %1583 = vdwg.mxu0
    %v1584 = vadd.f32 %v1465, %v1578
    %v1585 = vadd.f32 %v1468, %v1581
    %v1586 = vld [vmem:[#allocation2 + $0x8] sm:$0x3]
    %v1587 = vld [vmem:[#allocation6 + $0xc0] sm:$0xf]
    %v1588 = vld [vmem:[#allocation6 + $0xc4] sm:$0xf]
    %v1589 = vld [vmem:[#allocation6 + $0xc8] sm:$0xf]
    %v1590 = vld [vmem:[#allocation6 + $0xcc] sm:$0xf]
    %v1591 = vld [vmem:[#allocation6 + $0xd0] sm:$0xf]
    %v1592 = vld [vmem:[#allocation6 + $0xd4] sm:$0xf]
    %v1593 = vld [vmem:[#allocation6 + $0xd8] sm:$0xf]
    %v1594 = vld [vmem:[#allocation6 + $0xdc] sm:$0xf]
    %v1595 = vld [vmem:[#allocation6 + $0xe0] sm:$0xf]
    %v1596 = vld [vmem:[#allocation6 + $0xe4] sm:$0xf]
    %v1597 = vld [vmem:[#allocation6 + $0xe8] sm:$0xf]
    %v1598 = vld [vmem:[#allocation6 + $0xec] sm:$0xf]
    %v1599 = vld [vmem:[#allocation6 + $0xf0] sm:$0xf]
    %v1600 = vld [vmem:[#allocation6 + $0xf4] sm:$0xf]
    %v1601 = vld [vmem:[#allocation6 + $0xf8] sm:$0xf]
    %v1602 = vld [vmem:[#allocation6 + $0xfc] sm:$0xf]
    %v1604 = vunpack.c.l.b16 %v1586
    %v1605 = vpack.c.b16 %v1604, %v1604
    %v1607 = vshrl.u32 %v1490, 16
    %v1609 = vrot.slane %v1607, 1
    %v1610 = vshll.u32 %v1490, 16
    %v1612 = vrot.slane %v1610, 2
    %v1613 = vor.u32 %v1609, %v1612
    %v1615 = vshrl.u32 %v1605, 16
    %v1617 = vrot.slane %v1615, 1
    %v1618 = vshll.u32 %v1605, 16
    %v1620 = vrot.slane %v1618, 2
    %v1621 = vor.u32 %v1617, %v1620
    %v1622 = vsel %vm460, %v1613, %v1621
    %v1640 = vunpack.c.l.b16 %v1587
    %v1641 = vunpack.c.l.b16 %v1588
    %v1642 = vunpack.c.l.b16 %v1589
    %v1643 = vunpack.c.l.b16 %v1590
    %v1644 = vunpack.c.l.b16 %v1591
    %v1645 = vunpack.c.l.b16 %v1592
    %v1646 = vunpack.c.l.b16 %v1593
    %v1647 = vunpack.c.l.b16 %v1594
    %v1648 = vunpack.c.l.b16 %v1595
    %v1649 = vunpack.c.l.b16 %v1596
    %v1650 = vunpack.c.l.b16 %v1597
    %v1651 = vunpack.c.l.b16 %v1598
    %v1652 = vunpack.c.l.b16 %v1599
    %v1653 = vunpack.c.l.b16 %v1600
    %v1654 = vunpack.c.l.b16 %v1601
    %v1655 = vunpack.c.l.b16 %v1602
    %v1656 = vpack.c.b16 %v1641, %v1640
    %v1657 = vpack.c.b16 %v1643, %v1642
    %v1658 = vpack.c.b16 %v1645, %v1644
    %v1659 = vpack.c.b16 %v1647, %v1646
    %v1660 = vpack.c.b16 %v1649, %v1648
    %v1661 = vpack.c.b16 %v1651, %v1650
    %v1662 = vpack.c.b16 %v1653, %v1652
    %v1663 = vpack.c.b16 %v1655, %v1654
    %1672 = vmatprep.subr.bf16.mxu0 0
    %1673 = vmatpush1.bf16.msra.mxu0 %v1656
    %1674 = vmatprep.subr.bf16.mxu0 0
    %1675 = vmatpush1.bf16.msra.mxu0 %v1657
    %1676 = vmatprep.subr.bf16.mxu0 0
    %1677 = vmatpush1.bf16.msra.mxu0 %v1658
    %1678 = vmatprep.subr.bf16.mxu0 0
    %1679 = vmatpush1.bf16.msra.mxu0 %v1659
    %1680 = vmatprep.subr.bf16.mxu0 0
    %1681 = vmatpush1.bf16.msra.mxu0 %v1660
    %1682 = vmatprep.subr.bf16.mxu0 0
    %1683 = vmatpush1.bf16.msra.mxu0 %v1661
    %1684 = vmatprep.subr.bf16.mxu0 0
    %1685 = vmatpush1.bf16.msra.mxu0 %v1662
    %1686 = vmatprep.subr.bf16.mxu0 0
    %1687 = vmatpush1.bf16.msra.mxu0 %v1663
    %1688 = vmatprep.subr.bf16.mxu0 0
    %1689 = vmatpush1.bf16.msra.mxu0 0
    %1690 = vmatprep.subr.bf16.mxu0 0
    %1691 = vmatpush1.bf16.msra.mxu0 0
    %1692 = vmatprep.subr.bf16.mxu0 0
    %1693 = vmatpush1.bf16.msra.mxu0 0
    %1694 = vmatprep.subr.bf16.mxu0 0
    %1695 = vmatpush1.bf16.msra.mxu0 0
    %1696 = vmatprep.subr.bf16.mxu0 0
    %1697 = vmatpush1.bf16.msra.mxu0 0
    %1698 = vmatprep.subr.bf16.mxu0 0
    %1699 = vmatpush1.bf16.msra.mxu0 0
    %1700 = vmatprep.subr.bf16.mxu0 0
    %1701 = vmatpush1.bf16.msra.mxu0 0
    %1702 = vmatprep.subr.bf16.mxu0 0
    %1703 = vmatpush1.bf16.msra.mxu0 0
    %1704 = vmatprep.mubr.bf16.mxu0 0
    %1705 = vmatmul.mubr.bf16.gmra.mrb[0].mxu0 %v1622
    %v1706 = vpop.f32.mrb[0].mxu0
    %v1707 = vadd.f32 0.0, %v1706
    %v1708 = vpop.f32.mrb[0].mxu0
    %v1709 = vpop.f32.mrb[0].mxu0
    %v1710 = vadd.f32 0.0, %v1709
    %v1711 = vpop.f32.mrb[0].mxu0
    %1712 = vdwg.mxu0
    %v1713 = vadd.f32 %v1584, %v1707
    %v1714 = vadd.f32 %v1585, %v1710
    %v1715 = vld [vmem:[#allocation2] sm:$0xc]
    %v1716 = vld [vmem:[#allocation6 + $0x100] sm:$0xf]
    %v1717 = vld [vmem:[#allocation6 + $0x104] sm:$0xf]
    %v1718 = vld [vmem:[#allocation6 + $0x108] sm:$0xf]
    %v1719 = vld [vmem:[#allocation6 + $0x10c] sm:$0xf]
    %v1720 = vld [vmem:[#allocation6 + $0x110] sm:$0xf]
    %v1721 = vld [vmem:[#allocation6 + $0x114] sm:$0xf]
    %v1722 = vld [vmem:[#allocation6 + $0x118] sm:$0xf]
    %v1723 = vld [vmem:[#allocation6 + $0x11c] sm:$0xf]
    %v1724 = vld [vmem:[#allocation6 + $0x120] sm:$0xf]
    %v1725 = vld [vmem:[#allocation6 + $0x124] sm:$0xf]
    %v1726 = vld [vmem:[#allocation6 + $0x128] sm:$0xf]
    %v1727 = vld [vmem:[#allocation6 + $0x12c] sm:$0xf]
    %v1728 = vld [vmem:[#allocation6 + $0x130] sm:$0xf]
    %v1729 = vld [vmem:[#allocation6 + $0x134] sm:$0xf]
    %v1730 = vld [vmem:[#allocation6 + $0x138] sm:$0xf]
    %v1731 = vld [vmem:[#allocation6 + $0x13c] sm:$0xf]
    %v1733 = vunpack.c.l.b16 %v1715
    %v1734 = vpack.c.b16 %v1275, %v1733
    %v1735 = vrot.slane %v1734, 2
    %v1736 = vrot.slane %v1605, 2
    %v1737 = vsel %vm590, %v1735, %v1736
    %v1755 = vunpack.c.l.b16 %v1716
    %v1756 = vunpack.c.l.b16 %v1717
    %v1757 = vunpack.c.l.b16 %v1718
    %v1758 = vunpack.c.l.b16 %v1719
    %v1759 = vunpack.c.l.b16 %v1720
    %v1760 = vunpack.c.l.b16 %v1721
    %v1761 = vunpack.c.l.b16 %v1722
    %v1762 = vunpack.c.l.b16 %v1723
    %v1763 = vunpack.c.l.b16 %v1724
    %v1764 = vunpack.c.l.b16 %v1725
    %v1765 = vunpack.c.l.b16 %v1726
    %v1766 = vunpack.c.l.b16 %v1727
    %v1767 = vunpack.c.l.b16 %v1728
    %v1768 = vunpack.c.l.b16 %v1729
    %v1769 = vunpack.c.l.b16 %v1730
    %v1770 = vunpack.c.l.b16 %v1731
    %v1771 = vpack.c.b16 %v1756, %v1755
    %v1772 = vpack.c.b16 %v1758, %v1757
    %v1773 = vpack.c.b16 %v1760, %v1759
    %v1774 = vpack.c.b16 %v1762, %v1761
    %v1775 = vpack.c.b16 %v1764, %v1763
    %v1776 = vpack.c.b16 %v1766, %v1765
    %v1777 = vpack.c.b16 %v1768, %v1767
    %v1778 = vpack.c.b16 %v1770, %v1769
    %1787 = vmatprep.subr.bf16.mxu0 0
    %1788 = vmatpush1.bf16.msra.mxu0 %v1771
    %1789 = vmatprep.subr.bf16.mxu0 0
    %1790 = vmatpush1.bf16.msra.mxu0 %v1772
    %1791 = vmatprep.subr.bf16.mxu0 0
    %1792 = vmatpush1.bf16.msra.mxu0 %v1773
    %1793 = vmatprep.subr.bf16.mxu0 0
    %1794 = vmatpush1.bf16.msra.mxu0 %v1774
    %1795 = vmatprep.subr.bf16.mxu0 0
    %1796 = vmatpush1.bf16.msra.mxu0 %v1775
    %1797 = vmatprep.subr.bf16.mxu0 0
    %1798 = vmatpush1.bf16.msra.mxu0 %v1776
    %1799 = vmatprep.subr.bf16.mxu0 0
    %1800 = vmatpush1.bf16.msra.mxu0 %v1777
    %1801 = vmatprep.subr.bf16.mxu0 0
    %1802 = vmatpush1.bf16.msra.mxu0 %v1778
    %1803 = vmatprep.subr.bf16.mxu0 0
    %1804 = vmatpush1.bf16.msra.mxu0 0
    %1805 = vmatprep.subr.bf16.mxu0 0
    %1806 = vmatpush1.bf16.msra.mxu0 0
    %1807 = vmatprep.subr.bf16.mxu0 0
    %1808 = vmatpush1.bf16.msra.mxu0 0
    %1809 = vmatprep.subr.bf16.mxu0 0
    %1810 = vmatpush1.bf16.msra.mxu0 0
    %1811 = vmatprep.subr.bf16.mxu0 0
    %1812 = vmatpush1.bf16.msra.mxu0 0
    %1813 = vmatprep.subr.bf16.mxu0 0
    %1814 = vmatpush1.bf16.msra.mxu0 0
    %1815 = vmatprep.subr.bf16.mxu0 0
    %1816 = vmatpush1.bf16.msra.mxu0 0
    %1817 = vmatprep.subr.bf16.mxu0 0
    %1818 = vmatpush1.bf16.msra.mxu0 0
    %1819 = vmatprep.mubr.bf16.mxu0 0
    %1820 = vmatmul.mubr.bf16.gmra.mrb[0].mxu0 %v1737
    %v1821 = vpop.f32.mrb[0].mxu0
    %v1822 = vadd.f32 0.0, %v1821
    %v1823 = vpop.f32.mrb[0].mxu0
    %v1824 = vpop.f32.mrb[0].mxu0
    %v1825 = vadd.f32 0.0, %v1824
    %v1826 = vpop.f32.mrb[0].mxu0
    %1827 = vdwg.mxu0
    %v1828 = vadd.f32 %v1713, %v1822
    %v1829 = vadd.f32 %v1714, %v1825
    %v1830 = vld [vmem:[#allocation2 + $0x8] sm:$0x7]
    %v1831 = vld [vmem:[#allocation6 + $0x140] sm:$0xf]
    %v1832 = vld [vmem:[#allocation6 + $0x144] sm:$0xf]
    %v1833 = vld [vmem:[#allocation6 + $0x148] sm:$0xf]
    %v1834 = vld [vmem:[#allocation6 + $0x14c] sm:$0xf]
    %v1835 = vld [vmem:[#allocation6 + $0x150] sm:$0xf]
    %v1836 = vld [vmem:[#allocation6 + $0x154] sm:$0xf]
    %v1837 = vld [vmem:[#allocation6 + $0x158] sm:$0xf]
    %v1838 = vld [vmem:[#allocation6 + $0x15c] sm:$0xf]
    %v1839 = vld [vmem:[#allocation6 + $0x160] sm:$0xf]
    %v1840 = vld [vmem:[#allocation6 + $0x164] sm:$0xf]
    %v1841 = vld [vmem:[#allocation6 + $0x168] sm:$0xf]
    %v1842 = vld [vmem:[#allocation6 + $0x16c] sm:$0xf]
    %v1843 = vld [vmem:[#allocation6 + $0x170] sm:$0xf]
    %v1844 = vld [vmem:[#allocation6 + $0x174] sm:$0xf]
    %v1845 = vld [vmem:[#allocation6 + $0x178] sm:$0xf]
    %v1846 = vld [vmem:[#allocation6 + $0x17c] sm:$0xf]
    %v1848 = vunpack.c.l.b16 %v1830
    %v1849 = vpack.c.b16 %v1848, %v1848
    %v1851 = vshrl.u32 %v1734, 16
    %v1853 = vrot.slane %v1851, 2
    %v1854 = vshll.u32 %v1734, 16
    %v1856 = vrot.slane %v1854, 3
    %v1857 = vor.u32 %v1853, %v1856
    %v1859 = vshrl.u32 %v1849, 16
    %v1861 = vrot.slane %v1859, 2
    %v1862 = vshll.u32 %v1849, 16
    %v1864 = vrot.slane %v1862, 3
    %v1865 = vor.u32 %v1861, %v1864
    %v1866 = vsel %vm706, %v1857, %v1865
    %v1884 = vunpack.c.l.b16 %v1831
    %v1885 = vunpack.c.l.b16 %v1832
    %v1886 = vunpack.c.l.b16 %v1833
    %v1887 = vunpack.c.l.b16 %v1834
    %v1888 = vunpack.c.l.b16 %v1835
    %v1889 = vunpack.c.l.b16 %v1836
    %v1890 = vunpack.c.l.b16 %v1837
    %v1891 = vunpack.c.l.b16 %v1838
    %v1892 = vunpack.c.l.b16 %v1839
    %v1893 = vunpack.c.l.b16 %v1840
    %v1894 = vunpack.c.l.b16 %v1841
    %v1895 = vunpack.c.l.b16 %v1842
    %v1896 = vunpack.c.l.b16 %v1843
    %v1897 = vunpack.c.l.b16 %v1844
    %v1898 = vunpack.c.l.b16 %v1845
    %v1899 = vunpack.c.l.b16 %v1846
    %v1900 = vpack.c.b16 %v1885, %v1884
    %v1901 = vpack.c.b16 %v1887, %v1886
    %v1902 = vpack.c.b16 %v1889, %v1888
    %v1903 = vpack.c.b16 %v1891, %v1890
    %v1904 = vpack.c.b16 %v1893, %v1892
    %v1905 = vpack.c.b16 %v1895, %v1894
    %v1906 = vpack.c.b16 %v1897, %v1896
    %v1907 = vpack.c.b16 %v1899, %v1898
    %1916 = vmatprep.subr.bf16.mxu0 0
    %1917 = vmatpush1.bf16.msra.mxu0 %v1900
    %1918 = vmatprep.subr.bf16.mxu0 0
    %1919 = vmatpush1.bf16.msra.mxu0 %v1901
    %1920 = vmatprep.subr.bf16.mxu0 0
    %1921 = vmatpush1.bf16.msra.mxu0 %v1902
    %1922 = vmatprep.subr.bf16.mxu0 0
    %1923 = vmatpush1.bf16.msra.mxu0 %v1903
    %1924 = vmatprep.subr.bf16.mxu0 0
    %1925 = vmatpush1.bf16.msra.mxu0 %v1904
    %1926 = vmatprep.subr.bf16.mxu0 0
    %1927 = vmatpush1.bf16.msra.mxu0 %v1905
    %1928 = vmatprep.subr.bf16.mxu0 0
    %1929 = vmatpush1.bf16.msra.mxu0 %v1906
    %1930 = vmatprep.subr.bf16.mxu0 0
    %1931 = vmatpush1.bf16.msra.mxu0 %v1907
    %1932 = vmatprep.subr.bf16.mxu0 0
    %1933 = vmatpush1.bf16.msra.mxu0 0
    %1934 = vmatprep.subr.bf16.mxu0 0
    %1935 = vmatpush1.bf16.msra.mxu0 0
    %1936 = vmatprep.subr.bf16.mxu0 0
    %1937 = vmatpush1.bf16.msra.mxu0 0
    %1938 = vmatprep.subr.bf16.mxu0 0
    %1939 = vmatpush1.bf16.msra.mxu0 0
    %1940 = vmatprep.subr.bf16.mxu0 0
    %1941 = vmatpush1.bf16.msra.mxu0 0
    %1942 = vmatprep.subr.bf16.mxu0 0
    %1943 = vmatpush1.bf16.msra.mxu0 0
    %1944 = vmatprep.subr.bf16.mxu0 0
    %1945 = vmatpush1.bf16.msra.mxu0 0
    %1946 = vmatprep.subr.bf16.mxu0 0
    %1947 = vmatpush1.bf16.msra.mxu0 0
    %1948 = vmatprep.mubr.bf16.mxu0 0
    %1949 = vmatmul.mubr.bf16.gmra.mrb[0].mxu0 %v1866
    %v1950 = vpop.f32.mrb[0].mxu0
    %v1951 = vadd.f32 0.0, %v1950
    %v1952 = vpop.f32.mrb[0].mxu0
    %v1953 = vpop.f32.mrb[0].mxu0
    %v1954 = vadd.f32 0.0, %v1953
    %v1955 = vpop.f32.mrb[0].mxu0
    %1956 = vdwg.mxu0
    %v1957 = vadd.f32 %v1828, %v1951
    %v1958 = vadd.f32 %v1829, %v1954
    %v1959 = vld [vmem:[#allocation2] sm:$0x8]
    %v1960 = vld [vmem:[#allocation6 + $0x180] sm:$0xf]
    %v1961 = vld [vmem:[#allocation6 + $0x184] sm:$0xf]
    %v1962 = vld [vmem:[#allocation6 + $0x188] sm:$0xf]
    %v1963 = vld [vmem:[#allocation6 + $0x18c] sm:$0xf]
    %v1964 = vld [vmem:[#allocation6 + $0x190] sm:$0xf]
    %v1965 = vld [vmem:[#allocation6 + $0x194] sm:$0xf]
    %v1966 = vld [vmem:[#allocation6 + $0x198] sm:$0xf]
    %v1967 = vld [vmem:[#allocation6 + $0x19c] sm:$0xf]
    %v1968 = vld [vmem:[#allocation6 + $0x1a0] sm:$0xf]
    %v1969 = vld [vmem:[#allocation6 + $0x1a4] sm:$0xf]
    %v1970 = vld [vmem:[#allocation6 + $0x1a8] sm:$0xf]
    %v1971 = vld [vmem:[#allocation6 + $0x1ac] sm:$0xf]
    %v1972 = vld [vmem:[#allocation6 + $0x1b0] sm:$0xf]
    %v1973 = vld [vmem:[#allocation6 + $0x1b4] sm:$0xf]
    %v1974 = vld [vmem:[#allocation6 + $0x1b8] sm:$0xf]
    %v1975 = vld [vmem:[#allocation6 + $0x1bc] sm:$0xf]
    %v1977 = vunpack.c.l.b16 %v1959
    %v1978 = vpack.c.b16 %v1275, %v1977
    %v1979 = vrot.slane %v1978, 3
    %v1980 = vrot.slane %v1849, 3
    %v1981 = vsel %vm836, %v1979, %v1980
    %v1999 = vunpack.c.l.b16 %v1960
    %v2000 = vunpack.c.l.b16 %v1961
    %v2001 = vunpack.c.l.b16 %v1962
    %v2002 = vunpack.c.l.b16 %v1963
    %v2003 = vunpack.c.l.b16 %v1964
    %v2004 = vunpack.c.l.b16 %v1965
    %v2005 = vunpack.c.l.b16 %v1966
    %v2006 = vunpack.c.l.b16 %v1967
    %v2007 = vunpack.c.l.b16 %v1968
    %v2008 = vunpack.c.l.b16 %v1969
    %v2009 = vunpack.c.l.b16 %v1970
    %v2010 = vunpack.c.l.b16 %v1971
    %v2011 = vunpack.c.l.b16 %v1972
    %v2012 = vunpack.c.l.b16 %v1973
    %v2013 = vunpack.c.l.b16 %v1974
    %v2014 = vunpack.c.l.b16 %v1975
    %v2015 = vpack.c.b16 %v2000, %v1999
    %v2016 = vpack.c.b16 %v2002, %v2001
    %v2017 = vpack.c.b16 %v2004, %v2003
    %v2018 = vpack.c.b16 %v2006, %v2005
    %v2019 = vpack.c.b16 %v2008, %v2007
    %v2020 = vpack.c.b16 %v2010, %v2009
    %v2021 = vpack.c.b16 %v2012, %v2011
    %v2022 = vpack.c.b16 %v2014, %v2013
    %2031 = vmatprep.subr.bf16.mxu0 0
    %2032 = vmatpush1.bf16.msra.mxu0 %v2015
    %2033 = vmatprep.subr.bf16.mxu0 0
    %2034 = vmatpush1.bf16.msra.mxu0 %v2016
    %2035 = vmatprep.subr.bf16.mxu0 0
    %2036 = vmatpush1.bf16.msra.mxu0 %v2017
    %2037 = vmatprep.subr.bf16.mxu0 0
    %2038 = vmatpush1.bf16.msra.mxu0 %v2018
    %2039 = vmatprep.subr.bf16.mxu0 0
    %2040 = vmatpush1.bf16.msra.mxu0 %v2019
    %2041 = vmatprep.subr.bf16.mxu0 0
    %2042 = vmatpush1.bf16.msra.mxu0 %v2020
    %2043 = vmatprep.subr.bf16.mxu0 0
    %2044 = vmatpush1.bf16.msra.mxu0 %v2021
    %2045 = vmatprep.subr.bf16.mxu0 0
    %2046 = vmatpush1.bf16.msra.mxu0 %v2022
    %2047 = vmatprep.subr.bf16.mxu0 0
    %2048 = vmatpush1.bf16.msra.mxu0 0
    %2049 = vmatprep.subr.bf16.mxu0 0
    %2050 = vmatpush1.bf16.msra.mxu0 0
    %2051 = vmatprep.subr.bf16.mxu0 0
    %2052 = vmatpush1.bf16.msra.mxu0 0
    %2053 = vmatprep.subr.bf16.mxu0 0
    %2054 = vmatpush1.bf16.msra.mxu0 0
    %2055 = vmatprep.subr.bf16.mxu0 0
    %2056 = vmatpush1.bf16.msra.mxu0 0
    %2057 = vmatprep.subr.bf16.mxu0 0
    %2058 = vmatpush1.bf16.msra.mxu0 0
    %2059 = vmatprep.subr.bf16.mxu0 0
    %2060 = vmatpush1.bf16.msra.mxu0 0
    %2061 = vmatprep.subr.bf16.mxu0 0
    %2062 = vmatpush1.bf16.msra.mxu0 0
    %2063 = vmatprep.mubr.bf16.mxu0 0
    %2064 = vmatmul.mubr.bf16.gmra.mrb[0].mxu0 %v1981
    %v2065 = vpop.f32.mrb[0].mxu0
    %v2066 = vadd.f32 0.0, %v2065
    %v2067 = vpop.f32.mrb[0].mxu0
    %v2068 = vpop.f32.mrb[0].mxu0
    %v2069 = vadd.f32 0.0, %v2068
    %v2070 = vpop.f32.mrb[0].mxu0
    %2071 = vdwg.mxu0
    %v2072 = vadd.f32 %v1957, %v2066
    %v2073 = vadd.f32 %v1958, %v2069
    %v2074 = vadd.f32 %v2072, %v936
    %v2075 = vadd.f32 %v2073, %v936
    %v2076 = vmax.f32 %v2074, 0.0
    %v2077 = vmax.f32 %v2075, 0.0
    %v2078 = vpack.c.bf16 %v2077, %v2076
    %v2080 = vcombine.high %v2078, %v2078
    %v2082 = vunpack.c.l.s4 1966171168
    %v2083 = vunpack.c.0.s8 %v2082
    %v2084 = vlaneseq
    %v2085 = vshrl.u32 %v2084, 7
    %v2086 = vsub.s32 %v2083, %v2085
    %v2087 = vrot.slane %v2078, %v2086
    %v2089 = vunpack.c.l.s4 1966171168
    %v2090 = vunpack.c.0.s8 %v2089
    %v2091 = vlaneseq
    %v2092 = vshrl.u32 %v2091, 7
    %v2093 = vsub.s32 %v2090, %v2092
    %v2094 = vrot.slane %v2080, %v2093
    %v2095 = vcombine.high %v2087, %v2087
    %v2096 = vcombine.high %v2094, %v2094
    %v2098 = vunpack.c.l.s4 1966171168
    %v2099 = vunpack.c.0.s8 %v2098
    %v2100 = vlaneseq
    %v2101 = vshrl.u32 %v2100, 7
    %v2102 = vsub.s32 %v2099, %v2101
    %v2103 = vrot.slane %v2087, %v2102
    %v2105 = vunpack.c.l.s4 1966171168
    %v2106 = vunpack.c.0.s8 %v2105
    %v2107 = vlaneseq
    %v2108 = vshrl.u32 %v2107, 7
    %v2109 = vsub.s32 %v2106, %v2108
    %v2110 = vrot.slane %v2094, %v2109
    %v2112 = vunpack.c.l.s4 1966171168
    %v2113 = vunpack.c.0.s8 %v2112
    %v2114 = vlaneseq
    %v2115 = vshrl.u32 %v2114, 7
    %v2116 = vsub.s32 %v2113, %v2115
    %v2117 = vrot.slane %v2095, %v2116
    %v2119 = vunpack.c.l.s4 1966171168
    %v2120 = vunpack.c.0.s8 %v2119
    %v2121 = vlaneseq
    %v2122 = vshrl.u32 %v2121, 7
    %v2123 = vsub.s32 %v2120, %v2122
    %v2124 = vrot.slane %v2096, %v2123
    %v2125 = vcombine.high %v2103, %v2103
    %v2126 = vcombine.high %v2110, %v2110
    %v2127 = vcombine.high %v2117, %v2117
    %v2128 = vcombine.high %v2124, %v2124
    %v2129 = vunpack.i.l.s16 %v2103
    %v2130 = vunpack.i.h.s16 %v2103
    %v2131 = vunpack.i.l.s16 %v2117
    %v2132 = vunpack.i.h.s16 %v2117
    %v2133 = vunpack.i.l.s16 %v2125
    %v2134 = vunpack.i.h.s16 %v2125
    %v2135 = vunpack.i.l.s16 %v2127
    %v2136 = vunpack.i.h.s16 %v2127
    %v2137 = vunpack.i.l.s16 %v2110
    %v2138 = vunpack.i.h.s16 %v2110
    %v2139 = vunpack.i.l.s16 %v2124
    %v2140 = vunpack.i.h.s16 %v2124
    %v2141 = vunpack.i.l.s16 %v2126
    %v2142 = vunpack.i.h.s16 %v2126
    %v2143 = vunpack.i.l.s16 %v2128
    %v2144 = vunpack.i.h.s16 %v2128
    %v2145 = vpack.i.b16 %v2129, %v2129
    %v2146 = vpack.i.b16 %v2130, %v2130
    %v2147 = vpack.i.b16 %v2131, %v2131
    %v2148 = vpack.i.b16 %v2132, %v2132
    %v2149 = vpack.i.b16 %v2133, %v2133
    %v2150 = vpack.i.b16 %v2134, %v2134
    %v2151 = vpack.i.b16 %v2135, %v2135
    %v2152 = vpack.i.b16 %v2136, %v2136
    %v2153 = vpack.i.b16 %v2137, %v2137
    %v2154 = vpack.i.b16 %v2138, %v2138
    %v2155 = vpack.i.b16 %v2139, %v2139
    %v2156 = vpack.i.b16 %v2140, %v2140
    %v2157 = vpack.i.b16 %v2141, %v2141
    %v2158 = vpack.i.b16 %v2142, %v2142
    %v2159 = vpack.i.b16 %v2143, %v2143
    %v2160 = vpack.i.b16 %v2144, %v2144
    %v2162 = vunpack.c.l.s4 286326784
    %v2163 = vunpack.c.0.s8 %v2162
    %v2164 = vlaneseq
    %v2165 = vshrl.u32 %v2164, 7
    %v2166 = vsub.s32 %v2163, %v2165
    %v2167 = vrot.slane %v2145, %v2166
    %v2169 = vunpack.c.l.s4 286326784
    %v2170 = vunpack.c.0.s8 %v2169
    %v2171 = vlaneseq
    %v2172 = vshrl.u32 %v2171, 7
    %v2173 = vsub.s32 %v2170, %v2172
    %v2174 = vrot.slane %v2146, %v2173
    %v2176 = vunpack.c.l.s4 286326784
    %v2177 = vunpack.c.0.s8 %v2176
    %v2178 = vlaneseq
    %v2179 = vshrl.u32 %v2178, 7
    %v2180 = vsub.s32 %v2177, %v2179
    %v2181 = vrot.slane %v2147, %v2180
    %v2183 = vunpack.c.l.s4 286326784
    %v2184 = vunpack.c.0.s8 %v2183
    %v2185 = vlaneseq
    %v2186 = vshrl.u32 %v2185, 7
    %v2187 = vsub.s32 %v2184, %v2186
    %v2188 = vrot.slane %v2148, %v2187
    %v2190 = vunpack.c.l.s4 286326784
    %v2191 = vunpack.c.0.s8 %v2190
    %v2192 = vlaneseq
    %v2193 = vshrl.u32 %v2192, 7
    %v2194 = vsub.s32 %v2191, %v2193
    %v2195 = vrot.slane %v2149, %v2194
    %v2197 = vunpack.c.l.s4 286326784
    %v2198 = vunpack.c.0.s8 %v2197
    %v2199 = vlaneseq
    %v2200 = vshrl.u32 %v2199, 7
    %v2201 = vsub.s32 %v2198, %v2200
    %v2202 = vrot.slane %v2150, %v2201
    %v2204 = vunpack.c.l.s4 286326784
    %v2205 = vunpack.c.0.s8 %v2204
    %v2206 = vlaneseq
    %v2207 = vshrl.u32 %v2206, 7
    %v2208 = vsub.s32 %v2205, %v2207
    %v2209 = vrot.slane %v2151, %v2208
    %v2211 = vunpack.c.l.s4 286326784
    %v2212 = vunpack.c.0.s8 %v2211
    %v2213 = vlaneseq
    %v2214 = vshrl.u32 %v2213, 7
    %v2215 = vsub.s32 %v2212, %v2214
    %v2216 = vrot.slane %v2152, %v2215
    %v2218 = vunpack.c.l.s4 286326784
    %v2219 = vunpack.c.0.s8 %v2218
    %v2220 = vlaneseq
    %v2221 = vshrl.u32 %v2220, 7
    %v2222 = vsub.s32 %v2219, %v2221
    %v2223 = vrot.slane %v2153, %v2222
    %v2225 = vunpack.c.l.s4 286326784
    %v2226 = vunpack.c.0.s8 %v2225
    %v2227 = vlaneseq
    %v2228 = vshrl.u32 %v2227, 7
    %v2229 = vsub.s32 %v2226, %v2228
    %v2230 = vrot.slane %v2154, %v2229
    %v2232 = vunpack.c.l.s4 286326784
    %v2233 = vunpack.c.0.s8 %v2232
    %v2234 = vlaneseq
    %v2235 = vshrl.u32 %v2234, 7
    %v2236 = vsub.s32 %v2233, %v2235
    %v2237 = vrot.slane %v2155, %v2236
    %v2239 = vunpack.c.l.s4 286326784
    %v2240 = vunpack.c.0.s8 %v2239
    %v2241 = vlaneseq
    %v2242 = vshrl.u32 %v2241, 7
    %v2243 = vsub.s32 %v2240, %v2242
    %v2244 = vrot.slane %v2156, %v2243
    %v2246 = vunpack.c.l.s4 286326784
    %v2247 = vunpack.c.0.s8 %v2246
    %v2248 = vlaneseq
    %v2249 = vshrl.u32 %v2248, 7
    %v2250 = vsub.s32 %v2247, %v2249
    %v2251 = vrot.slane %v2157, %v2250
    %v2253 = vunpack.c.l.s4 286326784
    %v2254 = vunpack.c.0.s8 %v2253
    %v2255 = vlaneseq
    %v2256 = vshrl.u32 %v2255, 7
    %v2257 = vsub.s32 %v2254, %v2256
    %v2258 = vrot.slane %v2158, %v2257
    %v2260 = vunpack.c.l.s4 286326784
    %v2261 = vunpack.c.0.s8 %v2260
    %v2262 = vlaneseq
    %v2263 = vshrl.u32 %v2262, 7
    %v2264 = vsub.s32 %v2261, %v2263
    %v2265 = vrot.slane %v2159, %v2264
    %v2267 = vunpack.c.l.s4 286326784
    %v2268 = vunpack.c.0.s8 %v2267
    %v2269 = vlaneseq
    %v2270 = vshrl.u32 %v2269, 7
    %v2271 = vsub.s32 %v2268, %v2270
    %v2272 = vrot.slane %v2160, %v2271
    %vm2289 = vsmask.f32 7938
    %vm2290 = vmand %vm1153, %vm2289
    %v2291 = vld [vmem:[#allocation8] sm:$0x1]
    %v2292 = vsel %vm2290, %v2167, %v2291
    %2293 = vst [vmem:[#allocation8] sm:$0x1] %v2292
    %v2294 = vld [vmem:[#allocation8 + $0x4] sm:$0x1]
    %v2295 = vsel %vm2290, %v2174, %v2294
    %2296 = vst [vmem:[#allocation8 + $0x4] sm:$0x1] %v2295
    %v2297 = vld [vmem:[#allocation8 + $0x8] sm:$0x1]
    %v2298 = vsel %vm2290, %v2181, %v2297
    %2299 = vst [vmem:[#allocation8 + $0x8] sm:$0x1] %v2298
    %v2300 = vld [vmem:[#allocation8 + $0xc] sm:$0x1]
    %v2301 = vsel %vm2290, %v2188, %v2300
    %2302 = vst [vmem:[#allocation8 + $0xc] sm:$0x1] %v2301
    %v2303 = vld [vmem:[#allocation8 + $0x10] sm:$0x1]
    %v2304 = vsel %vm2290, %v2195, %v2303
    %2305 = vst [vmem:[#allocation8 + $0x10] sm:$0x1] %v2304
    %v2306 = vld [vmem:[#allocation8 + $0x14] sm:$0x1]
    %v2307 = vsel %vm2290, %v2202, %v2306
    %2308 = vst [vmem:[#allocation8 + $0x14] sm:$0x1] %v2307
    %v2309 = vld [vmem:[#allocation8 + $0x18] sm:$0x1]
    %v2310 = vsel %vm2290, %v2209, %v2309
    %2311 = vst [vmem:[#allocation8 + $0x18] sm:$0x1] %v2310
    %v2312 = vld [vmem:[#allocation8 + $0x1c] sm:$0x1]
    %v2313 = vsel %vm2290, %v2216, %v2312
    %2314 = vst [vmem:[#allocation8 + $0x1c] sm:$0x1] %v2313
    %v2315 = vld [vmem:[#allocation8 + $0x20] sm:$0x1]
    %v2316 = vsel %vm2290, %v2223, %v2315
    %2317 = vst [vmem:[#allocation8 + $0x20] sm:$0x1] %v2316
    %v2318 = vld [vmem:[#allocation8 + $0x24] sm:$0x1]
    %v2319 = vsel %vm2290, %v2230, %v2318
    %2320 = vst [vmem:[#allocation8 + $0x24] sm:$0x1] %v2319
    %v2321 = vld [vmem:[#allocation8 + $0x28] sm:$0x1]
    %v2322 = vsel %vm2290, %v2237, %v2321
    %2323 = vst [vmem:[#allocation8 + $0x28] sm:$0x1] %v2322
    %v2324 = vld [vmem:[#allocation8 + $0x2c] sm:$0x1]
    %v2325 = vsel %vm2290, %v2244, %v2324
    %2326 = vst [vmem:[#allocation8 + $0x2c] sm:$0x1] %v2325
    %v2327 = vld [vmem:[#allocation8 + $0x30] sm:$0x1]
    %v2328 = vsel %vm2290, %v2251, %v2327
    %2329 = vst [vmem:[#allocation8 + $0x30] sm:$0x1] %v2328
    %v2330 = vld [vmem:[#allocation8 + $0x34] sm:$0x1]
    %v2331 = vsel %vm2290, %v2258, %v2330
    %2332 = vst [vmem:[#allocation8 + $0x34] sm:$0x1] %v2331
    %v2333 = vld [vmem:[#allocation8 + $0x38] sm:$0x1]
    %v2334 = vsel %vm2290, %v2265, %v2333
    %2335 = vst [vmem:[#allocation8 + $0x38] sm:$0x1] %v2334
    %v2336 = vld [vmem:[#allocation8 + $0x3c] sm:$0x1]
    %v2337 = vsel %vm2290, %v2272, %v2336
    %2338 = vst [vmem:[#allocation8 + $0x3c] sm:$0x1] %v2337
    %s2339 = scalar_lea.vmem [#allocation3], 16
    %v2340 = vld [vmem:[%s2339] sm:$0xf]
    %v2341 = vld [vmem:[%s2339 + $0x4] sm:$0xf]
    %v2343 = vshrl.u32 %v2340, 16
    %v2345 = vrot.slane %v2343, 6
    %v2346 = vshll.u32 %v2340, 16
    %v2348 = vrot.slane %v2346, 7
    %v2349 = vor.u32 %v2345, %v2348
    %v2350 = vrot.slane %v2349, 4
    %v2352 = vshrl.u32 %v2341, 16
    %v2354 = vrot.slane %v2352, 6
    %v2355 = vshll.u32 %v2341, 16
    %v2357 = vrot.slane %v2355, 7
    %v2358 = vor.u32 %v2354, %v2357
    %v2359 = vsel %vm52, %v2350, %v2358
    %v2360 = vrot.slane %v2358, 4
    %v2364 = vld [vmem:[#allocation2] sm:$0xe]
    %v2365 = vsel %vm77, %v2349, %v2364
    %2366 = vst [vmem:[#allocation2] sm:$0xe] %v2365
    %2367 = vst.msk [vmem:[#allocation2 + $0x4] sm:$0xf] %vm81, %v2359
    %v2368 = vld [vmem:[#allocation2 + $0x8] sm:$0x3]
    %v2369 = vsel %vm84, %v2360, %v2368
    %2370 = vst [vmem:[#allocation2 + $0x8] sm:$0x3] %v2369
    %v2371 = vld [vmem:[#allocation2] sm:$0xf]
    %v2372 = vld [vmem:[#allocation2 + $0x4] sm:$0xf]
    %v2373 = vld [vmem:[#allocation6] sm:$0xf]
    %v2374 = vld [vmem:[#allocation6 + $0x4] sm:$0xf]
    %v2375 = vld [vmem:[#allocation6 + $0x8] sm:$0xf]
    %v2376 = vld [vmem:[#allocation6 + $0xc] sm:$0xf]
    %v2377 = vld [vmem:[#allocation6 + $0x10] sm:$0xf]
    %v2378 = vld [vmem:[#allocation6 + $0x14] sm:$0xf]
    %v2379 = vld [vmem:[#allocation6 + $0x18] sm:$0xf]
    %v2380 = vld [vmem:[#allocation6 + $0x1c] sm:$0xf]
    %v2381 = vld [vmem:[#allocation6 + $0x20] sm:$0xf]
    %v2382 = vld [vmem:[#allocation6 + $0x24] sm:$0xf]
    %v2383 = vld [vmem:[#allocation6 + $0x28] sm:$0xf]
    %v2384 = vld [vmem:[#allocation6 + $0x2c] sm:$0xf]
    %v2385 = vld [vmem:[#allocation6 + $0x30] sm:$0xf]
    %v2386 = vld [vmem:[#allocation6 + $0x34] sm:$0xf]
    %v2387 = vld [vmem:[#allocation6 + $0x38] sm:$0xf]
    %v2388 = vld [vmem:[#allocation6 + $0x3c] sm:$0xf]
    %v2389 = vld [vmem:[#allocation2 + $0x8] sm:$0x1]
    %v2390 = vld [vmem:[#allocation6 + $0x40] sm:$0xf]
    %v2391 = vld [vmem:[#allocation6 + $0x44] sm:$0xf]
    %v2392 = vld [vmem:[#allocation6 + $0x48] sm:$0xf]
    %v2393 = vld [vmem:[#allocation6 + $0x4c] sm:$0xf]
    %v2394 = vld [vmem:[#allocation6 + $0x50] sm:$0xf]
    %v2395 = vld [vmem:[#allocation6 + $0x54] sm:$0xf]
    %v2396 = vld [vmem:[#allocation6 + $0x58] sm:$0xf]
    %v2397 = vld [vmem:[#allocation6 + $0x5c] sm:$0xf]
    %v2398 = vld [vmem:[#allocation6 + $0x60] sm:$0xf]
    %v2399 = vld [vmem:[#allocation6 + $0x64] sm:$0xf]
    %v2400 = vld [vmem:[#allocation6 + $0x68] sm:$0xf]
    %v2401 = vld [vmem:[#allocation6 + $0x6c] sm:$0xf]
    %v2402 = vld [vmem:[#allocation6 + $0x70] sm:$0xf]
    %v2403 = vld [vmem:[#allocation6 + $0x74] sm:$0xf]
    %v2404 = vld [vmem:[#allocation6 + $0x78] sm:$0xf]
    %v2405 = vld [vmem:[#allocation6 + $0x7c] sm:$0xf]
    %v2409 = vunpack.c.l.b16 %v2371
    %v2410 = vunpack.c.l.b16 %v2372
    %v2411 = vunpack.c.l.b16 %v2389
    %v2412 = vpack.c.b16 %v2410, %v2409
    %v2413 = vpack.c.b16 %v2411, %v2411
    %v2415 = vshrl.u32 %v2412, 16
    %v2417 = vshll.u32 %v2412, 16
    %v2419 = vrot.slane %v2417, 1
    %v2420 = vor.u32 %v2415, %v2419
    %v2422 = vshll.u32 %v2413, 16
    %v2424 = vrot.slane %v2422, 1
    %v2425 = vsel %vm131, %v2420, %v2424
    %v2443 = vunpack.c.l.b16 %v2390
    %v2444 = vunpack.c.l.b16 %v2391
    %v2445 = vunpack.c.l.b16 %v2392
    %v2446 = vunpack.c.l.b16 %v2393
    %v2447 = vunpack.c.l.b16 %v2394
    %v2448 = vunpack.c.l.b16 %v2395
    %v2449 = vunpack.c.l.b16 %v2396
    %v2450 = vunpack.c.l.b16 %v2397
    %v2451 = vunpack.c.l.b16 %v2398
    %v2452 = vunpack.c.l.b16 %v2399
    %v2453 = vunpack.c.l.b16 %v2400
    %v2454 = vunpack.c.l.b16 %v2401
    %v2455 = vunpack.c.l.b16 %v2402
    %v2456 = vunpack.c.l.b16 %v2403
    %v2457 = vunpack.c.l.b16 %v2404
    %v2458 = vunpack.c.l.b16 %v2405
    %v2459 = vpack.c.b16 %v2444, %v2443
    %v2460 = vpack.c.b16 %v2446, %v2445
    %v2461 = vpack.c.b16 %v2448, %v2447
    %v2462 = vpack.c.b16 %v2450, %v2449
    %v2463 = vpack.c.b16 %v2452, %v2451
    %v2464 = vpack.c.b16 %v2454, %v2453
    %v2465 = vpack.c.b16 %v2456, %v2455
    %v2466 = vpack.c.b16 %v2458, %v2457
    %2475 = vmatprep.subr.bf16.mxu0 0
    %2476 = vmatpush1.bf16.msra.mxu0 %v2459
    %2477 = vmatprep.subr.bf16.mxu0 0
    %2478 = vmatpush1.bf16.msra.mxu0 %v2460
    %2479 = vmatprep.subr.bf16.mxu0 0
    %2480 = vmatpush1.bf16.msra.mxu0 %v2461
    %2481 = vmatprep.subr.bf16.mxu0 0
    %2482 = vmatpush1.bf16.msra.mxu0 %v2462
    %2483 = vmatprep.subr.bf16.mxu0 0
    %2484 = vmatpush1.bf16.msra.mxu0 %v2463
    %2485 = vmatprep.subr.bf16.mxu0 0
    %2486 = vmatpush1.bf16.msra.mxu0 %v2464
    %2487 = vmatprep.subr.bf16.mxu0 0
    %2488 = vmatpush1.bf16.msra.mxu0 %v2465
    %2489 = vmatprep.subr.bf16.mxu0 0
    %2490 = vmatpush1.bf16.msra.mxu0 %v2466
    %2491 = vmatprep.subr.bf16.mxu0 0
    %2492 = vmatpush1.bf16.msra.mxu0 0
    %2493 = vmatprep.subr.bf16.mxu0 0
    %2494 = vmatpush1.bf16.msra.mxu0 0
    %2495 = vmatprep.subr.bf16.mxu0 0
    %2496 = vmatpush1.bf16.msra.mxu0 0
    %2497 = vmatprep.subr.bf16.mxu0 0
    %2498 = vmatpush1.bf16.msra.mxu0 0
    %2499 = vmatprep.subr.bf16.mxu0 0
    %2500 = vmatpush1.bf16.msra.mxu0 0
    %2501 = vmatprep.subr.bf16.mxu0 0
    %2502 = vmatpush1.bf16.msra.mxu0 0
    %2503 = vmatprep.subr.bf16.mxu0 0
    %2504 = vmatpush1.bf16.msra.mxu0 0
    %2505 = vmatprep.subr.bf16.mxu0 0
    %2506 = vmatpush1.bf16.msra.mxu0 0
    %2507 = vmatprep.mubr.bf16.mxu0 0
    %2508 = vmatmul.mubr.bf16.gmra.mrb[0].mxu0 %v2425
    %v2509 = vpop.f32.mrb[0].mxu0
    %v2510 = vadd.f32 0.0, %v2509
    %v2511 = vpop.f32.mrb[0].mxu0
    %v2512 = vpop.f32.mrb[0].mxu0
    %v2513 = vadd.f32 0.0, %v2512
    %v2514 = vpop.f32.mrb[0].mxu0
    %2515 = vdwg.mxu0
    %v2533 = vunpack.c.l.b16 %v2373
    %v2534 = vunpack.c.l.b16 %v2374
    %v2535 = vunpack.c.l.b16 %v2375
    %v2536 = vunpack.c.l.b16 %v2376
    %v2537 = vunpack.c.l.b16 %v2377
    %v2538 = vunpack.c.l.b16 %v2378
    %v2539 = vunpack.c.l.b16 %v2379
    %v2540 = vunpack.c.l.b16 %v2380
    %v2541 = vunpack.c.l.b16 %v2381
    %v2542 = vunpack.c.l.b16 %v2382
    %v2543 = vunpack.c.l.b16 %v2383
    %v2544 = vunpack.c.l.b16 %v2384
    %v2545 = vunpack.c.l.b16 %v2385
    %v2546 = vunpack.c.l.b16 %v2386
    %v2547 = vunpack.c.l.b16 %v2387
    %v2548 = vunpack.c.l.b16 %v2388
    %v2549 = vpack.c.b16 %v2534, %v2533
    %v2550 = vpack.c.b16 %v2536, %v2535
    %v2551 = vpack.c.b16 %v2538, %v2537
    %v2552 = vpack.c.b16 %v2540, %v2539
    %v2553 = vpack.c.b16 %v2542, %v2541
    %v2554 = vpack.c.b16 %v2544, %v2543
    %v2555 = vpack.c.b16 %v2546, %v2545
    %v2556 = vpack.c.b16 %v2548, %v2547
    %2565 = vmatprep.subr.bf16.mxu0 0
    %2566 = vmatpush1.bf16.msra.mxu0 %v2549
    %2567 = vmatprep.subr.bf16.mxu0 0
    %2568 = vmatpush1.bf16.msra.mxu0 %v2550
    %2569 = vmatprep.subr.bf16.mxu0 0
    %2570 = vmatpush1.bf16.msra.mxu0 %v2551
    %2571 = vmatprep.subr.bf16.mxu0 0
    %2572 = vmatpush1.bf16.msra.mxu0 %v2552
    %2573 = vmatprep.subr.bf16.mxu0 0
    %2574 = vmatpush1.bf16.msra.mxu0 %v2553
    %2575 = vmatprep.subr.bf16.mxu0 0
    %2576 = vmatpush1.bf16.msra.mxu0 %v2554
    %2577 = vmatprep.subr.bf16.mxu0 0
    %2578 = vmatpush1.bf16.msra.mxu0 %v2555
    %2579 = vmatprep.subr.bf16.mxu0 0
    %2580 = vmatpush1.bf16.msra.mxu0 %v2556
    %2581 = vmatprep.subr.bf16.mxu0 0
    %2582 = vmatpush1.bf16.msra.mxu0 0
    %2583 = vmatprep.subr.bf16.mxu0 0
    %2584 = vmatpush1.bf16.msra.mxu0 0
    %2585 = vmatprep.subr.bf16.mxu0 0
    %2586 = vmatpush1.bf16.msra.mxu0 0
    %2587 = vmatprep.subr.bf16.mxu0 0
    %2588 = vmatpush1.bf16.msra.mxu0 0
    %2589 = vmatprep.subr.bf16.mxu0 0
    %2590 = vmatpush1.bf16.msra.mxu0 0
    %2591 = vmatprep.subr.bf16.mxu0 0
    %2592 = vmatpush1.bf16.msra.mxu0 0
    %2593 = vmatprep.subr.bf16.mxu0 0
    %2594 = vmatpush1.bf16.msra.mxu0 0
    %2595 = vmatprep.subr.bf16.mxu0 0
    %2596 = vmatpush1.bf16.msra.mxu0 0
    %2597 = vmatprep.mubr.bf16.mxu0 0
    %2598 = vmatmul.mubr.bf16.gmra.mrb[0].mxu0 %v2412
    %v2599 = vpop.f32.mrb[0].mxu0
    %v2600 = vadd.f32 %v2510, %v2599
    %v2601 = vpop.f32.mrb[0].mxu0
    %v2602 = vpop.f32.mrb[0].mxu0
    %v2603 = vadd.f32 %v2513, %v2602
    %v2604 = vpop.f32.mrb[0].mxu0
    %2605 = vdwg.mxu0
    %v2606 = vld [vmem:[#allocation2] sm:$0xe]
    %v2607 = vld [vmem:[#allocation6 + $0x80] sm:$0xf]
    %v2608 = vld [vmem:[#allocation6 + $0x84] sm:$0xf]
    %v2609 = vld [vmem:[#allocation6 + $0x88] sm:$0xf]
    %v2610 = vld [vmem:[#allocation6 + $0x8c] sm:$0xf]
    %v2611 = vld [vmem:[#allocation6 + $0x90] sm:$0xf]
    %v2612 = vld [vmem:[#allocation6 + $0x94] sm:$0xf]
    %v2613 = vld [vmem:[#allocation6 + $0x98] sm:$0xf]
    %v2614 = vld [vmem:[#allocation6 + $0x9c] sm:$0xf]
    %v2615 = vld [vmem:[#allocation6 + $0xa0] sm:$0xf]
    %v2616 = vld [vmem:[#allocation6 + $0xa4] sm:$0xf]
    %v2617 = vld [vmem:[#allocation6 + $0xa8] sm:$0xf]
    %v2618 = vld [vmem:[#allocation6 + $0xac] sm:$0xf]
    %v2619 = vld [vmem:[#allocation6 + $0xb0] sm:$0xf]
    %v2620 = vld [vmem:[#allocation6 + $0xb4] sm:$0xf]
    %v2621 = vld [vmem:[#allocation6 + $0xb8] sm:$0xf]
    %v2622 = vld [vmem:[#allocation6 + $0xbc] sm:$0xf]
    %v2624 = vunpack.c.l.b16 %v2606
    %v2625 = vpack.c.b16 %v2410, %v2624
    %v2626 = vrot.slane %v2625, 1
    %v2627 = vrot.slane %v2413, 1
    %v2628 = vsel %vm344, %v2626, %v2627
    %v2646 = vunpack.c.l.b16 %v2607
    %v2647 = vunpack.c.l.b16 %v2608
    %v2648 = vunpack.c.l.b16 %v2609
    %v2649 = vunpack.c.l.b16 %v2610
    %v2650 = vunpack.c.l.b16 %v2611
    %v2651 = vunpack.c.l.b16 %v2612
    %v2652 = vunpack.c.l.b16 %v2613
    %v2653 = vunpack.c.l.b16 %v2614
    %v2654 = vunpack.c.l.b16 %v2615
    %v2655 = vunpack.c.l.b16 %v2616
    %v2656 = vunpack.c.l.b16 %v2617
    %v2657 = vunpack.c.l.b16 %v2618
    %v2658 = vunpack.c.l.b16 %v2619
    %v2659 = vunpack.c.l.b16 %v2620
    %v2660 = vunpack.c.l.b16 %v2621
    %v2661 = vunpack.c.l.b16 %v2622
    %v2662 = vpack.c.b16 %v2647, %v2646
    %v2663 = vpack.c.b16 %v2649, %v2648
    %v2664 = vpack.c.b16 %v2651, %v2650
    %v2665 = vpack.c.b16 %v2653, %v2652
    %v2666 = vpack.c.b16 %v2655, %v2654
    %v2667 = vpack.c.b16 %v2657, %v2656
    %v2668 = vpack.c.b16 %v2659, %v2658
    %v2669 = vpack.c.b16 %v2661, %v2660
    %2678 = vmatprep.subr.bf16.mxu0 0
    %2679 = vmatpush1.bf16.msra.mxu0 %v2662
    %2680 = vmatprep.subr.bf16.mxu0 0
    %2681 = vmatpush1.bf16.msra.mxu0 %v2663
    %2682 = vmatprep.subr.bf16.mxu0 0
    %2683 = vmatpush1.bf16.msra.mxu0 %v2664
    %2684 = vmatprep.subr.bf16.mxu0 0
    %2685 = vmatpush1.bf16.msra.mxu0 %v2665
    %2686 = vmatprep.subr.bf16.mxu0 0
    %2687 = vmatpush1.bf16.msra.mxu0 %v2666
    %2688 = vmatprep.subr.bf16.mxu0 0
    %2689 = vmatpush1.bf16.msra.mxu0 %v2667
    %2690 = vmatprep.subr.bf16.mxu0 0
    %2691 = vmatpush1.bf16.msra.mxu0 %v2668
    %2692 = vmatprep.subr.bf16.mxu0 0
    %2693 = vmatpush1.bf16.msra.mxu0 %v2669
    %2694 = vmatprep.subr.bf16.mxu0 0
    %2695 = vmatpush1.bf16.msra.mxu0 0
    %2696 = vmatprep.subr.bf16.mxu0 0
    %2697 = vmatpush1.bf16.msra.mxu0 0
    %2698 = vmatprep.subr.bf16.mxu0 0
    %2699 = vmatpush1.bf16.msra.mxu0 0
    %2700 = vmatprep.subr.bf16.mxu0 0
    %2701 = vmatpush1.bf16.msra.mxu0 0
    %2702 = vmatprep.subr.bf16.mxu0 0
    %2703 = vmatpush1.bf16.msra.mxu0 0
    %2704 = vmatprep.subr.bf16.mxu0 0
    %2705 = vmatpush1.bf16.msra.mxu0 0
    %2706 = vmatprep.subr.bf16.mxu0 0
    %2707 = vmatpush1.bf16.msra.mxu0 0
    %2708 = vmatprep.subr.bf16.mxu0 0
    %2709 = vmatpush1.bf16.msra.mxu0 0
    %2710 = vmatprep.mubr.bf16.mxu0 0
    %2711 = vmatmul.mubr.bf16.gmra.mrb[0].mxu0 %v2628
    %v2712 = vpop.f32.mrb[0].mxu0
    %v2713 = vadd.f32 0.0, %v2712
    %v2714 = vpop.f32.mrb[0].mxu0
    %v2715 = vpop.f32.mrb[0].mxu0
    %v2716 = vadd.f32 0.0, %v2715
    %v2717 = vpop.f32.mrb[0].mxu0
    %2718 = vdwg.mxu0
    %v2719 = vadd.f32 %v2600, %v2713
    %v2720 = vadd.f32 %v2603, %v2716
    %v2721 = vld [vmem:[#allocation2 + $0x8] sm:$0x3]
    %v2722 = vld [vmem:[#allocation6 + $0xc0] sm:$0xf]
    %v2723 = vld [vmem:[#allocation6 + $0xc4] sm:$0xf]
    %v2724 = vld [vmem:[#allocation6 + $0xc8] sm:$0xf]
    %v2725 = vld [vmem:[#allocation6 + $0xcc] sm:$0xf]
    %v2726 = vld [vmem:[#allocation6 + $0xd0] sm:$0xf]
    %v2727 = vld [vmem:[#allocation6 + $0xd4] sm:$0xf]
    %v2728 = vld [vmem:[#allocation6 + $0xd8] sm:$0xf]
    %v2729 = vld [vmem:[#allocation6 + $0xdc] sm:$0xf]
    %v2730 = vld [vmem:[#allocation6 + $0xe0] sm:$0xf]
    %v2731 = vld [vmem:[#allocation6 + $0xe4] sm:$0xf]
    %v2732 = vld [vmem:[#allocation6 + $0xe8] sm:$0xf]
    %v2733 = vld [vmem:[#allocation6 + $0xec] sm:$0xf]
    %v2734 = vld [vmem:[#allocation6 + $0xf0] sm:$0xf]
    %v2735 = vld [vmem:[#allocation6 + $0xf4] sm:$0xf]
    %v2736 = vld [vmem:[#allocation6 + $0xf8] sm:$0xf]
    %v2737 = vld [vmem:[#allocation6 + $0xfc] sm:$0xf]
    %v2739 = vunpack.c.l.b16 %v2721
    %v2740 = vpack.c.b16 %v2739, %v2739
    %v2742 = vshrl.u32 %v2625, 16
    %v2744 = vrot.slane %v2742, 1
    %v2745 = vshll.u32 %v2625, 16
    %v2747 = vrot.slane %v2745, 2
    %v2748 = vor.u32 %v2744, %v2747
    %v2750 = vshrl.u32 %v2740, 16
    %v2752 = vrot.slane %v2750, 1
    %v2753 = vshll.u32 %v2740, 16
    %v2755 = vrot.slane %v2753, 2
    %v2756 = vor.u32 %v2752, %v2755
    %v2757 = vsel %vm460, %v2748, %v2756
    %v2775 = vunpack.c.l.b16 %v2722
    %v2776 = vunpack.c.l.b16 %v2723
    %v2777 = vunpack.c.l.b16 %v2724
    %v2778 = vunpack.c.l.b16 %v2725
    %v2779 = vunpack.c.l.b16 %v2726
    %v2780 = vunpack.c.l.b16 %v2727
    %v2781 = vunpack.c.l.b16 %v2728
    %v2782 = vunpack.c.l.b16 %v2729
    %v2783 = vunpack.c.l.b16 %v2730
    %v2784 = vunpack.c.l.b16 %v2731
    %v2785 = vunpack.c.l.b16 %v2732
    %v2786 = vunpack.c.l.b16 %v2733
    %v2787 = vunpack.c.l.b16 %v2734
    %v2788 = vunpack.c.l.b16 %v2735
    %v2789 = vunpack.c.l.b16 %v2736
    %v2790 = vunpack.c.l.b16 %v2737
    %v2791 = vpack.c.b16 %v2776, %v2775
    %v2792 = vpack.c.b16 %v2778, %v2777
    %v2793 = vpack.c.b16 %v2780, %v2779
    %v2794 = vpack.c.b16 %v2782, %v2781
    %v2795 = vpack.c.b16 %v2784, %v2783
    %v2796 = vpack.c.b16 %v2786, %v2785
    %v2797 = vpack.c.b16 %v2788, %v2787
    %v2798 = vpack.c.b16 %v2790, %v2789
    %2807 = vmatprep.subr.bf16.mxu0 0
    %2808 = vmatpush1.bf16.msra.mxu0 %v2791
    %2809 = vmatprep.subr.bf16.mxu0 0
    %2810 = vmatpush1.bf16.msra.mxu0 %v2792
    %2811 = vmatprep.subr.bf16.mxu0 0
    %2812 = vmatpush1.bf16.msra.mxu0 %v2793
    %2813 = vmatprep.subr.bf16.mxu0 0
    %2814 = vmatpush1.bf16.msra.mxu0 %v2794
    %2815 = vmatprep.subr.bf16.mxu0 0
    %2816 = vmatpush1.bf16.msra.mxu0 %v2795
    %2817 = vmatprep.subr.bf16.mxu0 0
    %2818 = vmatpush1.bf16.msra.mxu0 %v2796
    %2819 = vmatprep.subr.bf16.mxu0 0
    %2820 = vmatpush1.bf16.msra.mxu0 %v2797
    %2821 = vmatprep.subr.bf16.mxu0 0
    %2822 = vmatpush1.bf16.msra.mxu0 %v2798
    %2823 = vmatprep.subr.bf16.mxu0 0
    %2824 = vmatpush1.bf16.msra.mxu0 0
    %2825 = vmatprep.subr.bf16.mxu0 0
    %2826 = vmatpush1.bf16.msra.mxu0 0
    %2827 = vmatprep.subr.bf16.mxu0 0
    %2828 = vmatpush1.bf16.msra.mxu0 0
    %2829 = vmatprep.subr.bf16.mxu0 0
    %2830 = vmatpush1.bf16.msra.mxu0 0
    %2831 = vmatprep.subr.bf16.mxu0 0
    %2832 = vmatpush1.bf16.msra.mxu0 0
    %2833 = vmatprep.subr.bf16.mxu0 0
    %2834 = vmatpush1.bf16.msra.mxu0 0
    %2835 = vmatprep.subr.bf16.mxu0 0
    %2836 = vmatpush1.bf16.msra.mxu0 0
    %2837 = vmatprep.subr.bf16.mxu0 0
    %2838 = vmatpush1.bf16.msra.mxu0 0
    %2839 = vmatprep.mubr.bf16.mxu0 0
    %2840 = vmatmul.mubr.bf16.gmra.mrb[0].mxu0 %v2757
    %v2841 = vpop.f32.mrb[0].mxu0
    %v2842 = vadd.f32 0.0, %v2841
    %v2843 = vpop.f32.mrb[0].mxu0
    %v2844 = vpop.f32.mrb[0].mxu0
    %v2845 = vadd.f32 0.0, %v2844
    %v2846 = vpop.f32.mrb[0].mxu0
    %2847 = vdwg.mxu0
    %v2848 = vadd.f32 %v2719, %v2842
    %v2849 = vadd.f32 %v2720, %v2845
    %v2850 = vld [vmem:[#allocation2] sm:$0xc]
    %v2851 = vld [vmem:[#allocation6 + $0x100] sm:$0xf]
    %v2852 = vld [vmem:[#allocation6 + $0x104] sm:$0xf]
    %v2853 = vld [vmem:[#allocation6 + $0x108] sm:$0xf]
    %v2854 = vld [vmem:[#allocation6 + $0x10c] sm:$0xf]
    %v2855 = vld [vmem:[#allocation6 + $0x110] sm:$0xf]
    %v2856 = vld [vmem:[#allocation6 + $0x114] sm:$0xf]
    %v2857 = vld [vmem:[#allocation6 + $0x118] sm:$0xf]
    %v2858 = vld [vmem:[#allocation6 + $0x11c] sm:$0xf]
    %v2859 = vld [vmem:[#allocation6 + $0x120] sm:$0xf]
    %v2860 = vld [vmem:[#allocation6 + $0x124] sm:$0xf]
    %v2861 = vld [vmem:[#allocation6 + $0x128] sm:$0xf]
    %v2862 = vld [vmem:[#allocation6 + $0x12c] sm:$0xf]
    %v2863 = vld [vmem:[#allocation6 + $0x130] sm:$0xf]
    %v2864 = vld [vmem:[#allocation6 + $0x134] sm:$0xf]
    %v2865 = vld [vmem:[#allocation6 + $0x138] sm:$0xf]
    %v2866 = vld [vmem:[#allocation6 + $0x13c] sm:$0xf]
    %v2868 = vunpack.c.l.b16 %v2850
    %v2869 = vpack.c.b16 %v2410, %v2868
    %v2870 = vrot.slane %v2869, 2
    %v2871 = vrot.slane %v2740, 2
    %v2872 = vsel %vm590, %v2870, %v2871
    %v2890 = vunpack.c.l.b16 %v2851
    %v2891 = vunpack.c.l.b16 %v2852
    %v2892 = vunpack.c.l.b16 %v2853
    %v2893 = vunpack.c.l.b16 %v2854
    %v2894 = vunpack.c.l.b16 %v2855
    %v2895 = vunpack.c.l.b16 %v2856
    %v2896 = vunpack.c.l.b16 %v2857
    %v2897 = vunpack.c.l.b16 %v2858
    %v2898 = vunpack.c.l.b16 %v2859
    %v2899 = vunpack.c.l.b16 %v2860
    %v2900 = vunpack.c.l.b16 %v2861
    %v2901 = vunpack.c.l.b16 %v2862
    %v2902 = vunpack.c.l.b16 %v2863
    %v2903 = vunpack.c.l.b16 %v2864
    %v2904 = vunpack.c.l.b16 %v2865
    %v2905 = vunpack.c.l.b16 %v2866
    %v2906 = vpack.c.b16 %v2891, %v2890
    %v2907 = vpack.c.b16 %v2893, %v2892
    %v2908 = vpack.c.b16 %v2895, %v2894
    %v2909 = vpack.c.b16 %v2897, %v2896
    %v2910 = vpack.c.b16 %v2899, %v2898
    %v2911 = vpack.c.b16 %v2901, %v2900
    %v2912 = vpack.c.b16 %v2903, %v2902
    %v2913 = vpack.c.b16 %v2905, %v2904
    %2922 = vmatprep.subr.bf16.mxu0 0
    %2923 = vmatpush1.bf16.msra.mxu0 %v2906
    %2924 = vmatprep.subr.bf16.mxu0 0
    %2925 = vmatpush1.bf16.msra.mxu0 %v2907
    %2926 = vmatprep.subr.bf16.mxu0 0
    %2927 = vmatpush1.bf16.msra.mxu0 %v2908
    %2928 = vmatprep.subr.bf16.mxu0 0
    %2929 = vmatpush1.bf16.msra.mxu0 %v2909
    %2930 = vmatprep.subr.bf16.mxu0 0
    %2931 = vmatpush1.bf16.msra.mxu0 %v2910
    %2932 = vmatprep.subr.bf16.mxu0 0
    %2933 = vmatpush1.bf16.msra.mxu0 %v2911
    %2934 = vmatprep.subr.bf16.mxu0 0
    %2935 = vmatpush1.bf16.msra.mxu0 %v2912
    %2936 = vmatprep.subr.bf16.mxu0 0
    %2937 = vmatpush1.bf16.msra.mxu0 %v2913
    %2938 = vmatprep.subr.bf16.mxu0 0
    %2939 = vmatpush1.bf16.msra.mxu0 0
    %2940 = vmatprep.subr.bf16.mxu0 0
    %2941 = vmatpush1.bf16.msra.mxu0 0
    %2942 = vmatprep.subr.bf16.mxu0 0
    %2943 = vmatpush1.bf16.msra.mxu0 0
    %2944 = vmatprep.subr.bf16.mxu0 0
    %2945 = vmatpush1.bf16.msra.mxu0 0
    %2946 = vmatprep.subr.bf16.mxu0 0
    %2947 = vmatpush1.bf16.msra.mxu0 0
    %2948 = vmatprep.subr.bf16.mxu0 0
    %2949 = vmatpush1.bf16.msra.mxu0 0
    %2950 = vmatprep.subr.bf16.mxu0 0
    %2951 = vmatpush1.bf16.msra.mxu0 0
    %2952 = vmatprep.subr.bf16.mxu0 0
    %2953 = vmatpush1.bf16.msra.mxu0 0
    %2954 = vmatprep.mubr.bf16.mxu0 0
    %2955 = vmatmul.mubr.bf16.gmra.mrb[0].mxu0 %v2872
    %v2956 = vpop.f32.mrb[0].mxu0
    %v2957 = vadd.f32 0.0, %v2956
    %v2958 = vpop.f32.mrb[0].mxu0
    %v2959 = vpop.f32.mrb[0].mxu0
    %v2960 = vadd.f32 0.0, %v2959
    %v2961 = vpop.f32.mrb[0].mxu0
    %2962 = vdwg.mxu0
    %v2963 = vadd.f32 %v2848, %v2957
    %v2964 = vadd.f32 %v2849, %v2960
    %v2965 = vld [vmem:[#allocation2 + $0x8] sm:$0x7]
    %v2966 = vld [vmem:[#allocation6 + $0x140] sm:$0xf]
    %v2967 = vld [vmem:[#allocation6 + $0x144] sm:$0xf]
    %v2968 = vld [vmem:[#allocation6 + $0x148] sm:$0xf]
    %v2969 = vld [vmem:[#allocation6 + $0x14c] sm:$0xf]
    %v2970 = vld [vmem:[#allocation6 + $0x150] sm:$0xf]
    %v2971 = vld [vmem:[#allocation6 + $0x154] sm:$0xf]
    %v2972 = vld [vmem:[#allocation6 + $0x158] sm:$0xf]
    %v2973 = vld [vmem:[#allocation6 + $0x15c] sm:$0xf]
    %v2974 = vld [vmem:[#allocation6 + $0x160] sm:$0xf]
    %v2975 = vld [vmem:[#allocation6 + $0x164] sm:$0xf]
    %v2976 = vld [vmem:[#allocation6 + $0x168] sm:$0xf]
    %v2977 = vld [vmem:[#allocation6 + $0x16c] sm:$0xf]
    %v2978 = vld [vmem:[#allocation6 + $0x170] sm:$0xf]
    %v2979 = vld [vmem:[#allocation6 + $0x174] sm:$0xf]
    %v2980 = vld [vmem:[#allocation6 + $0x178] sm:$0xf]
    %v2981 = vld [vmem:[#allocation6 + $0x17c] sm:$0xf]
    %v2983 = vunpack.c.l.b16 %v2965
    %v2984 = vpack.c.b16 %v2983, %v2983
    %v2986 = vshrl.u32 %v2869, 16
    %v2988 = vrot.slane %v2986, 2
    %v2989 = vshll.u32 %v2869, 16
    %v2991 = vrot.slane %v2989, 3
    %v2992 = vor.u32 %v2988, %v2991
    %v2994 = vshrl.u32 %v2984, 16
    %v2996 = vrot.slane %v2994, 2
    %v2997 = vshll.u32 %v2984, 16
    %v2999 = vrot.slane %v2997, 3
    %v3000 = vor.u32 %v2996, %v2999
    %v3001 = vsel %vm706, %v2992, %v3000
    %v3019 = vunpack.c.l.b16 %v2966
    %v3020 = vunpack.c.l.b16 %v2967
    %v3021 = vunpack.c.l.b16 %v2968
    %v3022 = vunpack.c.l.b16 %v2969
    %v3023 = vunpack.c.l.b16 %v2970
    %v3024 = vunpack.c.l.b16 %v2971
    %v3025 = vunpack.c.l.b16 %v2972
    %v3026 = vunpack.c.l.b16 %v2973
    %v3027 = vunpack.c.l.b16 %v2974
    %v3028 = vunpack.c.l.b16 %v2975
    %v3029 = vunpack.c.l.b16 %v2976
    %v3030 = vunpack.c.l.b16 %v2977
    %v3031 = vunpack.c.l.b16 %v2978
    %v3032 = vunpack.c.l.b16 %v2979
    %v3033 = vunpack.c.l.b16 %v2980
    %v3034 = vunpack.c.l.b16 %v2981
    %v3035 = vpack.c.b16 %v3020, %v3019
    %v3036 = vpack.c.b16 %v3022, %v3021
    %v3037 = vpack.c.b16 %v3024, %v3023
    %v3038 = vpack.c.b16 %v3026, %v3025
    %v3039 = vpack.c.b16 %v3028, %v3027
    %v3040 = vpack.c.b16 %v3030, %v3029
    %v3041 = vpack.c.b16 %v3032, %v3031
    %v3042 = vpack.c.b16 %v3034, %v3033
    %3051 = vmatprep.subr.bf16.mxu0 0
    %3052 = vmatpush1.bf16.msra.mxu0 %v3035
    %3053 = vmatprep.subr.bf16.mxu0 0
    %3054 = vmatpush1.bf16.msra.mxu0 %v3036
    %3055 = vmatprep.subr.bf16.mxu0 0
    %3056 = vmatpush1.bf16.msra.mxu0 %v3037
    %3057 = vmatprep.subr.bf16.mxu0 0
    %3058 = vmatpush1.bf16.msra.mxu0 %v3038
    %3059 = vmatprep.subr.bf16.mxu0 0
    %3060 = vmatpush1.bf16.msra.mxu0 %v3039
    %3061 = vmatprep.subr.bf16.mxu0 0
    %3062 = vmatpush1.bf16.msra.mxu0 %v3040
    %3063 = vmatprep.subr.bf16.mxu0 0
    %3064 = vmatpush1.bf16.msra.mxu0 %v3041
    %3065 = vmatprep.subr.bf16.mxu0 0
    %3066 = vmatpush1.bf16.msra.mxu0 %v3042
    %3067 = vmatprep.subr.bf16.mxu0 0
    %3068 = vmatpush1.bf16.msra.mxu0 0
    %3069 = vmatprep.subr.bf16.mxu0 0
    %3070 = vmatpush1.bf16.msra.mxu0 0
    %3071 = vmatprep.subr.bf16.mxu0 0
    %3072 = vmatpush1.bf16.msra.mxu0 0
    %3073 = vmatprep.subr.bf16.mxu0 0
    %3074 = vmatpush1.bf16.msra.mxu0 0
    %3075 = vmatprep.subr.bf16.mxu0 0
    %3076 = vmatpush1.bf16.msra.mxu0 0
    %3077 = vmatprep.subr.bf16.mxu0 0
    %3078 = vmatpush1.bf16.msra.mxu0 0
    %3079 = vmatprep.subr.bf16.mxu0 0
    %3080 = vmatpush1.bf16.msra.mxu0 0
    %3081 = vmatprep.subr.bf16.mxu0 0
    %3082 = vmatpush1.bf16.msra.mxu0 0
    %3083 = vmatprep.mubr.bf16.mxu0 0
    %3084 = vmatmul.mubr.bf16.gmra.mrb[0].mxu0 %v3001
    %v3085 = vpop.f32.mrb[0].mxu0
    %v3086 = vadd.f32 0.0, %v3085
    %v3087 = vpop.f32.mrb[0].mxu0
    %v3088 = vpop.f32.mrb[0].mxu0
    %v3089 = vadd.f32 0.0, %v3088
    %v3090 = vpop.f32.mrb[0].mxu0
    %3091 = vdwg.mxu0
    %v3092 = vadd.f32 %v2963, %v3086
    %v3093 = vadd.f32 %v2964, %v3089
    %v3094 = vld [vmem:[#allocation2] sm:$0x8]
    %v3095 = vld [vmem:[#allocation6 + $0x180] sm:$0xf]
    %v3096 = vld [vmem:[#allocation6 + $0x184] sm:$0xf]
    %v3097 = vld [vmem:[#allocation6 + $0x188] sm:$0xf]
    %v3098 = vld [vmem:[#allocation6 + $0x18c] sm:$0xf]
    %v3099 = vld [vmem:[#allocation6 + $0x190] sm:$0xf]
    %v3100 = vld [vmem:[#allocation6 + $0x194] sm:$0xf]
    %v3101 = vld [vmem:[#allocation6 + $0x198] sm:$0xf]
    %v3102 = vld [vmem:[#allocation6 + $0x19c] sm:$0xf]
    %v3103 = vld [vmem:[#allocation6 + $0x1a0] sm:$0xf]
    %v3104 = vld [vmem:[#allocation6 + $0x1a4] sm:$0xf]
    %v3105 = vld [vmem:[#allocation6 + $0x1a8] sm:$0xf]
    %v3106 = vld [vmem:[#allocation6 + $0x1ac] sm:$0xf]
    %v3107 = vld [vmem:[#allocation6 + $0x1b0] sm:$0xf]
    %v3108 = vld [vmem:[#allocation6 + $0x1b4] sm:$0xf]
    %v3109 = vld [vmem:[#allocation6 + $0x1b8] sm:$0xf]
    %v3110 = vld [vmem:[#allocation6 + $0x1bc] sm:$0xf]
    %v3112 = vunpack.c.l.b16 %v3094
    %v3113 = vpack.c.b16 %v2410, %v3112
    %v3114 = vrot.slane %v3113, 3
    %v3115 = vrot.slane %v2984, 3
    %v3116 = vsel %vm836, %v3114, %v3115
    %v3134 = vunpack.c.l.b16 %v3095
    %v3135 = vunpack.c.l.b16 %v3096
    %v3136 = vunpack.c.l.b16 %v3097
    %v3137 = vunpack.c.l.b16 %v3098
    %v3138 = vunpack.c.l.b16 %v3099
    %v3139 = vunpack.c.l.b16 %v3100
    %v3140 = vunpack.c.l.b16 %v3101
    %v3141 = vunpack.c.l.b16 %v3102
    %v3142 = vunpack.c.l.b16 %v3103
    %v3143 = vunpack.c.l.b16 %v3104
    %v3144 = vunpack.c.l.b16 %v3105
    %v3145 = vunpack.c.l.b16 %v3106
    %v3146 = vunpack.c.l.b16 %v3107
    %v3147 = vunpack.c.l.b16 %v3108
    %v3148 = vunpack.c.l.b16 %v3109
    %v3149 = vunpack.c.l.b16 %v3110
    %v3150 = vpack.c.b16 %v3135, %v3134
    %v3151 = vpack.c.b16 %v3137, %v3136
    %v3152 = vpack.c.b16 %v3139, %v3138
    %v3153 = vpack.c.b16 %v3141, %v3140
    %v3154 = vpack.c.b16 %v3143, %v3142
    %v3155 = vpack.c.b16 %v3145, %v3144
    %v3156 = vpack.c.b16 %v3147, %v3146
    %v3157 = vpack.c.b16 %v3149, %v3148
    %3166 = vmatprep.subr.bf16.mxu0 0
    %3167 = vmatpush1.bf16.msra.mxu0 %v3150
    %3168 = vmatprep.subr.bf16.mxu0 0
    %3169 = vmatpush1.bf16.msra.mxu0 %v3151
    %3170 = vmatprep.subr.bf16.mxu0 0
    %3171 = vmatpush1.bf16.msra.mxu0 %v3152
    %3172 = vmatprep.subr.bf16.mxu0 0
    %3173 = vmatpush1.bf16.msra.mxu0 %v3153
    %3174 = vmatprep.subr.bf16.mxu0 0
    %3175 = vmatpush1.bf16.msra.mxu0 %v3154
    %3176 = vmatprep.subr.bf16.mxu0 0
    %3177 = vmatpush1.bf16.msra.mxu0 %v3155
    %3178 = vmatprep.subr.bf16.mxu0 0
    %3179 = vmatpush1.bf16.msra.mxu0 %v3156
    %3180 = vmatprep.subr.bf16.mxu0 0
    %3181 = vmatpush1.bf16.msra.mxu0 %v3157
    %3182 = vmatprep.subr.bf16.mxu0 0
    %3183 = vmatpush1.bf16.msra.mxu0 0
    %3184 = vmatprep.subr.bf16.mxu0 0
    %3185 = vmatpush1.bf16.msra.mxu0 0
    %3186 = vmatprep.subr.bf16.mxu0 0
    %3187 = vmatpush1.bf16.msra.mxu0 0
    %3188 = vmatprep.subr.bf16.mxu0 0
    %3189 = vmatpush1.bf16.msra.mxu0 0
    %3190 = vmatprep.subr.bf16.mxu0 0
    %3191 = vmatpush1.bf16.msra.mxu0 0
    %3192 = vmatprep.subr.bf16.mxu0 0
    %3193 = vmatpush1.bf16.msra.mxu0 0
    %3194 = vmatprep.subr.bf16.mxu0 0
    %3195 = vmatpush1.bf16.msra.mxu0 0
    %3196 = vmatprep.subr.bf16.mxu0 0
    %3197 = vmatpush1.bf16.msra.mxu0 0
    %3198 = vmatprep.mubr.bf16.mxu0 0
    %3199 = vmatmul.mubr.bf16.gmra.mrb[0].mxu0 %v3116
    %v3200 = vpop.f32.mrb[0].mxu0
    %v3201 = vadd.f32 0.0, %v3200
    %v3202 = vpop.f32.mrb[0].mxu0
    %v3203 = vpop.f32.mrb[0].mxu0
    %v3204 = vadd.f32 0.0, %v3203
    %v3205 = vpop.f32.mrb[0].mxu0
    %3206 = vdwg.mxu0
    %v3207 = vadd.f32 %v3092, %v3201
    %v3208 = vadd.f32 %v3093, %v3204
    %v3209 = vadd.f32 %v3207, %v936
    %v3210 = vadd.f32 %v3208, %v936
    %v3211 = vmax.f32 %v3209, 0.0
    %v3212 = vmax.f32 %v3210, 0.0
    %v3213 = vpack.c.bf16 %v3212, %v3211
    %v3215 = vcombine.high %v3213, %v3213
    %v3217 = vunpack.c.l.s4 1966171168
    %v3218 = vunpack.c.0.s8 %v3217
    %v3219 = vlaneseq
    %v3220 = vshrl.u32 %v3219, 7
    %v3221 = vsub.s32 %v3218, %v3220
    %v3222 = vrot.slane %v3213, %v3221
    %v3224 = vunpack.c.l.s4 1966171168
    %v3225 = vunpack.c.0.s8 %v3224
    %v3226 = vlaneseq
    %v3227 = vshrl.u32 %v3226, 7
    %v3228 = vsub.s32 %v3225, %v3227
    %v3229 = vrot.slane %v3215, %v3228
    %v3230 = vcombine.high %v3222, %v3222
    %v3231 = vcombine.high %v3229, %v3229
    %v3233 = vunpack.c.l.s4 1966171168
    %v3234 = vunpack.c.0.s8 %v3233
    %v3235 = vlaneseq
    %v3236 = vshrl.u32 %v3235, 7
    %v3237 = vsub.s32 %v3234, %v3236
    %v3238 = vrot.slane %v3222, %v3237
    %v3240 = vunpack.c.l.s4 1966171168
    %v3241 = vunpack.c.0.s8 %v3240
    %v3242 = vlaneseq
    %v3243 = vshrl.u32 %v3242, 7
    %v3244 = vsub.s32 %v3241, %v3243
    %v3245 = vrot.slane %v3229, %v3244
    %v3247 = vunpack.c.l.s4 1966171168
    %v3248 = vunpack.c.0.s8 %v3247
    %v3249 = vlaneseq
    %v3250 = vshrl.u32 %v3249, 7
    %v3251 = vsub.s32 %v3248, %v3250
    %v3252 = vrot.slane %v3230, %v3251
    %v3254 = vunpack.c.l.s4 1966171168
    %v3255 = vunpack.c.0.s8 %v3254
    %v3256 = vlaneseq
    %v3257 = vshrl.u32 %v3256, 7
    %v3258 = vsub.s32 %v3255, %v3257
    %v3259 = vrot.slane %v3231, %v3258
    %v3260 = vcombine.high %v3238, %v3238
    %v3261 = vcombine.high %v3245, %v3245
    %v3262 = vcombine.high %v3252, %v3252
    %v3263 = vcombine.high %v3259, %v3259
    %v3264 = vunpack.i.l.s16 %v3238
    %v3265 = vunpack.i.h.s16 %v3238
    %v3266 = vunpack.i.l.s16 %v3252
    %v3267 = vunpack.i.h.s16 %v3252
    %v3268 = vunpack.i.l.s16 %v3260
    %v3269 = vunpack.i.h.s16 %v3260
    %v3270 = vunpack.i.l.s16 %v3262
    %v3271 = vunpack.i.h.s16 %v3262
    %v3272 = vunpack.i.l.s16 %v3245
    %v3273 = vunpack.i.h.s16 %v3245
    %v3274 = vunpack.i.l.s16 %v3259
    %v3275 = vunpack.i.h.s16 %v3259
    %v3276 = vunpack.i.l.s16 %v3261
    %v3277 = vunpack.i.h.s16 %v3261
    %v3278 = vunpack.i.l.s16 %v3263
    %v3279 = vunpack.i.h.s16 %v3263
    %v3280 = vpack.i.b16 %v3264, %v3264
    %v3281 = vpack.i.b16 %v3265, %v3265
    %v3282 = vpack.i.b16 %v3266, %v3266
    %v3283 = vpack.i.b16 %v3267, %v3267
    %v3284 = vpack.i.b16 %v3268, %v3268
    %v3285 = vpack.i.b16 %v3269, %v3269
    %v3286 = vpack.i.b16 %v3270, %v3270
    %v3287 = vpack.i.b16 %v3271, %v3271
    %v3288 = vpack.i.b16 %v3272, %v3272
    %v3289 = vpack.i.b16 %v3273, %v3273
    %v3290 = vpack.i.b16 %v3274, %v3274
    %v3291 = vpack.i.b16 %v3275, %v3275
    %v3292 = vpack.i.b16 %v3276, %v3276
    %v3293 = vpack.i.b16 %v3277, %v3277
    %v3294 = vpack.i.b16 %v3278, %v3278
    %v3295 = vpack.i.b16 %v3279, %v3279
    %v3297 = vunpack.c.l.s4 286326784
    %v3298 = vunpack.c.0.s8 %v3297
    %v3299 = vlaneseq
    %v3300 = vshrl.u32 %v3299, 7
    %v3301 = vsub.s32 %v3298, %v3300
    %v3302 = vrot.slane %v3280, %v3301
    %v3304 = vunpack.c.l.s4 286326784
    %v3305 = vunpack.c.0.s8 %v3304
    %v3306 = vlaneseq
    %v3307 = vshrl.u32 %v3306, 7
    %v3308 = vsub.s32 %v3305, %v3307
    %v3309 = vrot.slane %v3281, %v3308
    %v3311 = vunpack.c.l.s4 286326784
    %v3312 = vunpack.c.0.s8 %v3311
    %v3313 = vlaneseq
    %v3314 = vshrl.u32 %v3313, 7
    %v3315 = vsub.s32 %v3312, %v3314
    %v3316 = vrot.slane %v3282, %v3315
    %v3318 = vunpack.c.l.s4 286326784
    %v3319 = vunpack.c.0.s8 %v3318
    %v3320 = vlaneseq
    %v3321 = vshrl.u32 %v3320, 7
    %v3322 = vsub.s32 %v3319, %v3321
    %v3323 = vrot.slane %v3283, %v3322
    %v3325 = vunpack.c.l.s4 286326784
    %v3326 = vunpack.c.0.s8 %v3325
    %v3327 = vlaneseq
    %v3328 = vshrl.u32 %v3327, 7
    %v3329 = vsub.s32 %v3326, %v3328
    %v3330 = vrot.slane %v3284, %v3329
    %v3332 = vunpack.c.l.s4 286326784
    %v3333 = vunpack.c.0.s8 %v3332
    %v3334 = vlaneseq
    %v3335 = vshrl.u32 %v3334, 7
    %v3336 = vsub.s32 %v3333, %v3335
    %v3337 = vrot.slane %v3285, %v3336
    %v3339 = vunpack.c.l.s4 286326784
    %v3340 = vunpack.c.0.s8 %v3339
    %v3341 = vlaneseq
    %v3342 = vshrl.u32 %v3341, 7
    %v3343 = vsub.s32 %v3340, %v3342
    %v3344 = vrot.slane %v3286, %v3343
    %v3346 = vunpack.c.l.s4 286326784
    %v3347 = vunpack.c.0.s8 %v3346
    %v3348 = vlaneseq
    %v3349 = vshrl.u32 %v3348, 7
    %v3350 = vsub.s32 %v3347, %v3349
    %v3351 = vrot.slane %v3287, %v3350
    %v3353 = vunpack.c.l.s4 286326784
    %v3354 = vunpack.c.0.s8 %v3353
    %v3355 = vlaneseq
    %v3356 = vshrl.u32 %v3355, 7
    %v3357 = vsub.s32 %v3354, %v3356
    %v3358 = vrot.slane %v3288, %v3357
    %v3360 = vunpack.c.l.s4 286326784
    %v3361 = vunpack.c.0.s8 %v3360
    %v3362 = vlaneseq
    %v3363 = vshrl.u32 %v3362, 7
    %v3364 = vsub.s32 %v3361, %v3363
    %v3365 = vrot.slane %v3289, %v3364
    %v3367 = vunpack.c.l.s4 286326784
    %v3368 = vunpack.c.0.s8 %v3367
    %v3369 = vlaneseq
    %v3370 = vshrl.u32 %v3369, 7
    %v3371 = vsub.s32 %v3368, %v3370
    %v3372 = vrot.slane %v3290, %v3371
    %v3374 = vunpack.c.l.s4 286326784
    %v3375 = vunpack.c.0.s8 %v3374
    %v3376 = vlaneseq
    %v3377 = vshrl.u32 %v3376, 7
    %v3378 = vsub.s32 %v3375, %v3377
    %v3379 = vrot.slane %v3291, %v3378
    %v3381 = vunpack.c.l.s4 286326784
    %v3382 = vunpack.c.0.s8 %v3381
    %v3383 = vlaneseq
    %v3384 = vshrl.u32 %v3383, 7
    %v3385 = vsub.s32 %v3382, %v3384
    %v3386 = vrot.slane %v3292, %v3385
    %v3388 = vunpack.c.l.s4 286326784
    %v3389 = vunpack.c.0.s8 %v3388
    %v3390 = vlaneseq
    %v3391 = vshrl.u32 %v3390, 7
    %v3392 = vsub.s32 %v3389, %v3391
    %v3393 = vrot.slane %v3293, %v3392
    %v3395 = vunpack.c.l.s4 286326784
    %v3396 = vunpack.c.0.s8 %v3395
    %v3397 = vlaneseq
    %v3398 = vshrl.u32 %v3397, 7
    %v3399 = vsub.s32 %v3396, %v3398
    %v3400 = vrot.slane %v3294, %v3399
    %v3402 = vunpack.c.l.s4 286326784
    %v3403 = vunpack.c.0.s8 %v3402
    %v3404 = vlaneseq
    %v3405 = vshrl.u32 %v3404, 7
    %v3406 = vsub.s32 %v3403, %v3405
    %v3407 = vrot.slane %v3295, %v3406
    %vm3424 = vcmask 1041409
    %vm3425 = vmand %vm3424, %vm50
    %v3426 = vld [vmem:[#allocation8] sm:$0x2]
    %v3427 = vsel %vm3425, %v3302, %v3426
    %3428 = vst [vmem:[#allocation8] sm:$0x2] %v3427
    %v3429 = vld [vmem:[#allocation8 + $0x4] sm:$0x2]
    %v3430 = vsel %vm3425, %v3309, %v3429
    %3431 = vst [vmem:[#allocation8 + $0x4] sm:$0x2] %v3430
    %v3432 = vld [vmem:[#allocation8 + $0x8] sm:$0x2]
    %v3433 = vsel %vm3425, %v3316, %v3432
    %3434 = vst [vmem:[#allocation8 + $0x8] sm:$0x2] %v3433
    %v3435 = vld [vmem:[#allocation8 + $0xc] sm:$0x2]
    %v3436 = vsel %vm3425, %v3323, %v3435
    %3437 = vst [vmem:[#allocation8 + $0xc] sm:$0x2] %v3436
    %v3438 = vld [vmem:[#allocation8 + $0x10] sm:$0x2]
    %v3439 = vsel %vm3425, %v3330, %v3438
    %3440 = vst [vmem:[#allocation8 + $0x10] sm:$0x2] %v3439
    %v3441 = vld [vmem:[#allocation8 + $0x14] sm:$0x2]
    %v3442 = vsel %vm3425, %v3337, %v3441
    %3443 = vst [vmem:[#allocation8 + $0x14] sm:$0x2] %v3442
    %v3444 = vld [vmem:[#allocation8 + $0x18] sm:$0x2]
    %v3445 = vsel %vm3425, %v3344, %v3444
    %3446 = vst [vmem:[#allocation8 + $0x18] sm:$0x2] %v3445
    %v3447 = vld [vmem:[#allocation8 + $0x1c] sm:$0x2]
    %v3448 = vsel %vm3425, %v3351, %v3447
    %3449 = vst [vmem:[#allocation8 + $0x1c] sm:$0x2] %v3448
    %v3450 = vld [vmem:[#allocation8 + $0x20] sm:$0x2]
    %v3451 = vsel %vm3425, %v3358, %v3450
    %3452 = vst [vmem:[#allocation8 + $0x20] sm:$0x2] %v3451
    %v3453 = vld [vmem:[#allocation8 + $0x24] sm:$0x2]
    %v3454 = vsel %vm3425, %v3365, %v3453
    %3455 = vst [vmem:[#allocation8 + $0x24] sm:$0x2] %v3454
    %v3456 = vld [vmem:[#allocation8 + $0x28] sm:$0x2]
    %v3457 = vsel %vm3425, %v3372, %v3456
    %3458 = vst [vmem:[#allocation8 + $0x28] sm:$0x2] %v3457
    %v3459 = vld [vmem:[#allocation8 + $0x2c] sm:$0x2]
    %v3460 = vsel %vm3425, %v3379, %v3459
    %3461 = vst [vmem:[#allocation8 + $0x2c] sm:$0x2] %v3460
    %v3462 = vld [vmem:[#allocation8 + $0x30] sm:$0x2]
    %v3463 = vsel %vm3425, %v3386, %v3462
    %3464 = vst [vmem:[#allocation8 + $0x30] sm:$0x2] %v3463
    %v3465 = vld [vmem:[#allocation8 + $0x34] sm:$0x2]
    %v3466 = vsel %vm3425, %v3393, %v3465
    %3467 = vst [vmem:[#allocation8 + $0x34] sm:$0x2] %v3466
    %v3468 = vld [vmem:[#allocation8 + $0x38] sm:$0x2]
    %v3469 = vsel %vm3425, %v3400, %v3468
    %3470 = vst [vmem:[#allocation8 + $0x38] sm:$0x2] %v3469
    %v3471 = vld [vmem:[#allocation8 + $0x3c] sm:$0x2]
    %v3472 = vsel %vm3425, %v3407, %v3471
    %3473 = vst [vmem:[#allocation8 + $0x3c] sm:$0x2] %v3472
    %s3474 = scalar_lea.vmem [#allocation3], 24
    %v3475 = vld [vmem:[%s3474] sm:$0xf]
    %v3476 = vld [vmem:[%s3474 + $0x4] sm:$0xf]
    %v3478 = vshrl.u32 %v3475, 16
    %v3480 = vrot.slane %v3478, 6
    %v3481 = vshll.u32 %v3475, 16
    %v3483 = vrot.slane %v3481, 7
    %v3484 = vor.u32 %v3480, %v3483
    %v3485 = vrot.slane %v3484, 4
    %v3487 = vshrl.u32 %v3476, 16
    %v3489 = vrot.slane %v3487, 6
    %v3490 = vshll.u32 %v3476, 16
    %v3492 = vrot.slane %v3490, 7
    %v3493 = vor.u32 %v3489, %v3492
    %v3494 = vsel %vm52, %v3485, %v3493
    %v3495 = vrot.slane %v3493, 4
    %v3499 = vld [vmem:[#allocation2] sm:$0xe]
    %v3500 = vsel %vm77, %v3484, %v3499
    %3501 = vst [vmem:[#allocation2] sm:$0xe] %v3500
    %3502 = vst.msk [vmem:[#allocation2 + $0x4] sm:$0xf] %vm81, %v3494
    %v3503 = vld [vmem:[#allocation2 + $0x8] sm:$0x3]
    %v3504 = vsel %vm84, %v3495, %v3503
    %3505 = vst [vmem:[#allocation2 + $0x8] sm:$0x3] %v3504
    %v3506 = vld [vmem:[#allocation2] sm:$0xf]
    %v3507 = vld [vmem:[#allocation2 + $0x4] sm:$0xf]
    %v3508 = vld [vmem:[#allocation6] sm:$0xf]
    %v3509 = vld [vmem:[#allocation6 + $0x4] sm:$0xf]
    %v3510 = vld [vmem:[#allocation6 + $0x8] sm:$0xf]
    %v3511 = vld [vmem:[#allocation6 + $0xc] sm:$0xf]
    %v3512 = vld [vmem:[#allocation6 + $0x10] sm:$0xf]
    %v3513 = vld [vmem:[#allocation6 + $0x14] sm:$0xf]
    %v3514 = vld [vmem:[#allocation6 + $0x18] sm:$0xf]
    %v3515 = vld [vmem:[#allocation6 + $0x1c] sm:$0xf]
    %v3516 = vld [vmem:[#allocation6 + $0x20] sm:$0xf]
    %v3517 = vld [vmem:[#allocation6 + $0x24] sm:$0xf]
    %v3518 = vld [vmem:[#allocation6 + $0x28] sm:$0xf]
    %v3519 = vld [vmem:[#allocation6 + $0x2c] sm:$0xf]
    %v3520 = vld [vmem:[#allocation6 + $0x30] sm:$0xf]
    %v3521 = vld [vmem:[#allocation6 + $0x34] sm:$0xf]
    %v3522 = vld [vmem:[#allocation6 + $0x38] sm:$0xf]
    %v3523 = vld [vmem:[#allocation6 + $0x3c] sm:$0xf]
    %v3524 = vld [vmem:[#allocation2 + $0x8] sm:$0x1]
    %v3525 = vld [vmem:[#allocation6 + $0x40] sm:$0xf]
    %v3526 = vld [vmem:[#allocation6 + $0x44] sm:$0xf]
    %v3527 = vld [vmem:[#allocation6 + $0x48] sm:$0xf]
    %v3528 = vld [vmem:[#allocation6 + $0x4c] sm:$0xf]
    %v3529 = vld [vmem:[#allocation6 + $0x50] sm:$0xf]
    %v3530 = vld [vmem:[#allocation6 + $0x54] sm:$0xf]
    %v3531 = vld [vmem:[#allocation6 + $0x58] sm:$0xf]
    %v3532 = vld [vmem:[#allocation6 + $0x5c] sm:$0xf]
    %v3533 = vld [vmem:[#allocation6 + $0x60] sm:$0xf]
    %v3534 = vld [vmem:[#allocation6 + $0x64] sm:$0xf]
    %v3535 = vld [vmem:[#allocation6 + $0x68] sm:$0xf]
    %v3536 = vld [vmem:[#allocation6 + $0x6c] sm:$0xf]
    %v3537 = vld [vmem:[#allocation6 + $0x70] sm:$0xf]
    %v3538 = vld [vmem:[#allocation6 + $0x74] sm:$0xf]
    %v3539 = vld [vmem:[#allocation6 + $0x78] sm:$0xf]
    %v3540 = vld [vmem:[#allocation6 + $0x7c] sm:$0xf]
    %v3544 = vunpack.c.l.b16 %v3506
    %v3545 = vunpack.c.l.b16 %v3507
    %v3546 = vunpack.c.l.b16 %v3524
    %v3547 = vpack.c.b16 %v3545, %v3544
    %v3548 = vpack.c.b16 %v3546, %v3546
    %v3550 = vshrl.u32 %v3547, 16
    %v3552 = vshll.u32 %v3547, 16
    %v3554 = vrot.slane %v3552, 1
    %v3555 = vor.u32 %v3550, %v3554
    %v3557 = vshll.u32 %v3548, 16
    %v3559 = vrot.slane %v3557, 1
    %v3560 = vsel %vm131, %v3555, %v3559
    %v3578 = vunpack.c.l.b16 %v3525
    %v3579 = vunpack.c.l.b16 %v3526
    %v3580 = vunpack.c.l.b16 %v3527
    %v3581 = vunpack.c.l.b16 %v3528
    %v3582 = vunpack.c.l.b16 %v3529
    %v3583 = vunpack.c.l.b16 %v3530
    %v3584 = vunpack.c.l.b16 %v3531
    %v3585 = vunpack.c.l.b16 %v3532
    %v3586 = vunpack.c.l.b16 %v3533
    %v3587 = vunpack.c.l.b16 %v3534
    %v3588 = vunpack.c.l.b16 %v3535
    %v3589 = vunpack.c.l.b16 %v3536
    %v3590 = vunpack.c.l.b16 %v3537
    %v3591 = vunpack.c.l.b16 %v3538
    %v3592 = vunpack.c.l.b16 %v3539
    %v3593 = vunpack.c.l.b16 %v3540
    %v3594 = vpack.c.b16 %v3579, %v3578
    %v3595 = vpack.c.b16 %v3581, %v3580
    %v3596 = vpack.c.b16 %v3583, %v3582
    %v3597 = vpack.c.b16 %v3585, %v3584
    %v3598 = vpack.c.b16 %v3587, %v3586
    %v3599 = vpack.c.b16 %v3589, %v3588
    %v3600 = vpack.c.b16 %v3591, %v3590
    %v3601 = vpack.c.b16 %v3593, %v3592
    %3610 = vmatprep.subr.bf16.mxu0 0
    %3611 = vmatpush1.bf16.msra.mxu0 %v3594
    %3612 = vmatprep.subr.bf16.mxu0 0
    %3613 = vmatpush1.bf16.msra.mxu0 %v3595
    %3614 = vmatprep.subr.bf16.mxu0 0
    %3615 = vmatpush1.bf16.msra.mxu0 %v3596
    %3616 = vmatprep.subr.bf16.mxu0 0
    %3617 = vmatpush1.bf16.msra.mxu0 %v3597
    %3618 = vmatprep.subr.bf16.mxu0 0
    %3619 = vmatpush1.bf16.msra.mxu0 %v3598
    %3620 = vmatprep.subr.bf16.mxu0 0
    %3621 = vmatpush1.bf16.msra.mxu0 %v3599
    %3622 = vmatprep.subr.bf16.mxu0 0
    %3623 = vmatpush1.bf16.msra.mxu0 %v3600
    %3624 = vmatprep.subr.bf16.mxu0 0
    %3625 = vmatpush1.bf16.msra.mxu0 %v3601
    %3626 = vmatprep.subr.bf16.mxu0 0
    %3627 = vmatpush1.bf16.msra.mxu0 0
    %3628 = vmatprep.subr.bf16.mxu0 0
    %3629 = vmatpush1.bf16.msra.mxu0 0
    %3630 = vmatprep.subr.bf16.mxu0 0
    %3631 = vmatpush1.bf16.msra.mxu0 0
    %3632 = vmatprep.subr.bf16.mxu0 0
    %3633 = vmatpush1.bf16.msra.mxu0 0
    %3634 = vmatprep.subr.bf16.mxu0 0
    %3635 = vmatpush1.bf16.msra.mxu0 0
    %3636 = vmatprep.subr.bf16.mxu0 0
    %3637 = vmatpush1.bf16.msra.mxu0 0
    %3638 = vmatprep.subr.bf16.mxu0 0
    %3639 = vmatpush1.bf16.msra.mxu0 0
    %3640 = vmatprep.subr.bf16.mxu0 0
    %3641 = vmatpush1.bf16.msra.mxu0 0
    %3642 = vmatprep.mubr.bf16.mxu0 0
    %3643 = vmatmul.mubr.bf16.gmra.mrb[0].mxu0 %v3560
    %v3644 = vpop.f32.mrb[0].mxu0
    %v3645 = vadd.f32 0.0, %v3644
    %v3646 = vpop.f32.mrb[0].mxu0
    %v3647 = vpop.f32.mrb[0].mxu0
    %v3648 = vadd.f32 0.0, %v3647
    %v3649 = vpop.f32.mrb[0].mxu0
    %3650 = vdwg.mxu0
    %v3668 = vunpack.c.l.b16 %v3508
    %v3669 = vunpack.c.l.b16 %v3509
    %v3670 = vunpack.c.l.b16 %v3510
    %v3671 = vunpack.c.l.b16 %v3511
    %v3672 = vunpack.c.l.b16 %v3512
    %v3673 = vunpack.c.l.b16 %v3513
    %v3674 = vunpack.c.l.b16 %v3514
    %v3675 = vunpack.c.l.b16 %v3515
    %v3676 = vunpack.c.l.b16 %v3516
    %v3677 = vunpack.c.l.b16 %v3517
    %v3678 = vunpack.c.l.b16 %v3518
    %v3679 = vunpack.c.l.b16 %v3519
    %v3680 = vunpack.c.l.b16 %v3520
    %v3681 = vunpack.c.l.b16 %v3521
    %v3682 = vunpack.c.l.b16 %v3522
    %v3683 = vunpack.c.l.b16 %v3523
    %v3684 = vpack.c.b16 %v3669, %v3668
    %v3685 = vpack.c.b16 %v3671, %v3670
    %v3686 = vpack.c.b16 %v3673, %v3672
    %v3687 = vpack.c.b16 %v3675, %v3674
    %v3688 = vpack.c.b16 %v3677, %v3676
    %v3689 = vpack.c.b16 %v3679, %v3678
    %v3690 = vpack.c.b16 %v3681, %v3680
    %v3691 = vpack.c.b16 %v3683, %v3682
    %3700 = vmatprep.subr.bf16.mxu0 0
    %3701 = vmatpush1.bf16.msra.mxu0 %v3684
    %3702 = vmatprep.subr.bf16.mxu0 0
    %3703 = vmatpush1.bf16.msra.mxu0 %v3685
    %3704 = vmatprep.subr.bf16.mxu0 0
    %3705 = vmatpush1.bf16.msra.mxu0 %v3686
    %3706 = vmatprep.subr.bf16.mxu0 0
    %3707 = vmatpush1.bf16.msra.mxu0 %v3687
    %3708 = vmatprep.subr.bf16.mxu0 0
    %3709 = vmatpush1.bf16.msra.mxu0 %v3688
    %3710 = vmatprep.subr.bf16.mxu0 0
    %3711 = vmatpush1.bf16.msra.mxu0 %v3689
    %3712 = vmatprep.subr.bf16.mxu0 0
    %3713 = vmatpush1.bf16.msra.mxu0 %v3690
    %3714 = vmatprep.subr.bf16.mxu0 0
    %3715 = vmatpush1.bf16.msra.mxu0 %v3691
    %3716 = vmatprep.subr.bf16.mxu0 0
    %3717 = vmatpush1.bf16.msra.mxu0 0
    %3718 = vmatprep.subr.bf16.mxu0 0
    %3719 = vmatpush1.bf16.msra.mxu0 0
    %3720 = vmatprep.subr.bf16.mxu0 0
    %3721 = vmatpush1.bf16.msra.mxu0 0
    %3722 = vmatprep.subr.bf16.mxu0 0
    %3723 = vmatpush1.bf16.msra.mxu0 0
    %3724 = vmatprep.subr.bf16.mxu0 0
    %3725 = vmatpush1.bf16.msra.mxu0 0
    %3726 = vmatprep.subr.bf16.mxu0 0
    %3727 = vmatpush1.bf16.msra.mxu0 0
    %3728 = vmatprep.subr.bf16.mxu0 0
    %3729 = vmatpush1.bf16.msra.mxu0 0
    %3730 = vmatprep.subr.bf16.mxu0 0
    %3731 = vmatpush1.bf16.msra.mxu0 0
    %3732 = vmatprep.mubr.bf16.mxu0 0
    %3733 = vmatmul.mubr.bf16.gmra.mrb[0].mxu0 %v3547
    %v3734 = vpop.f32.mrb[0].mxu0
    %v3735 = vadd.f32 %v3645, %v3734
    %v3736 = vpop.f32.mrb[0].mxu0
    %v3737 = vpop.f32.mrb[0].mxu0
    %v3738 = vadd.f32 %v3648, %v3737
    %v3739 = vpop.f32.mrb[0].mxu0
    %3740 = vdwg.mxu0
    %v3741 = vld [vmem:[#allocation2] sm:$0xe]
    %v3742 = vld [vmem:[#allocation6 + $0x80] sm:$0xf]
    %v3743 = vld [vmem:[#allocation6 + $0x84] sm:$0xf]
    %v3744 = vld [vmem:[#allocation6 + $0x88] sm:$0xf]
    %v3745 = vld [vmem:[#allocation6 + $0x8c] sm:$0xf]
    %v3746 = vld [vmem:[#allocation6 + $0x90] sm:$0xf]
    %v3747 = vld [vmem:[#allocation6 + $0x94] sm:$0xf]
    %v3748 = vld [vmem:[#allocation6 + $0x98] sm:$0xf]
    %v3749 = vld [vmem:[#allocation6 + $0x9c] sm:$0xf]
    %v3750 = vld [vmem:[#allocation6 + $0xa0] sm:$0xf]
    %v3751 = vld [vmem:[#allocation6 + $0xa4] sm:$0xf]
    %v3752 = vld [vmem:[#allocation6 + $0xa8] sm:$0xf]
    %v3753 = vld [vmem:[#allocation6 + $0xac] sm:$0xf]
    %v3754 = vld [vmem:[#allocation6 + $0xb0] sm:$0xf]
    %v3755 = vld [vmem:[#allocation6 + $0xb4] sm:$0xf]
    %v3756 = vld [vmem:[#allocation6 + $0xb8] sm:$0xf]
    %v3757 = vld [vmem:[#allocation6 + $0xbc] sm:$0xf]
    %v3759 = vunpack.c.l.b16 %v3741
    %v3760 = vpack.c.b16 %v3545, %v3759
    %v3761 = vrot.slane %v3760, 1
    %v3762 = vrot.slane %v3548, 1
    %v3763 = vsel %vm344, %v3761, %v3762
    %v3781 = vunpack.c.l.b16 %v3742
    %v3782 = vunpack.c.l.b16 %v3743
    %v3783 = vunpack.c.l.b16 %v3744
    %v3784 = vunpack.c.l.b16 %v3745
    %v3785 = vunpack.c.l.b16 %v3746
    %v3786 = vunpack.c.l.b16 %v3747
    %v3787 = vunpack.c.l.b16 %v3748
    %v3788 = vunpack.c.l.b16 %v3749
    %v3789 = vunpack.c.l.b16 %v3750
    %v3790 = vunpack.c.l.b16 %v3751
    %v3791 = vunpack.c.l.b16 %v3752
    %v3792 = vunpack.c.l.b16 %v3753
    %v3793 = vunpack.c.l.b16 %v3754
    %v3794 = vunpack.c.l.b16 %v3755
    %v3795 = vunpack.c.l.b16 %v3756
    %v3796 = vunpack.c.l.b16 %v3757
    %v3797 = vpack.c.b16 %v3782, %v3781
    %v3798 = vpack.c.b16 %v3784, %v3783
    %v3799 = vpack.c.b16 %v3786, %v3785
    %v3800 = vpack.c.b16 %v3788, %v3787
    %v3801 = vpack.c.b16 %v3790, %v3789
    %v3802 = vpack.c.b16 %v3792, %v3791
    %v3803 = vpack.c.b16 %v3794, %v3793
    %v3804 = vpack.c.b16 %v3796, %v3795
    %3813 = vmatprep.subr.bf16.mxu0 0
    %3814 = vmatpush1.bf16.msra.mxu0 %v3797
    %3815 = vmatprep.subr.bf16.mxu0 0
    %3816 = vmatpush1.bf16.msra.mxu0 %v3798
    %3817 = vmatprep.subr.bf16.mxu0 0
    %3818 = vmatpush1.bf16.msra.mxu0 %v3799
    %3819 = vmatprep.subr.bf16.mxu0 0
    %3820 = vmatpush1.bf16.msra.mxu0 %v3800
    %3821 = vmatprep.subr.bf16.mxu0 0
    %3822 = vmatpush1.bf16.msra.mxu0 %v3801
    %3823 = vmatprep.subr.bf16.mxu0 0
    %3824 = vmatpush1.bf16.msra.mxu0 %v3802
    %3825 = vmatprep.subr.bf16.mxu0 0
    %3826 = vmatpush1.bf16.msra.mxu0 %v3803
    %3827 = vmatprep.subr.bf16.mxu0 0
    %3828 = vmatpush1.bf16.msra.mxu0 %v3804
    %3829 = vmatprep.subr.bf16.mxu0 0
    %3830 = vmatpush1.bf16.msra.mxu0 0
    %3831 = vmatprep.subr.bf16.mxu0 0
    %3832 = vmatpush1.bf16.msra.mxu0 0
    %3833 = vmatprep.subr.bf16.mxu0 0
    %3834 = vmatpush1.bf16.msra.mxu0 0
    %3835 = vmatprep.subr.bf16.mxu0 0
    %3836 = vmatpush1.bf16.msra.mxu0 0
    %3837 = vmatprep.subr.bf16.mxu0 0
    %3838 = vmatpush1.bf16.msra.mxu0 0
    %3839 = vmatprep.subr.bf16.mxu0 0
    %3840 = vmatpush1.bf16.msra.mxu0 0
    %3841 = vmatprep.subr.bf16.mxu0 0
    %3842 = vmatpush1.bf16.msra.mxu0 0
    %3843 = vmatprep.subr.bf16.mxu0 0
    %3844 = vmatpush1.bf16.msra.mxu0 0
    %3845 = vmatprep.mubr.bf16.mxu0 0
    %3846 = vmatmul.mubr.bf16.gmra.mrb[0].mxu0 %v3763
    %v3847 = vpop.f32.mrb[0].mxu0
    %v3848 = vadd.f32 0.0, %v3847
    %v3849 = vpop.f32.mrb[0].mxu0
    %v3850 = vpop.f32.mrb[0].mxu0
    %v3851 = vadd.f32 0.0, %v3850
    %v3852 = vpop.f32.mrb[0].mxu0
    %3853 = vdwg.mxu0
    %v3854 = vadd.f32 %v3735, %v3848
    %v3855 = vadd.f32 %v3738, %v3851
    %v3856 = vld [vmem:[#allocation2 + $0x8] sm:$0x3]
    %v3857 = vld [vmem:[#allocation6 + $0xc0] sm:$0xf]
    %v3858 = vld [vmem:[#allocation6 + $0xc4] sm:$0xf]
    %v3859 = vld [vmem:[#allocation6 + $0xc8] sm:$0xf]
    %v3860 = vld [vmem:[#allocation6 + $0xcc] sm:$0xf]
    %v3861 = vld [vmem:[#allocation6 + $0xd0] sm:$0xf]
    %v3862 = vld [vmem:[#allocation6 + $0xd4] sm:$0xf]
    %v3863 = vld [vmem:[#allocation6 + $0xd8] sm:$0xf]
    %v3864 = vld [vmem:[#allocation6 + $0xdc] sm:$0xf]
    %v3865 = vld [vmem:[#allocation6 + $0xe0] sm:$0xf]
    %v3866 = vld [vmem:[#allocation6 + $0xe4] sm:$0xf]
    %v3867 = vld [vmem:[#allocation6 + $0xe8] sm:$0xf]
    %v3868 = vld [vmem:[#allocation6 + $0xec] sm:$0xf]
    %v3869 = vld [vmem:[#allocation6 + $0xf0] sm:$0xf]
    %v3870 = vld [vmem:[#allocation6 + $0xf4] sm:$0xf]
    %v3871 = vld [vmem:[#allocation6 + $0xf8] sm:$0xf]
    %v3872 = vld [vmem:[#allocation6 + $0xfc] sm:$0xf]
    %v3874 = vunpack.c.l.b16 %v3856
    %v3875 = vpack.c.b16 %v3874, %v3874
    %v3877 = vshrl.u32 %v3760, 16
    %v3879 = vrot.slane %v3877, 1
    %v3880 = vshll.u32 %v3760, 16
    %v3882 = vrot.slane %v3880, 2
    %v3883 = vor.u32 %v3879, %v3882
    %v3885 = vshrl.u32 %v3875, 16
    %v3887 = vrot.slane %v3885, 1
    %v3888 = vshll.u32 %v3875, 16
    %v3890 = vrot.slane %v3888, 2
    %v3891 = vor.u32 %v3887, %v3890
    %v3892 = vsel %vm460, %v3883, %v3891
    %v3910 = vunpack.c.l.b16 %v3857
    %v3911 = vunpack.c.l.b16 %v3858
    %v3912 = vunpack.c.l.b16 %v3859
    %v3913 = vunpack.c.l.b16 %v3860
    %v3914 = vunpack.c.l.b16 %v3861
    %v3915 = vunpack.c.l.b16 %v3862
    %v3916 = vunpack.c.l.b16 %v3863
    %v3917 = vunpack.c.l.b16 %v3864
    %v3918 = vunpack.c.l.b16 %v3865
    %v3919 = vunpack.c.l.b16 %v3866
    %v3920 = vunpack.c.l.b16 %v3867
    %v3921 = vunpack.c.l.b16 %v3868
    %v3922 = vunpack.c.l.b16 %v3869
    %v3923 = vunpack.c.l.b16 %v3870
    %v3924 = vunpack.c.l.b16 %v3871
    %v3925 = vunpack.c.l.b16 %v3872
    %v3926 = vpack.c.b16 %v3911, %v3910
    %v3927 = vpack.c.b16 %v3913, %v3912
    %v3928 = vpack.c.b16 %v3915, %v3914
    %v3929 = vpack.c.b16 %v3917, %v3916
    %v3930 = vpack.c.b16 %v3919, %v3918
    %v3931 = vpack.c.b16 %v3921, %v3920
    %v3932 = vpack.c.b16 %v3923, %v3922
    %v3933 = vpack.c.b16 %v3925, %v3924
    %3942 = vmatprep.subr.bf16.mxu0 0
    %3943 = vmatpush1.bf16.msra.mxu0 %v3926
    %3944 = vmatprep.subr.bf16.mxu0 0
    %3945 = vmatpush1.bf16.msra.mxu0 %v3927
    %3946 = vmatprep.subr.bf16.mxu0 0
    %3947 = vmatpush1.bf16.msra.mxu0 %v3928
    %3948 = vmatprep.subr.bf16.mxu0 0
    %3949 = vmatpush1.bf16.msra.mxu0 %v3929
    %3950 = vmatprep.subr.bf16.mxu0 0
    %3951 = vmatpush1.bf16.msra.mxu0 %v3930
    %3952 = vmatprep.subr.bf16.mxu0 0
    %3953 = vmatpush1.bf16.msra.mxu0 %v3931
    %3954 = vmatprep.subr.bf16.mxu0 0
    %3955 = vmatpush1.bf16.msra.mxu0 %v3932
    %3956 = vmatprep.subr.bf16.mxu0 0
    %3957 = vmatpush1.bf16.msra.mxu0 %v3933
    %3958 = vmatprep.subr.bf16.mxu0 0
    %3959 = vmatpush1.bf16.msra.mxu0 0
    %3960 = vmatprep.subr.bf16.mxu0 0
    %3961 = vmatpush1.bf16.msra.mxu0 0
    %3962 = vmatprep.subr.bf16.mxu0 0
    %3963 = vmatpush1.bf16.msra.mxu0 0
    %3964 = vmatprep.subr.bf16.mxu0 0
    %3965 = vmatpush1.bf16.msra.mxu0 0
    %3966 = vmatprep.subr.bf16.mxu0 0
    %3967 = vmatpush1.bf16.msra.mxu0 0
    %3968 = vmatprep.subr.bf16.mxu0 0
    %3969 = vmatpush1.bf16.msra.mxu0 0
    %3970 = vmatprep.subr.bf16.mxu0 0
    %3971 = vmatpush1.bf16.msra.mxu0 0
    %3972 = vmatprep.subr.bf16.mxu0 0
    %3973 = vmatpush1.bf16.msra.mxu0 0
    %3974 = vmatprep.mubr.bf16.mxu0 0
    %3975 = vmatmul.mubr.bf16.gmra.mrb[0].mxu0 %v3892
    %v3976 = vpop.f32.mrb[0].mxu0
    %v3977 = vadd.f32 0.0, %v3976
    %v3978 = vpop.f32.mrb[0].mxu0
    %v3979 = vpop.f32.mrb[0].mxu0
    %v3980 = vadd.f32 0.0, %v3979
    %v3981 = vpop.f32.mrb[0].mxu0
    %3982 = vdwg.mxu0
    %v3983 = vadd.f32 %v3854, %v3977
    %v3984 = vadd.f32 %v3855, %v3980
    %v3985 = vld [vmem:[#allocation2] sm:$0xc]
    %v3986 = vld [vmem:[#allocation6 + $0x100] sm:$0xf]
    %v3987 = vld [vmem:[#allocation6 + $0x104] sm:$0xf]
    %v3988 = vld [vmem:[#allocation6 + $0x108] sm:$0xf]
    %v3989 = vld [vmem:[#allocation6 + $0x10c] sm:$0xf]
    %v3990 = vld [vmem:[#allocation6 + $0x110] sm:$0xf]
    %v3991 = vld [vmem:[#allocation6 + $0x114] sm:$0xf]
    %v3992 = vld [vmem:[#allocation6 + $0x118] sm:$0xf]
    %v3993 = vld [vmem:[#allocation6 + $0x11c] sm:$0xf]
    %v3994 = vld [vmem:[#allocation6 + $0x120] sm:$0xf]
    %v3995 = vld [vmem:[#allocation6 + $0x124] sm:$0xf]
    %v3996 = vld [vmem:[#allocation6 + $0x128] sm:$0xf]
    %v3997 = vld [vmem:[#allocation6 + $0x12c] sm:$0xf]
    %v3998 = vld [vmem:[#allocation6 + $0x130] sm:$0xf]
    %v3999 = vld [vmem:[#allocation6 + $0x134] sm:$0xf]
    %v4000 = vld [vmem:[#allocation6 + $0x138] sm:$0xf]
    %v4001 = vld [vmem:[#allocation6 + $0x13c] sm:$0xf]
    %v4003 = vunpack.c.l.b16 %v3985
    %v4004 = vpack.c.b16 %v3545, %v4003
    %v4005 = vrot.slane %v4004, 2
    %v4006 = vrot.slane %v3875, 2
    %v4007 = vsel %vm590, %v4005, %v4006
    %v4025 = vunpack.c.l.b16 %v3986
    %v4026 = vunpack.c.l.b16 %v3987
    %v4027 = vunpack.c.l.b16 %v3988
    %v4028 = vunpack.c.l.b16 %v3989
    %v4029 = vunpack.c.l.b16 %v3990
    %v4030 = vunpack.c.l.b16 %v3991
    %v4031 = vunpack.c.l.b16 %v3992
    %v4032 = vunpack.c.l.b16 %v3993
    %v4033 = vunpack.c.l.b16 %v3994
    %v4034 = vunpack.c.l.b16 %v3995
    %v4035 = vunpack.c.l.b16 %v3996
    %v4036 = vunpack.c.l.b16 %v3997
    %v4037 = vunpack.c.l.b16 %v3998
    %v4038 = vunpack.c.l.b16 %v3999
    %v4039 = vunpack.c.l.b16 %v4000
    %v4040 = vunpack.c.l.b16 %v4001
    %v4041 = vpack.c.b16 %v4026, %v4025
    %v4042 = vpack.c.b16 %v4028, %v4027
    %v4043 = vpack.c.b16 %v4030, %v4029
    %v4044 = vpack.c.b16 %v4032, %v4031
    %v4045 = vpack.c.b16 %v4034, %v4033
    %v4046 = vpack.c.b16 %v4036, %v4035
    %v4047 = vpack.c.b16 %v4038, %v4037
    %v4048 = vpack.c.b16 %v4040, %v4039
    %4057 = vmatprep.subr.bf16.mxu0 0
    %4058 = vmatpush1.bf16.msra.mxu0 %v4041
    %4059 = vmatprep.subr.bf16.mxu0 0
    %4060 = vmatpush1.bf16.msra.mxu0 %v4042
    %4061 = vmatprep.subr.bf16.mxu0 0
    %4062 = vmatpush1.bf16.msra.mxu0 %v4043
    %4063 = vmatprep.subr.bf16.mxu0 0
    %4064 = vmatpush1.bf16.msra.mxu0 %v4044
    %4065 = vmatprep.subr.bf16.mxu0 0
    %4066 = vmatpush1.bf16.msra.mxu0 %v4045
    %4067 = vmatprep.subr.bf16.mxu0 0
    %4068 = vmatpush1.bf16.msra.mxu0 %v4046
    %4069 = vmatprep.subr.bf16.mxu0 0
    %4070 = vmatpush1.bf16.msra.mxu0 %v4047
    %4071 = vmatprep.subr.bf16.mxu0 0
    %4072 = vmatpush1.bf16.msra.mxu0 %v4048
    %4073 = vmatprep.subr.bf16.mxu0 0
    %4074 = vmatpush1.bf16.msra.mxu0 0
    %4075 = vmatprep.subr.bf16.mxu0 0
    %4076 = vmatpush1.bf16.msra.mxu0 0
    %4077 = vmatprep.subr.bf16.mxu0 0
    %4078 = vmatpush1.bf16.msra.mxu0 0
    %4079 = vmatprep.subr.bf16.mxu0 0
    %4080 = vmatpush1.bf16.msra.mxu0 0
    %4081 = vmatprep.subr.bf16.mxu0 0
    %4082 = vmatpush1.bf16.msra.mxu0 0
    %4083 = vmatprep.subr.bf16.mxu0 0
    %4084 = vmatpush1.bf16.msra.mxu0 0
    %4085 = vmatprep.subr.bf16.mxu0 0
    %4086 = vmatpush1.bf16.msra.mxu0 0
    %4087 = vmatprep.subr.bf16.mxu0 0
    %4088 = vmatpush1.bf16.msra.mxu0 0
    %4089 = vmatprep.mubr.bf16.mxu0 0
    %4090 = vmatmul.mubr.bf16.gmra.mrb[0].mxu0 %v4007
    %v4091 = vpop.f32.mrb[0].mxu0
    %v4092 = vadd.f32 0.0, %v4091
    %v4093 = vpop.f32.mrb[0].mxu0
    %v4094 = vpop.f32.mrb[0].mxu0
    %v4095 = vadd.f32 0.0, %v4094
    %v4096 = vpop.f32.mrb[0].mxu0
    %4097 = vdwg.mxu0
    %v4098 = vadd.f32 %v3983, %v4092
    %v4099 = vadd.f32 %v3984, %v4095
    %v4100 = vld [vmem:[#allocation2 + $0x8] sm:$0x7]
    %v4101 = vld [vmem:[#allocation6 + $0x140] sm:$0xf]
    %v4102 = vld [vmem:[#allocation6 + $0x144] sm:$0xf]
    %v4103 = vld [vmem:[#allocation6 + $0x148] sm:$0xf]
    %v4104 = vld [vmem:[#allocation6 + $0x14c] sm:$0xf]
    %v4105 = vld [vmem:[#allocation6 + $0x150] sm:$0xf]
    %v4106 = vld [vmem:[#allocation6 + $0x154] sm:$0xf]
    %v4107 = vld [vmem:[#allocation6 + $0x158] sm:$0xf]
    %v4108 = vld [vmem:[#allocation6 + $0x15c] sm:$0xf]
    %v4109 = vld [vmem:[#allocation6 + $0x160] sm:$0xf]
    %v4110 = vld [vmem:[#allocation6 + $0x164] sm:$0xf]
    %v4111 = vld [vmem:[#allocation6 + $0x168] sm:$0xf]
    %v4112 = vld [vmem:[#allocation6 + $0x16c] sm:$0xf]
    %v4113 = vld [vmem:[#allocation6 + $0x170] sm:$0xf]
    %v4114 = vld [vmem:[#allocation6 + $0x174] sm:$0xf]
    %v4115 = vld [vmem:[#allocation6 + $0x178] sm:$0xf]
    %v4116 = vld [vmem:[#allocation6 + $0x17c] sm:$0xf]
    %v4118 = vunpack.c.l.b16 %v4100
    %v4119 = vpack.c.b16 %v4118, %v4118
    %v4121 = vshrl.u32 %v4004, 16
    %v4123 = vrot.slane %v4121, 2
    %v4124 = vshll.u32 %v4004, 16
    %v4126 = vrot.slane %v4124, 3
    %v4127 = vor.u32 %v4123, %v4126
    %v4129 = vshrl.u32 %v4119, 16
    %v4131 = vrot.slane %v4129, 2
    %v4132 = vshll.u32 %v4119, 16
    %v4134 = vrot.slane %v4132, 3
    %v4135 = vor.u32 %v4131, %v4134
    %v4136 = vsel %vm706, %v4127, %v4135
    %v4154 = vunpack.c.l.b16 %v4101
    %v4155 = vunpack.c.l.b16 %v4102
    %v4156 = vunpack.c.l.b16 %v4103
    %v4157 = vunpack.c.l.b16 %v4104
    %v4158 = vunpack.c.l.b16 %v4105
    %v4159 = vunpack.c.l.b16 %v4106
    %v4160 = vunpack.c.l.b16 %v4107
    %v4161 = vunpack.c.l.b16 %v4108
    %v4162 = vunpack.c.l.b16 %v4109
    %v4163 = vunpack.c.l.b16 %v4110
    %v4164 = vunpack.c.l.b16 %v4111
    %v4165 = vunpack.c.l.b16 %v4112
    %v4166 = vunpack.c.l.b16 %v4113
    %v4167 = vunpack.c.l.b16 %v4114
    %v4168 = vunpack.c.l.b16 %v4115
    %v4169 = vunpack.c.l.b16 %v4116
    %v4170 = vpack.c.b16 %v4155, %v4154
    %v4171 = vpack.c.b16 %v4157, %v4156
    %v4172 = vpack.c.b16 %v4159, %v4158
    %v4173 = vpack.c.b16 %v4161, %v4160
    %v4174 = vpack.c.b16 %v4163, %v4162
    %v4175 = vpack.c.b16 %v4165, %v4164
    %v4176 = vpack.c.b16 %v4167, %v4166
    %v4177 = vpack.c.b16 %v4169, %v4168
    %4186 = vmatprep.subr.bf16.mxu0 0
    %4187 = vmatpush1.bf16.msra.mxu0 %v4170
    %4188 = vmatprep.subr.bf16.mxu0 0
    %4189 = vmatpush1.bf16.msra.mxu0 %v4171
    %4190 = vmatprep.subr.bf16.mxu0 0
    %4191 = vmatpush1.bf16.msra.mxu0 %v4172
    %4192 = vmatprep.subr.bf16.mxu0 0
    %4193 = vmatpush1.bf16.msra.mxu0 %v4173
    %4194 = vmatprep.subr.bf16.mxu0 0
    %4195 = vmatpush1.bf16.msra.mxu0 %v4174
    %4196 = vmatprep.subr.bf16.mxu0 0
    %4197 = vmatpush1.bf16.msra.mxu0 %v4175
    %4198 = vmatprep.subr.bf16.mxu0 0
    %4199 = vmatpush1.bf16.msra.mxu0 %v4176
    %4200 = vmatprep.subr.bf16.mxu0 0
    %4201 = vmatpush1.bf16.msra.mxu0 %v4177
    %4202 = vmatprep.subr.bf16.mxu0 0
    %4203 = vmatpush1.bf16.msra.mxu0 0
    %4204 = vmatprep.subr.bf16.mxu0 0
    %4205 = vmatpush1.bf16.msra.mxu0 0
    %4206 = vmatprep.subr.bf16.mxu0 0
    %4207 = vmatpush1.bf16.msra.mxu0 0
    %4208 = vmatprep.subr.bf16.mxu0 0
    %4209 = vmatpush1.bf16.msra.mxu0 0
    %4210 = vmatprep.subr.bf16.mxu0 0
    %4211 = vmatpush1.bf16.msra.mxu0 0
    %4212 = vmatprep.subr.bf16.mxu0 0
    %4213 = vmatpush1.bf16.msra.mxu0 0
    %4214 = vmatprep.subr.bf16.mxu0 0
    %4215 = vmatpush1.bf16.msra.mxu0 0
    %4216 = vmatprep.subr.bf16.mxu0 0
    %4217 = vmatpush1.bf16.msra.mxu0 0
    %4218 = vmatprep.mubr.bf16.mxu0 0
    %4219 = vmatmul.mubr.bf16.gmra.mrb[0].mxu0 %v4136
    %v4220 = vpop.f32.mrb[0].mxu0
    %v4221 = vadd.f32 0.0, %v4220
    %v4222 = vpop.f32.mrb[0].mxu0
    %v4223 = vpop.f32.mrb[0].mxu0
    %v4224 = vadd.f32 0.0, %v4223
    %v4225 = vpop.f32.mrb[0].mxu0
    %4226 = vdwg.mxu0
    %v4227 = vadd.f32 %v4098, %v4221
    %v4228 = vadd.f32 %v4099, %v4224
    %v4229 = vld [vmem:[#allocation2] sm:$0x8]
    %v4230 = vld [vmem:[#allocation6 + $0x180] sm:$0xf]
    %v4231 = vld [vmem:[#allocation6 + $0x184] sm:$0xf]
    %v4232 = vld [vmem:[#allocation6 + $0x188] sm:$0xf]
    %v4233 = vld [vmem:[#allocation6 + $0x18c] sm:$0xf]
    %v4234 = vld [vmem:[#allocation6 + $0x190] sm:$0xf]
    %v4235 = vld [vmem:[#allocation6 + $0x194] sm:$0xf]
    %v4236 = vld [vmem:[#allocation6 + $0x198] sm:$0xf]
    %v4237 = vld [vmem:[#allocation6 + $0x19c] sm:$0xf]
    %v4238 = vld [vmem:[#allocation6 + $0x1a0] sm:$0xf]
    %v4239 = vld [vmem:[#allocation6 + $0x1a4] sm:$0xf]
    %v4240 = vld [vmem:[#allocation6 + $0x1a8] sm:$0xf]
    %v4241 = vld [vmem:[#allocation6 + $0x1ac] sm:$0xf]
    %v4242 = vld [vmem:[#allocation6 + $0x1b0] sm:$0xf]
    %v4243 = vld [vmem:[#allocation6 + $0x1b4] sm:$0xf]
    %v4244 = vld [vmem:[#allocation6 + $0x1b8] sm:$0xf]
    %v4245 = vld [vmem:[#allocation6 + $0x1bc] sm:$0xf]
    %v4247 = vunpack.c.l.b16 %v4229
    %v4248 = vpack.c.b16 %v3545, %v4247
    %v4249 = vrot.slane %v4248, 3
    %v4250 = vrot.slane %v4119, 3
    %v4251 = vsel %vm836, %v4249, %v4250
    %v4269 = vunpack.c.l.b16 %v4230
    %v4270 = vunpack.c.l.b16 %v4231
    %v4271 = vunpack.c.l.b16 %v4232
    %v4272 = vunpack.c.l.b16 %v4233
    %v4273 = vunpack.c.l.b16 %v4234
    %v4274 = vunpack.c.l.b16 %v4235
    %v4275 = vunpack.c.l.b16 %v4236
    %v4276 = vunpack.c.l.b16 %v4237
    %v4277 = vunpack.c.l.b16 %v4238
    %v4278 = vunpack.c.l.b16 %v4239
    %v4279 = vunpack.c.l.b16 %v4240
    %v4280 = vunpack.c.l.b16 %v4241
    %v4281 = vunpack.c.l.b16 %v4242
    %v4282 = vunpack.c.l.b16 %v4243
    %v4283 = vunpack.c.l.b16 %v4244
    %v4284 = vunpack.c.l.b16 %v4245
    %v4285 = vpack.c.b16 %v4270, %v4269
    %v4286 = vpack.c.b16 %v4272, %v4271
    %v4287 = vpack.c.b16 %v4274, %v4273
    %v4288 = vpack.c.b16 %v4276, %v4275
    %v4289 = vpack.c.b16 %v4278, %v4277
    %v4290 = vpack.c.b16 %v4280, %v4279
    %v4291 = vpack.c.b16 %v4282, %v4281
    %v4292 = vpack.c.b16 %v4284, %v4283
    %4301 = vmatprep.subr.bf16.mxu0 0
    %4302 = vmatpush1.bf16.msra.mxu0 %v4285
    %4303 = vmatprep.subr.bf16.mxu0 0
    %4304 = vmatpush1.bf16.msra.mxu0 %v4286
    %4305 = vmatprep.subr.bf16.mxu0 0
    %4306 = vmatpush1.bf16.msra.mxu0 %v4287
    %4307 = vmatprep.subr.bf16.mxu0 0
    %4308 = vmatpush1.bf16.msra.mxu0 %v4288
    %4309 = vmatprep.subr.bf16.mxu0 0
    %4310 = vmatpush1.bf16.msra.mxu0 %v4289
    %4311 = vmatprep.subr.bf16.mxu0 0
    %4312 = vmatpush1.bf16.msra.mxu0 %v4290
    %4313 = vmatprep.subr.bf16.mxu0 0
    %4314 = vmatpush1.bf16.msra.mxu0 %v4291
    %4315 = vmatprep.subr.bf16.mxu0 0
    %4316 = vmatpush1.bf16.msra.mxu0 %v4292
    %4317 = vmatprep.subr.bf16.mxu0 0
    %4318 = vmatpush1.bf16.msra.mxu0 0
    %4319 = vmatprep.subr.bf16.mxu0 0
    %4320 = vmatpush1.bf16.msra.mxu0 0
    %4321 = vmatprep.subr.bf16.mxu0 0
    %4322 = vmatpush1.bf16.msra.mxu0 0
    %4323 = vmatprep.subr.bf16.mxu0 0
    %4324 = vmatpush1.bf16.msra.mxu0 0
    %4325 = vmatprep.subr.bf16.mxu0 0
    %4326 = vmatpush1.bf16.msra.mxu0 0
    %4327 = vmatprep.subr.bf16.mxu0 0
    %4328 = vmatpush1.bf16.msra.mxu0 0
    %4329 = vmatprep.subr.bf16.mxu0 0
    %4330 = vmatpush1.bf16.msra.mxu0 0
    %4331 = vmatprep.subr.bf16.mxu0 0
    %4332 = vmatpush1.bf16.msra.mxu0 0
    %4333 = vmatprep.mubr.bf16.mxu0 0
    %4334 = vmatmul.mubr.bf16.gmra.mrb[0].mxu0 %v4251
    %v4335 = vpop.f32.mrb[0].mxu0
    %v4336 = vadd.f32 0.0, %v4335
    %v4337 = vpop.f32.mrb[0].mxu0
    %v4338 = vpop.f32.mrb[0].mxu0
    %v4339 = vadd.f32 0.0, %v4338
    %v4340 = vpop.f32.mrb[0].mxu0
    %4341 = vdwg.mxu0
    %v4342 = vadd.f32 %v4227, %v4336
    %v4343 = vadd.f32 %v4228, %v4339
    %v4344 = vadd.f32 %v4342, %v936
    %v4345 = vadd.f32 %v4343, %v936
    %v4346 = vmax.f32 %v4344, 0.0
    %v4347 = vmax.f32 %v4345, 0.0
    %v4348 = vpack.c.bf16 %v4347, %v4346
    %v4350 = vcombine.high %v4348, %v4348
    %v4352 = vunpack.c.l.s4 1966171168
    %v4353 = vunpack.c.0.s8 %v4352
    %v4354 = vlaneseq
    %v4355 = vshrl.u32 %v4354, 7
    %v4356 = vsub.s32 %v4353, %v4355
    %v4357 = vrot.slane %v4348, %v4356
    %v4359 = vunpack.c.l.s4 1966171168
    %v4360 = vunpack.c.0.s8 %v4359
    %v4361 = vlaneseq
    %v4362 = vshrl.u32 %v4361, 7
    %v4363 = vsub.s32 %v4360, %v4362
    %v4364 = vrot.slane %v4350, %v4363
    %v4365 = vcombine.high %v4357, %v4357
    %v4366 = vcombine.high %v4364, %v4364
    %v4368 = vunpack.c.l.s4 1966171168
    %v4369 = vunpack.c.0.s8 %v4368
    %v4370 = vlaneseq
    %v4371 = vshrl.u32 %v4370, 7
    %v4372 = vsub.s32 %v4369, %v4371
    %v4373 = vrot.slane %v4357, %v4372
    %v4375 = vunpack.c.l.s4 1966171168
    %v4376 = vunpack.c.0.s8 %v4375
    %v4377 = vlaneseq
    %v4378 = vshrl.u32 %v4377, 7
    %v4379 = vsub.s32 %v4376, %v4378
    %v4380 = vrot.slane %v4364, %v4379
    %v4382 = vunpack.c.l.s4 1966171168
    %v4383 = vunpack.c.0.s8 %v4382
    %v4384 = vlaneseq
    %v4385 = vshrl.u32 %v4384, 7
    %v4386 = vsub.s32 %v4383, %v4385
    %v4387 = vrot.slane %v4365, %v4386
    %v4389 = vunpack.c.l.s4 1966171168
    %v4390 = vunpack.c.0.s8 %v4389
    %v4391 = vlaneseq
    %v4392 = vshrl.u32 %v4391, 7
    %v4393 = vsub.s32 %v4390, %v4392
    %v4394 = vrot.slane %v4366, %v4393
    %v4395 = vcombine.high %v4373, %v4373
    %v4396 = vcombine.high %v4380, %v4380
    %v4397 = vcombine.high %v4387, %v4387
    %v4398 = vcombine.high %v4394, %v4394
    %v4399 = vunpack.i.l.s16 %v4373
    %v4400 = vunpack.i.h.s16 %v4373
    %v4401 = vunpack.i.l.s16 %v4387
    %v4402 = vunpack.i.h.s16 %v4387
    %v4403 = vunpack.i.l.s16 %v4395
    %v4404 = vunpack.i.h.s16 %v4395
    %v4405 = vunpack.i.l.s16 %v4397
    %v4406 = vunpack.i.h.s16 %v4397
    %v4407 = vunpack.i.l.s16 %v4380
    %v4408 = vunpack.i.h.s16 %v4380
    %v4409 = vunpack.i.l.s16 %v4394
    %v4410 = vunpack.i.h.s16 %v4394
    %v4411 = vunpack.i.l.s16 %v4396
    %v4412 = vunpack.i.h.s16 %v4396
    %v4413 = vunpack.i.l.s16 %v4398
    %v4414 = vunpack.i.h.s16 %v4398
    %v4415 = vpack.i.b16 %v4399, %v4399
    %v4416 = vpack.i.b16 %v4400, %v4400
    %v4417 = vpack.i.b16 %v4401, %v4401
    %v4418 = vpack.i.b16 %v4402, %v4402
    %v4419 = vpack.i.b16 %v4403, %v4403
    %v4420 = vpack.i.b16 %v4404, %v4404
    %v4421 = vpack.i.b16 %v4405, %v4405
    %v4422 = vpack.i.b16 %v4406, %v4406
    %v4423 = vpack.i.b16 %v4407, %v4407
    %v4424 = vpack.i.b16 %v4408, %v4408
    %v4425 = vpack.i.b16 %v4409, %v4409
    %v4426 = vpack.i.b16 %v4410, %v4410
    %v4427 = vpack.i.b16 %v4411, %v4411
    %v4428 = vpack.i.b16 %v4412, %v4412
    %v4429 = vpack.i.b16 %v4413, %v4413
    %v4430 = vpack.i.b16 %v4414, %v4414
    %v4432 = vunpack.c.l.s4 286326784
    %v4433 = vunpack.c.0.s8 %v4432
    %v4434 = vlaneseq
    %v4435 = vshrl.u32 %v4434, 7
    %v4436 = vsub.s32 %v4433, %v4435
    %v4437 = vrot.slane %v4415, %v4436
    %v4439 = vunpack.c.l.s4 286326784
    %v4440 = vunpack.c.0.s8 %v4439
    %v4441 = vlaneseq
    %v4442 = vshrl.u32 %v4441, 7
    %v4443 = vsub.s32 %v4440, %v4442
    %v4444 = vrot.slane %v4416, %v4443
    %v4446 = vunpack.c.l.s4 286326784
    %v4447 = vunpack.c.0.s8 %v4446
    %v4448 = vlaneseq
    %v4449 = vshrl.u32 %v4448, 7
    %v4450 = vsub.s32 %v4447, %v4449
    %v4451 = vrot.slane %v4417, %v4450
    %v4453 = vunpack.c.l.s4 286326784
    %v4454 = vunpack.c.0.s8 %v4453
    %v4455 = vlaneseq
    %v4456 = vshrl.u32 %v4455, 7
    %v4457 = vsub.s32 %v4454, %v4456
    %v4458 = vrot.slane %v4418, %v4457
    %v4460 = vunpack.c.l.s4 286326784
    %v4461 = vunpack.c.0.s8 %v4460
    %v4462 = vlaneseq
    %v4463 = vshrl.u32 %v4462, 7
    %v4464 = vsub.s32 %v4461, %v4463
    %v4465 = vrot.slane %v4419, %v4464
    %v4467 = vunpack.c.l.s4 286326784
    %v4468 = vunpack.c.0.s8 %v4467
    %v4469 = vlaneseq
    %v4470 = vshrl.u32 %v4469, 7
    %v4471 = vsub.s32 %v4468, %v4470
    %v4472 = vrot.slane %v4420, %v4471
    %v4474 = vunpack.c.l.s4 286326784
    %v4475 = vunpack.c.0.s8 %v4474
    %v4476 = vlaneseq
    %v4477 = vshrl.u32 %v4476, 7
    %v4478 = vsub.s32 %v4475, %v4477
    %v4479 = vrot.slane %v4421, %v4478
    %v4481 = vunpack.c.l.s4 286326784
    %v4482 = vunpack.c.0.s8 %v4481
    %v4483 = vlaneseq
    %v4484 = vshrl.u32 %v4483, 7
    %v4485 = vsub.s32 %v4482, %v4484
    %v4486 = vrot.slane %v4422, %v4485
    %v4488 = vunpack.c.l.s4 286326784
    %v4489 = vunpack.c.0.s8 %v4488
    %v4490 = vlaneseq
    %v4491 = vshrl.u32 %v4490, 7
    %v4492 = vsub.s32 %v4489, %v4491
    %v4493 = vrot.slane %v4423, %v4492
    %v4495 = vunpack.c.l.s4 286326784
    %v4496 = vunpack.c.0.s8 %v4495
    %v4497 = vlaneseq
    %v4498 = vshrl.u32 %v4497, 7
    %v4499 = vsub.s32 %v4496, %v4498
    %v4500 = vrot.slane %v4424, %v4499
    %v4502 = vunpack.c.l.s4 286326784
    %v4503 = vunpack.c.0.s8 %v4502
    %v4504 = vlaneseq
    %v4505 = vshrl.u32 %v4504, 7
    %v4506 = vsub.s32 %v4503, %v4505
    %v4507 = vrot.slane %v4425, %v4506
    %v4509 = vunpack.c.l.s4 286326784
    %v4510 = vunpack.c.0.s8 %v4509
    %v4511 = vlaneseq
    %v4512 = vshrl.u32 %v4511, 7
    %v4513 = vsub.s32 %v4510, %v4512
    %v4514 = vrot.slane %v4426, %v4513
    %v4516 = vunpack.c.l.s4 286326784
    %v4517 = vunpack.c.0.s8 %v4516
    %v4518 = vlaneseq
    %v4519 = vshrl.u32 %v4518, 7
    %v4520 = vsub.s32 %v4517, %v4519
    %v4521 = vrot.slane %v4427, %v4520
    %v4523 = vunpack.c.l.s4 286326784
    %v4524 = vunpack.c.0.s8 %v4523
    %v4525 = vlaneseq
    %v4526 = vshrl.u32 %v4525, 7
    %v4527 = vsub.s32 %v4524, %v4526
    %v4528 = vrot.slane %v4428, %v4527
    %v4530 = vunpack.c.l.s4 286326784
    %v4531 = vunpack.c.0.s8 %v4530
    %v4532 = vlaneseq
    %v4533 = vshrl.u32 %v4532, 7
    %v4534 = vsub.s32 %v4531, %v4533
    %v4535 = vrot.slane %v4429, %v4534
    %v4537 = vunpack.c.l.s4 286326784
    %v4538 = vunpack.c.0.s8 %v4537
    %v4539 = vlaneseq
    %v4540 = vshrl.u32 %v4539, 7
    %v4541 = vsub.s32 %v4538, %v4540
    %v4542 = vrot.slane %v4430, %v4541
    %vm4559 = vmand %vm3424, %vm76
    %v4560 = vld [vmem:[#allocation8] sm:$0x2]
    %v4561 = vsel %vm4559, %v4437, %v4560
    %4562 = vst [vmem:[#allocation8] sm:$0x2] %v4561
    %v4563 = vld [vmem:[#allocation8 + $0x4] sm:$0x2]
    %v4564 = vsel %vm4559, %v4444, %v4563
    %4565 = vst [vmem:[#allocation8 + $0x4] sm:$0x2] %v4564
    %v4566 = vld [vmem:[#allocation8 + $0x8] sm:$0x2]
    %v4567 = vsel %vm4559, %v4451, %v4566
    %4568 = vst [vmem:[#allocation8 + $0x8] sm:$0x2] %v4567
    %v4569 = vld [vmem:[#allocation8 + $0xc] sm:$0x2]
    %v4570 = vsel %vm4559, %v4458, %v4569
    %4571 = vst [vmem:[#allocation8 + $0xc] sm:$0x2] %v4570
    %v4572 = vld [vmem:[#allocation8 + $0x10] sm:$0x2]
    %v4573 = vsel %vm4559, %v4465, %v4572
    %4574 = vst [vmem:[#allocation8 + $0x10] sm:$0x2] %v4573
    %v4575 = vld [vmem:[#allocation8 + $0x14] sm:$0x2]
    %v4576 = vsel %vm4559, %v4472, %v4575
    %4577 = vst [vmem:[#allocation8 + $0x14] sm:$0x2] %v4576
    %v4578 = vld [vmem:[#allocation8 + $0x18] sm:$0x2]
    %v4579 = vsel %vm4559, %v4479, %v4578
    %4580 = vst [vmem:[#allocation8 + $0x18] sm:$0x2] %v4579
    %v4581 = vld [vmem:[#allocation8 + $0x1c] sm:$0x2]
    %v4582 = vsel %vm4559, %v4486, %v4581
    %4583 = vst [vmem:[#allocation8 + $0x1c] sm:$0x2] %v4582
    %v4584 = vld [vmem:[#allocation8 + $0x20] sm:$0x2]
    %v4585 = vsel %vm4559, %v4493, %v4584
    %4586 = vst [vmem:[#allocation8 + $0x20] sm:$0x2] %v4585
    %v4587 = vld [vmem:[#allocation8 + $0x24] sm:$0x2]
    %v4588 = vsel %vm4559, %v4500, %v4587
    %4589 = vst [vmem:[#allocation8 + $0x24] sm:$0x2] %v4588
    %v4590 = vld [vmem:[#allocation8 + $0x28] sm:$0x2]
    %v4591 = vsel %vm4559, %v4507, %v4590
    %4592 = vst [vmem:[#allocation8 + $0x28] sm:$0x2] %v4591
    %v4593 = vld [vmem:[#allocation8 + $0x2c] sm:$0x2]
    %v4594 = vsel %vm4559, %v4514, %v4593
    %4595 = vst [vmem:[#allocation8 + $0x2c] sm:$0x2] %v4594
    %v4596 = vld [vmem:[#allocation8 + $0x30] sm:$0x2]
    %v4597 = vsel %vm4559, %v4521, %v4596
    %4598 = vst [vmem:[#allocation8 + $0x30] sm:$0x2] %v4597
    %v4599 = vld [vmem:[#allocation8 + $0x34] sm:$0x2]
    %v4600 = vsel %vm4559, %v4528, %v4599
    %4601 = vst [vmem:[#allocation8 + $0x34] sm:$0x2] %v4600
    %v4602 = vld [vmem:[#allocation8 + $0x38] sm:$0x2]
    %v4603 = vsel %vm4559, %v4535, %v4602
    %4604 = vst [vmem:[#allocation8 + $0x38] sm:$0x2] %v4603
    %v4605 = vld [vmem:[#allocation8 + $0x3c] sm:$0x2]
    %v4606 = vsel %vm4559, %v4542, %v4605
    %4607 = vst [vmem:[#allocation8 + $0x3c] sm:$0x2] %v4606
    %s4608 = scalar_lea.vmem [#allocation3], 32
    %v4609 = vld [vmem:[%s4608] sm:$0xf]
    %v4610 = vld [vmem:[%s4608 + $0x4] sm:$0xf]
    %v4612 = vshrl.u32 %v4609, 16
    %v4614 = vrot.slane %v4612, 6
    %v4615 = vshll.u32 %v4609, 16
    %v4617 = vrot.slane %v4615, 7
    %v4618 = vor.u32 %v4614, %v4617
    %v4619 = vrot.slane %v4618, 4
    %v4621 = vshrl.u32 %v4610, 16
    %v4623 = vrot.slane %v4621, 6
    %v4624 = vshll.u32 %v4610, 16
    %v4626 = vrot.slane %v4624, 7
    %v4627 = vor.u32 %v4623, %v4626
    %v4628 = vsel %vm52, %v4619, %v4627
    %v4629 = vrot.slane %v4627, 4
    %v4633 = vld [vmem:[#allocation2] sm:$0xe]
    %v4634 = vsel %vm77, %v4618, %v4633
    %4635 = vst [vmem:[#allocation2] sm:$0xe] %v4634
    %4636 = vst.msk [vmem:[#allocation2 + $0x4] sm:$0xf] %vm81, %v4628
    %v4637 = vld [vmem:[#allocation2 + $0x8] sm:$0x3]
    %v4638 = vsel %vm84, %v4629, %v4637
    %4639 = vst [vmem:[#allocation2 + $0x8] sm:$0x3] %v4638
    %v4640 = vld [vmem:[#allocation2] sm:$0xf]
    %v4641 = vld [vmem:[#allocation2 + $0x4] sm:$0xf]
    %v4642 = vld [vmem:[#allocation6] sm:$0xf]
    %v4643 = vld [vmem:[#allocation6 + $0x4] sm:$0xf]
    %v4644 = vld [vmem:[#allocation6 + $0x8] sm:$0xf]
    %v4645 = vld [vmem:[#allocation6 + $0xc] sm:$0xf]
    %v4646 = vld [vmem:[#allocation6 + $0x10] sm:$0xf]
    %v4647 = vld [vmem:[#allocation6 + $0x14] sm:$0xf]
    %v4648 = vld [vmem:[#allocation6 + $0x18] sm:$0xf]
    %v4649 = vld [vmem:[#allocation6 + $0x1c] sm:$0xf]
    %v4650 = vld [vmem:[#allocation6 + $0x20] sm:$0xf]
    %v4651 = vld [vmem:[#allocation6 + $0x24] sm:$0xf]
    %v4652 = vld [vmem:[#allocation6 + $0x28] sm:$0xf]
    %v4653 = vld [vmem:[#allocation6 + $0x2c] sm:$0xf]
    %v4654 = vld [vmem:[#allocation6 + $0x30] sm:$0xf]
    %v4655 = vld [vmem:[#allocation6 + $0x34] sm:$0xf]
    %v4656 = vld [vmem:[#allocation6 + $0x38] sm:$0xf]
    %v4657 = vld [vmem:[#allocation6 + $0x3c] sm:$0xf]
    %v4658 = vld [vmem:[#allocation2 + $0x8] sm:$0x1]
    %v4659 = vld [vmem:[#allocation6 + $0x40] sm:$0xf]
    %v4660 = vld [vmem:[#allocation6 + $0x44] sm:$0xf]
    %v4661 = vld [vmem:[#allocation6 + $0x48] sm:$0xf]
    %v4662 = vld [vmem:[#allocation6 + $0x4c] sm:$0xf]
    %v4663 = vld [vmem:[#allocation6 + $0x50] sm:$0xf]
    %v4664 = vld [vmem:[#allocation6 + $0x54] sm:$0xf]
    %v4665 = vld [vmem:[#allocation6 + $0x58] sm:$0xf]
    %v4666 = vld [vmem:[#allocation6 + $0x5c] sm:$0xf]
    %v4667 = vld [vmem:[#allocation6 + $0x60] sm:$0xf]
    %v4668 = vld [vmem:[#allocation6 + $0x64] sm:$0xf]
    %v4669 = vld [vmem:[#allocation6 + $0x68] sm:$0xf]
    %v4670 = vld [vmem:[#allocation6 + $0x6c] sm:$0xf]
    %v4671 = vld [vmem:[#allocation6 + $0x70] sm:$0xf]
    %v4672 = vld [vmem:[#allocation6 + $0x74] sm:$0xf]
    %v4673 = vld [vmem:[#allocation6 + $0x78] sm:$0xf]
    %v4674 = vld [vmem:[#allocation6 + $0x7c] sm:$0xf]
    %v4678 = vunpack.c.l.b16 %v4640
    %v4679 = vunpack.c.l.b16 %v4641
    %v4680 = vunpack.c.l.b16 %v4658
    %v4681 = vpack.c.b16 %v4679, %v4678
    %v4682 = vpack.c.b16 %v4680, %v4680
    %v4684 = vshrl.u32 %v4681, 16
    %v4686 = vshll.u32 %v4681, 16
    %v4688 = vrot.slane %v4686, 1
    %v4689 = vor.u32 %v4684, %v4688
    %v4691 = vshll.u32 %v4682, 16
    %v4693 = vrot.slane %v4691, 1
    %v4694 = vsel %vm131, %v4689, %v4693
    %v4712 = vunpack.c.l.b16 %v4659
    %v4713 = vunpack.c.l.b16 %v4660
    %v4714 = vunpack.c.l.b16 %v4661
    %v4715 = vunpack.c.l.b16 %v4662
    %v4716 = vunpack.c.l.b16 %v4663
    %v4717 = vunpack.c.l.b16 %v4664
    %v4718 = vunpack.c.l.b16 %v4665
    %v4719 = vunpack.c.l.b16 %v4666
    %v4720 = vunpack.c.l.b16 %v4667
    %v4721 = vunpack.c.l.b16 %v4668
    %v4722 = vunpack.c.l.b16 %v4669
    %v4723 = vunpack.c.l.b16 %v4670
    %v4724 = vunpack.c.l.b16 %v4671
    %v4725 = vunpack.c.l.b16 %v4672
    %v4726 = vunpack.c.l.b16 %v4673
    %v4727 = vunpack.c.l.b16 %v4674
    %v4728 = vpack.c.b16 %v4713, %v4712
    %v4729 = vpack.c.b16 %v4715, %v4714
    %v4730 = vpack.c.b16 %v4717, %v4716
    %v4731 = vpack.c.b16 %v4719, %v4718
    %v4732 = vpack.c.b16 %v4721, %v4720
    %v4733 = vpack.c.b16 %v4723, %v4722
    %v4734 = vpack.c.b16 %v4725, %v4724
    %v4735 = vpack.c.b16 %v4727, %v4726
    %4744 = vmatprep.subr.bf16.mxu0 0
    %4745 = vmatpush1.bf16.msra.mxu0 %v4728
    %4746 = vmatprep.subr.bf16.mxu0 0
    %4747 = vmatpush1.bf16.msra.mxu0 %v4729
    %4748 = vmatprep.subr.bf16.mxu0 0
    %4749 = vmatpush1.bf16.msra.mxu0 %v4730
    %4750 = vmatprep.subr.bf16.mxu0 0
    %4751 = vmatpush1.bf16.msra.mxu0 %v4731
    %4752 = vmatprep.subr.bf16.mxu0 0
    %4753 = vmatpush1.bf16.msra.mxu0 %v4732
    %4754 = vmatprep.subr.bf16.mxu0 0
    %4755 = vmatpush1.bf16.msra.mxu0 %v4733
    %4756 = vmatprep.subr.bf16.mxu0 0
    %4757 = vmatpush1.bf16.msra.mxu0 %v4734
    %4758 = vmatprep.subr.bf16.mxu0 0
    %4759 = vmatpush1.bf16.msra.mxu0 %v4735
    %4760 = vmatprep.subr.bf16.mxu0 0
    %4761 = vmatpush1.bf16.msra.mxu0 0
    %4762 = vmatprep.subr.bf16.mxu0 0
    %4763 = vmatpush1.bf16.msra.mxu0 0
    %4764 = vmatprep.subr.bf16.mxu0 0
    %4765 = vmatpush1.bf16.msra.mxu0 0
    %4766 = vmatprep.subr.bf16.mxu0 0
    %4767 = vmatpush1.bf16.msra.mxu0 0
    %4768 = vmatprep.subr.bf16.mxu0 0
    %4769 = vmatpush1.bf16.msra.mxu0 0
    %4770 = vmatprep.subr.bf16.mxu0 0
    %4771 = vmatpush1.bf16.msra.mxu0 0
    %4772 = vmatprep.subr.bf16.mxu0 0
    %4773 = vmatpush1.bf16.msra.mxu0 0
    %4774 = vmatprep.subr.bf16.mxu0 0
    %4775 = vmatpush1.bf16.msra.mxu0 0
    %4776 = vmatprep.mubr.bf16.mxu0 0
    %4777 = vmatmul.mubr.bf16.gmra.mrb[0].mxu0 %v4694
    %v4778 = vpop.f32.mrb[0].mxu0
    %v4779 = vadd.f32 0.0, %v4778
    %v4780 = vpop.f32.mrb[0].mxu0
    %v4781 = vpop.f32.mrb[0].mxu0
    %v4782 = vadd.f32 0.0, %v4781
    %v4783 = vpop.f32.mrb[0].mxu0
    %4784 = vdwg.mxu0
    %v4802 = vunpack.c.l.b16 %v4642
    %v4803 = vunpack.c.l.b16 %v4643
    %v4804 = vunpack.c.l.b16 %v4644
    %v4805 = vunpack.c.l.b16 %v4645
    %v4806 = vunpack.c.l.b16 %v4646
    %v4807 = vunpack.c.l.b16 %v4647
    %v4808 = vunpack.c.l.b16 %v4648
    %v4809 = vunpack.c.l.b16 %v4649
    %v4810 = vunpack.c.l.b16 %v4650
    %v4811 = vunpack.c.l.b16 %v4651
    %v4812 = vunpack.c.l.b16 %v4652
    %v4813 = vunpack.c.l.b16 %v4653
    %v4814 = vunpack.c.l.b16 %v4654
    %v4815 = vunpack.c.l.b16 %v4655
    %v4816 = vunpack.c.l.b16 %v4656
    %v4817 = vunpack.c.l.b16 %v4657
    %v4818 = vpack.c.b16 %v4803, %v4802
    %v4819 = vpack.c.b16 %v4805, %v4804
    %v4820 = vpack.c.b16 %v4807, %v4806
    %v4821 = vpack.c.b16 %v4809, %v4808
    %v4822 = vpack.c.b16 %v4811, %v4810
    %v4823 = vpack.c.b16 %v4813, %v4812
    %v4824 = vpack.c.b16 %v4815, %v4814
    %v4825 = vpack.c.b16 %v4817, %v4816
    %4834 = vmatprep.subr.bf16.mxu0 0
    %4835 = vmatpush1.bf16.msra.mxu0 %v4818
    %4836 = vmatprep.subr.bf16.mxu0 0
    %4837 = vmatpush1.bf16.msra.mxu0 %v4819
    %4838 = vmatprep.subr.bf16.mxu0 0
    %4839 = vmatpush1.bf16.msra.mxu0 %v4820
    %4840 = vmatprep.subr.bf16.mxu0 0
    %4841 = vmatpush1.bf16.msra.mxu0 %v4821
    %4842 = vmatprep.subr.bf16.mxu0 0
    %4843 = vmatpush1.bf16.msra.mxu0 %v4822
    %4844 = vmatprep.subr.bf16.mxu0 0
    %4845 = vmatpush1.bf16.msra.mxu0 %v4823
    %4846 = vmatprep.subr.bf16.mxu0 0
    %4847 = vmatpush1.bf16.msra.mxu0 %v4824
    %4848 = vmatprep.subr.bf16.mxu0 0
    %4849 = vmatpush1.bf16.msra.mxu0 %v4825
    %4850 = vmatprep.subr.bf16.mxu0 0
    %4851 = vmatpush1.bf16.msra.mxu0 0
    %4852 = vmatprep.subr.bf16.mxu0 0
    %4853 = vmatpush1.bf16.msra.mxu0 0
    %4854 = vmatprep.subr.bf16.mxu0 0
    %4855 = vmatpush1.bf16.msra.mxu0 0
    %4856 = vmatprep.subr.bf16.mxu0 0
    %4857 = vmatpush1.bf16.msra.mxu0 0
    %4858 = vmatprep.subr.bf16.mxu0 0
    %4859 = vmatpush1.bf16.msra.mxu0 0
    %4860 = vmatprep.subr.bf16.mxu0 0
    %4861 = vmatpush1.bf16.msra.mxu0 0
    %4862 = vmatprep.subr.bf16.mxu0 0
    %4863 = vmatpush1.bf16.msra.mxu0 0
    %4864 = vmatprep.subr.bf16.mxu0 0
    %4865 = vmatpush1.bf16.msra.mxu0 0
    %4866 = vmatprep.mubr.bf16.mxu0 0
    %4867 = vmatmul.mubr.bf16.gmra.mrb[0].mxu0 %v4681
    %v4868 = vpop.f32.mrb[0].mxu0
    %v4869 = vadd.f32 %v4779, %v4868
    %v4870 = vpop.f32.mrb[0].mxu0
    %v4871 = vpop.f32.mrb[0].mxu0
    %v4872 = vadd.f32 %v4782, %v4871
    %v4873 = vpop.f32.mrb[0].mxu0
    %4874 = vdwg.mxu0
    %v4875 = vld [vmem:[#allocation2] sm:$0xe]
    %v4876 = vld [vmem:[#allocation6 + $0x80] sm:$0xf]
    %v4877 = vld [vmem:[#allocation6 + $0x84] sm:$0xf]
    %v4878 = vld [vmem:[#allocation6 + $0x88] sm:$0xf]
    %v4879 = vld [vmem:[#allocation6 + $0x8c] sm:$0xf]
    %v4880 = vld [vmem:[#allocation6 + $0x90] sm:$0xf]
    %v4881 = vld [vmem:[#allocation6 + $0x94] sm:$0xf]
    %v4882 = vld [vmem:[#allocation6 + $0x98] sm:$0xf]
    %v4883 = vld [vmem:[#allocation6 + $0x9c] sm:$0xf]
    %v4884 = vld [vmem:[#allocation6 + $0xa0] sm:$0xf]
    %v4885 = vld [vmem:[#allocation6 + $0xa4] sm:$0xf]
    %v4886 = vld [vmem:[#allocation6 + $0xa8] sm:$0xf]
    %v4887 = vld [vmem:[#allocation6 + $0xac] sm:$0xf]
    %v4888 = vld [vmem:[#allocation6 + $0xb0] sm:$0xf]
    %v4889 = vld [vmem:[#allocation6 + $0xb4] sm:$0xf]
    %v4890 = vld [vmem:[#allocation6 + $0xb8] sm:$0xf]
    %v4891 = vld [vmem:[#allocation6 + $0xbc] sm:$0xf]
    %v4893 = vunpack.c.l.b16 %v4875
    %v4894 = vpack.c.b16 %v4679, %v4893
    %v4895 = vrot.slane %v4894, 1
    %v4896 = vrot.slane %v4682, 1
    %v4897 = vsel %vm344, %v4895, %v4896
    %v4915 = vunpack.c.l.b16 %v4876
    %v4916 = vunpack.c.l.b16 %v4877
    %v4917 = vunpack.c.l.b16 %v4878
    %v4918 = vunpack.c.l.b16 %v4879
    %v4919 = vunpack.c.l.b16 %v4880
    %v4920 = vunpack.c.l.b16 %v4881
    %v4921 = vunpack.c.l.b16 %v4882
    %v4922 = vunpack.c.l.b16 %v4883
    %v4923 = vunpack.c.l.b16 %v4884
    %v4924 = vunpack.c.l.b16 %v4885
    %v4925 = vunpack.c.l.b16 %v4886
    %v4926 = vunpack.c.l.b16 %v4887
    %v4927 = vunpack.c.l.b16 %v4888
    %v4928 = vunpack.c.l.b16 %v4889
    %v4929 = vunpack.c.l.b16 %v4890
    %v4930 = vunpack.c.l.b16 %v4891
    %v4931 = vpack.c.b16 %v4916, %v4915
    %v4932 = vpack.c.b16 %v4918, %v4917
    %v4933 = vpack.c.b16 %v4920, %v4919
    %v4934 = vpack.c.b16 %v4922, %v4921
    %v4935 = vpack.c.b16 %v4924, %v4923
    %v4936 = vpack.c.b16 %v4926, %v4925
    %v4937 = vpack.c.b16 %v4928, %v4927
    %v4938 = vpack.c.b16 %v4930, %v4929
    %4947 = vmatprep.subr.bf16.mxu0 0
    %4948 = vmatpush1.bf16.msra.mxu0 %v4931
    %4949 = vmatprep.subr.bf16.mxu0 0
    %4950 = vmatpush1.bf16.msra.mxu0 %v4932
    %4951 = vmatprep.subr.bf16.mxu0 0
    %4952 = vmatpush1.bf16.msra.mxu0 %v4933
    %4953 = vmatprep.subr.bf16.mxu0 0
    %4954 = vmatpush1.bf16.msra.mxu0 %v4934
    %4955 = vmatprep.subr.bf16.mxu0 0
    %4956 = vmatpush1.bf16.msra.mxu0 %v4935
    %4957 = vmatprep.subr.bf16.mxu0 0
    %4958 = vmatpush1.bf16.msra.mxu0 %v4936
    %4959 = vmatprep.subr.bf16.mxu0 0
    %4960 = vmatpush1.bf16.msra.mxu0 %v4937
    %4961 = vmatprep.subr.bf16.mxu0 0
    %4962 = vmatpush1.bf16.msra.mxu0 %v4938
    %4963 = vmatprep.subr.bf16.mxu0 0
    %4964 = vmatpush1.bf16.msra.mxu0 0
    %4965 = vmatprep.subr.bf16.mxu0 0
    %4966 = vmatpush1.bf16.msra.mxu0 0
    %4967 = vmatprep.subr.bf16.mxu0 0
    %4968 = vmatpush1.bf16.msra.mxu0 0
    %4969 = vmatprep.subr.bf16.mxu0 0
    %4970 = vmatpush1.bf16.msra.mxu0 0
    %4971 = vmatprep.subr.bf16.mxu0 0
    %4972 = vmatpush1.bf16.msra.mxu0 0
    %4973 = vmatprep.subr.bf16.mxu0 0
    %4974 = vmatpush1.bf16.msra.mxu0 0
    %4975 = vmatprep.subr.bf16.mxu0 0
    %4976 = vmatpush1.bf16.msra.mxu0 0
    %4977 = vmatprep.subr.bf16.mxu0 0
    %4978 = vmatpush1.bf16.msra.mxu0 0
    %4979 = vmatprep.mubr.bf16.mxu0 0
    %4980 = vmatmul.mubr.bf16.gmra.mrb[0].mxu0 %v4897
    %v4981 = vpop.f32.mrb[0].mxu0
    %v4982 = vadd.f32 0.0, %v4981
    %v4983 = vpop.f32.mrb[0].mxu0
    %v4984 = vpop.f32.mrb[0].mxu0
    %v4985 = vadd.f32 0.0, %v4984
    %v4986 = vpop.f32.mrb[0].mxu0
    %4987 = vdwg.mxu0
    %v4988 = vadd.f32 %v4869, %v4982
    %v4989 = vadd.f32 %v4872, %v4985
    %v4990 = vld [vmem:[#allocation2 + $0x8] sm:$0x3]
    %v4991 = vld [vmem:[#allocation6 + $0xc0] sm:$0xf]
    %v4992 = vld [vmem:[#allocation6 + $0xc4] sm:$0xf]
    %v4993 = vld [vmem:[#allocation6 + $0xc8] sm:$0xf]
    %v4994 = vld [vmem:[#allocation6 + $0xcc] sm:$0xf]
    %v4995 = vld [vmem:[#allocation6 + $0xd0] sm:$0xf]
    %v4996 = vld [vmem:[#allocation6 + $0xd4] sm:$0xf]
    %v4997 = vld [vmem:[#allocation6 + $0xd8] sm:$0xf]
    %v4998 = vld [vmem:[#allocation6 + $0xdc] sm:$0xf]
    %v4999 = vld [vmem:[#allocation6 + $0xe0] sm:$0xf]
    %v5000 = vld [vmem:[#allocation6 + $0xe4] sm:$0xf]
    %v5001 = vld [vmem:[#allocation6 + $0xe8] sm:$0xf]
    %v5002 = vld [vmem:[#allocation6 + $0xec] sm:$0xf]
    %v5003 = vld [vmem:[#allocation6 + $0xf0] sm:$0xf]
    %v5004 = vld [vmem:[#allocation6 + $0xf4] sm:$0xf]
    %v5005 = vld [vmem:[#allocation6 + $0xf8] sm:$0xf]
    %v5006 = vld [vmem:[#allocation6 + $0xfc] sm:$0xf]
    %v5008 = vunpack.c.l.b16 %v4990
    %v5009 = vpack.c.b16 %v5008, %v5008
    %v5011 = vshrl.u32 %v4894, 16
    %v5013 = vrot.slane %v5011, 1
    %v5014 = vshll.u32 %v4894, 16
    %v5016 = vrot.slane %v5014, 2
    %v5017 = vor.u32 %v5013, %v5016
    %v5019 = vshrl.u32 %v5009, 16
    %v5021 = vrot.slane %v5019, 1
    %v5022 = vshll.u32 %v5009, 16
    %v5024 = vrot.slane %v5022, 2
    %v5025 = vor.u32 %v5021, %v5024
    %v5026 = vsel %vm460, %v5017, %v5025
    %v5044 = vunpack.c.l.b16 %v4991
    %v5045 = vunpack.c.l.b16 %v4992
    %v5046 = vunpack.c.l.b16 %v4993
    %v5047 = vunpack.c.l.b16 %v4994
    %v5048 = vunpack.c.l.b16 %v4995
    %v5049 = vunpack.c.l.b16 %v4996
    %v5050 = vunpack.c.l.b16 %v4997
    %v5051 = vunpack.c.l.b16 %v4998
    %v5052 = vunpack.c.l.b16 %v4999
    %v5053 = vunpack.c.l.b16 %v5000
    %v5054 = vunpack.c.l.b16 %v5001
    %v5055 = vunpack.c.l.b16 %v5002
    %v5056 = vunpack.c.l.b16 %v5003
    %v5057 = vunpack.c.l.b16 %v5004
    %v5058 = vunpack.c.l.b16 %v5005
    %v5059 = vunpack.c.l.b16 %v5006
    %v5060 = vpack.c.b16 %v5045, %v5044
    %v5061 = vpack.c.b16 %v5047, %v5046
    %v5062 = vpack.c.b16 %v5049, %v5048
    %v5063 = vpack.c.b16 %v5051, %v5050
    %v5064 = vpack.c.b16 %v5053, %v5052
    %v5065 = vpack.c.b16 %v5055, %v5054
    %v5066 = vpack.c.b16 %v5057, %v5056
    %v5067 = vpack.c.b16 %v5059, %v5058
    %5076 = vmatprep.subr.bf16.mxu0 0
    %5077 = vmatpush1.bf16.msra.mxu0 %v5060
    %5078 = vmatprep.subr.bf16.mxu0 0
    %5079 = vmatpush1.bf16.msra.mxu0 %v5061
    %5080 = vmatprep.subr.bf16.mxu0 0
    %5081 = vmatpush1.bf16.msra.mxu0 %v5062
    %5082 = vmatprep.subr.bf16.mxu0 0
    %5083 = vmatpush1.bf16.msra.mxu0 %v5063
    %5084 = vmatprep.subr.bf16.mxu0 0
    %5085 = vmatpush1.bf16.msra.mxu0 %v5064
    %5086 = vmatprep.subr.bf16.mxu0 0
    %5087 = vmatpush1.bf16.msra.mxu0 %v5065
    %5088 = vmatprep.subr.bf16.mxu0 0
    %5089 = vmatpush1.bf16.msra.mxu0 %v5066
    %5090 = vmatprep.subr.bf16.mxu0 0
    %5091 = vmatpush1.bf16.msra.mxu0 %v5067
    %5092 = vmatprep.subr.bf16.mxu0 0
    %5093 = vmatpush1.bf16.msra.mxu0 0
    %5094 = vmatprep.subr.bf16.mxu0 0
    %5095 = vmatpush1.bf16.msra.mxu0 0
    %5096 = vmatprep.subr.bf16.mxu0 0
    %5097 = vmatpush1.bf16.msra.mxu0 0
    %5098 = vmatprep.subr.bf16.mxu0 0
    %5099 = vmatpush1.bf16.msra.mxu0 0
    %5100 = vmatprep.subr.bf16.mxu0 0
    %5101 = vmatpush1.bf16.msra.mxu0 0
    %5102 = vmatprep.subr.bf16.mxu0 0
    %5103 = vmatpush1.bf16.msra.mxu0 0
    %5104 = vmatprep.subr.bf16.mxu0 0
    %5105 = vmatpush1.bf16.msra.mxu0 0
    %5106 = vmatprep.subr.bf16.mxu0 0
    %5107 = vmatpush1.bf16.msra.mxu0 0
    %5108 = vmatprep.mubr.bf16.mxu0 0
    %5109 = vmatmul.mubr.bf16.gmra.mrb[0].mxu0 %v5026
    %v5110 = vpop.f32.mrb[0].mxu0
    %v5111 = vadd.f32 0.0, %v5110
    %v5112 = vpop.f32.mrb[0].mxu0
    %v5113 = vpop.f32.mrb[0].mxu0
    %v5114 = vadd.f32 0.0, %v5113
    %v5115 = vpop.f32.mrb[0].mxu0
    %5116 = vdwg.mxu0
    %v5117 = vadd.f32 %v4988, %v5111
    %v5118 = vadd.f32 %v4989, %v5114
    %v5119 = vld [vmem:[#allocation2] sm:$0xc]
    %v5120 = vld [vmem:[#allocation6 + $0x100] sm:$0xf]
    %v5121 = vld [vmem:[#allocation6 + $0x104] sm:$0xf]
    %v5122 = vld [vmem:[#allocation6 + $0x108] sm:$0xf]
    %v5123 = vld [vmem:[#allocation6 + $0x10c] sm:$0xf]
    %v5124 = vld [vmem:[#allocation6 + $0x110] sm:$0xf]
    %v5125 = vld [vmem:[#allocation6 + $0x114] sm:$0xf]
    %v5126 = vld [vmem:[#allocation6 + $0x118] sm:$0xf]
    %v5127 = vld [vmem:[#allocation6 + $0x11c] sm:$0xf]
    %v5128 = vld [vmem:[#allocation6 + $0x120] sm:$0xf]
    %v5129 = vld [vmem:[#allocation6 + $0x124] sm:$0xf]
    %v5130 = vld [vmem:[#allocation6 + $0x128] sm:$0xf]
    %v5131 = vld [vmem:[#allocation6 + $0x12c] sm:$0xf]
    %v5132 = vld [vmem:[#allocation6 + $0x130] sm:$0xf]
    %v5133 = vld [vmem:[#allocation6 + $0x134] sm:$0xf]
    %v5134 = vld [vmem:[#allocation6 + $0x138] sm:$0xf]
    %v5135 = vld [vmem:[#allocation6 + $0x13c] sm:$0xf]
    %v5137 = vunpack.c.l.b16 %v5119
    %v5138 = vpack.c.b16 %v4679, %v5137
    %v5139 = vrot.slane %v5138, 2
    %v5140 = vrot.slane %v5009, 2
    %v5141 = vsel %vm590, %v5139, %v5140
    %v5159 = vunpack.c.l.b16 %v5120
    %v5160 = vunpack.c.l.b16 %v5121
    %v5161 = vunpack.c.l.b16 %v5122
    %v5162 = vunpack.c.l.b16 %v5123
    %v5163 = vunpack.c.l.b16 %v5124
    %v5164 = vunpack.c.l.b16 %v5125
    %v5165 = vunpack.c.l.b16 %v5126
    %v5166 = vunpack.c.l.b16 %v5127
    %v5167 = vunpack.c.l.b16 %v5128
    %v5168 = vunpack.c.l.b16 %v5129
    %v5169 = vunpack.c.l.b16 %v5130
    %v5170 = vunpack.c.l.b16 %v5131
    %v5171 = vunpack.c.l.b16 %v5132
    %v5172 = vunpack.c.l.b16 %v5133
    %v5173 = vunpack.c.l.b16 %v5134
    %v5174 = vunpack.c.l.b16 %v5135
    %v5175 = vpack.c.b16 %v5160, %v5159
    %v5176 = vpack.c.b16 %v5162, %v5161
    %v5177 = vpack.c.b16 %v5164, %v5163
    %v5178 = vpack.c.b16 %v5166, %v5165
    %v5179 = vpack.c.b16 %v5168, %v5167
    %v5180 = vpack.c.b16 %v5170, %v5169
    %v5181 = vpack.c.b16 %v5172, %v5171
    %v5182 = vpack.c.b16 %v5174, %v5173
    %5191 = vmatprep.subr.bf16.mxu0 0
    %5192 = vmatpush1.bf16.msra.mxu0 %v5175
    %5193 = vmatprep.subr.bf16.mxu0 0
    %5194 = vmatpush1.bf16.msra.mxu0 %v5176
    %5195 = vmatprep.subr.bf16.mxu0 0
    %5196 = vmatpush1.bf16.msra.mxu0 %v5177
    %5197 = vmatprep.subr.bf16.mxu0 0
    %5198 = vmatpush1.bf16.msra.mxu0 %v5178
    %5199 = vmatprep.subr.bf16.mxu0 0
    %5200 = vmatpush1.bf16.msra.mxu0 %v5179
    %5201 = vmatprep.subr.bf16.mxu0 0
    %5202 = vmatpush1.bf16.msra.mxu0 %v5180
    %5203 = vmatprep.subr.bf16.mxu0 0
    %5204 = vmatpush1.bf16.msra.mxu0 %v5181
    %5205 = vmatprep.subr.bf16.mxu0 0
    %5206 = vmatpush1.bf16.msra.mxu0 %v5182
    %5207 = vmatprep.subr.bf16.mxu0 0
    %5208 = vmatpush1.bf16.msra.mxu0 0
    %5209 = vmatprep.subr.bf16.mxu0 0
    %5210 = vmatpush1.bf16.msra.mxu0 0
    %5211 = vmatprep.subr.bf16.mxu0 0
    %5212 = vmatpush1.bf16.msra.mxu0 0
    %5213 = vmatprep.subr.bf16.mxu0 0
    %5214 = vmatpush1.bf16.msra.mxu0 0
    %5215 = vmatprep.subr.bf16.mxu0 0
    %5216 = vmatpush1.bf16.msra.mxu0 0
    %5217 = vmatprep.subr.bf16.mxu0 0
    %5218 = vmatpush1.bf16.msra.mxu0 0
    %5219 = vmatprep.subr.bf16.mxu0 0
    %5220 = vmatpush1.bf16.msra.mxu0 0
    %5221 = vmatprep.subr.bf16.mxu0 0
    %5222 = vmatpush1.bf16.msra.mxu0 0
    %5223 = vmatprep.mubr.bf16.mxu0 0
    %5224 = vmatmul.mubr.bf16.gmra.mrb[0].mxu0 %v5141
    %v5225 = vpop.f32.mrb[0].mxu0
    %v5226 = vadd.f32 0.0, %v5225
    %v5227 = vpop.f32.mrb[0].mxu0
    %v5228 = vpop.f32.mrb[0].mxu0
    %v5229 = vadd.f32 0.0, %v5228
    %v5230 = vpop.f32.mrb[0].mxu0
    %5231 = vdwg.mxu0
    %v5232 = vadd.f32 %v5117, %v5226
    %v5233 = vadd.f32 %v5118, %v5229
    %v5234 = vld [vmem:[#allocation2 + $0x8] sm:$0x7]
    %v5235 = vld [vmem:[#allocation6 + $0x140] sm:$0xf]
    %v5236 = vld [vmem:[#allocation6 + $0x144] sm:$0xf]
    %v5237 = vld [vmem:[#allocation6 + $0x148] sm:$0xf]
    %v5238 = vld [vmem:[#allocation6 + $0x14c] sm:$0xf]
    %v5239 = vld [vmem:[#allocation6 + $0x150] sm:$0xf]
    %v5240 = vld [vmem:[#allocation6 + $0x154] sm:$0xf]
    %v5241 = vld [vmem:[#allocation6 + $0x158] sm:$0xf]
    %v5242 = vld [vmem:[#allocation6 + $0x15c] sm:$0xf]
    %v5243 = vld [vmem:[#allocation6 + $0x160] sm:$0xf]
    %v5244 = vld [vmem:[#allocation6 + $0x164] sm:$0xf]
    %v5245 = vld [vmem:[#allocation6 + $0x168] sm:$0xf]
    %v5246 = vld [vmem:[#allocation6 + $0x16c] sm:$0xf]
    %v5247 = vld [vmem:[#allocation6 + $0x170] sm:$0xf]
    %v5248 = vld [vmem:[#allocation6 + $0x174] sm:$0xf]
    %v5249 = vld [vmem:[#allocation6 + $0x178] sm:$0xf]
    %v5250 = vld [vmem:[#allocation6 + $0x17c] sm:$0xf]
    %v5252 = vunpack.c.l.b16 %v5234
    %v5253 = vpack.c.b16 %v5252, %v5252
    %v5255 = vshrl.u32 %v5138, 16
    %v5257 = vrot.slane %v5255, 2
    %v5258 = vshll.u32 %v5138, 16
    %v5260 = vrot.slane %v5258, 3
    %v5261 = vor.u32 %v5257, %v5260
    %v5263 = vshrl.u32 %v5253, 16
    %v5265 = vrot.slane %v5263, 2
    %v5266 = vshll.u32 %v5253, 16
    %v5268 = vrot.slane %v5266, 3
    %v5269 = vor.u32 %v5265, %v5268
    %v5270 = vsel %vm706, %v5261, %v5269
    %v5288 = vunpack.c.l.b16 %v5235
    %v5289 = vunpack.c.l.b16 %v5236
    %v5290 = vunpack.c.l.b16 %v5237
    %v5291 = vunpack.c.l.b16 %v5238
    %v5292 = vunpack.c.l.b16 %v5239
    %v5293 = vunpack.c.l.b16 %v5240
    %v5294 = vunpack.c.l.b16 %v5241
    %v5295 = vunpack.c.l.b16 %v5242
    %v5296 = vunpack.c.l.b16 %v5243
    %v5297 = vunpack.c.l.b16 %v5244
    %v5298 = vunpack.c.l.b16 %v5245
    %v5299 = vunpack.c.l.b16 %v5246
    %v5300 = vunpack.c.l.b16 %v5247
    %v5301 = vunpack.c.l.b16 %v5248
    %v5302 = vunpack.c.l.b16 %v5249
    %v5303 = vunpack.c.l.b16 %v5250
    %v5304 = vpack.c.b16 %v5289, %v5288
    %v5305 = vpack.c.b16 %v5291, %v5290
    %v5306 = vpack.c.b16 %v5293, %v5292
    %v5307 = vpack.c.b16 %v5295, %v5294
    %v5308 = vpack.c.b16 %v5297, %v5296
    %v5309 = vpack.c.b16 %v5299, %v5298
    %v5310 = vpack.c.b16 %v5301, %v5300
    %v5311 = vpack.c.b16 %v5303, %v5302
    %5320 = vmatprep.subr.bf16.mxu0 0
    %5321 = vmatpush1.bf16.msra.mxu0 %v5304
    %5322 = vmatprep.subr.bf16.mxu0 0
    %5323 = vmatpush1.bf16.msra.mxu0 %v5305
    %5324 = vmatprep.subr.bf16.mxu0 0
    %5325 = vmatpush1.bf16.msra.mxu0 %v5306
    %5326 = vmatprep.subr.bf16.mxu0 0
    %5327 = vmatpush1.bf16.msra.mxu0 %v5307
    %5328 = vmatprep.subr.bf16.mxu0 0
    %5329 = vmatpush1.bf16.msra.mxu0 %v5308
    %5330 = vmatprep.subr.bf16.mxu0 0
    %5331 = vmatpush1.bf16.msra.mxu0 %v5309
    %5332 = vmatprep.subr.bf16.mxu0 0
    %5333 = vmatpush1.bf16.msra.mxu0 %v5310
    %5334 = vmatprep.subr.bf16.mxu0 0
    %5335 = vmatpush1.bf16.msra.mxu0 %v5311
    %5336 = vmatprep.subr.bf16.mxu0 0
    %5337 = vmatpush1.bf16.msra.mxu0 0
    %5338 = vmatprep.subr.bf16.mxu0 0
    %5339 = vmatpush1.bf16.msra.mxu0 0
    %5340 = vmatprep.subr.bf16.mxu0 0
    %5341 = vmatpush1.bf16.msra.mxu0 0
    %5342 = vmatprep.subr.bf16.mxu0 0
    %5343 = vmatpush1.bf16.msra.mxu0 0
    %5344 = vmatprep.subr.bf16.mxu0 0
    %5345 = vmatpush1.bf16.msra.mxu0 0
    %5346 = vmatprep.subr.bf16.mxu0 0
    %5347 = vmatpush1.bf16.msra.mxu0 0
    %5348 = vmatprep.subr.bf16.mxu0 0
    %5349 = vmatpush1.bf16.msra.mxu0 0
    %5350 = vmatprep.subr.bf16.mxu0 0
    %5351 = vmatpush1.bf16.msra.mxu0 0
    %5352 = vmatprep.mubr.bf16.mxu0 0
    %5353 = vmatmul.mubr.bf16.gmra.mrb[0].mxu0 %v5270
    %v5354 = vpop.f32.mrb[0].mxu0
    %v5355 = vadd.f32 0.0, %v5354
    %v5356 = vpop.f32.mrb[0].mxu0
    %v5357 = vpop.f32.mrb[0].mxu0
    %v5358 = vadd.f32 0.0, %v5357
    %v5359 = vpop.f32.mrb[0].mxu0
    %5360 = vdwg.mxu0
    %v5361 = vadd.f32 %v5232, %v5355
    %v5362 = vadd.f32 %v5233, %v5358
    %v5363 = vld [vmem:[#allocation2] sm:$0x8]
    %v5364 = vld [vmem:[#allocation6 + $0x180] sm:$0xf]
    %v5365 = vld [vmem:[#allocation6 + $0x184] sm:$0xf]
    %v5366 = vld [vmem:[#allocation6 + $0x188] sm:$0xf]
    %v5367 = vld [vmem:[#allocation6 + $0x18c] sm:$0xf]
    %v5368 = vld [vmem:[#allocation6 + $0x190] sm:$0xf]
    %v5369 = vld [vmem:[#allocation6 + $0x194] sm:$0xf]
    %v5370 = vld [vmem:[#allocation6 + $0x198] sm:$0xf]
    %v5371 = vld [vmem:[#allocation6 + $0x19c] sm:$0xf]
    %v5372 = vld [vmem:[#allocation6 + $0x1a0] sm:$0xf]
    %v5373 = vld [vmem:[#allocation6 + $0x1a4] sm:$0xf]
    %v5374 = vld [vmem:[#allocation6 + $0x1a8] sm:$0xf]
    %v5375 = vld [vmem:[#allocation6 + $0x1ac] sm:$0xf]
    %v5376 = vld [vmem:[#allocation6 + $0x1b0] sm:$0xf]
    %v5377 = vld [vmem:[#allocation6 + $0x1b4] sm:$0xf]
    %v5378 = vld [vmem:[#allocation6 + $0x1b8] sm:$0xf]
    %v5379 = vld [vmem:[#allocation6 + $0x1bc] sm:$0xf]
    %v5381 = vunpack.c.l.b16 %v5363
    %v5382 = vpack.c.b16 %v4679, %v5381
    %v5383 = vrot.slane %v5382, 3
    %v5384 = vrot.slane %v5253, 3
    %v5385 = vsel %vm836, %v5383, %v5384
    %v5403 = vunpack.c.l.b16 %v5364
    %v5404 = vunpack.c.l.b16 %v5365
    %v5405 = vunpack.c.l.b16 %v5366
    %v5406 = vunpack.c.l.b16 %v5367
    %v5407 = vunpack.c.l.b16 %v5368
    %v5408 = vunpack.c.l.b16 %v5369
    %v5409 = vunpack.c.l.b16 %v5370
    %v5410 = vunpack.c.l.b16 %v5371
    %v5411 = vunpack.c.l.b16 %v5372
    %v5412 = vunpack.c.l.b16 %v5373
    %v5413 = vunpack.c.l.b16 %v5374
    %v5414 = vunpack.c.l.b16 %v5375
    %v5415 = vunpack.c.l.b16 %v5376
    %v5416 = vunpack.c.l.b16 %v5377
    %v5417 = vunpack.c.l.b16 %v5378
    %v5418 = vunpack.c.l.b16 %v5379
    %v5419 = vpack.c.b16 %v5404, %v5403
    %v5420 = vpack.c.b16 %v5406, %v5405
    %v5421 = vpack.c.b16 %v5408, %v5407
    %v5422 = vpack.c.b16 %v5410, %v5409
    %v5423 = vpack.c.b16 %v5412, %v5411
    %v5424 = vpack.c.b16 %v5414, %v5413
    %v5425 = vpack.c.b16 %v5416, %v5415
    %v5426 = vpack.c.b16 %v5418, %v5417
    %5435 = vmatprep.subr.bf16.mxu0 0
    %5436 = vmatpush1.bf16.msra.mxu0 %v5419
    %5437 = vmatprep.subr.bf16.mxu0 0
    %5438 = vmatpush1.bf16.msra.mxu0 %v5420
    %5439 = vmatprep.subr.bf16.mxu0 0
    %5440 = vmatpush1.bf16.msra.mxu0 %v5421
    %5441 = vmatprep.subr.bf16.mxu0 0
    %5442 = vmatpush1.bf16.msra.mxu0 %v5422
    %5443 = vmatprep.subr.bf16.mxu0 0
    %5444 = vmatpush1.bf16.msra.mxu0 %v5423
    %5445 = vmatprep.subr.bf16.mxu0 0
    %5446 = vmatpush1.bf16.msra.mxu0 %v5424
    %5447 = vmatprep.subr.bf16.mxu0 0
    %5448 = vmatpush1.bf16.msra.mxu0 %v5425
    %5449 = vmatprep.subr.bf16.mxu0 0
    %5450 = vmatpush1.bf16.msra.mxu0 %v5426
    %5451 = vmatprep.subr.bf16.mxu0 0
    %5452 = vmatpush1.bf16.msra.mxu0 0
    %5453 = vmatprep.subr.bf16.mxu0 0
    %5454 = vmatpush1.bf16.msra.mxu0 0
    %5455 = vmatprep.subr.bf16.mxu0 0
    %5456 = vmatpush1.bf16.msra.mxu0 0
    %5457 = vmatprep.subr.bf16.mxu0 0
    %5458 = vmatpush1.bf16.msra.mxu0 0
    %5459 = vmatprep.subr.bf16.mxu0 0
    %5460 = vmatpush1.bf16.msra.mxu0 0
    %5461 = vmatprep.subr.bf16.mxu0 0
    %5462 = vmatpush1.bf16.msra.mxu0 0
    %5463 = vmatprep.subr.bf16.mxu0 0
    %5464 = vmatpush1.bf16.msra.mxu0 0
    %5465 = vmatprep.subr.bf16.mxu0 0
    %5466 = vmatpush1.bf16.msra.mxu0 0
    %5467 = vmatprep.mubr.bf16.mxu0 0
    %5468 = vmatmul.mubr.bf16.gmra.mrb[0].mxu0 %v5385
    %v5469 = vpop.f32.mrb[0].mxu0
    %v5470 = vadd.f32 0.0, %v5469
    %v5471 = vpop.f32.mrb[0].mxu0
    %v5472 = vpop.f32.mrb[0].mxu0
    %v5473 = vadd.f32 0.0, %v5472
    %v5474 = vpop.f32.mrb[0].mxu0
    %5475 = vdwg.mxu0
    %v5476 = vadd.f32 %v5361, %v5470
    %v5477 = vadd.f32 %v5362, %v5473
    %v5478 = vadd.f32 %v5476, %v936
    %v5479 = vadd.f32 %v5477, %v936
    %v5480 = vmax.f32 %v5478, 0.0
    %v5481 = vmax.f32 %v5479, 0.0
    %v5482 = vpack.c.bf16 %v5481, %v5480
    %v5484 = vcombine.high %v5482, %v5482
    %v5486 = vunpack.c.l.s4 1966171168
    %v5487 = vunpack.c.0.s8 %v5486
    %v5488 = vlaneseq
    %v5489 = vshrl.u32 %v5488, 7
    %v5490 = vsub.s32 %v5487, %v5489
    %v5491 = vrot.slane %v5482, %v5490
    %v5493 = vunpack.c.l.s4 1966171168
    %v5494 = vunpack.c.0.s8 %v5493
    %v5495 = vlaneseq
    %v5496 = vshrl.u32 %v5495, 7
    %v5497 = vsub.s32 %v5494, %v5496
    %v5498 = vrot.slane %v5484, %v5497
    %v5499 = vcombine.high %v5491, %v5491
    %v5500 = vcombine.high %v5498, %v5498
    %v5502 = vunpack.c.l.s4 1966171168
    %v5503 = vunpack.c.0.s8 %v5502
    %v5504 = vlaneseq
    %v5505 = vshrl.u32 %v5504, 7
    %v5506 = vsub.s32 %v5503, %v5505
    %v5507 = vrot.slane %v5491, %v5506
    %v5509 = vunpack.c.l.s4 1966171168
    %v5510 = vunpack.c.0.s8 %v5509
    %v5511 = vlaneseq
    %v5512 = vshrl.u32 %v5511, 7
    %v5513 = vsub.s32 %v5510, %v5512
    %v5514 = vrot.slane %v5498, %v5513
    %v5516 = vunpack.c.l.s4 1966171168
    %v5517 = vunpack.c.0.s8 %v5516
    %v5518 = vlaneseq
    %v5519 = vshrl.u32 %v5518, 7
    %v5520 = vsub.s32 %v5517, %v5519
    %v5521 = vrot.slane %v5499, %v5520
    %v5523 = vunpack.c.l.s4 1966171168
    %v5524 = vunpack.c.0.s8 %v5523
    %v5525 = vlaneseq
    %v5526 = vshrl.u32 %v5525, 7
    %v5527 = vsub.s32 %v5524, %v5526
    %v5528 = vrot.slane %v5500, %v5527
    %v5529 = vcombine.high %v5507, %v5507
    %v5530 = vcombine.high %v5514, %v5514
    %v5531 = vcombine.high %v5521, %v5521
    %v5532 = vcombine.high %v5528, %v5528
    %v5533 = vunpack.i.l.s16 %v5507
    %v5534 = vunpack.i.h.s16 %v5507
    %v5535 = vunpack.i.l.s16 %v5521
    %v5536 = vunpack.i.h.s16 %v5521
    %v5537 = vunpack.i.l.s16 %v5529
    %v5538 = vunpack.i.h.s16 %v5529
    %v5539 = vunpack.i.l.s16 %v5531
    %v5540 = vunpack.i.h.s16 %v5531
    %v5541 = vunpack.i.l.s16 %v5514
    %v5542 = vunpack.i.h.s16 %v5514
    %v5543 = vunpack.i.l.s16 %v5528
    %v5544 = vunpack.i.h.s16 %v5528
    %v5545 = vunpack.i.l.s16 %v5530
    %v5546 = vunpack.i.h.s16 %v5530
    %v5547 = vunpack.i.l.s16 %v5532
    %v5548 = vunpack.i.h.s16 %v5532
    %v5549 = vpack.i.b16 %v5533, %v5533
    %v5550 = vpack.i.b16 %v5534, %v5534
    %v5551 = vpack.i.b16 %v5535, %v5535
    %v5552 = vpack.i.b16 %v5536, %v5536
    %v5553 = vpack.i.b16 %v5537, %v5537
    %v5554 = vpack.i.b16 %v5538, %v5538
    %v5555 = vpack.i.b16 %v5539, %v5539
    %v5556 = vpack.i.b16 %v5540, %v5540
    %v5557 = vpack.i.b16 %v5541, %v5541
    %v5558 = vpack.i.b16 %v5542, %v5542
    %v5559 = vpack.i.b16 %v5543, %v5543
    %v5560 = vpack.i.b16 %v5544, %v5544
    %v5561 = vpack.i.b16 %v5545, %v5545
    %v5562 = vpack.i.b16 %v5546, %v5546
    %v5563 = vpack.i.b16 %v5547, %v5547
    %v5564 = vpack.i.b16 %v5548, %v5548
    %v5566 = vunpack.c.l.s4 286326784
    %v5567 = vunpack.c.0.s8 %v5566
    %v5568 = vlaneseq
    %v5569 = vshrl.u32 %v5568, 7
    %v5570 = vsub.s32 %v5567, %v5569
    %v5571 = vrot.slane %v5549, %v5570
    %v5573 = vunpack.c.l.s4 286326784
    %v5574 = vunpack.c.0.s8 %v5573
    %v5575 = vlaneseq
    %v5576 = vshrl.u32 %v5575, 7
    %v5577 = vsub.s32 %v5574, %v5576
    %v5578 = vrot.slane %v5550, %v5577
    %v5580 = vunpack.c.l.s4 286326784
    %v5581 = vunpack.c.0.s8 %v5580
    %v5582 = vlaneseq
    %v5583 = vshrl.u32 %v5582, 7
    %v5584 = vsub.s32 %v5581, %v5583
    %v5585 = vrot.slane %v5551, %v5584
    %v5587 = vunpack.c.l.s4 286326784
    %v5588 = vunpack.c.0.s8 %v5587
    %v5589 = vlaneseq
    %v5590 = vshrl.u32 %v5589, 7
    %v5591 = vsub.s32 %v5588, %v5590
    %v5592 = vrot.slane %v5552, %v5591
    %v5594 = vunpack.c.l.s4 286326784
    %v5595 = vunpack.c.0.s8 %v5594
    %v5596 = vlaneseq
    %v5597 = vshrl.u32 %v5596, 7
    %v5598 = vsub.s32 %v5595, %v5597
    %v5599 = vrot.slane %v5553, %v5598
    %v5601 = vunpack.c.l.s4 286326784
    %v5602 = vunpack.c.0.s8 %v5601
    %v5603 = vlaneseq
    %v5604 = vshrl.u32 %v5603, 7
    %v5605 = vsub.s32 %v5602, %v5604
    %v5606 = vrot.slane %v5554, %v5605
    %v5608 = vunpack.c.l.s4 286326784
    %v5609 = vunpack.c.0.s8 %v5608
    %v5610 = vlaneseq
    %v5611 = vshrl.u32 %v5610, 7
    %v5612 = vsub.s32 %v5609, %v5611
    %v5613 = vrot.slane %v5555, %v5612
    %v5615 = vunpack.c.l.s4 286326784
    %v5616 = vunpack.c.0.s8 %v5615
    %v5617 = vlaneseq
    %v5618 = vshrl.u32 %v5617, 7
    %v5619 = vsub.s32 %v5616, %v5618
    %v5620 = vrot.slane %v5556, %v5619
    %v5622 = vunpack.c.l.s4 286326784
    %v5623 = vunpack.c.0.s8 %v5622
    %v5624 = vlaneseq
    %v5625 = vshrl.u32 %v5624, 7
    %v5626 = vsub.s32 %v5623, %v5625
    %v5627 = vrot.slane %v5557, %v5626
    %v5629 = vunpack.c.l.s4 286326784
    %v5630 = vunpack.c.0.s8 %v5629
    %v5631 = vlaneseq
    %v5632 = vshrl.u32 %v5631, 7
    %v5633 = vsub.s32 %v5630, %v5632
    %v5634 = vrot.slane %v5558, %v5633
    %v5636 = vunpack.c.l.s4 286326784
    %v5637 = vunpack.c.0.s8 %v5636
    %v5638 = vlaneseq
    %v5639 = vshrl.u32 %v5638, 7
    %v5640 = vsub.s32 %v5637, %v5639
    %v5641 = vrot.slane %v5559, %v5640
    %v5643 = vunpack.c.l.s4 286326784
    %v5644 = vunpack.c.0.s8 %v5643
    %v5645 = vlaneseq
    %v5646 = vshrl.u32 %v5645, 7
    %v5647 = vsub.s32 %v5644, %v5646
    %v5648 = vrot.slane %v5560, %v5647
    %v5650 = vunpack.c.l.s4 286326784
    %v5651 = vunpack.c.0.s8 %v5650
    %v5652 = vlaneseq
    %v5653 = vshrl.u32 %v5652, 7
    %v5654 = vsub.s32 %v5651, %v5653
    %v5655 = vrot.slane %v5561, %v5654
    %v5657 = vunpack.c.l.s4 286326784
    %v5658 = vunpack.c.0.s8 %v5657
    %v5659 = vlaneseq
    %v5660 = vshrl.u32 %v5659, 7
    %v5661 = vsub.s32 %v5658, %v5660
    %v5662 = vrot.slane %v5562, %v5661
    %v5664 = vunpack.c.l.s4 286326784
    %v5665 = vunpack.c.0.s8 %v5664
    %v5666 = vlaneseq
    %v5667 = vshrl.u32 %v5666, 7
    %v5668 = vsub.s32 %v5665, %v5667
    %v5669 = vrot.slane %v5563, %v5668
    %v5671 = vunpack.c.l.s4 286326784
    %v5672 = vunpack.c.0.s8 %v5671
    %v5673 = vlaneseq
    %v5674 = vshrl.u32 %v5673, 7
    %v5675 = vsub.s32 %v5672, %v5674
    %v5676 = vrot.slane %v5564, %v5675
    %vm5693 = vcmask 1042434
    %vm5694 = vsmask.f32 2304
    %vm5695 = vmand %vm5693, %vm5694
    %v5696 = vld [vmem:[#allocation8] sm:$0x4]
    %v5697 = vsel %vm5695, %v5571, %v5696
    %5698 = vst [vmem:[#allocation8] sm:$0x4] %v5697
    %v5699 = vld [vmem:[#allocation8 + $0x4] sm:$0x4]
    %v5700 = vsel %vm5695, %v5578, %v5699
    %5701 = vst [vmem:[#allocation8 + $0x4] sm:$0x4] %v5700
    %v5702 = vld [vmem:[#allocation8 + $0x8] sm:$0x4]
    %v5703 = vsel %vm5695, %v5585, %v5702
    %5704 = vst [vmem:[#allocation8 + $0x8] sm:$0x4] %v5703
    %v5705 = vld [vmem:[#allocation8 + $0xc] sm:$0x4]
    %v5706 = vsel %vm5695, %v5592, %v5705
    %5707 = vst [vmem:[#allocation8 + $0xc] sm:$0x4] %v5706
    %v5708 = vld [vmem:[#allocation8 + $0x10] sm:$0x4]
    %v5709 = vsel %vm5695, %v5599, %v5708
    %5710 = vst [vmem:[#allocation8 + $0x10] sm:$0x4] %v5709
    %v5711 = vld [vmem:[#allocation8 + $0x14] sm:$0x4]
    %v5712 = vsel %vm5695, %v5606, %v5711
    %5713 = vst [vmem:[#allocation8 + $0x14] sm:$0x4] %v5712
    %v5714 = vld [vmem:[#allocation8 + $0x18] sm:$0x4]
    %v5715 = vsel %vm5695, %v5613, %v5714
    %5716 = vst [vmem:[#allocation8 + $0x18] sm:$0x4] %v5715
    %v5717 = vld [vmem:[#allocation8 + $0x1c] sm:$0x4]
    %v5718 = vsel %vm5695, %v5620, %v5717
    %5719 = vst [vmem:[#allocation8 + $0x1c] sm:$0x4] %v5718
    %v5720 = vld [vmem:[#allocation8 + $0x20] sm:$0x4]
    %v5721 = vsel %vm5695, %v5627, %v5720
    %5722 = vst [vmem:[#allocation8 + $0x20] sm:$0x4] %v5721
    %v5723 = vld [vmem:[#allocation8 + $0x24] sm:$0x4]
    %v5724 = vsel %vm5695, %v5634, %v5723
    %5725 = vst [vmem:[#allocation8 + $0x24] sm:$0x4] %v5724
    %v5726 = vld [vmem:[#allocation8 + $0x28] sm:$0x4]
    %v5727 = vsel %vm5695, %v5641, %v5726
    %5728 = vst [vmem:[#allocation8 + $0x28] sm:$0x4] %v5727
    %v5729 = vld [vmem:[#allocation8 + $0x2c] sm:$0x4]
    %v5730 = vsel %vm5695, %v5648, %v5729
    %5731 = vst [vmem:[#allocation8 + $0x2c] sm:$0x4] %v5730
    %v5732 = vld [vmem:[#allocation8 + $0x30] sm:$0x4]
    %v5733 = vsel %vm5695, %v5655, %v5732
    %5734 = vst [vmem:[#allocation8 + $0x30] sm:$0x4] %v5733
    %v5735 = vld [vmem:[#allocation8 + $0x34] sm:$0x4]
    %v5736 = vsel %vm5695, %v5662, %v5735
    %5737 = vst [vmem:[#allocation8 + $0x34] sm:$0x4] %v5736
    %v5738 = vld [vmem:[#allocation8 + $0x38] sm:$0x4]
    %v5739 = vsel %vm5695, %v5669, %v5738
    %5740 = vst [vmem:[#allocation8 + $0x38] sm:$0x4] %v5739
    %v5741 = vld [vmem:[#allocation8 + $0x3c] sm:$0x4]
    %v5742 = vsel %vm5695, %v5676, %v5741
    %5743 = vst [vmem:[#allocation8 + $0x3c] sm:$0x4] %v5742
    %s5744 = scalar_lea.vmem [#allocation3], 40
    %v5745 = vld [vmem:[%s5744] sm:$0xf]
    %v5746 = vld [vmem:[%s5744 + $0x4] sm:$0xf]
    %v5748 = vshrl.u32 %v5745, 16
    %v5750 = vrot.slane %v5748, 6
    %v5751 = vshll.u32 %v5745, 16
    %v5753 = vrot.slane %v5751, 7
    %v5754 = vor.u32 %v5750, %v5753
    %v5755 = vrot.slane %v5754, 4
    %v5757 = vshrl.u32 %v5746, 16
    %v5759 = vrot.slane %v5757, 6
    %v5760 = vshll.u32 %v5746, 16
    %v5762 = vrot.slane %v5760, 7
    %v5763 = vor.u32 %v5759, %v5762
    %v5764 = vsel %vm52, %v5755, %v5763
    %v5765 = vrot.slane %v5763, 4
    %v5769 = vld [vmem:[#allocation2] sm:$0xe]
    %v5770 = vsel %vm77, %v5754, %v5769
    %5771 = vst [vmem:[#allocation2] sm:$0xe] %v5770
    %5772 = vst.msk [vmem:[#allocation2 + $0x4] sm:$0xf] %vm81, %v5764
    %v5773 = vld [vmem:[#allocation2 + $0x8] sm:$0x3]
    %v5774 = vsel %vm84, %v5765, %v5773
    %5775 = vst [vmem:[#allocation2 + $0x8] sm:$0x3] %v5774
    %v5776 = vld [vmem:[#allocation2] sm:$0xf]
    %v5777 = vld [vmem:[#allocation2 + $0x4] sm:$0xf]
    %v5778 = vld [vmem:[#allocation6] sm:$0xf]
    %v5779 = vld [vmem:[#allocation6 + $0x4] sm:$0xf]
    %v5780 = vld [vmem:[#allocation6 + $0x8] sm:$0xf]
    %v5781 = vld [vmem:[#allocation6 + $0xc] sm:$0xf]
    %v5782 = vld [vmem:[#allocation6 + $0x10] sm:$0xf]
    %v5783 = vld [vmem:[#allocation6 + $0x14] sm:$0xf]
    %v5784 = vld [vmem:[#allocation6 + $0x18] sm:$0xf]
    %v5785 = vld [vmem:[#allocation6 + $0x1c] sm:$0xf]
    %v5786 = vld [vmem:[#allocation6 + $0x20] sm:$0xf]
    %v5787 = vld [vmem:[#allocation6 + $0x24] sm:$0xf]
    %v5788 = vld [vmem:[#allocation6 + $0x28] sm:$0xf]
    %v5789 = vld [vmem:[#allocation6 + $0x2c] sm:$0xf]
    %v5790 = vld [vmem:[#allocation6 + $0x30] sm:$0xf]
    %v5791 = vld [vmem:[#allocation6 + $0x34] sm:$0xf]
    %v5792 = vld [vmem:[#allocation6 + $0x38] sm:$0xf]
    %v5793 = vld [vmem:[#allocation6 + $0x3c] sm:$0xf]
    %v5794 = vld [vmem:[#allocation2 + $0x8] sm:$0x1]
    %v5795 = vld [vmem:[#allocation6 + $0x40] sm:$0xf]
    %v5796 = vld [vmem:[#allocation6 + $0x44] sm:$0xf]
    %v5797 = vld [vmem:[#allocation6 + $0x48] sm:$0xf]
    %v5798 = vld [vmem:[#allocation6 + $0x4c] sm:$0xf]
    %v5799 = vld [vmem:[#allocation6 + $0x50] sm:$0xf]
    %v5800 = vld [vmem:[#allocation6 + $0x54] sm:$0xf]
    %v5801 = vld [vmem:[#allocation6 + $0x58] sm:$0xf]
    %v5802 = vld [vmem:[#allocation6 + $0x5c] sm:$0xf]
    %v5803 = vld [vmem:[#allocation6 + $0x60] sm:$0xf]
    %v5804 = vld [vmem:[#allocation6 + $0x64] sm:$0xf]
    %v5805 = vld [vmem:[#allocation6 + $0x68] sm:$0xf]
    %v5806 = vld [vmem:[#allocation6 + $0x6c] sm:$0xf]
    %v5807 = vld [vmem:[#allocation6 + $0x70] sm:$0xf]
    %v5808 = vld [vmem:[#allocation6 + $0x74] sm:$0xf]
    %v5809 = vld [vmem:[#allocation6 + $0x78] sm:$0xf]
    %v5810 = vld [vmem:[#allocation6 + $0x7c] sm:$0xf]
    %v5814 = vunpack.c.l.b16 %v5776
    %v5815 = vunpack.c.l.b16 %v5777
    %v5816 = vunpack.c.l.b16 %v5794
    %v5817 = vpack.c.b16 %v5815, %v5814
    %v5818 = vpack.c.b16 %v5816, %v5816
    %v5820 = vshrl.u32 %v5817, 16
    %v5822 = vshll.u32 %v5817, 16
    %v5824 = vrot.slane %v5822, 1
    %v5825 = vor.u32 %v5820, %v5824
    %v5827 = vshll.u32 %v5818, 16
    %v5829 = vrot.slane %v5827, 1
    %v5830 = vsel %vm131, %v5825, %v5829
    %v5848 = vunpack.c.l.b16 %v5795
    %v5849 = vunpack.c.l.b16 %v5796
    %v5850 = vunpack.c.l.b16 %v5797
    %v5851 = vunpack.c.l.b16 %v5798
    %v5852 = vunpack.c.l.b16 %v5799
    %v5853 = vunpack.c.l.b16 %v5800
    %v5854 = vunpack.c.l.b16 %v5801
    %v5855 = vunpack.c.l.b16 %v5802
    %v5856 = vunpack.c.l.b16 %v5803
    %v5857 = vunpack.c.l.b16 %v5804
    %v5858 = vunpack.c.l.b16 %v5805
    %v5859 = vunpack.c.l.b16 %v5806
    %v5860 = vunpack.c.l.b16 %v5807
    %v5861 = vunpack.c.l.b16 %v5808
    %v5862 = vunpack.c.l.b16 %v5809
    %v5863 = vunpack.c.l.b16 %v5810
    %v5864 = vpack.c.b16 %v5849, %v5848
    %v5865 = vpack.c.b16 %v5851, %v5850
    %v5866 = vpack.c.b16 %v5853, %v5852
    %v5867 = vpack.c.b16 %v5855, %v5854
    %v5868 = vpack.c.b16 %v5857, %v5856
    %v5869 = vpack.c.b16 %v5859, %v5858
    %v5870 = vpack.c.b16 %v5861, %v5860
    %v5871 = vpack.c.b16 %v5863, %v5862
    %5880 = vmatprep.subr.bf16.mxu0 0
    %5881 = vmatpush1.bf16.msra.mxu0 %v5864
    %5882 = vmatprep.subr.bf16.mxu0 0
    %5883 = vmatpush1.bf16.msra.mxu0 %v5865
    %5884 = vmatprep.subr.bf16.mxu0 0
    %5885 = vmatpush1.bf16.msra.mxu0 %v5866
    %5886 = vmatprep.subr.bf16.mxu0 0
    %5887 = vmatpush1.bf16.msra.mxu0 %v5867
    %5888 = vmatprep.subr.bf16.mxu0 0
    %5889 = vmatpush1.bf16.msra.mxu0 %v5868
    %5890 = vmatprep.subr.bf16.mxu0 0
    %5891 = vmatpush1.bf16.msra.mxu0 %v5869
    %5892 = vmatprep.subr.bf16.mxu0 0
    %5893 = vmatpush1.bf16.msra.mxu0 %v5870
    %5894 = vmatprep.subr.bf16.mxu0 0
    %5895 = vmatpush1.bf16.msra.mxu0 %v5871
    %5896 = vmatprep.subr.bf16.mxu0 0
    %5897 = vmatpush1.bf16.msra.mxu0 0
    %5898 = vmatprep.subr.bf16.mxu0 0
    %5899 = vmatpush1.bf16.msra.mxu0 0
    %5900 = vmatprep.subr.bf16.mxu0 0
    %5901 = vmatpush1.bf16.msra.mxu0 0
    %5902 = vmatprep.subr.bf16.mxu0 0
    %5903 = vmatpush1.bf16.msra.mxu0 0
    %5904 = vmatprep.subr.bf16.mxu0 0
    %5905 = vmatpush1.bf16.msra.mxu0 0
    %5906 = vmatprep.subr.bf16.mxu0 0
    %5907 = vmatpush1.bf16.msra.mxu0 0
    %5908 = vmatprep.subr.bf16.mxu0 0
    %5909 = vmatpush1.bf16.msra.mxu0 0
    %5910 = vmatprep.subr.bf16.mxu0 0
    %5911 = vmatpush1.bf16.msra.mxu0 0
    %5912 = vmatprep.mubr.bf16.mxu0 0
    %5913 = vmatmul.mubr.bf16.gmra.mrb[0].mxu0 %v5830
    %v5914 = vpop.f32.mrb[0].mxu0
    %v5915 = vadd.f32 0.0, %v5914
    %v5916 = vpop.f32.mrb[0].mxu0
    %v5917 = vpop.f32.mrb[0].mxu0
    %v5918 = vadd.f32 0.0, %v5917
    %v5919 = vpop.f32.mrb[0].mxu0
    %5920 = vdwg.mxu0
    %v5938 = vunpack.c.l.b16 %v5778
    %v5939 = vunpack.c.l.b16 %v5779
    %v5940 = vunpack.c.l.b16 %v5780
    %v5941 = vunpack.c.l.b16 %v5781
    %v5942 = vunpack.c.l.b16 %v5782
    %v5943 = vunpack.c.l.b16 %v5783
    %v5944 = vunpack.c.l.b16 %v5784
    %v5945 = vunpack.c.l.b16 %v5785
    %v5946 = vunpack.c.l.b16 %v5786
    %v5947 = vunpack.c.l.b16 %v5787
    %v5948 = vunpack.c.l.b16 %v5788
    %v5949 = vunpack.c.l.b16 %v5789
    %v5950 = vunpack.c.l.b16 %v5790
    %v5951 = vunpack.c.l.b16 %v5791
    %v5952 = vunpack.c.l.b16 %v5792
    %v5953 = vunpack.c.l.b16 %v5793
    %v5954 = vpack.c.b16 %v5939, %v5938
    %v5955 = vpack.c.b16 %v5941, %v5940
    %v5956 = vpack.c.b16 %v5943, %v5942
    %v5957 = vpack.c.b16 %v5945, %v5944
    %v5958 = vpack.c.b16 %v5947, %v5946
    %v5959 = vpack.c.b16 %v5949, %v5948
    %v5960 = vpack.c.b16 %v5951, %v5950
    %v5961 = vpack.c.b16 %v5953, %v5952
    %5970 = vmatprep.subr.bf16.mxu0 0
    %5971 = vmatpush1.bf16.msra.mxu0 %v5954
    %5972 = vmatprep.subr.bf16.mxu0 0
    %5973 = vmatpush1.bf16.msra.mxu0 %v5955
    %5974 = vmatprep.subr.bf16.mxu0 0
    %5975 = vmatpush1.bf16.msra.mxu0 %v5956
    %5976 = vmatprep.subr.bf16.mxu0 0
    %5977 = vmatpush1.bf16.msra.mxu0 %v5957
    %5978 = vmatprep.subr.bf16.mxu0 0
    %5979 = vmatpush1.bf16.msra.mxu0 %v5958
    %5980 = vmatprep.subr.bf16.mxu0 0
    %5981 = vmatpush1.bf16.msra.mxu0 %v5959
    %5982 = vmatprep.subr.bf16.mxu0 0
    %5983 = vmatpush1.bf16.msra.mxu0 %v5960
    %5984 = vmatprep.subr.bf16.mxu0 0
    %5985 = vmatpush1.bf16.msra.mxu0 %v5961
    %5986 = vmatprep.subr.bf16.mxu0 0
    %5987 = vmatpush1.bf16.msra.mxu0 0
    %5988 = vmatprep.subr.bf16.mxu0 0
    %5989 = vmatpush1.bf16.msra.mxu0 0
    %5990 = vmatprep.subr.bf16.mxu0 0
    %5991 = vmatpush1.bf16.msra.mxu0 0
    %5992 = vmatprep.subr.bf16.mxu0 0
    %5993 = vmatpush1.bf16.msra.mxu0 0
    %5994 = vmatprep.subr.bf16.mxu0 0
    %5995 = vmatpush1.bf16.msra.mxu0 0
    %5996 = vmatprep.subr.bf16.mxu0 0
    %5997 = vmatpush1.bf16.msra.mxu0 0
    %5998 = vmatprep.subr.bf16.mxu0 0
    %5999 = vmatpush1.bf16.msra.mxu0 0
    %6000 = vmatprep.subr.bf16.mxu0 0
    %6001 = vmatpush1.bf16.msra.mxu0 0
    %6002 = vmatprep.mubr.bf16.mxu0 0
    %6003 = vmatmul.mubr.bf16.gmra.mrb[0].mxu0 %v5817
    %v6004 = vpop.f32.mrb[0].mxu0
    %v6005 = vadd.f32 %v5915, %v6004
    %v6006 = vpop.f32.mrb[0].mxu0
    %v6007 = vpop.f32.mrb[0].mxu0
    %v6008 = vadd.f32 %v5918, %v6007
    %v6009 = vpop.f32.mrb[0].mxu0
    %6010 = vdwg.mxu0
    %v6011 = vld [vmem:[#allocation2] sm:$0xe]
    %v6012 = vld [vmem:[#allocation6 + $0x80] sm:$0xf]
    %v6013 = vld [vmem:[#allocation6 + $0x84] sm:$0xf]
    %v6014 = vld [vmem:[#allocation6 + $0x88] sm:$0xf]
    %v6015 = vld [vmem:[#allocation6 + $0x8c] sm:$0xf]
    %v6016 = vld [vmem:[#allocation6 + $0x90] sm:$0xf]
    %v6017 = vld [vmem:[#allocation6 + $0x94] sm:$0xf]
    %v6018 = vld [vmem:[#allocation6 + $0x98] sm:$0xf]
    %v6019 = vld [vmem:[#allocation6 + $0x9c] sm:$0xf]
    %v6020 = vld [vmem:[#allocation6 + $0xa0] sm:$0xf]
    %v6021 = vld [vmem:[#allocation6 + $0xa4] sm:$0xf]
    %v6022 = vld [vmem:[#allocation6 + $0xa8] sm:$0xf]
    %v6023 = vld [vmem:[#allocation6 + $0xac] sm:$0xf]
    %v6024 = vld [vmem:[#allocation6 + $0xb0] sm:$0xf]
    %v6025 = vld [vmem:[#allocation6 + $0xb4] sm:$0xf]
    %v6026 = vld [vmem:[#allocation6 + $0xb8] sm:$0xf]
    %v6027 = vld [vmem:[#allocation6 + $0xbc] sm:$0xf]
    %v6029 = vunpack.c.l.b16 %v6011
    %v6030 = vpack.c.b16 %v5815, %v6029
    %v6031 = vrot.slane %v6030, 1
    %v6032 = vrot.slane %v5818, 1
    %v6033 = vsel %vm344, %v6031, %v6032
    %v6051 = vunpack.c.l.b16 %v6012
    %v6052 = vunpack.c.l.b16 %v6013
    %v6053 = vunpack.c.l.b16 %v6014
    %v6054 = vunpack.c.l.b16 %v6015
    %v6055 = vunpack.c.l.b16 %v6016
    %v6056 = vunpack.c.l.b16 %v6017
    %v6057 = vunpack.c.l.b16 %v6018
    %v6058 = vunpack.c.l.b16 %v6019
    %v6059 = vunpack.c.l.b16 %v6020
    %v6060 = vunpack.c.l.b16 %v6021
    %v6061 = vunpack.c.l.b16 %v6022
    %v6062 = vunpack.c.l.b16 %v6023
    %v6063 = vunpack.c.l.b16 %v6024
    %v6064 = vunpack.c.l.b16 %v6025
    %v6065 = vunpack.c.l.b16 %v6026
    %v6066 = vunpack.c.l.b16 %v6027
    %v6067 = vpack.c.b16 %v6052, %v6051
    %v6068 = vpack.c.b16 %v6054, %v6053
    %v6069 = vpack.c.b16 %v6056, %v6055
    %v6070 = vpack.c.b16 %v6058, %v6057
    %v6071 = vpack.c.b16 %v6060, %v6059
    %v6072 = vpack.c.b16 %v6062, %v6061
    %v6073 = vpack.c.b16 %v6064, %v6063
    %v6074 = vpack.c.b16 %v6066, %v6065
    %6083 = vmatprep.subr.bf16.mxu0 0
    %6084 = vmatpush1.bf16.msra.mxu0 %v6067
    %6085 = vmatprep.subr.bf16.mxu0 0
    %6086 = vmatpush1.bf16.msra.mxu0 %v6068
    %6087 = vmatprep.subr.bf16.mxu0 0
    %6088 = vmatpush1.bf16.msra.mxu0 %v6069
    %6089 = vmatprep.subr.bf16.mxu0 0
    %6090 = vmatpush1.bf16.msra.mxu0 %v6070
    %6091 = vmatprep.subr.bf16.mxu0 0
    %6092 = vmatpush1.bf16.msra.mxu0 %v6071
    %6093 = vmatprep.subr.bf16.mxu0 0
    %6094 = vmatpush1.bf16.msra.mxu0 %v6072
    %6095 = vmatprep.subr.bf16.mxu0 0
    %6096 = vmatpush1.bf16.msra.mxu0 %v6073
    %6097 = vmatprep.subr.bf16.mxu0 0
    %6098 = vmatpush1.bf16.msra.mxu0 %v6074
    %6099 = vmatprep.subr.bf16.mxu0 0
    %6100 = vmatpush1.bf16.msra.mxu0 0
    %6101 = vmatprep.subr.bf16.mxu0 0
    %6102 = vmatpush1.bf16.msra.mxu0 0
    %6103 = vmatprep.subr.bf16.mxu0 0
    %6104 = vmatpush1.bf16.msra.mxu0 0
    %6105 = vmatprep.subr.bf16.mxu0 0
    %6106 = vmatpush1.bf16.msra.mxu0 0
    %6107 = vmatprep.subr.bf16.mxu0 0
    %6108 = vmatpush1.bf16.msra.mxu0 0
    %6109 = vmatprep.subr.bf16.mxu0 0
    %6110 = vmatpush1.bf16.msra.mxu0 0
    %6111 = vmatprep.subr.bf16.mxu0 0
    %6112 = vmatpush1.bf16.msra.mxu0 0
    %6113 = vmatprep.subr.bf16.mxu0 0
    %6114 = vmatpush1.bf16.msra.mxu0 0
    %6115 = vmatprep.mubr.bf16.mxu0 0
    %6116 = vmatmul.mubr.bf16.gmra.mrb[0].mxu0 %v6033
    %v6117 = vpop.f32.mrb[0].mxu0
    %v6118 = vadd.f32 0.0, %v6117
    %v6119 = vpop.f32.mrb[0].mxu0
    %v6120 = vpop.f32.mrb[0].mxu0
    %v6121 = vadd.f32 0.0, %v6120
    %v6122 = vpop.f32.mrb[0].mxu0
    %6123 = vdwg.mxu0
    %v6124 = vadd.f32 %v6005, %v6118
    %v6125 = vadd.f32 %v6008, %v6121
    %v6126 = vld [vmem:[#allocation2 + $0x8] sm:$0x3]
    %v6127 = vld [vmem:[#allocation6 + $0xc0] sm:$0xf]
    %v6128 = vld [vmem:[#allocation6 + $0xc4] sm:$0xf]
    %v6129 = vld [vmem:[#allocation6 + $0xc8] sm:$0xf]
    %v6130 = vld [vmem:[#allocation6 + $0xcc] sm:$0xf]
    %v6131 = vld [vmem:[#allocation6 + $0xd0] sm:$0xf]
    %v6132 = vld [vmem:[#allocation6 + $0xd4] sm:$0xf]
    %v6133 = vld [vmem:[#allocation6 + $0xd8] sm:$0xf]
    %v6134 = vld [vmem:[#allocation6 + $0xdc] sm:$0xf]
    %v6135 = vld [vmem:[#allocation6 + $0xe0] sm:$0xf]
    %v6136 = vld [vmem:[#allocation6 + $0xe4] sm:$0xf]
    %v6137 = vld [vmem:[#allocation6 + $0xe8] sm:$0xf]
    %v6138 = vld [vmem:[#allocation6 + $0xec] sm:$0xf]
    %v6139 = vld [vmem:[#allocation6 + $0xf0] sm:$0xf]
    %v6140 = vld [vmem:[#allocation6 + $0xf4] sm:$0xf]
    %v6141 = vld [vmem:[#allocation6 + $0xf8] sm:$0xf]
    %v6142 = vld [vmem:[#allocation6 + $0xfc] sm:$0xf]
    %v6144 = vunpack.c.l.b16 %v6126
    %v6145 = vpack.c.b16 %v6144, %v6144
    %v6147 = vshrl.u32 %v6030, 16
    %v6149 = vrot.slane %v6147, 1
    %v6150 = vshll.u32 %v6030, 16
    %v6152 = vrot.slane %v6150, 2
    %v6153 = vor.u32 %v6149, %v6152
    %v6155 = vshrl.u32 %v6145, 16
    %v6157 = vrot.slane %v6155, 1
    %v6158 = vshll.u32 %v6145, 16
    %v6160 = vrot.slane %v6158, 2
    %v6161 = vor.u32 %v6157, %v6160
    %v6162 = vsel %vm460, %v6153, %v6161
    %v6180 = vunpack.c.l.b16 %v6127
    %v6181 = vunpack.c.l.b16 %v6128
    %v6182 = vunpack.c.l.b16 %v6129
    %v6183 = vunpack.c.l.b16 %v6130
    %v6184 = vunpack.c.l.b16 %v6131
    %v6185 = vunpack.c.l.b16 %v6132
    %v6186 = vunpack.c.l.b16 %v6133
    %v6187 = vunpack.c.l.b16 %v6134
    %v6188 = vunpack.c.l.b16 %v6135
    %v6189 = vunpack.c.l.b16 %v6136
    %v6190 = vunpack.c.l.b16 %v6137
    %v6191 = vunpack.c.l.b16 %v6138
    %v6192 = vunpack.c.l.b16 %v6139
    %v6193 = vunpack.c.l.b16 %v6140
    %v6194 = vunpack.c.l.b16 %v6141
    %v6195 = vunpack.c.l.b16 %v6142
    %v6196 = vpack.c.b16 %v6181, %v6180
    %v6197 = vpack.c.b16 %v6183, %v6182
    %v6198 = vpack.c.b16 %v6185, %v6184
    %v6199 = vpack.c.b16 %v6187, %v6186
    %v6200 = vpack.c.b16 %v6189, %v6188
    %v6201 = vpack.c.b16 %v6191, %v6190
    %v6202 = vpack.c.b16 %v6193, %v6192
    %v6203 = vpack.c.b16 %v6195, %v6194
    %6212 = vmatprep.subr.bf16.mxu0 0
    %6213 = vmatpush1.bf16.msra.mxu0 %v6196
    %6214 = vmatprep.subr.bf16.mxu0 0
    %6215 = vmatpush1.bf16.msra.mxu0 %v6197
    %6216 = vmatprep.subr.bf16.mxu0 0
    %6217 = vmatpush1.bf16.msra.mxu0 %v6198
    %6218 = vmatprep.subr.bf16.mxu0 0
    %6219 = vmatpush1.bf16.msra.mxu0 %v6199
    %6220 = vmatprep.subr.bf16.mxu0 0
    %6221 = vmatpush1.bf16.msra.mxu0 %v6200
    %6222 = vmatprep.subr.bf16.mxu0 0
    %6223 = vmatpush1.bf16.msra.mxu0 %v6201
    %6224 = vmatprep.subr.bf16.mxu0 0
    %6225 = vmatpush1.bf16.msra.mxu0 %v6202
    %6226 = vmatprep.subr.bf16.mxu0 0
    %6227 = vmatpush1.bf16.msra.mxu0 %v6203
    %6228 = vmatprep.subr.bf16.mxu0 0
    %6229 = vmatpush1.bf16.msra.mxu0 0
    %6230 = vmatprep.subr.bf16.mxu0 0
    %6231 = vmatpush1.bf16.msra.mxu0 0
    %6232 = vmatprep.subr.bf16.mxu0 0
    %6233 = vmatpush1.bf16.msra.mxu0 0
    %6234 = vmatprep.subr.bf16.mxu0 0
    %6235 = vmatpush1.bf16.msra.mxu0 0
    %6236 = vmatprep.subr.bf16.mxu0 0
    %6237 = vmatpush1.bf16.msra.mxu0 0
    %6238 = vmatprep.subr.bf16.mxu0 0
    %6239 = vmatpush1.bf16.msra.mxu0 0
    %6240 = vmatprep.subr.bf16.mxu0 0
    %6241 = vmatpush1.bf16.msra.mxu0 0
    %6242 = vmatprep.subr.bf16.mxu0 0
    %6243 = vmatpush1.bf16.msra.mxu0 0
    %6244 = vmatprep.mubr.bf16.mxu0 0
    %6245 = vmatmul.mubr.bf16.gmra.mrb[0].mxu0 %v6162
    %v6246 = vpop.f32.mrb[0].mxu0
    %v6247 = vadd.f32 0.0, %v6246
    %v6248 = vpop.f32.mrb[0].mxu0
    %v6249 = vpop.f32.mrb[0].mxu0
    %v6250 = vadd.f32 0.0, %v6249
    %v6251 = vpop.f32.mrb[0].mxu0
    %6252 = vdwg.mxu0
    %v6253 = vadd.f32 %v6124, %v6247
    %v6254 = vadd.f32 %v6125, %v6250
    %v6255 = vld [vmem:[#allocation2] sm:$0xc]
    %v6256 = vld [vmem:[#allocation6 + $0x100] sm:$0xf]
    %v6257 = vld [vmem:[#allocation6 + $0x104] sm:$0xf]
    %v6258 = vld [vmem:[#allocation6 + $0x108] sm:$0xf]
    %v6259 = vld [vmem:[#allocation6 + $0x10c] sm:$0xf]
    %v6260 = vld [vmem:[#allocation6 + $0x110] sm:$0xf]
    %v6261 = vld [vmem:[#allocation6 + $0x114] sm:$0xf]
    %v6262 = vld [vmem:[#allocation6 + $0x118] sm:$0xf]
    %v6263 = vld [vmem:[#allocation6 + $0x11c] sm:$0xf]
    %v6264 = vld [vmem:[#allocation6 + $0x120] sm:$0xf]
    %v6265 = vld [vmem:[#allocation6 + $0x124] sm:$0xf]
    %v6266 = vld [vmem:[#allocation6 + $0x128] sm:$0xf]
    %v6267 = vld [vmem:[#allocation6 + $0x12c] sm:$0xf]
    %v6268 = vld [vmem:[#allocation6 + $0x130] sm:$0xf]
    %v6269 = vld [vmem:[#allocation6 + $0x134] sm:$0xf]
    %v6270 = vld [vmem:[#allocation6 + $0x138] sm:$0xf]
    %v6271 = vld [vmem:[#allocation6 + $0x13c] sm:$0xf]
    %v6273 = vunpack.c.l.b16 %v6255
    %v6274 = vpack.c.b16 %v5815, %v6273
    %v6275 = vrot.slane %v6274, 2
    %v6276 = vrot.slane %v6145, 2
    %v6277 = vsel %vm590, %v6275, %v6276
    %v6295 = vunpack.c.l.b16 %v6256
    %v6296 = vunpack.c.l.b16 %v6257
    %v6297 = vunpack.c.l.b16 %v6258
    %v6298 = vunpack.c.l.b16 %v6259
    %v6299 = vunpack.c.l.b16 %v6260
    %v6300 = vunpack.c.l.b16 %v6261
    %v6301 = vunpack.c.l.b16 %v6262
    %v6302 = vunpack.c.l.b16 %v6263
    %v6303 = vunpack.c.l.b16 %v6264
    %v6304 = vunpack.c.l.b16 %v6265
    %v6305 = vunpack.c.l.b16 %v6266
    %v6306 = vunpack.c.l.b16 %v6267
    %v6307 = vunpack.c.l.b16 %v6268
    %v6308 = vunpack.c.l.b16 %v6269
    %v6309 = vunpack.c.l.b16 %v6270
    %v6310 = vunpack.c.l.b16 %v6271
    %v6311 = vpack.c.b16 %v6296, %v6295
    %v6312 = vpack.c.b16 %v6298, %v6297
    %v6313 = vpack.c.b16 %v6300, %v6299
    %v6314 = vpack.c.b16 %v6302, %v6301
    %v6315 = vpack.c.b16 %v6304, %v6303
    %v6316 = vpack.c.b16 %v6306, %v6305
    %v6317 = vpack.c.b16 %v6308, %v6307
    %v6318 = vpack.c.b16 %v6310, %v6309
    %6327 = vmatprep.subr.bf16.mxu0 0
    %6328 = vmatpush1.bf16.msra.mxu0 %v6311
    %6329 = vmatprep.subr.bf16.mxu0 0
    %6330 = vmatpush1.bf16.msra.mxu0 %v6312
    %6331 = vmatprep.subr.bf16.mxu0 0
    %6332 = vmatpush1.bf16.msra.mxu0 %v6313
    %6333 = vmatprep.subr.bf16.mxu0 0
    %6334 = vmatpush1.bf16.msra.mxu0 %v6314
    %6335 = vmatprep.subr.bf16.mxu0 0
    %6336 = vmatpush1.bf16.msra.mxu0 %v6315
    %6337 = vmatprep.subr.bf16.mxu0 0
    %6338 = vmatpush1.bf16.msra.mxu0 %v6316
    %6339 = vmatprep.subr.bf16.mxu0 0
    %6340 = vmatpush1.bf16.msra.mxu0 %v6317
    %6341 = vmatprep.subr.bf16.mxu0 0
    %6342 = vmatpush1.bf16.msra.mxu0 %v6318
    %6343 = vmatprep.subr.bf16.mxu0 0
    %6344 = vmatpush1.bf16.msra.mxu0 0
    %6345 = vmatprep.subr.bf16.mxu0 0
    %6346 = vmatpush1.bf16.msra.mxu0 0
    %6347 = vmatprep.subr.bf16.mxu0 0
    %6348 = vmatpush1.bf16.msra.mxu0 0
    %6349 = vmatprep.subr.bf16.mxu0 0
    %6350 = vmatpush1.bf16.msra.mxu0 0
    %6351 = vmatprep.subr.bf16.mxu0 0
    %6352 = vmatpush1.bf16.msra.mxu0 0
    %6353 = vmatprep.subr.bf16.mxu0 0
    %6354 = vmatpush1.bf16.msra.mxu0 0
    %6355 = vmatprep.subr.bf16.mxu0 0
    %6356 = vmatpush1.bf16.msra.mxu0 0
    %6357 = vmatprep.subr.bf16.mxu0 0
    %6358 = vmatpush1.bf16.msra.mxu0 0
    %6359 = vmatprep.mubr.bf16.mxu0 0
    %6360 = vmatmul.mubr.bf16.gmra.mrb[0].mxu0 %v6277
    %v6361 = vpop.f32.mrb[0].mxu0
    %v6362 = vadd.f32 0.0, %v6361
    %v6363 = vpop.f32.mrb[0].mxu0
    %v6364 = vpop.f32.mrb[0].mxu0
    %v6365 = vadd.f32 0.0, %v6364
    %v6366 = vpop.f32.mrb[0].mxu0
    %6367 = vdwg.mxu0
    %v6368 = vadd.f32 %v6253, %v6362
    %v6369 = vadd.f32 %v6254, %v6365
    %v6370 = vld [vmem:[#allocation2 + $0x8] sm:$0x7]
    %v6371 = vld [vmem:[#allocation6 + $0x140] sm:$0xf]
    %v6372 = vld [vmem:[#allocation6 + $0x144] sm:$0xf]
    %v6373 = vld [vmem:[#allocation6 + $0x148] sm:$0xf]
    %v6374 = vld [vmem:[#allocation6 + $0x14c] sm:$0xf]
    %v6375 = vld [vmem:[#allocation6 + $0x150] sm:$0xf]
    %v6376 = vld [vmem:[#allocation6 + $0x154] sm:$0xf]
    %v6377 = vld [vmem:[#allocation6 + $0x158] sm:$0xf]
    %v6378 = vld [vmem:[#allocation6 + $0x15c] sm:$0xf]
    %v6379 = vld [vmem:[#allocation6 + $0x160] sm:$0xf]
    %v6380 = vld [vmem:[#allocation6 + $0x164] sm:$0xf]
    %v6381 = vld [vmem:[#allocation6 + $0x168] sm:$0xf]
    %v6382 = vld [vmem:[#allocation6 + $0x16c] sm:$0xf]
    %v6383 = vld [vmem:[#allocation6 + $0x170] sm:$0xf]
    %v6384 = vld [vmem:[#allocation6 + $0x174] sm:$0xf]
    %v6385 = vld [vmem:[#allocation6 + $0x178] sm:$0xf]
    %v6386 = vld [vmem:[#allocation6 + $0x17c] sm:$0xf]
    %v6388 = vunpack.c.l.b16 %v6370
    %v6389 = vpack.c.b16 %v6388, %v6388
    %v6391 = vshrl.u32 %v6274, 16
    %v6393 = vrot.slane %v6391, 2
    %v6394 = vshll.u32 %v6274, 16
    %v6396 = vrot.slane %v6394, 3
    %v6397 = vor.u32 %v6393, %v6396
    %v6399 = vshrl.u32 %v6389, 16
    %v6401 = vrot.slane %v6399, 2
    %v6402 = vshll.u32 %v6389, 16
    %v6404 = vrot.slane %v6402, 3
    %v6405 = vor.u32 %v6401, %v6404
    %v6406 = vsel %vm706, %v6397, %v6405
    %v6424 = vunpack.c.l.b16 %v6371
    %v6425 = vunpack.c.l.b16 %v6372
    %v6426 = vunpack.c.l.b16 %v6373
    %v6427 = vunpack.c.l.b16 %v6374
    %v6428 = vunpack.c.l.b16 %v6375
    %v6429 = vunpack.c.l.b16 %v6376
    %v6430 = vunpack.c.l.b16 %v6377
    %v6431 = vunpack.c.l.b16 %v6378
    %v6432 = vunpack.c.l.b16 %v6379
    %v6433 = vunpack.c.l.b16 %v6380
    %v6434 = vunpack.c.l.b16 %v6381
    %v6435 = vunpack.c.l.b16 %v6382
    %v6436 = vunpack.c.l.b16 %v6383
    %v6437 = vunpack.c.l.b16 %v6384
    %v6438 = vunpack.c.l.b16 %v6385
    %v6439 = vunpack.c.l.b16 %v6386
    %v6440 = vpack.c.b16 %v6425, %v6424
    %v6441 = vpack.c.b16 %v6427, %v6426
    %v6442 = vpack.c.b16 %v6429, %v6428
    %v6443 = vpack.c.b16 %v6431, %v6430
    %v6444 = vpack.c.b16 %v6433, %v6432
    %v6445 = vpack.c.b16 %v6435, %v6434
    %v6446 = vpack.c.b16 %v6437, %v6436
    %v6447 = vpack.c.b16 %v6439, %v6438
    %6456 = vmatprep.subr.bf16.mxu0 0
    %6457 = vmatpush1.bf16.msra.mxu0 %v6440
    %6458 = vmatprep.subr.bf16.mxu0 0
    %6459 = vmatpush1.bf16.msra.mxu0 %v6441
    %6460 = vmatprep.subr.bf16.mxu0 0
    %6461 = vmatpush1.bf16.msra.mxu0 %v6442
    %6462 = vmatprep.subr.bf16.mxu0 0
    %6463 = vmatpush1.bf16.msra.mxu0 %v6443
    %6464 = vmatprep.subr.bf16.mxu0 0
    %6465 = vmatpush1.bf16.msra.mxu0 %v6444
    %6466 = vmatprep.subr.bf16.mxu0 0
    %6467 = vmatpush1.bf16.msra.mxu0 %v6445
    %6468 = vmatprep.subr.bf16.mxu0 0
    %6469 = vmatpush1.bf16.msra.mxu0 %v6446
    %6470 = vmatprep.subr.bf16.mxu0 0
    %6471 = vmatpush1.bf16.msra.mxu0 %v6447
    %6472 = vmatprep.subr.bf16.mxu0 0
    %6473 = vmatpush1.bf16.msra.mxu0 0
    %6474 = vmatprep.subr.bf16.mxu0 0
    %6475 = vmatpush1.bf16.msra.mxu0 0
    %6476 = vmatprep.subr.bf16.mxu0 0
    %6477 = vmatpush1.bf16.msra.mxu0 0
    %6478 = vmatprep.subr.bf16.mxu0 0
    %6479 = vmatpush1.bf16.msra.mxu0 0
    %6480 = vmatprep.subr.bf16.mxu0 0
    %6481 = vmatpush1.bf16.msra.mxu0 0
    %6482 = vmatprep.subr.bf16.mxu0 0
    %6483 = vmatpush1.bf16.msra.mxu0 0
    %6484 = vmatprep.subr.bf16.mxu0 0
    %6485 = vmatpush1.bf16.msra.mxu0 0
    %6486 = vmatprep.subr.bf16.mxu0 0
    %6487 = vmatpush1.bf16.msra.mxu0 0
    %6488 = vmatprep.mubr.bf16.mxu0 0
    %6489 = vmatmul.mubr.bf16.gmra.mrb[0].mxu0 %v6406
    %v6490 = vpop.f32.mrb[0].mxu0
    %v6491 = vadd.f32 0.0, %v6490
    %v6492 = vpop.f32.mrb[0].mxu0
    %v6493 = vpop.f32.mrb[0].mxu0
    %v6494 = vadd.f32 0.0, %v6493
    %v6495 = vpop.f32.mrb[0].mxu0
    %6496 = vdwg.mxu0
    %v6497 = vadd.f32 %v6368, %v6491
    %v6498 = vadd.f32 %v6369, %v6494
    %v6499 = vld [vmem:[#allocation2] sm:$0x8]
    %v6500 = vld [vmem:[#allocation6 + $0x180] sm:$0xf]
    %v6501 = vld [vmem:[#allocation6 + $0x184] sm:$0xf]
    %v6502 = vld [vmem:[#allocation6 + $0x188] sm:$0xf]
    %v6503 = vld [vmem:[#allocation6 + $0x18c] sm:$0xf]
    %v6504 = vld [vmem:[#allocation6 + $0x190] sm:$0xf]
    %v6505 = vld [vmem:[#allocation6 + $0x194] sm:$0xf]
    %v6506 = vld [vmem:[#allocation6 + $0x198] sm:$0xf]
    %v6507 = vld [vmem:[#allocation6 + $0x19c] sm:$0xf]
    %v6508 = vld [vmem:[#allocation6 + $0x1a0] sm:$0xf]
    %v6509 = vld [vmem:[#allocation6 + $0x1a4] sm:$0xf]
    %v6510 = vld [vmem:[#allocation6 + $0x1a8] sm:$0xf]
    %v6511 = vld [vmem:[#allocation6 + $0x1ac] sm:$0xf]
    %v6512 = vld [vmem:[#allocation6 + $0x1b0] sm:$0xf]
    %v6513 = vld [vmem:[#allocation6 + $0x1b4] sm:$0xf]
    %v6514 = vld [vmem:[#allocation6 + $0x1b8] sm:$0xf]
    %v6515 = vld [vmem:[#allocation6 + $0x1bc] sm:$0xf]
    %v6517 = vunpack.c.l.b16 %v6499
    %v6518 = vpack.c.b16 %v5815, %v6517
    %v6519 = vrot.slane %v6518, 3
    %v6520 = vrot.slane %v6389, 3
    %v6521 = vsel %vm836, %v6519, %v6520
    %v6539 = vunpack.c.l.b16 %v6500
    %v6540 = vunpack.c.l.b16 %v6501
    %v6541 = vunpack.c.l.b16 %v6502
    %v6542 = vunpack.c.l.b16 %v6503
    %v6543 = vunpack.c.l.b16 %v6504
    %v6544 = vunpack.c.l.b16 %v6505
    %v6545 = vunpack.c.l.b16 %v6506
    %v6546 = vunpack.c.l.b16 %v6507
    %v6547 = vunpack.c.l.b16 %v6508
    %v6548 = vunpack.c.l.b16 %v6509
    %v6549 = vunpack.c.l.b16 %v6510
    %v6550 = vunpack.c.l.b16 %v6511
    %v6551 = vunpack.c.l.b16 %v6512
    %v6552 = vunpack.c.l.b16 %v6513
    %v6553 = vunpack.c.l.b16 %v6514
    %v6554 = vunpack.c.l.b16 %v6515
    %v6555 = vpack.c.b16 %v6540, %v6539
    %v6556 = vpack.c.b16 %v6542, %v6541
    %v6557 = vpack.c.b16 %v6544, %v6543
    %v6558 = vpack.c.b16 %v6546, %v6545
    %v6559 = vpack.c.b16 %v6548, %v6547
    %v6560 = vpack.c.b16 %v6550, %v6549
    %v6561 = vpack.c.b16 %v6552, %v6551
    %v6562 = vpack.c.b16 %v6554, %v6553
    %6571 = vmatprep.subr.bf16.mxu0 0
    %6572 = vmatpush1.bf16.msra.mxu0 %v6555
    %6573 = vmatprep.subr.bf16.mxu0 0
    %6574 = vmatpush1.bf16.msra.mxu0 %v6556
    %6575 = vmatprep.subr.bf16.mxu0 0
    %6576 = vmatpush1.bf16.msra.mxu0 %v6557
    %6577 = vmatprep.subr.bf16.mxu0 0
    %6578 = vmatpush1.bf16.msra.mxu0 %v6558
    %6579 = vmatprep.subr.bf16.mxu0 0
    %6580 = vmatpush1.bf16.msra.mxu0 %v6559
    %6581 = vmatprep.subr.bf16.mxu0 0
    %6582 = vmatpush1.bf16.msra.mxu0 %v6560
    %6583 = vmatprep.subr.bf16.mxu0 0
    %6584 = vmatpush1.bf16.msra.mxu0 %v6561
    %6585 = vmatprep.subr.bf16.mxu0 0
    %6586 = vmatpush1.bf16.msra.mxu0 %v6562
    %6587 = vmatprep.subr.bf16.mxu0 0
    %6588 = vmatpush1.bf16.msra.mxu0 0
    %6589 = vmatprep.subr.bf16.mxu0 0
    %6590 = vmatpush1.bf16.msra.mxu0 0
    %6591 = vmatprep.subr.bf16.mxu0 0
    %6592 = vmatpush1.bf16.msra.mxu0 0
    %6593 = vmatprep.subr.bf16.mxu0 0
    %6594 = vmatpush1.bf16.msra.mxu0 0
    %6595 = vmatprep.subr.bf16.mxu0 0
    %6596 = vmatpush1.bf16.msra.mxu0 0
    %6597 = vmatprep.subr.bf16.mxu0 0
    %6598 = vmatpush1.bf16.msra.mxu0 0
    %6599 = vmatprep.subr.bf16.mxu0 0
    %6600 = vmatpush1.bf16.msra.mxu0 0
    %6601 = vmatprep.subr.bf16.mxu0 0
    %6602 = vmatpush1.bf16.msra.mxu0 0
    %6603 = vmatprep.mubr.bf16.mxu0 0
    %6604 = vmatmul.mubr.bf16.gmra.mrb[0].mxu0 %v6521
    %v6605 = vpop.f32.mrb[0].mxu0
    %v6606 = vadd.f32 0.0, %v6605
    %v6607 = vpop.f32.mrb[0].mxu0
    %v6608 = vpop.f32.mrb[0].mxu0
    %v6609 = vadd.f32 0.0, %v6608
    %v6610 = vpop.f32.mrb[0].mxu0
    %6611 = vdwg.mxu0
    %v6612 = vadd.f32 %v6497, %v6606
    %v6613 = vadd.f32 %v6498, %v6609
    %v6614 = vadd.f32 %v6612, %v936
    %v6615 = vadd.f32 %v6613, %v936
    %v6616 = vmax.f32 %v6614, 0.0
    %v6617 = vmax.f32 %v6615, 0.0
    %v6618 = vpack.c.bf16 %v6617, %v6616
    %v6620 = vcombine.high %v6618, %v6618
    %v6622 = vunpack.c.l.s4 1966171168
    %v6623 = vunpack.c.0.s8 %v6622
    %v6624 = vlaneseq
    %v6625 = vshrl.u32 %v6624, 7
    %v6626 = vsub.s32 %v6623, %v6625
    %v6627 = vrot.slane %v6618, %v6626
    %v6629 = vunpack.c.l.s4 1966171168
    %v6630 = vunpack.c.0.s8 %v6629
    %v6631 = vlaneseq
    %v6632 = vshrl.u32 %v6631, 7
    %v6633 = vsub.s32 %v6630, %v6632
    %v6634 = vrot.slane %v6620, %v6633
    %v6635 = vcombine.high %v6627, %v6627
    %v6636 = vcombine.high %v6634, %v6634
    %v6638 = vunpack.c.l.s4 1966171168
    %v6639 = vunpack.c.0.s8 %v6638
    %v6640 = vlaneseq
    %v6641 = vshrl.u32 %v6640, 7
    %v6642 = vsub.s32 %v6639, %v6641
    %v6643 = vrot.slane %v6627, %v6642
    %v6645 = vunpack.c.l.s4 1966171168
    %v6646 = vunpack.c.0.s8 %v6645
    %v6647 = vlaneseq
    %v6648 = vshrl.u32 %v6647, 7
    %v6649 = vsub.s32 %v6646, %v6648
    %v6650 = vrot.slane %v6634, %v6649
    %v6652 = vunpack.c.l.s4 1966171168
    %v6653 = vunpack.c.0.s8 %v6652
    %v6654 = vlaneseq
    %v6655 = vshrl.u32 %v6654, 7
    %v6656 = vsub.s32 %v6653, %v6655
    %v6657 = vrot.slane %v6635, %v6656
    %v6659 = vunpack.c.l.s4 1966171168
    %v6660 = vunpack.c.0.s8 %v6659
    %v6661 = vlaneseq
    %v6662 = vshrl.u32 %v6661, 7
    %v6663 = vsub.s32 %v6660, %v6662
    %v6664 = vrot.slane %v6636, %v6663
    %v6665 = vcombine.high %v6643, %v6643
    %v6666 = vcombine.high %v6650, %v6650
    %v6667 = vcombine.high %v6657, %v6657
    %v6668 = vcombine.high %v6664, %v6664
    %v6669 = vunpack.i.l.s16 %v6643
    %v6670 = vunpack.i.h.s16 %v6643
    %v6671 = vunpack.i.l.s16 %v6657
    %v6672 = vunpack.i.h.s16 %v6657
    %v6673 = vunpack.i.l.s16 %v6665
    %v6674 = vunpack.i.h.s16 %v6665
    %v6675 = vunpack.i.l.s16 %v6667
    %v6676 = vunpack.i.h.s16 %v6667
    %v6677 = vunpack.i.l.s16 %v6650
    %v6678 = vunpack.i.h.s16 %v6650
    %v6679 = vunpack.i.l.s16 %v6664
    %v6680 = vunpack.i.h.s16 %v6664
    %v6681 = vunpack.i.l.s16 %v6666
    %v6682 = vunpack.i.h.s16 %v6666
    %v6683 = vunpack.i.l.s16 %v6668
    %v6684 = vunpack.i.h.s16 %v6668
    %v6685 = vpack.i.b16 %v6669, %v6669
    %v6686 = vpack.i.b16 %v6670, %v6670
    %v6687 = vpack.i.b16 %v6671, %v6671
    %v6688 = vpack.i.b16 %v6672, %v6672
    %v6689 = vpack.i.b16 %v6673, %v6673
    %v6690 = vpack.i.b16 %v6674, %v6674
    %v6691 = vpack.i.b16 %v6675, %v6675
    %v6692 = vpack.i.b16 %v6676, %v6676
    %v6693 = vpack.i.b16 %v6677, %v6677
    %v6694 = vpack.i.b16 %v6678, %v6678
    %v6695 = vpack.i.b16 %v6679, %v6679
    %v6696 = vpack.i.b16 %v6680, %v6680
    %v6697 = vpack.i.b16 %v6681, %v6681
    %v6698 = vpack.i.b16 %v6682, %v6682
    %v6699 = vpack.i.b16 %v6683, %v6683
    %v6700 = vpack.i.b16 %v6684, %v6684
    %v6702 = vunpack.c.l.s4 286326784
    %v6703 = vunpack.c.0.s8 %v6702
    %v6704 = vlaneseq
    %v6705 = vshrl.u32 %v6704, 7
    %v6706 = vsub.s32 %v6703, %v6705
    %v6707 = vrot.slane %v6685, %v6706
    %v6709 = vunpack.c.l.s4 286326784
    %v6710 = vunpack.c.0.s8 %v6709
    %v6711 = vlaneseq
    %v6712 = vshrl.u32 %v6711, 7
    %v6713 = vsub.s32 %v6710, %v6712
    %v6714 = vrot.slane %v6686, %v6713
    %v6716 = vunpack.c.l.s4 286326784
    %v6717 = vunpack.c.0.s8 %v6716
    %v6718 = vlaneseq
    %v6719 = vshrl.u32 %v6718, 7
    %v6720 = vsub.s32 %v6717, %v6719
    %v6721 = vrot.slane %v6687, %v6720
    %v6723 = vunpack.c.l.s4 286326784
    %v6724 = vunpack.c.0.s8 %v6723
    %v6725 = vlaneseq
    %v6726 = vshrl.u32 %v6725, 7
    %v6727 = vsub.s32 %v6724, %v6726
    %v6728 = vrot.slane %v6688, %v6727
    %v6730 = vunpack.c.l.s4 286326784
    %v6731 = vunpack.c.0.s8 %v6730
    %v6732 = vlaneseq
    %v6733 = vshrl.u32 %v6732, 7
    %v6734 = vsub.s32 %v6731, %v6733
    %v6735 = vrot.slane %v6689, %v6734
    %v6737 = vunpack.c.l.s4 286326784
    %v6738 = vunpack.c.0.s8 %v6737
    %v6739 = vlaneseq
    %v6740 = vshrl.u32 %v6739, 7
    %v6741 = vsub.s32 %v6738, %v6740
    %v6742 = vrot.slane %v6690, %v6741
    %v6744 = vunpack.c.l.s4 286326784
    %v6745 = vunpack.c.0.s8 %v6744
    %v6746 = vlaneseq
    %v6747 = vshrl.u32 %v6746, 7
    %v6748 = vsub.s32 %v6745, %v6747
    %v6749 = vrot.slane %v6691, %v6748
    %v6751 = vunpack.c.l.s4 286326784
    %v6752 = vunpack.c.0.s8 %v6751
    %v6753 = vlaneseq
    %v6754 = vshrl.u32 %v6753, 7
    %v6755 = vsub.s32 %v6752, %v6754
    %v6756 = vrot.slane %v6692, %v6755
    %v6758 = vunpack.c.l.s4 286326784
    %v6759 = vunpack.c.0.s8 %v6758
    %v6760 = vlaneseq
    %v6761 = vshrl.u32 %v6760, 7
    %v6762 = vsub.s32 %v6759, %v6761
    %v6763 = vrot.slane %v6693, %v6762
    %v6765 = vunpack.c.l.s4 286326784
    %v6766 = vunpack.c.0.s8 %v6765
    %v6767 = vlaneseq
    %v6768 = vshrl.u32 %v6767, 7
    %v6769 = vsub.s32 %v6766, %v6768
    %v6770 = vrot.slane %v6694, %v6769
    %v6772 = vunpack.c.l.s4 286326784
    %v6773 = vunpack.c.0.s8 %v6772
    %v6774 = vlaneseq
    %v6775 = vshrl.u32 %v6774, 7
    %v6776 = vsub.s32 %v6773, %v6775
    %v6777 = vrot.slane %v6695, %v6776
    %v6779 = vunpack.c.l.s4 286326784
    %v6780 = vunpack.c.0.s8 %v6779
    %v6781 = vlaneseq
    %v6782 = vshrl.u32 %v6781, 7
    %v6783 = vsub.s32 %v6780, %v6782
    %v6784 = vrot.slane %v6696, %v6783
    %v6786 = vunpack.c.l.s4 286326784
    %v6787 = vunpack.c.0.s8 %v6786
    %v6788 = vlaneseq
    %v6789 = vshrl.u32 %v6788, 7
    %v6790 = vsub.s32 %v6787, %v6789
    %v6791 = vrot.slane %v6697, %v6790
    %v6793 = vunpack.c.l.s4 286326784
    %v6794 = vunpack.c.0.s8 %v6793
    %v6795 = vlaneseq
    %v6796 = vshrl.u32 %v6795, 7
    %v6797 = vsub.s32 %v6794, %v6796
    %v6798 = vrot.slane %v6698, %v6797
    %v6800 = vunpack.c.l.s4 286326784
    %v6801 = vunpack.c.0.s8 %v6800
    %v6802 = vlaneseq
    %v6803 = vshrl.u32 %v6802, 7
    %v6804 = vsub.s32 %v6801, %v6803
    %v6805 = vrot.slane %v6699, %v6804
    %v6807 = vunpack.c.l.s4 286326784
    %v6808 = vunpack.c.0.s8 %v6807
    %v6809 = vlaneseq
    %v6810 = vshrl.u32 %v6809, 7
    %v6811 = vsub.s32 %v6808, %v6810
    %v6812 = vrot.slane %v6700, %v6811
    %vm6829 = vsmask.f32 7946
    %vm6830 = vmand %vm5693, %vm6829
    %v6831 = vld [vmem:[#allocation8] sm:$0x4]
    %v6832 = vsel %vm6830, %v6707, %v6831
    %6833 = vst [vmem:[#allocation8] sm:$0x4] %v6832
    %v6834 = vld [vmem:[#allocation8 + $0x4] sm:$0x4]
    %v6835 = vsel %vm6830, %v6714, %v6834
    %6836 = vst [vmem:[#allocation8 + $0x4] sm:$0x4] %v6835
    %v6837 = vld [vmem:[#allocation8 + $0x8] sm:$0x4]
    %v6838 = vsel %vm6830, %v6721, %v6837
    %6839 = vst [vmem:[#allocation8 + $0x8] sm:$0x4] %v6838
    %v6840 = vld [vmem:[#allocation8 + $0xc] sm:$0x4]
    %v6841 = vsel %vm6830, %v6728, %v6840
    %6842 = vst [vmem:[#allocation8 + $0xc] sm:$0x4] %v6841
    %v6843 = vld [vmem:[#allocation8 + $0x10] sm:$0x4]
    %v6844 = vsel %vm6830, %v6735, %v6843
    %6845 = vst [vmem:[#allocation8 + $0x10] sm:$0x4] %v6844
    %v6846 = vld [vmem:[#allocation8 + $0x14] sm:$0x4]
    %v6847 = vsel %vm6830, %v6742, %v6846
    %6848 = vst [vmem:[#allocation8 + $0x14] sm:$0x4] %v6847
    %v6849 = vld [vmem:[#allocation8 + $0x18] sm:$0x4]
    %v6850 = vsel %vm6830, %v6749, %v6849
    %6851 = vst [vmem:[#allocation8 + $0x18] sm:$0x4] %v6850
    %v6852 = vld [vmem:[#allocation8 + $0x1c] sm:$0x4]
    %v6853 = vsel %vm6830, %v6756, %v6852
    %6854 = vst [vmem:[#allocation8 + $0x1c] sm:$0x4] %v6853
    %v6855 = vld [vmem:[#allocation8 + $0x20] sm:$0x4]
    %v6856 = vsel %vm6830, %v6763, %v6855
    %6857 = vst [vmem:[#allocation8 + $0x20] sm:$0x4] %v6856
    %v6858 = vld [vmem:[#allocation8 + $0x24] sm:$0x4]
    %v6859 = vsel %vm6830, %v6770, %v6858
    %6860 = vst [vmem:[#allocation8 + $0x24] sm:$0x4] %v6859
    %v6861 = vld [vmem:[#allocation8 + $0x28] sm:$0x4]
    %v6862 = vsel %vm6830, %v6777, %v6861
    %6863 = vst [vmem:[#allocation8 + $0x28] sm:$0x4] %v6862
    %v6864 = vld [vmem:[#allocation8 + $0x2c] sm:$0x4]
    %v6865 = vsel %vm6830, %v6784, %v6864
    %6866 = vst [vmem:[#allocation8 + $0x2c] sm:$0x4] %v6865
    %v6867 = vld [vmem:[#allocation8 + $0x30] sm:$0x4]
    %v6868 = vsel %vm6830, %v6791, %v6867
    %6869 = vst [vmem:[#allocation8 + $0x30] sm:$0x4] %v6868
    %v6870 = vld [vmem:[#allocation8 + $0x34] sm:$0x4]
    %v6871 = vsel %vm6830, %v6798, %v6870
    %6872 = vst [vmem:[#allocation8 + $0x34] sm:$0x4] %v6871
    %v6873 = vld [vmem:[#allocation8 + $0x38] sm:$0x4]
    %v6874 = vsel %vm6830, %v6805, %v6873
    %6875 = vst [vmem:[#allocation8 + $0x38] sm:$0x4] %v6874
    %v6876 = vld [vmem:[#allocation8 + $0x3c] sm:$0x4]
    %v6877 = vsel %vm6830, %v6812, %v6876
    %6878 = vst [vmem:[#allocation8 + $0x3c] sm:$0x4] %v6877
    %s6879 = scalar_lea.vmem [#allocation3], 48
    %v6880 = vld [vmem:[%s6879] sm:$0xf]
    %v6881 = vld [vmem:[%s6879 + $0x4] sm:$0xf]
    %v6883 = vshrl.u32 %v6880, 16
    %v6885 = vrot.slane %v6883, 6
    %v6886 = vshll.u32 %v6880, 16
    %v6888 = vrot.slane %v6886, 7
    %v6889 = vor.u32 %v6885, %v6888
    %v6890 = vrot.slane %v6889, 4
    %v6892 = vshrl.u32 %v6881, 16
    %v6894 = vrot.slane %v6892, 6
    %v6895 = vshll.u32 %v6881, 16
    %v6897 = vrot.slane %v6895, 7
    %v6898 = vor.u32 %v6894, %v6897
    %v6899 = vsel %vm52, %v6890, %v6898
    %v6900 = vrot.slane %v6898, 4
    %v6904 = vld [vmem:[#allocation2] sm:$0xe]
    %v6905 = vsel %vm77, %v6889, %v6904
    %6906 = vst [vmem:[#allocation2] sm:$0xe] %v6905
    %6907 = vst.msk [vmem:[#allocation2 + $0x4] sm:$0xf] %vm81, %v6899
    %v6908 = vld [vmem:[#allocation2 + $0x8] sm:$0x3]
    %v6909 = vsel %vm84, %v6900, %v6908
    %6910 = vst [vmem:[#allocation2 + $0x8] sm:$0x3] %v6909
    %v6911 = vld [vmem:[#allocation2] sm:$0xf]
    %v6912 = vld [vmem:[#allocation2 + $0x4] sm:$0xf]
    %v6913 = vld [vmem:[#allocation6] sm:$0xf]
    %v6914 = vld [vmem:[#allocation6 + $0x4] sm:$0xf]
    %v6915 = vld [vmem:[#allocation6 + $0x8] sm:$0xf]
    %v6916 = vld [vmem:[#allocation6 + $0xc] sm:$0xf]
    %v6917 = vld [vmem:[#allocation6 + $0x10] sm:$0xf]
    %v6918 = vld [vmem:[#allocation6 + $0x14] sm:$0xf]
    %v6919 = vld [vmem:[#allocation6 + $0x18] sm:$0xf]
    %v6920 = vld [vmem:[#allocation6 + $0x1c] sm:$0xf]
    %v6921 = vld [vmem:[#allocation6 + $0x20] sm:$0xf]
    %v6922 = vld [vmem:[#allocation6 + $0x24] sm:$0xf]
    %v6923 = vld [vmem:[#allocation6 + $0x28] sm:$0xf]
    %v6924 = vld [vmem:[#allocation6 + $0x2c] sm:$0xf]
    %v6925 = vld [vmem:[#allocation6 + $0x30] sm:$0xf]
    %v6926 = vld [vmem:[#allocation6 + $0x34] sm:$0xf]
    %v6927 = vld [vmem:[#allocation6 + $0x38] sm:$0xf]
    %v6928 = vld [vmem:[#allocation6 + $0x3c] sm:$0xf]
    %v6929 = vld [vmem:[#allocation2 + $0x8] sm:$0x1]
    %v6930 = vld [vmem:[#allocation6 + $0x40] sm:$0xf]
    %v6931 = vld [vmem:[#allocation6 + $0x44] sm:$0xf]
    %v6932 = vld [vmem:[#allocation6 + $0x48] sm:$0xf]
    %v6933 = vld [vmem:[#allocation6 + $0x4c] sm:$0xf]
    %v6934 = vld [vmem:[#allocation6 + $0x50] sm:$0xf]
    %v6935 = vld [vmem:[#allocation6 + $0x54] sm:$0xf]
    %v6936 = vld [vmem:[#allocation6 + $0x58] sm:$0xf]
    %v6937 = vld [vmem:[#allocation6 + $0x5c] sm:$0xf]
    %v6938 = vld [vmem:[#allocation6 + $0x60] sm:$0xf]
    %v6939 = vld [vmem:[#allocation6 + $0x64] sm:$0xf]
    %v6940 = vld [vmem:[#allocation6 + $0x68] sm:$0xf]
    %v6941 = vld [vmem:[#allocation6 + $0x6c] sm:$0xf]
    %v6942 = vld [vmem:[#allocation6 + $0x70] sm:$0xf]
    %v6943 = vld [vmem:[#allocation6 + $0x74] sm:$0xf]
    %v6944 = vld [vmem:[#allocation6 + $0x78] sm:$0xf]
    %v6945 = vld [vmem:[#allocation6 + $0x7c] sm:$0xf]
    %v6949 = vunpack.c.l.b16 %v6911
    %v6950 = vunpack.c.l.b16 %v6912
    %v6951 = vunpack.c.l.b16 %v6929
    %v6952 = vpack.c.b16 %v6950, %v6949
    %v6953 = vpack.c.b16 %v6951, %v6951
    %v6955 = vshrl.u32 %v6952, 16
    %v6957 = vshll.u32 %v6952, 16
    %v6959 = vrot.slane %v6957, 1
    %v6960 = vor.u32 %v6955, %v6959
    %v6962 = vshll.u32 %v6953, 16
    %v6964 = vrot.slane %v6962, 1
    %v6965 = vsel %vm131, %v6960, %v6964
    %v6983 = vunpack.c.l.b16 %v6930
    %v6984 = vunpack.c.l.b16 %v6931
    %v6985 = vunpack.c.l.b16 %v6932
    %v6986 = vunpack.c.l.b16 %v6933
    %v6987 = vunpack.c.l.b16 %v6934
    %v6988 = vunpack.c.l.b16 %v6935
    %v6989 = vunpack.c.l.b16 %v6936
    %v6990 = vunpack.c.l.b16 %v6937
    %v6991 = vunpack.c.l.b16 %v6938
    %v6992 = vunpack.c.l.b16 %v6939
    %v6993 = vunpack.c.l.b16 %v6940
    %v6994 = vunpack.c.l.b16 %v6941
    %v6995 = vunpack.c.l.b16 %v6942
    %v6996 = vunpack.c.l.b16 %v6943
    %v6997 = vunpack.c.l.b16 %v6944
    %v6998 = vunpack.c.l.b16 %v6945
    %v6999 = vpack.c.b16 %v6984, %v6983
    %v7000 = vpack.c.b16 %v6986, %v6985
    %v7001 = vpack.c.b16 %v6988, %v6987
    %v7002 = vpack.c.b16 %v6990, %v6989
    %v7003 = vpack.c.b16 %v6992, %v6991
    %v7004 = vpack.c.b16 %v6994, %v6993
    %v7005 = vpack.c.b16 %v6996, %v6995
    %v7006 = vpack.c.b16 %v6998, %v6997
    %7015 = vmatprep.subr.bf16.mxu0 0
    %7016 = vmatpush1.bf16.msra.mxu0 %v6999
    %7017 = vmatprep.subr.bf16.mxu0 0
    %7018 = vmatpush1.bf16.msra.mxu0 %v7000
    %7019 = vmatprep.subr.bf16.mxu0 0
    %7020 = vmatpush1.bf16.msra.mxu0 %v7001
    %7021 = vmatprep.subr.bf16.mxu0 0
    %7022 = vmatpush1.bf16.msra.mxu0 %v7002
    %7023 = vmatprep.subr.bf16.mxu0 0
    %7024 = vmatpush1.bf16.msra.mxu0 %v7003
    %7025 = vmatprep.subr.bf16.mxu0 0
    %7026 = vmatpush1.bf16.msra.mxu0 %v7004
    %7027 = vmatprep.subr.bf16.mxu0 0
    %7028 = vmatpush1.bf16.msra.mxu0 %v7005
    %7029 = vmatprep.subr.bf16.mxu0 0
    %7030 = vmatpush1.bf16.msra.mxu0 %v7006
    %7031 = vmatprep.subr.bf16.mxu0 0
    %7032 = vmatpush1.bf16.msra.mxu0 0
    %7033 = vmatprep.subr.bf16.mxu0 0
    %7034 = vmatpush1.bf16.msra.mxu0 0
    %7035 = vmatprep.subr.bf16.mxu0 0
    %7036 = vmatpush1.bf16.msra.mxu0 0
    %7037 = vmatprep.subr.bf16.mxu0 0
    %7038 = vmatpush1.bf16.msra.mxu0 0
    %7039 = vmatprep.subr.bf16.mxu0 0
    %7040 = vmatpush1.bf16.msra.mxu0 0
    %7041 = vmatprep.subr.bf16.mxu0 0
    %7042 = vmatpush1.bf16.msra.mxu0 0
    %7043 = vmatprep.subr.bf16.mxu0 0
    %7044 = vmatpush1.bf16.msra.mxu0 0
    %7045 = vmatprep.subr.bf16.mxu0 0
    %7046 = vmatpush1.bf16.msra.mxu0 0
    %7047 = vmatprep.mubr.bf16.mxu0 0
    %7048 = vmatmul.mubr.bf16.gmra.mrb[0].mxu0 %v6965
    %v7049 = vpop.f32.mrb[0].mxu0
    %v7050 = vadd.f32 0.0, %v7049
    %v7051 = vpop.f32.mrb[0].mxu0
    %v7052 = vpop.f32.mrb[0].mxu0
    %v7053 = vadd.f32 0.0, %v7052
    %v7054 = vpop.f32.mrb[0].mxu0
    %7055 = vdwg.mxu0
    %v7073 = vunpack.c.l.b16 %v6913
    %v7074 = vunpack.c.l.b16 %v6914
    %v7075 = vunpack.c.l.b16 %v6915
    %v7076 = vunpack.c.l.b16 %v6916
    %v7077 = vunpack.c.l.b16 %v6917
    %v7078 = vunpack.c.l.b16 %v6918
    %v7079 = vunpack.c.l.b16 %v6919
    %v7080 = vunpack.c.l.b16 %v6920
    %v7081 = vunpack.c.l.b16 %v6921
    %v7082 = vunpack.c.l.b16 %v6922
    %v7083 = vunpack.c.l.b16 %v6923
    %v7084 = vunpack.c.l.b16 %v6924
    %v7085 = vunpack.c.l.b16 %v6925
    %v7086 = vunpack.c.l.b16 %v6926
    %v7087 = vunpack.c.l.b16 %v6927
    %v7088 = vunpack.c.l.b16 %v6928
    %v7089 = vpack.c.b16 %v7074, %v7073
    %v7090 = vpack.c.b16 %v7076, %v7075
    %v7091 = vpack.c.b16 %v7078, %v7077
    %v7092 = vpack.c.b16 %v7080, %v7079
    %v7093 = vpack.c.b16 %v7082, %v7081
    %v7094 = vpack.c.b16 %v7084, %v7083
    %v7095 = vpack.c.b16 %v7086, %v7085
    %v7096 = vpack.c.b16 %v7088, %v7087
    %7105 = vmatprep.subr.bf16.mxu0 0
    %7106 = vmatpush1.bf16.msra.mxu0 %v7089
    %7107 = vmatprep.subr.bf16.mxu0 0
    %7108 = vmatpush1.bf16.msra.mxu0 %v7090
    %7109 = vmatprep.subr.bf16.mxu0 0
    %7110 = vmatpush1.bf16.msra.mxu0 %v7091
    %7111 = vmatprep.subr.bf16.mxu0 0
    %7112 = vmatpush1.bf16.msra.mxu0 %v7092
    %7113 = vmatprep.subr.bf16.mxu0 0
    %7114 = vmatpush1.bf16.msra.mxu0 %v7093
    %7115 = vmatprep.subr.bf16.mxu0 0
    %7116 = vmatpush1.bf16.msra.mxu0 %v7094
    %7117 = vmatprep.subr.bf16.mxu0 0
    %7118 = vmatpush1.bf16.msra.mxu0 %v7095
    %7119 = vmatprep.subr.bf16.mxu0 0
    %7120 = vmatpush1.bf16.msra.mxu0 %v7096
    %7121 = vmatprep.subr.bf16.mxu0 0
    %7122 = vmatpush1.bf16.msra.mxu0 0
    %7123 = vmatprep.subr.bf16.mxu0 0
    %7124 = vmatpush1.bf16.msra.mxu0 0
    %7125 = vmatprep.subr.bf16.mxu0 0
    %7126 = vmatpush1.bf16.msra.mxu0 0
    %7127 = vmatprep.subr.bf16.mxu0 0
    %7128 = vmatpush1.bf16.msra.mxu0 0
    %7129 = vmatprep.subr.bf16.mxu0 0
    %7130 = vmatpush1.bf16.msra.mxu0 0
    %7131 = vmatprep.subr.bf16.mxu0 0
    %7132 = vmatpush1.bf16.msra.mxu0 0
    %7133 = vmatprep.subr.bf16.mxu0 0
    %7134 = vmatpush1.bf16.msra.mxu0 0
    %7135 = vmatprep.subr.bf16.mxu0 0
    %7136 = vmatpush1.bf16.msra.mxu0 0
    %7137 = vmatprep.mubr.bf16.mxu0 0
    %7138 = vmatmul.mubr.bf16.gmra.mrb[0].mxu0 %v6952
    %v7139 = vpop.f32.mrb[0].mxu0
    %v7140 = vadd.f32 %v7050, %v7139
    %v7141 = vpop.f32.mrb[0].mxu0
    %v7142 = vpop.f32.mrb[0].mxu0
    %v7143 = vadd.f32 %v7053, %v7142
    %v7144 = vpop.f32.mrb[0].mxu0
    %7145 = vdwg.mxu0
    %v7146 = vld [vmem:[#allocation2] sm:$0xe]
    %v7147 = vld [vmem:[#allocation6 + $0x80] sm:$0xf]
    %v7148 = vld [vmem:[#allocation6 + $0x84] sm:$0xf]
    %v7149 = vld [vmem:[#allocation6 + $0x88] sm:$0xf]
    %v7150 = vld [vmem:[#allocation6 + $0x8c] sm:$0xf]
    %v7151 = vld [vmem:[#allocation6 + $0x90] sm:$0xf]
    %v7152 = vld [vmem:[#allocation6 + $0x94] sm:$0xf]
    %v7153 = vld [vmem:[#allocation6 + $0x98] sm:$0xf]
    %v7154 = vld [vmem:[#allocation6 + $0x9c] sm:$0xf]
    %v7155 = vld [vmem:[#allocation6 + $0xa0] sm:$0xf]
    %v7156 = vld [vmem:[#allocation6 + $0xa4] sm:$0xf]
    %v7157 = vld [vmem:[#allocation6 + $0xa8] sm:$0xf]
    %v7158 = vld [vmem:[#allocation6 + $0xac] sm:$0xf]
    %v7159 = vld [vmem:[#allocation6 + $0xb0] sm:$0xf]
    %v7160 = vld [vmem:[#allocation6 + $0xb4] sm:$0xf]
    %v7161 = vld [vmem:[#allocation6 + $0xb8] sm:$0xf]
    %v7162 = vld [vmem:[#allocation6 + $0xbc] sm:$0xf]
    %v7164 = vunpack.c.l.b16 %v7146
    %v7165 = vpack.c.b16 %v6950, %v7164
    %v7166 = vrot.slane %v7165, 1
    %v7167 = vrot.slane %v6953, 1
    %v7168 = vsel %vm344, %v7166, %v7167
    %v7186 = vunpack.c.l.b16 %v7147
    %v7187 = vunpack.c.l.b16 %v7148
    %v7188 = vunpack.c.l.b16 %v7149
    %v7189 = vunpack.c.l.b16 %v7150
    %v7190 = vunpack.c.l.b16 %v7151
    %v7191 = vunpack.c.l.b16 %v7152
    %v7192 = vunpack.c.l.b16 %v7153
    %v7193 = vunpack.c.l.b16 %v7154
    %v7194 = vunpack.c.l.b16 %v7155
    %v7195 = vunpack.c.l.b16 %v7156
    %v7196 = vunpack.c.l.b16 %v7157
    %v7197 = vunpack.c.l.b16 %v7158
    %v7198 = vunpack.c.l.b16 %v7159
    %v7199 = vunpack.c.l.b16 %v7160
    %v7200 = vunpack.c.l.b16 %v7161
    %v7201 = vunpack.c.l.b16 %v7162
    %v7202 = vpack.c.b16 %v7187, %v7186
    %v7203 = vpack.c.b16 %v7189, %v7188
    %v7204 = vpack.c.b16 %v7191, %v7190
    %v7205 = vpack.c.b16 %v7193, %v7192
    %v7206 = vpack.c.b16 %v7195, %v7194
    %v7207 = vpack.c.b16 %v7197, %v7196
    %v7208 = vpack.c.b16 %v7199, %v7198
    %v7209 = vpack.c.b16 %v7201, %v7200
    %7218 = vmatprep.subr.bf16.mxu0 0
    %7219 = vmatpush1.bf16.msra.mxu0 %v7202
    %7220 = vmatprep.subr.bf16.mxu0 0
    %7221 = vmatpush1.bf16.msra.mxu0 %v7203
    %7222 = vmatprep.subr.bf16.mxu0 0
    %7223 = vmatpush1.bf16.msra.mxu0 %v7204
    %7224 = vmatprep.subr.bf16.mxu0 0
    %7225 = vmatpush1.bf16.msra.mxu0 %v7205
    %7226 = vmatprep.subr.bf16.mxu0 0
    %7227 = vmatpush1.bf16.msra.mxu0 %v7206
    %7228 = vmatprep.subr.bf16.mxu0 0
    %7229 = vmatpush1.bf16.msra.mxu0 %v7207
    %7230 = vmatprep.subr.bf16.mxu0 0
    %7231 = vmatpush1.bf16.msra.mxu0 %v7208
    %7232 = vmatprep.subr.bf16.mxu0 0
    %7233 = vmatpush1.bf16.msra.mxu0 %v7209
    %7234 = vmatprep.subr.bf16.mxu0 0
    %7235 = vmatpush1.bf16.msra.mxu0 0
    %7236 = vmatprep.subr.bf16.mxu0 0
    %7237 = vmatpush1.bf16.msra.mxu0 0
    %7238 = vmatprep.subr.bf16.mxu0 0
    %7239 = vmatpush1.bf16.msra.mxu0 0
    %7240 = vmatprep.subr.bf16.mxu0 0
    %7241 = vmatpush1.bf16.msra.mxu0 0
    %7242 = vmatprep.subr.bf16.mxu0 0
    %7243 = vmatpush1.bf16.msra.mxu0 0
    %7244 = vmatprep.subr.bf16.mxu0 0
    %7245 = vmatpush1.bf16.msra.mxu0 0
    %7246 = vmatprep.subr.bf16.mxu0 0
    %7247 = vmatpush1.bf16.msra.mxu0 0
    %7248 = vmatprep.subr.bf16.mxu0 0
    %7249 = vmatpush1.bf16.msra.mxu0 0
    %7250 = vmatprep.mubr.bf16.mxu0 0
    %7251 = vmatmul.mubr.bf16.gmra.mrb[0].mxu0 %v7168
    %v7252 = vpop.f32.mrb[0].mxu0
    %v7253 = vadd.f32 0.0, %v7252
    %v7254 = vpop.f32.mrb[0].mxu0
    %v7255 = vpop.f32.mrb[0].mxu0
    %v7256 = vadd.f32 0.0, %v7255
    %v7257 = vpop.f32.mrb[0].mxu0
    %7258 = vdwg.mxu0
    %v7259 = vadd.f32 %v7140, %v7253
    %v7260 = vadd.f32 %v7143, %v7256
    %v7261 = vld [vmem:[#allocation2 + $0x8] sm:$0x3]
    %v7262 = vld [vmem:[#allocation6 + $0xc0] sm:$0xf]
    %v7263 = vld [vmem:[#allocation6 + $0xc4] sm:$0xf]
    %v7264 = vld [vmem:[#allocation6 + $0xc8] sm:$0xf]
    %v7265 = vld [vmem:[#allocation6 + $0xcc] sm:$0xf]
    %v7266 = vld [vmem:[#allocation6 + $0xd0] sm:$0xf]
    %v7267 = vld [vmem:[#allocation6 + $0xd4] sm:$0xf]
    %v7268 = vld [vmem:[#allocation6 + $0xd8] sm:$0xf]
    %v7269 = vld [vmem:[#allocation6 + $0xdc] sm:$0xf]
    %v7270 = vld [vmem:[#allocation6 + $0xe0] sm:$0xf]
    %v7271 = vld [vmem:[#allocation6 + $0xe4] sm:$0xf]
    %v7272 = vld [vmem:[#allocation6 + $0xe8] sm:$0xf]
    %v7273 = vld [vmem:[#allocation6 + $0xec] sm:$0xf]
    %v7274 = vld [vmem:[#allocation6 + $0xf0] sm:$0xf]
    %v7275 = vld [vmem:[#allocation6 + $0xf4] sm:$0xf]
    %v7276 = vld [vmem:[#allocation6 + $0xf8] sm:$0xf]
    %v7277 = vld [vmem:[#allocation6 + $0xfc] sm:$0xf]
    %v7279 = vunpack.c.l.b16 %v7261
    %v7280 = vpack.c.b16 %v7279, %v7279
    %v7282 = vshrl.u32 %v7165, 16
    %v7284 = vrot.slane %v7282, 1
    %v7285 = vshll.u32 %v7165, 16
    %v7287 = vrot.slane %v7285, 2
    %v7288 = vor.u32 %v7284, %v7287
    %v7290 = vshrl.u32 %v7280, 16
    %v7292 = vrot.slane %v7290, 1
    %v7293 = vshll.u32 %v7280, 16
    %v7295 = vrot.slane %v7293, 2
    %v7296 = vor.u32 %v7292, %v7295
    %v7297 = vsel %vm460, %v7288, %v7296
    %v7315 = vunpack.c.l.b16 %v7262
    %v7316 = vunpack.c.l.b16 %v7263
    %v7317 = vunpack.c.l.b16 %v7264
    %v7318 = vunpack.c.l.b16 %v7265
    %v7319 = vunpack.c.l.b16 %v7266
    %v7320 = vunpack.c.l.b16 %v7267
    %v7321 = vunpack.c.l.b16 %v7268
    %v7322 = vunpack.c.l.b16 %v7269
    %v7323 = vunpack.c.l.b16 %v7270
    %v7324 = vunpack.c.l.b16 %v7271
    %v7325 = vunpack.c.l.b16 %v7272
    %v7326 = vunpack.c.l.b16 %v7273
    %v7327 = vunpack.c.l.b16 %v7274
    %v7328 = vunpack.c.l.b16 %v7275
    %v7329 = vunpack.c.l.b16 %v7276
    %v7330 = vunpack.c.l.b16 %v7277
    %v7331 = vpack.c.b16 %v7316, %v7315
    %v7332 = vpack.c.b16 %v7318, %v7317
    %v7333 = vpack.c.b16 %v7320, %v7319
    %v7334 = vpack.c.b16 %v7322, %v7321
    %v7335 = vpack.c.b16 %v7324, %v7323
    %v7336 = vpack.c.b16 %v7326, %v7325
    %v7337 = vpack.c.b16 %v7328, %v7327
    %v7338 = vpack.c.b16 %v7330, %v7329
    %7347 = vmatprep.subr.bf16.mxu0 0
    %7348 = vmatpush1.bf16.msra.mxu0 %v7331
    %7349 = vmatprep.subr.bf16.mxu0 0
    %7350 = vmatpush1.bf16.msra.mxu0 %v7332
    %7351 = vmatprep.subr.bf16.mxu0 0
    %7352 = vmatpush1.bf16.msra.mxu0 %v7333
    %7353 = vmatprep.subr.bf16.mxu0 0
    %7354 = vmatpush1.bf16.msra.mxu0 %v7334
    %7355 = vmatprep.subr.bf16.mxu0 0
    %7356 = vmatpush1.bf16.msra.mxu0 %v7335
    %7357 = vmatprep.subr.bf16.mxu0 0
    %7358 = vmatpush1.bf16.msra.mxu0 %v7336
    %7359 = vmatprep.subr.bf16.mxu0 0
    %7360 = vmatpush1.bf16.msra.mxu0 %v7337
    %7361 = vmatprep.subr.bf16.mxu0 0
    %7362 = vmatpush1.bf16.msra.mxu0 %v7338
    %7363 = vmatprep.subr.bf16.mxu0 0
    %7364 = vmatpush1.bf16.msra.mxu0 0
    %7365 = vmatprep.subr.bf16.mxu0 0
    %7366 = vmatpush1.bf16.msra.mxu0 0
    %7367 = vmatprep.subr.bf16.mxu0 0
    %7368 = vmatpush1.bf16.msra.mxu0 0
    %7369 = vmatprep.subr.bf16.mxu0 0
    %7370 = vmatpush1.bf16.msra.mxu0 0
    %7371 = vmatprep.subr.bf16.mxu0 0
    %7372 = vmatpush1.bf16.msra.mxu0 0
    %7373 = vmatprep.subr.bf16.mxu0 0
    %7374 = vmatpush1.bf16.msra.mxu0 0
    %7375 = vmatprep.subr.bf16.mxu0 0
    %7376 = vmatpush1.bf16.msra.mxu0 0
    %7377 = vmatprep.subr.bf16.mxu0 0
    %7378 = vmatpush1.bf16.msra.mxu0 0
    %7379 = vmatprep.mubr.bf16.mxu0 0
    %7380 = vmatmul.mubr.bf16.gmra.mrb[0].mxu0 %v7297
    %v7381 = vpop.f32.mrb[0].mxu0
    %v7382 = vadd.f32 0.0, %v7381
    %v7383 = vpop.f32.mrb[0].mxu0
    %v7384 = vpop.f32.mrb[0].mxu0
    %v7385 = vadd.f32 0.0, %v7384
    %v7386 = vpop.f32.mrb[0].mxu0
    %7387 = vdwg.mxu0
    %v7388 = vadd.f32 %v7259, %v7382
    %v7389 = vadd.f32 %v7260, %v7385
    %v7390 = vld [vmem:[#allocation2] sm:$0xc]
    %v7391 = vld [vmem:[#allocation6 + $0x100] sm:$0xf]
    %v7392 = vld [vmem:[#allocation6 + $0x104] sm:$0xf]
    %v7393 = vld [vmem:[#allocation6 + $0x108] sm:$0xf]
    %v7394 = vld [vmem:[#allocation6 + $0x10c] sm:$0xf]
    %v7395 = vld [vmem:[#allocation6 + $0x110] sm:$0xf]
    %v7396 = vld [vmem:[#allocation6 + $0x114] sm:$0xf]
    %v7397 = vld [vmem:[#allocation6 + $0x118] sm:$0xf]
    %v7398 = vld [vmem:[#allocation6 + $0x11c] sm:$0xf]
    %v7399 = vld [vmem:[#allocation6 + $0x120] sm:$0xf]
    %v7400 = vld [vmem:[#allocation6 + $0x124] sm:$0xf]
    %v7401 = vld [vmem:[#allocation6 + $0x128] sm:$0xf]
    %v7402 = vld [vmem:[#allocation6 + $0x12c] sm:$0xf]
    %v7403 = vld [vmem:[#allocation6 + $0x130] sm:$0xf]
    %v7404 = vld [vmem:[#allocation6 + $0x134] sm:$0xf]
    %v7405 = vld [vmem:[#allocation6 + $0x138] sm:$0xf]
    %v7406 = vld [vmem:[#allocation6 + $0x13c] sm:$0xf]
    %v7408 = vunpack.c.l.b16 %v7390
    %v7409 = vpack.c.b16 %v6950, %v7408
    %v7410 = vrot.slane %v7409, 2
    %v7411 = vrot.slane %v7280, 2
    %v7412 = vsel %vm590, %v7410, %v7411
    %v7430 = vunpack.c.l.b16 %v7391
    %v7431 = vunpack.c.l.b16 %v7392
    %v7432 = vunpack.c.l.b16 %v7393
    %v7433 = vunpack.c.l.b16 %v7394
    %v7434 = vunpack.c.l.b16 %v7395
    %v7435 = vunpack.c.l.b16 %v7396
    %v7436 = vunpack.c.l.b16 %v7397
    %v7437 = vunpack.c.l.b16 %v7398
    %v7438 = vunpack.c.l.b16 %v7399
    %v7439 = vunpack.c.l.b16 %v7400
    %v7440 = vunpack.c.l.b16 %v7401
    %v7441 = vunpack.c.l.b16 %v7402
    %v7442 = vunpack.c.l.b16 %v7403
    %v7443 = vunpack.c.l.b16 %v7404
    %v7444 = vunpack.c.l.b16 %v7405
    %v7445 = vunpack.c.l.b16 %v7406
    %v7446 = vpack.c.b16 %v7431, %v7430
    %v7447 = vpack.c.b16 %v7433, %v7432
    %v7448 = vpack.c.b16 %v7435, %v7434
    %v7449 = vpack.c.b16 %v7437, %v7436
    %v7450 = vpack.c.b16 %v7439, %v7438
    %v7451 = vpack.c.b16 %v7441, %v7440
    %v7452 = vpack.c.b16 %v7443, %v7442
    %v7453 = vpack.c.b16 %v7445, %v7444
    %7462 = vmatprep.subr.bf16.mxu0 0
    %7463 = vmatpush1.bf16.msra.mxu0 %v7446
    %7464 = vmatprep.subr.bf16.mxu0 0
    %7465 = vmatpush1.bf16.msra.mxu0 %v7447
    %7466 = vmatprep.subr.bf16.mxu0 0
    %7467 = vmatpush1.bf16.msra.mxu0 %v7448
    %7468 = vmatprep.subr.bf16.mxu0 0
    %7469 = vmatpush1.bf16.msra.mxu0 %v7449
    %7470 = vmatprep.subr.bf16.mxu0 0
    %7471 = vmatpush1.bf16.msra.mxu0 %v7450
    %7472 = vmatprep.subr.bf16.mxu0 0
    %7473 = vmatpush1.bf16.msra.mxu0 %v7451
    %7474 = vmatprep.subr.bf16.mxu0 0
    %7475 = vmatpush1.bf16.msra.mxu0 %v7452
    %7476 = vmatprep.subr.bf16.mxu0 0
    %7477 = vmatpush1.bf16.msra.mxu0 %v7453
    %7478 = vmatprep.subr.bf16.mxu0 0
    %7479 = vmatpush1.bf16.msra.mxu0 0
    %7480 = vmatprep.subr.bf16.mxu0 0
    %7481 = vmatpush1.bf16.msra.mxu0 0
    %7482 = vmatprep.subr.bf16.mxu0 0
    %7483 = vmatpush1.bf16.msra.mxu0 0
    %7484 = vmatprep.subr.bf16.mxu0 0
    %7485 = vmatpush1.bf16.msra.mxu0 0
    %7486 = vmatprep.subr.bf16.mxu0 0
    %7487 = vmatpush1.bf16.msra.mxu0 0
    %7488 = vmatprep.subr.bf16.mxu0 0
    %7489 = vmatpush1.bf16.msra.mxu0 0
    %7490 = vmatprep.subr.bf16.mxu0 0
    %7491 = vmatpush1.bf16.msra.mxu0 0
    %7492 = vmatprep.subr.bf16.mxu0 0
    %7493 = vmatpush1.bf16.msra.mxu0 0
    %7494 = vmatprep.mubr.bf16.mxu0 0
    %7495 = vmatmul.mubr.bf16.gmra.mrb[0].mxu0 %v7412
    %v7496 = vpop.f32.mrb[0].mxu0
    %v7497 = vadd.f32 0.0, %v7496
    %v7498 = vpop.f32.mrb[0].mxu0
    %v7499 = vpop.f32.mrb[0].mxu0
    %v7500 = vadd.f32 0.0, %v7499
    %v7501 = vpop.f32.mrb[0].mxu0
    %7502 = vdwg.mxu0
    %v7503 = vadd.f32 %v7388, %v7497
    %v7504 = vadd.f32 %v7389, %v7500
    %v7505 = vld [vmem:[#allocation2 + $0x8] sm:$0x7]
    %v7506 = vld [vmem:[#allocation6 + $0x140] sm:$0xf]
    %v7507 = vld [vmem:[#allocation6 + $0x144] sm:$0xf]
    %v7508 = vld [vmem:[#allocation6 + $0x148] sm:$0xf]
    %v7509 = vld [vmem:[#allocation6 + $0x14c] sm:$0xf]
    %v7510 = vld [vmem:[#allocation6 + $0x150] sm:$0xf]
    %v7511 = vld [vmem:[#allocation6 + $0x154] sm:$0xf]
    %v7512 = vld [vmem:[#allocation6 + $0x158] sm:$0xf]
    %v7513 = vld [vmem:[#allocation6 + $0x15c] sm:$0xf]
    %v7514 = vld [vmem:[#allocation6 + $0x160] sm:$0xf]
    %v7515 = vld [vmem:[#allocation6 + $0x164] sm:$0xf]
    %v7516 = vld [vmem:[#allocation6 + $0x168] sm:$0xf]
    %v7517 = vld [vmem:[#allocation6 + $0x16c] sm:$0xf]
    %v7518 = vld [vmem:[#allocation6 + $0x170] sm:$0xf]
    %v7519 = vld [vmem:[#allocation6 + $0x174] sm:$0xf]
    %v7520 = vld [vmem:[#allocation6 + $0x178] sm:$0xf]
    %v7521 = vld [vmem:[#allocation6 + $0x17c] sm:$0xf]
    %v7523 = vunpack.c.l.b16 %v7505
    %v7524 = vpack.c.b16 %v7523, %v7523
    %v7526 = vshrl.u32 %v7409, 16
    %v7528 = vrot.slane %v7526, 2
    %v7529 = vshll.u32 %v7409, 16
    %v7531 = vrot.slane %v7529, 3
    %v7532 = vor.u32 %v7528, %v7531
    %v7534 = vshrl.u32 %v7524, 16
    %v7536 = vrot.slane %v7534, 2
    %v7537 = vshll.u32 %v7524, 16
    %v7539 = vrot.slane %v7537, 3
    %v7540 = vor.u32 %v7536, %v7539
    %v7541 = vsel %vm706, %v7532, %v7540
    %v7559 = vunpack.c.l.b16 %v7506
    %v7560 = vunpack.c.l.b16 %v7507
    %v7561 = vunpack.c.l.b16 %v7508
    %v7562 = vunpack.c.l.b16 %v7509
    %v7563 = vunpack.c.l.b16 %v7510
    %v7564 = vunpack.c.l.b16 %v7511
    %v7565 = vunpack.c.l.b16 %v7512
    %v7566 = vunpack.c.l.b16 %v7513
    %v7567 = vunpack.c.l.b16 %v7514
    %v7568 = vunpack.c.l.b16 %v7515
    %v7569 = vunpack.c.l.b16 %v7516
    %v7570 = vunpack.c.l.b16 %v7517
    %v7571 = vunpack.c.l.b16 %v7518
    %v7572 = vunpack.c.l.b16 %v7519
    %v7573 = vunpack.c.l.b16 %v7520
    %v7574 = vunpack.c.l.b16 %v7521
    %v7575 = vpack.c.b16 %v7560, %v7559
    %v7576 = vpack.c.b16 %v7562, %v7561
    %v7577 = vpack.c.b16 %v7564, %v7563
    %v7578 = vpack.c.b16 %v7566, %v7565
    %v7579 = vpack.c.b16 %v7568, %v7567
    %v7580 = vpack.c.b16 %v7570, %v7569
    %v7581 = vpack.c.b16 %v7572, %v7571
    %v7582 = vpack.c.b16 %v7574, %v7573
    %7591 = vmatprep.subr.bf16.mxu0 0
    %7592 = vmatpush1.bf16.msra.mxu0 %v7575
    %7593 = vmatprep.subr.bf16.mxu0 0
    %7594 = vmatpush1.bf16.msra.mxu0 %v7576
    %7595 = vmatprep.subr.bf16.mxu0 0
    %7596 = vmatpush1.bf16.msra.mxu0 %v7577
    %7597 = vmatprep.subr.bf16.mxu0 0
    %7598 = vmatpush1.bf16.msra.mxu0 %v7578
    %7599 = vmatprep.subr.bf16.mxu0 0
    %7600 = vmatpush1.bf16.msra.mxu0 %v7579
    %7601 = vmatprep.subr.bf16.mxu0 0
    %7602 = vmatpush1.bf16.msra.mxu0 %v7580
    %7603 = vmatprep.subr.bf16.mxu0 0
    %7604 = vmatpush1.bf16.msra.mxu0 %v7581
    %7605 = vmatprep.subr.bf16.mxu0 0
    %7606 = vmatpush1.bf16.msra.mxu0 %v7582
    %7607 = vmatprep.subr.bf16.mxu0 0
    %7608 = vmatpush1.bf16.msra.mxu0 0
    %7609 = vmatprep.subr.bf16.mxu0 0
    %7610 = vmatpush1.bf16.msra.mxu0 0
    %7611 = vmatprep.subr.bf16.mxu0 0
    %7612 = vmatpush1.bf16.msra.mxu0 0
    %7613 = vmatprep.subr.bf16.mxu0 0
    %7614 = vmatpush1.bf16.msra.mxu0 0
    %7615 = vmatprep.subr.bf16.mxu0 0
    %7616 = vmatpush1.bf16.msra.mxu0 0
    %7617 = vmatprep.subr.bf16.mxu0 0
    %7618 = vmatpush1.bf16.msra.mxu0 0
    %7619 = vmatprep.subr.bf16.mxu0 0
    %7620 = vmatpush1.bf16.msra.mxu0 0
    %7621 = vmatprep.subr.bf16.mxu0 0
    %7622 = vmatpush1.bf16.msra.mxu0 0
    %7623 = vmatprep.mubr.bf16.mxu0 0
    %7624 = vmatmul.mubr.bf16.gmra.mrb[0].mxu0 %v7541
    %v7625 = vpop.f32.mrb[0].mxu0
    %v7626 = vadd.f32 0.0, %v7625
    %v7627 = vpop.f32.mrb[0].mxu0
    %v7628 = vpop.f32.mrb[0].mxu0
    %v7629 = vadd.f32 0.0, %v7628
    %v7630 = vpop.f32.mrb[0].mxu0
    %7631 = vdwg.mxu0
    %v7632 = vadd.f32 %v7503, %v7626
    %v7633 = vadd.f32 %v7504, %v7629
    %v7634 = vld [vmem:[#allocation2] sm:$0x8]
    %v7635 = vld [vmem:[#allocation6 + $0x180] sm:$0xf]
    %v7636 = vld [vmem:[#allocation6 + $0x184] sm:$0xf]
    %v7637 = vld [vmem:[#allocation6 + $0x188] sm:$0xf]
    %v7638 = vld [vmem:[#allocation6 + $0x18c] sm:$0xf]
    %v7639 = vld [vmem:[#allocation6 + $0x190] sm:$0xf]
    %v7640 = vld [vmem:[#allocation6 + $0x194] sm:$0xf]
    %v7641 = vld [vmem:[#allocation6 + $0x198] sm:$0xf]
    %v7642 = vld [vmem:[#allocation6 + $0x19c] sm:$0xf]
    %v7643 = vld [vmem:[#allocation6 + $0x1a0] sm:$0xf]
    %v7644 = vld [vmem:[#allocation6 + $0x1a4] sm:$0xf]
    %v7645 = vld [vmem:[#allocation6 + $0x1a8] sm:$0xf]
    %v7646 = vld [vmem:[#allocation6 + $0x1ac] sm:$0xf]
    %v7647 = vld [vmem:[#allocation6 + $0x1b0] sm:$0xf]
    %v7648 = vld [vmem:[#allocation6 + $0x1b4] sm:$0xf]
    %v7649 = vld [vmem:[#allocation6 + $0x1b8] sm:$0xf]
    %v7650 = vld [vmem:[#allocation6 + $0x1bc] sm:$0xf]
    %v7652 = vunpack.c.l.b16 %v7634
    %v7653 = vpack.c.b16 %v6950, %v7652
    %v7654 = vrot.slane %v7653, 3
    %v7655 = vrot.slane %v7524, 3
    %v7656 = vsel %vm836, %v7654, %v7655
    %v7674 = vunpack.c.l.b16 %v7635
    %v7675 = vunpack.c.l.b16 %v7636
    %v7676 = vunpack.c.l.b16 %v7637
    %v7677 = vunpack.c.l.b16 %v7638
    %v7678 = vunpack.c.l.b16 %v7639
    %v7679 = vunpack.c.l.b16 %v7640
    %v7680 = vunpack.c.l.b16 %v7641
    %v7681 = vunpack.c.l.b16 %v7642
    %v7682 = vunpack.c.l.b16 %v7643
    %v7683 = vunpack.c.l.b16 %v7644
    %v7684 = vunpack.c.l.b16 %v7645
    %v7685 = vunpack.c.l.b16 %v7646
    %v7686 = vunpack.c.l.b16 %v7647
    %v7687 = vunpack.c.l.b16 %v7648
    %v7688 = vunpack.c.l.b16 %v7649
    %v7689 = vunpack.c.l.b16 %v7650
    %v7690 = vpack.c.b16 %v7675, %v7674
    %v7691 = vpack.c.b16 %v7677, %v7676
    %v7692 = vpack.c.b16 %v7679, %v7678
    %v7693 = vpack.c.b16 %v7681, %v7680
    %v7694 = vpack.c.b16 %v7683, %v7682
    %v7695 = vpack.c.b16 %v7685, %v7684
    %v7696 = vpack.c.b16 %v7687, %v7686
    %v7697 = vpack.c.b16 %v7689, %v7688
    %7706 = vmatprep.subr.bf16.mxu0 0
    %7707 = vmatpush1.bf16.msra.mxu0 %v7690
    %7708 = vmatprep.subr.bf16.mxu0 0
    %7709 = vmatpush1.bf16.msra.mxu0 %v7691
    %7710 = vmatprep.subr.bf16.mxu0 0
    %7711 = vmatpush1.bf16.msra.mxu0 %v7692
    %7712 = vmatprep.subr.bf16.mxu0 0
    %7713 = vmatpush1.bf16.msra.mxu0 %v7693
    %7714 = vmatprep.subr.bf16.mxu0 0
    %7715 = vmatpush1.bf16.msra.mxu0 %v7694
    %7716 = vmatprep.subr.bf16.mxu0 0
    %7717 = vmatpush1.bf16.msra.mxu0 %v7695
    %7718 = vmatprep.subr.bf16.mxu0 0
    %7719 = vmatpush1.bf16.msra.mxu0 %v7696
    %7720 = vmatprep.subr.bf16.mxu0 0
    %7721 = vmatpush1.bf16.msra.mxu0 %v7697
    %7722 = vmatprep.subr.bf16.mxu0 0
    %7723 = vmatpush1.bf16.msra.mxu0 0
    %7724 = vmatprep.subr.bf16.mxu0 0
    %7725 = vmatpush1.bf16.msra.mxu0 0
    %7726 = vmatprep.subr.bf16.mxu0 0
    %7727 = vmatpush1.bf16.msra.mxu0 0
    %7728 = vmatprep.subr.bf16.mxu0 0
    %7729 = vmatpush1.bf16.msra.mxu0 0
    %7730 = vmatprep.subr.bf16.mxu0 0
    %7731 = vmatpush1.bf16.msra.mxu0 0
    %7732 = vmatprep.subr.bf16.mxu0 0
    %7733 = vmatpush1.bf16.msra.mxu0 0
    %7734 = vmatprep.subr.bf16.mxu0 0
    %7735 = vmatpush1.bf16.msra.mxu0 0
    %7736 = vmatprep.subr.bf16.mxu0 0
    %7737 = vmatpush1.bf16.msra.mxu0 0
    %7738 = vmatprep.mubr.bf16.mxu0 0
    %7739 = vmatmul.mubr.bf16.gmra.mrb[0].mxu0 %v7656
    %v7740 = vpop.f32.mrb[0].mxu0
    %v7741 = vadd.f32 0.0, %v7740
    %v7742 = vpop.f32.mrb[0].mxu0
    %v7743 = vpop.f32.mrb[0].mxu0
    %v7744 = vadd.f32 0.0, %v7743
    %v7745 = vpop.f32.mrb[0].mxu0
    %7746 = vdwg.mxu0
    %v7747 = vadd.f32 %v7632, %v7741
    %v7748 = vadd.f32 %v7633, %v7744
    %v7749 = vadd.f32 %v7747, %v936
    %v7750 = vadd.f32 %v7748, %v936
    %v7751 = vmax.f32 %v7749, 0.0
    %v7752 = vmax.f32 %v7750, 0.0
    %v7753 = vpack.c.bf16 %v7752, %v7751
    %v7755 = vcombine.high %v7753, %v7753
    %v7757 = vunpack.c.l.s4 1966171168
    %v7758 = vunpack.c.0.s8 %v7757
    %v7759 = vlaneseq
    %v7760 = vshrl.u32 %v7759, 7
    %v7761 = vsub.s32 %v7758, %v7760
    %v7762 = vrot.slane %v7753, %v7761
    %v7764 = vunpack.c.l.s4 1966171168
    %v7765 = vunpack.c.0.s8 %v7764
    %v7766 = vlaneseq
    %v7767 = vshrl.u32 %v7766, 7
    %v7768 = vsub.s32 %v7765, %v7767
    %v7769 = vrot.slane %v7755, %v7768
    %v7770 = vcombine.high %v7762, %v7762
    %v7771 = vcombine.high %v7769, %v7769
    %v7773 = vunpack.c.l.s4 1966171168
    %v7774 = vunpack.c.0.s8 %v7773
    %v7775 = vlaneseq
    %v7776 = vshrl.u32 %v7775, 7
    %v7777 = vsub.s32 %v7774, %v7776
    %v7778 = vrot.slane %v7762, %v7777
    %v7780 = vunpack.c.l.s4 1966171168
    %v7781 = vunpack.c.0.s8 %v7780
    %v7782 = vlaneseq
    %v7783 = vshrl.u32 %v7782, 7
    %v7784 = vsub.s32 %v7781, %v7783
    %v7785 = vrot.slane %v7769, %v7784
    %v7787 = vunpack.c.l.s4 1966171168
    %v7788 = vunpack.c.0.s8 %v7787
    %v7789 = vlaneseq
    %v7790 = vshrl.u32 %v7789, 7
    %v7791 = vsub.s32 %v7788, %v7790
    %v7792 = vrot.slane %v7770, %v7791
    %v7794 = vunpack.c.l.s4 1966171168
    %v7795 = vunpack.c.0.s8 %v7794
    %v7796 = vlaneseq
    %v7797 = vshrl.u32 %v7796, 7
    %v7798 = vsub.s32 %v7795, %v7797
    %v7799 = vrot.slane %v7771, %v7798
    %v7800 = vcombine.high %v7778, %v7778
    %v7801 = vcombine.high %v7785, %v7785
    %v7802 = vcombine.high %v7792, %v7792
    %v7803 = vcombine.high %v7799, %v7799
    %v7804 = vunpack.i.l.s16 %v7778
    %v7805 = vunpack.i.h.s16 %v7778
    %v7806 = vunpack.i.l.s16 %v7792
    %v7807 = vunpack.i.h.s16 %v7792
    %v7808 = vunpack.i.l.s16 %v7800
    %v7809 = vunpack.i.h.s16 %v7800
    %v7810 = vunpack.i.l.s16 %v7802
    %v7811 = vunpack.i.h.s16 %v7802
    %v7812 = vunpack.i.l.s16 %v7785
    %v7813 = vunpack.i.h.s16 %v7785
    %v7814 = vunpack.i.l.s16 %v7799
    %v7815 = vunpack.i.h.s16 %v7799
    %v7816 = vunpack.i.l.s16 %v7801
    %v7817 = vunpack.i.h.s16 %v7801
    %v7818 = vunpack.i.l.s16 %v7803
    %v7819 = vunpack.i.h.s16 %v7803
    %v7820 = vpack.i.b16 %v7804, %v7804
    %v7821 = vpack.i.b16 %v7805, %v7805
    %v7822 = vpack.i.b16 %v7806, %v7806
    %v7823 = vpack.i.b16 %v7807, %v7807
    %v7824 = vpack.i.b16 %v7808, %v7808
    %v7825 = vpack.i.b16 %v7809, %v7809
    %v7826 = vpack.i.b16 %v7810, %v7810
    %v7827 = vpack.i.b16 %v7811, %v7811
    %v7828 = vpack.i.b16 %v7812, %v7812
    %v7829 = vpack.i.b16 %v7813, %v7813
    %v7830 = vpack.i.b16 %v7814, %v7814
    %v7831 = vpack.i.b16 %v7815, %v7815
    %v7832 = vpack.i.b16 %v7816, %v7816
    %v7833 = vpack.i.b16 %v7817, %v7817
    %v7834 = vpack.i.b16 %v7818, %v7818
    %v7835 = vpack.i.b16 %v7819, %v7819
    %v7837 = vunpack.c.l.s4 286326784
    %v7838 = vunpack.c.0.s8 %v7837
    %v7839 = vlaneseq
    %v7840 = vshrl.u32 %v7839, 7
    %v7841 = vsub.s32 %v7838, %v7840
    %v7842 = vrot.slane %v7820, %v7841
    %v7844 = vunpack.c.l.s4 286326784
    %v7845 = vunpack.c.0.s8 %v7844
    %v7846 = vlaneseq
    %v7847 = vshrl.u32 %v7846, 7
    %v7848 = vsub.s32 %v7845, %v7847
    %v7849 = vrot.slane %v7821, %v7848
    %v7851 = vunpack.c.l.s4 286326784
    %v7852 = vunpack.c.0.s8 %v7851
    %v7853 = vlaneseq
    %v7854 = vshrl.u32 %v7853, 7
    %v7855 = vsub.s32 %v7852, %v7854
    %v7856 = vrot.slane %v7822, %v7855
    %v7858 = vunpack.c.l.s4 286326784
    %v7859 = vunpack.c.0.s8 %v7858
    %v7860 = vlaneseq
    %v7861 = vshrl.u32 %v7860, 7
    %v7862 = vsub.s32 %v7859, %v7861
    %v7863 = vrot.slane %v7823, %v7862
    %v7865 = vunpack.c.l.s4 286326784
    %v7866 = vunpack.c.0.s8 %v7865
    %v7867 = vlaneseq
    %v7868 = vshrl.u32 %v7867, 7
    %v7869 = vsub.s32 %v7866, %v7868
    %v7870 = vrot.slane %v7824, %v7869
    %v7872 = vunpack.c.l.s4 286326784
    %v7873 = vunpack.c.0.s8 %v7872
    %v7874 = vlaneseq
    %v7875 = vshrl.u32 %v7874, 7
    %v7876 = vsub.s32 %v7873, %v7875
    %v7877 = vrot.slane %v7825, %v7876
    %v7879 = vunpack.c.l.s4 286326784
    %v7880 = vunpack.c.0.s8 %v7879
    %v7881 = vlaneseq
    %v7882 = vshrl.u32 %v7881, 7
    %v7883 = vsub.s32 %v7880, %v7882
    %v7884 = vrot.slane %v7826, %v7883
    %v7886 = vunpack.c.l.s4 286326784
    %v7887 = vunpack.c.0.s8 %v7886
    %v7888 = vlaneseq
    %v7889 = vshrl.u32 %v7888, 7
    %v7890 = vsub.s32 %v7887, %v7889
    %v7891 = vrot.slane %v7827, %v7890
    %v7893 = vunpack.c.l.s4 286326784
    %v7894 = vunpack.c.0.s8 %v7893
    %v7895 = vlaneseq
    %v7896 = vshrl.u32 %v7895, 7
    %v7897 = vsub.s32 %v7894, %v7896
    %v7898 = vrot.slane %v7828, %v7897
    %v7900 = vunpack.c.l.s4 286326784
    %v7901 = vunpack.c.0.s8 %v7900
    %v7902 = vlaneseq
    %v7903 = vshrl.u32 %v7902, 7
    %v7904 = vsub.s32 %v7901, %v7903
    %v7905 = vrot.slane %v7829, %v7904
    %v7907 = vunpack.c.l.s4 286326784
    %v7908 = vunpack.c.0.s8 %v7907
    %v7909 = vlaneseq
    %v7910 = vshrl.u32 %v7909, 7
    %v7911 = vsub.s32 %v7908, %v7910
    %v7912 = vrot.slane %v7830, %v7911
    %v7914 = vunpack.c.l.s4 286326784
    %v7915 = vunpack.c.0.s8 %v7914
    %v7916 = vlaneseq
    %v7917 = vshrl.u32 %v7916, 7
    %v7918 = vsub.s32 %v7915, %v7917
    %v7919 = vrot.slane %v7831, %v7918
    %v7921 = vunpack.c.l.s4 286326784
    %v7922 = vunpack.c.0.s8 %v7921
    %v7923 = vlaneseq
    %v7924 = vshrl.u32 %v7923, 7
    %v7925 = vsub.s32 %v7922, %v7924
    %v7926 = vrot.slane %v7832, %v7925
    %v7928 = vunpack.c.l.s4 286326784
    %v7929 = vunpack.c.0.s8 %v7928
    %v7930 = vlaneseq
    %v7931 = vshrl.u32 %v7930, 7
    %v7932 = vsub.s32 %v7929, %v7931
    %v7933 = vrot.slane %v7833, %v7932
    %v7935 = vunpack.c.l.s4 286326784
    %v7936 = vunpack.c.0.s8 %v7935
    %v7937 = vlaneseq
    %v7938 = vshrl.u32 %v7937, 7
    %v7939 = vsub.s32 %v7936, %v7938
    %v7940 = vrot.slane %v7834, %v7939
    %v7942 = vunpack.c.l.s4 286326784
    %v7943 = vunpack.c.0.s8 %v7942
    %v7944 = vlaneseq
    %v7945 = vshrl.u32 %v7944, 7
    %v7946 = vsub.s32 %v7943, %v7945
    %v7947 = vrot.slane %v7835, %v7946
    %vm7964 = vcmask 1043459
    %vm7965 = vsmask.f32 3328
    %vm7966 = vmand %vm7964, %vm7965
    %v7967 = vld [vmem:[#allocation8] sm:$0x8]
    %v7968 = vsel %vm7966, %v7842, %v7967
    %7969 = vst [vmem:[#allocation8] sm:$0x8] %v7968
    %v7970 = vld [vmem:[#allocation8 + $0x4] sm:$0x8]
    %v7971 = vsel %vm7966, %v7849, %v7970
    %7972 = vst [vmem:[#allocation8 + $0x4] sm:$0x8] %v7971
    %v7973 = vld [vmem:[#allocation8 + $0x8] sm:$0x8]
    %v7974 = vsel %vm7966, %v7856, %v7973
    %7975 = vst [vmem:[#allocation8 + $0x8] sm:$0x8] %v7974
    %v7976 = vld [vmem:[#allocation8 + $0xc] sm:$0x8]
    %v7977 = vsel %vm7966, %v7863, %v7976
    %7978 = vst [vmem:[#allocation8 + $0xc] sm:$0x8] %v7977
    %v7979 = vld [vmem:[#allocation8 + $0x10] sm:$0x8]
    %v7980 = vsel %vm7966, %v7870, %v7979
    %7981 = vst [vmem:[#allocation8 + $0x10] sm:$0x8] %v7980
    %v7982 = vld [vmem:[#allocation8 + $0x14] sm:$0x8]
    %v7983 = vsel %vm7966, %v7877, %v7982
    %7984 = vst [vmem:[#allocation8 + $0x14] sm:$0x8] %v7983
    %v7985 = vld [vmem:[#allocation8 + $0x18] sm:$0x8]
    %v7986 = vsel %vm7966, %v7884, %v7985
    %7987 = vst [vmem:[#allocation8 + $0x18] sm:$0x8] %v7986
    %v7988 = vld [vmem:[#allocation8 + $0x1c] sm:$0x8]
    %v7989 = vsel %vm7966, %v7891, %v7988
    %7990 = vst [vmem:[#allocation8 + $0x1c] sm:$0x8] %v7989
    %v7991 = vld [vmem:[#allocation8 + $0x20] sm:$0x8]
    %v7992 = vsel %vm7966, %v7898, %v7991
    %7993 = vst [vmem:[#allocation8 + $0x20] sm:$0x8] %v7992
    %v7994 = vld [vmem:[#allocation8 + $0x24] sm:$0x8]
    %v7995 = vsel %vm7966, %v7905, %v7994
    %7996 = vst [vmem:[#allocation8 + $0x24] sm:$0x8] %v7995
    %v7997 = vld [vmem:[#allocation8 + $0x28] sm:$0x8]
    %v7998 = vsel %vm7966, %v7912, %v7997
    %7999 = vst [vmem:[#allocation8 + $0x28] sm:$0x8] %v7998
    %v8000 = vld [vmem:[#allocation8 + $0x2c] sm:$0x8]
    %v8001 = vsel %vm7966, %v7919, %v8000
    %8002 = vst [vmem:[#allocation8 + $0x2c] sm:$0x8] %v8001
    %v8003 = vld [vmem:[#allocation8 + $0x30] sm:$0x8]
    %v8004 = vsel %vm7966, %v7926, %v8003
    %8005 = vst [vmem:[#allocation8 + $0x30] sm:$0x8] %v8004
    %v8006 = vld [vmem:[#allocation8 + $0x34] sm:$0x8]
    %v8007 = vsel %vm7966, %v7933, %v8006
    %8008 = vst [vmem:[#allocation8 + $0x34] sm:$0x8] %v8007
    %v8009 = vld [vmem:[#allocation8 + $0x38] sm:$0x8]
    %v8010 = vsel %vm7966, %v7940, %v8009
    %8011 = vst [vmem:[#allocation8 + $0x38] sm:$0x8] %v8010
    %v8012 = vld [vmem:[#allocation8 + $0x3c] sm:$0x8]
    %v8013 = vsel %vm7966, %v7947, %v8012
    %8014 = vst [vmem:[#allocation8 + $0x3c] sm:$0x8] %v8013
    %s8015 = scalar_lea.vmem [#allocation3], 56
    %v8016 = vld [vmem:[%s8015] sm:$0xf]
    %v8017 = vld [vmem:[%s8015 + $0x4] sm:$0xf]
    %v8019 = vshrl.u32 %v8016, 16
    %v8021 = vrot.slane %v8019, 6
    %v8022 = vshll.u32 %v8016, 16
    %v8024 = vrot.slane %v8022, 7
    %v8025 = vor.u32 %v8021, %v8024
    %v8026 = vrot.slane %v8025, 4
    %v8028 = vshrl.u32 %v8017, 16
    %v8030 = vrot.slane %v8028, 6
    %v8031 = vshll.u32 %v8017, 16
    %v8033 = vrot.slane %v8031, 7
    %v8034 = vor.u32 %v8030, %v8033
    %v8035 = vsel %vm52, %v8026, %v8034
    %v8036 = vrot.slane %v8034, 4
    %v8040 = vld [vmem:[#allocation2] sm:$0xe]
    %v8041 = vsel %vm77, %v8025, %v8040
    %8042 = vst [vmem:[#allocation2] sm:$0xe] %v8041
    %8043 = vst.msk [vmem:[#allocation2 + $0x4] sm:$0xf] %vm81, %v8035
    %v8044 = vld [vmem:[#allocation2 + $0x8] sm:$0x3]
    %v8045 = vsel %vm84, %v8036, %v8044
    %8046 = vst [vmem:[#allocation2 + $0x8] sm:$0x3] %v8045
    %v8047 = vld [vmem:[#allocation2] sm:$0xf]
    %v8048 = vld [vmem:[#allocation2 + $0x4] sm:$0xf]
    %v8049 = vld [vmem:[#allocation6] sm:$0xf]
    %v8050 = vld [vmem:[#allocation6 + $0x4] sm:$0xf]
    %v8051 = vld [vmem:[#allocation6 + $0x8] sm:$0xf]
    %v8052 = vld [vmem:[#allocation6 + $0xc] sm:$0xf]
    %v8053 = vld [vmem:[#allocation6 + $0x10] sm:$0xf]
    %v8054 = vld [vmem:[#allocation6 + $0x14] sm:$0xf]
    %v8055 = vld [vmem:[#allocation6 + $0x18] sm:$0xf]
    %v8056 = vld [vmem:[#allocation6 + $0x1c] sm:$0xf]
    %v8057 = vld [vmem:[#allocation6 + $0x20] sm:$0xf]
    %v8058 = vld [vmem:[#allocation6 + $0x24] sm:$0xf]
    %v8059 = vld [vmem:[#allocation6 + $0x28] sm:$0xf]
    %v8060 = vld [vmem:[#allocation6 + $0x2c] sm:$0xf]
    %v8061 = vld [vmem:[#allocation6 + $0x30] sm:$0xf]
    %v8062 = vld [vmem:[#allocation6 + $0x34] sm:$0xf]
    %v8063 = vld [vmem:[#allocation6 + $0x38] sm:$0xf]
    %v8064 = vld [vmem:[#allocation6 + $0x3c] sm:$0xf]
    %v8065 = vld [vmem:[#allocation2 + $0x8] sm:$0x1]
    %v8066 = vld [vmem:[#allocation6 + $0x40] sm:$0xf]
    %v8067 = vld [vmem:[#allocation6 + $0x44] sm:$0xf]
    %v8068 = vld [vmem:[#allocation6 + $0x48] sm:$0xf]
    %v8069 = vld [vmem:[#allocation6 + $0x4c] sm:$0xf]
    %v8070 = vld [vmem:[#allocation6 + $0x50] sm:$0xf]
    %v8071 = vld [vmem:[#allocation6 + $0x54] sm:$0xf]
    %v8072 = vld [vmem:[#allocation6 + $0x58] sm:$0xf]
    %v8073 = vld [vmem:[#allocation6 + $0x5c] sm:$0xf]
    %v8074 = vld [vmem:[#allocation6 + $0x60] sm:$0xf]
    %v8075 = vld [vmem:[#allocation6 + $0x64] sm:$0xf]
    %v8076 = vld [vmem:[#allocation6 + $0x68] sm:$0xf]
    %v8077 = vld [vmem:[#allocation6 + $0x6c] sm:$0xf]
    %v8078 = vld [vmem:[#allocation6 + $0x70] sm:$0xf]
    %v8079 = vld [vmem:[#allocation6 + $0x74] sm:$0xf]
    %v8080 = vld [vmem:[#allocation6 + $0x78] sm:$0xf]
    %v8081 = vld [vmem:[#allocation6 + $0x7c] sm:$0xf]
    %v8085 = vunpack.c.l.b16 %v8047
    %v8086 = vunpack.c.l.b16 %v8048
    %v8087 = vunpack.c.l.b16 %v8065
    %v8088 = vpack.c.b16 %v8086, %v8085
    %v8089 = vpack.c.b16 %v8087, %v8087
    %v8091 = vshrl.u32 %v8088, 16
    %v8093 = vshll.u32 %v8088, 16
    %v8095 = vrot.slane %v8093, 1
    %v8096 = vor.u32 %v8091, %v8095
    %v8098 = vshll.u32 %v8089, 16
    %v8100 = vrot.slane %v8098, 1
    %v8101 = vsel %vm131, %v8096, %v8100
    %v8119 = vunpack.c.l.b16 %v8066
    %v8120 = vunpack.c.l.b16 %v8067
    %v8121 = vunpack.c.l.b16 %v8068
    %v8122 = vunpack.c.l.b16 %v8069
    %v8123 = vunpack.c.l.b16 %v8070
    %v8124 = vunpack.c.l.b16 %v8071
    %v8125 = vunpack.c.l.b16 %v8072
    %v8126 = vunpack.c.l.b16 %v8073
    %v8127 = vunpack.c.l.b16 %v8074
    %v8128 = vunpack.c.l.b16 %v8075
    %v8129 = vunpack.c.l.b16 %v8076
    %v8130 = vunpack.c.l.b16 %v8077
    %v8131 = vunpack.c.l.b16 %v8078
    %v8132 = vunpack.c.l.b16 %v8079
    %v8133 = vunpack.c.l.b16 %v8080
    %v8134 = vunpack.c.l.b16 %v8081
    %v8135 = vpack.c.b16 %v8120, %v8119
    %v8136 = vpack.c.b16 %v8122, %v8121
    %v8137 = vpack.c.b16 %v8124, %v8123
    %v8138 = vpack.c.b16 %v8126, %v8125
    %v8139 = vpack.c.b16 %v8128, %v8127
    %v8140 = vpack.c.b16 %v8130, %v8129
    %v8141 = vpack.c.b16 %v8132, %v8131
    %v8142 = vpack.c.b16 %v8134, %v8133
    %8151 = vmatprep.subr.bf16.mxu0 0
    %8152 = vmatpush1.bf16.msra.mxu0 %v8135
    %8153 = vmatprep.subr.bf16.mxu0 0
    %8154 = vmatpush1.bf16.msra.mxu0 %v8136
    %8155 = vmatprep.subr.bf16.mxu0 0
    %8156 = vmatpush1.bf16.msra.mxu0 %v8137
    %8157 = vmatprep.subr.bf16.mxu0 0
    %8158 = vmatpush1.bf16.msra.mxu0 %v8138
    %8159 = vmatprep.subr.bf16.mxu0 0
    %8160 = vmatpush1.bf16.msra.mxu0 %v8139
    %8161 = vmatprep.subr.bf16.mxu0 0
    %8162 = vmatpush1.bf16.msra.mxu0 %v8140
    %8163 = vmatprep.subr.bf16.mxu0 0
    %8164 = vmatpush1.bf16.msra.mxu0 %v8141
    %8165 = vmatprep.subr.bf16.mxu0 0
    %8166 = vmatpush1.bf16.msra.mxu0 %v8142
    %8167 = vmatprep.subr.bf16.mxu0 0
    %8168 = vmatpush1.bf16.msra.mxu0 0
    %8169 = vmatprep.subr.bf16.mxu0 0
    %8170 = vmatpush1.bf16.msra.mxu0 0
    %8171 = vmatprep.subr.bf16.mxu0 0
    %8172 = vmatpush1.bf16.msra.mxu0 0
    %8173 = vmatprep.subr.bf16.mxu0 0
    %8174 = vmatpush1.bf16.msra.mxu0 0
    %8175 = vmatprep.subr.bf16.mxu0 0
    %8176 = vmatpush1.bf16.msra.mxu0 0
    %8177 = vmatprep.subr.bf16.mxu0 0
    %8178 = vmatpush1.bf16.msra.mxu0 0
    %8179 = vmatprep.subr.bf16.mxu0 0
    %8180 = vmatpush1.bf16.msra.mxu0 0
    %8181 = vmatprep.subr.bf16.mxu0 0
    %8182 = vmatpush1.bf16.msra.mxu0 0
    %8183 = vmatprep.mubr.bf16.mxu0 0
    %8184 = vmatmul.mubr.bf16.gmra.mrb[0].mxu0 %v8101
    %v8185 = vpop.f32.mrb[0].mxu0
    %v8186 = vadd.f32 0.0, %v8185
    %v8187 = vpop.f32.mrb[0].mxu0
    %v8188 = vpop.f32.mrb[0].mxu0
    %v8189 = vadd.f32 0.0, %v8188
    %v8190 = vpop.f32.mrb[0].mxu0
    %8191 = vdwg.mxu0
    %v8209 = vunpack.c.l.b16 %v8049
    %v8210 = vunpack.c.l.b16 %v8050
    %v8211 = vunpack.c.l.b16 %v8051
    %v8212 = vunpack.c.l.b16 %v8052
    %v8213 = vunpack.c.l.b16 %v8053
    %v8214 = vunpack.c.l.b16 %v8054
    %v8215 = vunpack.c.l.b16 %v8055
    %v8216 = vunpack.c.l.b16 %v8056
    %v8217 = vunpack.c.l.b16 %v8057
    %v8218 = vunpack.c.l.b16 %v8058
    %v8219 = vunpack.c.l.b16 %v8059
    %v8220 = vunpack.c.l.b16 %v8060
    %v8221 = vunpack.c.l.b16 %v8061
    %v8222 = vunpack.c.l.b16 %v8062
    %v8223 = vunpack.c.l.b16 %v8063
    %v8224 = vunpack.c.l.b16 %v8064
    %v8225 = vpack.c.b16 %v8210, %v8209
    %v8226 = vpack.c.b16 %v8212, %v8211
    %v8227 = vpack.c.b16 %v8214, %v8213
    %v8228 = vpack.c.b16 %v8216, %v8215
    %v8229 = vpack.c.b16 %v8218, %v8217
    %v8230 = vpack.c.b16 %v8220, %v8219
    %v8231 = vpack.c.b16 %v8222, %v8221
    %v8232 = vpack.c.b16 %v8224, %v8223
    %8241 = vmatprep.subr.bf16.mxu0 0
    %8242 = vmatpush1.bf16.msra.mxu0 %v8225
    %8243 = vmatprep.subr.bf16.mxu0 0
    %8244 = vmatpush1.bf16.msra.mxu0 %v8226
    %8245 = vmatprep.subr.bf16.mxu0 0
    %8246 = vmatpush1.bf16.msra.mxu0 %v8227
    %8247 = vmatprep.subr.bf16.mxu0 0
    %8248 = vmatpush1.bf16.msra.mxu0 %v8228
    %8249 = vmatprep.subr.bf16.mxu0 0
    %8250 = vmatpush1.bf16.msra.mxu0 %v8229
    %8251 = vmatprep.subr.bf16.mxu0 0
    %8252 = vmatpush1.bf16.msra.mxu0 %v8230
    %8253 = vmatprep.subr.bf16.mxu0 0
    %8254 = vmatpush1.bf16.msra.mxu0 %v8231
    %8255 = vmatprep.subr.bf16.mxu0 0
    %8256 = vmatpush1.bf16.msra.mxu0 %v8232
    %8257 = vmatprep.subr.bf16.mxu0 0
    %8258 = vmatpush1.bf16.msra.mxu0 0
    %8259 = vmatprep.subr.bf16.mxu0 0
    %8260 = vmatpush1.bf16.msra.mxu0 0
    %8261 = vmatprep.subr.bf16.mxu0 0
    %8262 = vmatpush1.bf16.msra.mxu0 0
    %8263 = vmatprep.subr.bf16.mxu0 0
    %8264 = vmatpush1.bf16.msra.mxu0 0
    %8265 = vmatprep.subr.bf16.mxu0 0
    %8266 = vmatpush1.bf16.msra.mxu0 0
    %8267 = vmatprep.subr.bf16.mxu0 0
    %8268 = vmatpush1.bf16.msra.mxu0 0
    %8269 = vmatprep.subr.bf16.mxu0 0
    %8270 = vmatpush1.bf16.msra.mxu0 0
    %8271 = vmatprep.subr.bf16.mxu0 0
    %8272 = vmatpush1.bf16.msra.mxu0 0
    %8273 = vmatprep.mubr.bf16.mxu0 0
    %8274 = vmatmul.mubr.bf16.gmra.mrb[0].mxu0 %v8088
    %v8275 = vpop.f32.mrb[0].mxu0
    %v8276 = vadd.f32 %v8186, %v8275
    %v8277 = vpop.f32.mrb[0].mxu0
    %v8278 = vpop.f32.mrb[0].mxu0
    %v8279 = vadd.f32 %v8189, %v8278
    %v8280 = vpop.f32.mrb[0].mxu0
    %8281 = vdwg.mxu0
    %v8282 = vld [vmem:[#allocation2] sm:$0xe]
    %v8283 = vld [vmem:[#allocation6 + $0x80] sm:$0xf]
    %v8284 = vld [vmem:[#allocation6 + $0x84] sm:$0xf]
    %v8285 = vld [vmem:[#allocation6 + $0x88] sm:$0xf]
    %v8286 = vld [vmem:[#allocation6 + $0x8c] sm:$0xf]
    %v8287 = vld [vmem:[#allocation6 + $0x90] sm:$0xf]
    %v8288 = vld [vmem:[#allocation6 + $0x94] sm:$0xf]
    %v8289 = vld [vmem:[#allocation6 + $0x98] sm:$0xf]
    %v8290 = vld [vmem:[#allocation6 + $0x9c] sm:$0xf]
    %v8291 = vld [vmem:[#allocation6 + $0xa0] sm:$0xf]
    %v8292 = vld [vmem:[#allocation6 + $0xa4] sm:$0xf]
    %v8293 = vld [vmem:[#allocation6 + $0xa8] sm:$0xf]
    %v8294 = vld [vmem:[#allocation6 + $0xac] sm:$0xf]
    %v8295 = vld [vmem:[#allocation6 + $0xb0] sm:$0xf]
    %v8296 = vld [vmem:[#allocation6 + $0xb4] sm:$0xf]
    %v8297 = vld [vmem:[#allocation6 + $0xb8] sm:$0xf]
    %v8298 = vld [vmem:[#allocation6 + $0xbc] sm:$0xf]
    %v8300 = vunpack.c.l.b16 %v8282
    %v8301 = vpack.c.b16 %v8086, %v8300
    %v8302 = vrot.slane %v8301, 1
    %v8303 = vrot.slane %v8089, 1
    %v8304 = vsel %vm344, %v8302, %v8303
    %v8322 = vunpack.c.l.b16 %v8283
    %v8323 = vunpack.c.l.b16 %v8284
    %v8324 = vunpack.c.l.b16 %v8285
    %v8325 = vunpack.c.l.b16 %v8286
    %v8326 = vunpack.c.l.b16 %v8287
    %v8327 = vunpack.c.l.b16 %v8288
    %v8328 = vunpack.c.l.b16 %v8289
    %v8329 = vunpack.c.l.b16 %v8290
    %v8330 = vunpack.c.l.b16 %v8291
    %v8331 = vunpack.c.l.b16 %v8292
    %v8332 = vunpack.c.l.b16 %v8293
    %v8333 = vunpack.c.l.b16 %v8294
    %v8334 = vunpack.c.l.b16 %v8295
    %v8335 = vunpack.c.l.b16 %v8296
    %v8336 = vunpack.c.l.b16 %v8297
    %v8337 = vunpack.c.l.b16 %v8298
    %v8338 = vpack.c.b16 %v8323, %v8322
    %v8339 = vpack.c.b16 %v8325, %v8324
    %v8340 = vpack.c.b16 %v8327, %v8326
    %v8341 = vpack.c.b16 %v8329, %v8328
    %v8342 = vpack.c.b16 %v8331, %v8330
    %v8343 = vpack.c.b16 %v8333, %v8332
    %v8344 = vpack.c.b16 %v8335, %v8334
    %v8345 = vpack.c.b16 %v8337, %v8336
    %8354 = vmatprep.subr.bf16.mxu0 0
    %8355 = vmatpush1.bf16.msra.mxu0 %v8338
    %8356 = vmatprep.subr.bf16.mxu0 0
    %8357 = vmatpush1.bf16.msra.mxu0 %v8339
    %8358 = vmatprep.subr.bf16.mxu0 0
    %8359 = vmatpush1.bf16.msra.mxu0 %v8340
    %8360 = vmatprep.subr.bf16.mxu0 0
    %8361 = vmatpush1.bf16.msra.mxu0 %v8341
    %8362 = vmatprep.subr.bf16.mxu0 0
    %8363 = vmatpush1.bf16.msra.mxu0 %v8342
    %8364 = vmatprep.subr.bf16.mxu0 0
    %8365 = vmatpush1.bf16.msra.mxu0 %v8343
    %8366 = vmatprep.subr.bf16.mxu0 0
    %8367 = vmatpush1.bf16.msra.mxu0 %v8344
    %8368 = vmatprep.subr.bf16.mxu0 0
    %8369 = vmatpush1.bf16.msra.mxu0 %v8345
    %8370 = vmatprep.subr.bf16.mxu0 0
    %8371 = vmatpush1.bf16.msra.mxu0 0
    %8372 = vmatprep.subr.bf16.mxu0 0
    %8373 = vmatpush1.bf16.msra.mxu0 0
    %8374 = vmatprep.subr.bf16.mxu0 0
    %8375 = vmatpush1.bf16.msra.mxu0 0
    %8376 = vmatprep.subr.bf16.mxu0 0
    %8377 = vmatpush1.bf16.msra.mxu0 0
    %8378 = vmatprep.subr.bf16.mxu0 0
    %8379 = vmatpush1.bf16.msra.mxu0 0
    %8380 = vmatprep.subr.bf16.mxu0 0
    %8381 = vmatpush1.bf16.msra.mxu0 0
    %8382 = vmatprep.subr.bf16.mxu0 0
    %8383 = vmatpush1.bf16.msra.mxu0 0
    %8384 = vmatprep.subr.bf16.mxu0 0
    %8385 = vmatpush1.bf16.msra.mxu0 0
    %8386 = vmatprep.mubr.bf16.mxu0 0
    %8387 = vmatmul.mubr.bf16.gmra.mrb[0].mxu0 %v8304
    %v8388 = vpop.f32.mrb[0].mxu0
    %v8389 = vadd.f32 0.0, %v8388
    %v8390 = vpop.f32.mrb[0].mxu0
    %v8391 = vpop.f32.mrb[0].mxu0
    %v8392 = vadd.f32 0.0, %v8391
    %v8393 = vpop.f32.mrb[0].mxu0
    %8394 = vdwg.mxu0
    %v8395 = vadd.f32 %v8276, %v8389
    %v8396 = vadd.f32 %v8279, %v8392
    %v8397 = vld [vmem:[#allocation2 + $0x8] sm:$0x3]
    %v8398 = vld [vmem:[#allocation6 + $0xc0] sm:$0xf]
    %v8399 = vld [vmem:[#allocation6 + $0xc4] sm:$0xf]
    %v8400 = vld [vmem:[#allocation6 + $0xc8] sm:$0xf]
    %v8401 = vld [vmem:[#allocation6 + $0xcc] sm:$0xf]
    %v8402 = vld [vmem:[#allocation6 + $0xd0] sm:$0xf]
    %v8403 = vld [vmem:[#allocation6 + $0xd4] sm:$0xf]
    %v8404 = vld [vmem:[#allocation6 + $0xd8] sm:$0xf]
    %v8405 = vld [vmem:[#allocation6 + $0xdc] sm:$0xf]
    %v8406 = vld [vmem:[#allocation6 + $0xe0] sm:$0xf]
    %v8407 = vld [vmem:[#allocation6 + $0xe4] sm:$0xf]
    %v8408 = vld [vmem:[#allocation6 + $0xe8] sm:$0xf]
    %v8409 = vld [vmem:[#allocation6 + $0xec] sm:$0xf]
    %v8410 = vld [vmem:[#allocation6 + $0xf0] sm:$0xf]
    %v8411 = vld [vmem:[#allocation6 + $0xf4] sm:$0xf]
    %v8412 = vld [vmem:[#allocation6 + $0xf8] sm:$0xf]
    %v8413 = vld [vmem:[#allocation6 + $0xfc] sm:$0xf]
    %v8415 = vunpack.c.l.b16 %v8397
    %v8416 = vpack.c.b16 %v8415, %v8415
    %v8418 = vshrl.u32 %v8301, 16
    %v8420 = vrot.slane %v8418, 1
    %v8421 = vshll.u32 %v8301, 16
    %v8423 = vrot.slane %v8421, 2
    %v8424 = vor.u32 %v8420, %v8423
    %v8426 = vshrl.u32 %v8416, 16
    %v8428 = vrot.slane %v8426, 1
    %v8429 = vshll.u32 %v8416, 16
    %v8431 = vrot.slane %v8429, 2
    %v8432 = vor.u32 %v8428, %v8431
    %v8433 = vsel %vm460, %v8424, %v8432
    %v8451 = vunpack.c.l.b16 %v8398
    %v8452 = vunpack.c.l.b16 %v8399
    %v8453 = vunpack.c.l.b16 %v8400
    %v8454 = vunpack.c.l.b16 %v8401
    %v8455 = vunpack.c.l.b16 %v8402
    %v8456 = vunpack.c.l.b16 %v8403
    %v8457 = vunpack.c.l.b16 %v8404
    %v8458 = vunpack.c.l.b16 %v8405
    %v8459 = vunpack.c.l.b16 %v8406
    %v8460 = vunpack.c.l.b16 %v8407
    %v8461 = vunpack.c.l.b16 %v8408
    %v8462 = vunpack.c.l.b16 %v8409
    %v8463 = vunpack.c.l.b16 %v8410
    %v8464 = vunpack.c.l.b16 %v8411
    %v8465 = vunpack.c.l.b16 %v8412
    %v8466 = vunpack.c.l.b16 %v8413
    %v8467 = vpack.c.b16 %v8452, %v8451
    %v8468 = vpack.c.b16 %v8454, %v8453
    %v8469 = vpack.c.b16 %v8456, %v8455
    %v8470 = vpack.c.b16 %v8458, %v8457
    %v8471 = vpack.c.b16 %v8460, %v8459
    %v8472 = vpack.c.b16 %v8462, %v8461
    %v8473 = vpack.c.b16 %v8464, %v8463
    %v8474 = vpack.c.b16 %v8466, %v8465
    %8483 = vmatprep.subr.bf16.mxu0 0
    %8484 = vmatpush1.bf16.msra.mxu0 %v8467
    %8485 = vmatprep.subr.bf16.mxu0 0
    %8486 = vmatpush1.bf16.msra.mxu0 %v8468
    %8487 = vmatprep.subr.bf16.mxu0 0
    %8488 = vmatpush1.bf16.msra.mxu0 %v8469
    %8489 = vmatprep.subr.bf16.mxu0 0
    %8490 = vmatpush1.bf16.msra.mxu0 %v8470
    %8491 = vmatprep.subr.bf16.mxu0 0
    %8492 = vmatpush1.bf16.msra.mxu0 %v8471
    %8493 = vmatprep.subr.bf16.mxu0 0
    %8494 = vmatpush1.bf16.msra.mxu0 %v8472
    %8495 = vmatprep.subr.bf16.mxu0 0
    %8496 = vmatpush1.bf16.msra.mxu0 %v8473
    %8497 = vmatprep.subr.bf16.mxu0 0
    %8498 = vmatpush1.bf16.msra.mxu0 %v8474
    %8499 = vmatprep.subr.bf16.mxu0 0
    %8500 = vmatpush1.bf16.msra.mxu0 0
    %8501 = vmatprep.subr.bf16.mxu0 0
    %8502 = vmatpush1.bf16.msra.mxu0 0
    %8503 = vmatprep.subr.bf16.mxu0 0
    %8504 = vmatpush1.bf16.msra.mxu0 0
    %8505 = vmatprep.subr.bf16.mxu0 0
    %8506 = vmatpush1.bf16.msra.mxu0 0
    %8507 = vmatprep.subr.bf16.mxu0 0
    %8508 = vmatpush1.bf16.msra.mxu0 0
    %8509 = vmatprep.subr.bf16.mxu0 0
    %8510 = vmatpush1.bf16.msra.mxu0 0
    %8511 = vmatprep.subr.bf16.mxu0 0
    %8512 = vmatpush1.bf16.msra.mxu0 0
    %8513 = vmatprep.subr.bf16.mxu0 0
    %8514 = vmatpush1.bf16.msra.mxu0 0
    %8515 = vmatprep.mubr.bf16.mxu0 0
    %8516 = vmatmul.mubr.bf16.gmra.mrb[0].mxu0 %v8433
    %v8517 = vpop.f32.mrb[0].mxu0
    %v8518 = vadd.f32 0.0, %v8517
    %v8519 = vpop.f32.mrb[0].mxu0
    %v8520 = vpop.f32.mrb[0].mxu0
    %v8521 = vadd.f32 0.0, %v8520
    %v8522 = vpop.f32.mrb[0].mxu0
    %8523 = vdwg.mxu0
    %v8524 = vadd.f32 %v8395, %v8518
    %v8525 = vadd.f32 %v8396, %v8521
    %v8526 = vld [vmem:[#allocation2] sm:$0xc]
    %v8527 = vld [vmem:[#allocation6 + $0x100] sm:$0xf]
    %v8528 = vld [vmem:[#allocation6 + $0x104] sm:$0xf]
    %v8529 = vld [vmem:[#allocation6 + $0x108] sm:$0xf]
    %v8530 = vld [vmem:[#allocation6 + $0x10c] sm:$0xf]
    %v8531 = vld [vmem:[#allocation6 + $0x110] sm:$0xf]
    %v8532 = vld [vmem:[#allocation6 + $0x114] sm:$0xf]
    %v8533 = vld [vmem:[#allocation6 + $0x118] sm:$0xf]
    %v8534 = vld [vmem:[#allocation6 + $0x11c] sm:$0xf]
    %v8535 = vld [vmem:[#allocation6 + $0x120] sm:$0xf]
    %v8536 = vld [vmem:[#allocation6 + $0x124] sm:$0xf]
    %v8537 = vld [vmem:[#allocation6 + $0x128] sm:$0xf]
    %v8538 = vld [vmem:[#allocation6 + $0x12c] sm:$0xf]
    %v8539 = vld [vmem:[#allocation6 + $0x130] sm:$0xf]
    %v8540 = vld [vmem:[#allocation6 + $0x134] sm:$0xf]
    %v8541 = vld [vmem:[#allocation6 + $0x138] sm:$0xf]
    %v8542 = vld [vmem:[#allocation6 + $0x13c] sm:$0xf]
    %v8544 = vunpack.c.l.b16 %v8526
    %v8545 = vpack.c.b16 %v8086, %v8544
    %v8546 = vrot.slane %v8545, 2
    %v8547 = vrot.slane %v8416, 2
    %v8548 = vsel %vm590, %v8546, %v8547
    %v8566 = vunpack.c.l.b16 %v8527
    %v8567 = vunpack.c.l.b16 %v8528
    %v8568 = vunpack.c.l.b16 %v8529
    %v8569 = vunpack.c.l.b16 %v8530
    %v8570 = vunpack.c.l.b16 %v8531
    %v8571 = vunpack.c.l.b16 %v8532
    %v8572 = vunpack.c.l.b16 %v8533
    %v8573 = vunpack.c.l.b16 %v8534
    %v8574 = vunpack.c.l.b16 %v8535
    %v8575 = vunpack.c.l.b16 %v8536
    %v8576 = vunpack.c.l.b16 %v8537
    %v8577 = vunpack.c.l.b16 %v8538
    %v8578 = vunpack.c.l.b16 %v8539
    %v8579 = vunpack.c.l.b16 %v8540
    %v8580 = vunpack.c.l.b16 %v8541
    %v8581 = vunpack.c.l.b16 %v8542
    %v8582 = vpack.c.b16 %v8567, %v8566
    %v8583 = vpack.c.b16 %v8569, %v8568
    %v8584 = vpack.c.b16 %v8571, %v8570
    %v8585 = vpack.c.b16 %v8573, %v8572
    %v8586 = vpack.c.b16 %v8575, %v8574
    %v8587 = vpack.c.b16 %v8577, %v8576
    %v8588 = vpack.c.b16 %v8579, %v8578
    %v8589 = vpack.c.b16 %v8581, %v8580
    %8598 = vmatprep.subr.bf16.mxu0 0
    %8599 = vmatpush1.bf16.msra.mxu0 %v8582
    %8600 = vmatprep.subr.bf16.mxu0 0
    %8601 = vmatpush1.bf16.msra.mxu0 %v8583
    %8602 = vmatprep.subr.bf16.mxu0 0
    %8603 = vmatpush1.bf16.msra.mxu0 %v8584
    %8604 = vmatprep.subr.bf16.mxu0 0
    %8605 = vmatpush1.bf16.msra.mxu0 %v8585
    %8606 = vmatprep.subr.bf16.mxu0 0
    %8607 = vmatpush1.bf16.msra.mxu0 %v8586
    %8608 = vmatprep.subr.bf16.mxu0 0
    %8609 = vmatpush1.bf16.msra.mxu0 %v8587
    %8610 = vmatprep.subr.bf16.mxu0 0
    %8611 = vmatpush1.bf16.msra.mxu0 %v8588
    %8612 = vmatprep.subr.bf16.mxu0 0
    %8613 = vmatpush1.bf16.msra.mxu0 %v8589
    %8614 = vmatprep.subr.bf16.mxu0 0
    %8615 = vmatpush1.bf16.msra.mxu0 0
    %8616 = vmatprep.subr.bf16.mxu0 0
    %8617 = vmatpush1.bf16.msra.mxu0 0
    %8618 = vmatprep.subr.bf16.mxu0 0
    %8619 = vmatpush1.bf16.msra.mxu0 0
    %8620 = vmatprep.subr.bf16.mxu0 0
    %8621 = vmatpush1.bf16.msra.mxu0 0
    %8622 = vmatprep.subr.bf16.mxu0 0
    %8623 = vmatpush1.bf16.msra.mxu0 0
    %8624 = vmatprep.subr.bf16.mxu0 0
    %8625 = vmatpush1.bf16.msra.mxu0 0
    %8626 = vmatprep.subr.bf16.mxu0 0
    %8627 = vmatpush1.bf16.msra.mxu0 0
    %8628 = vmatprep.subr.bf16.mxu0 0
    %8629 = vmatpush1.bf16.msra.mxu0 0
    %8630 = vmatprep.mubr.bf16.mxu0 0
    %8631 = vmatmul.mubr.bf16.gmra.mrb[0].mxu0 %v8548
    %v8632 = vpop.f32.mrb[0].mxu0
    %v8633 = vadd.f32 0.0, %v8632
    %v8634 = vpop.f32.mrb[0].mxu0
    %v8635 = vpop.f32.mrb[0].mxu0
    %v8636 = vadd.f32 0.0, %v8635
    %v8637 = vpop.f32.mrb[0].mxu0
    %8638 = vdwg.mxu0
    %v8639 = vadd.f32 %v8524, %v8633
    %v8640 = vadd.f32 %v8525, %v8636
    %v8641 = vld [vmem:[#allocation2 + $0x8] sm:$0x7]
    %v8642 = vld [vmem:[#allocation6 + $0x140] sm:$0xf]
    %v8643 = vld [vmem:[#allocation6 + $0x144] sm:$0xf]
    %v8644 = vld [vmem:[#allocation6 + $0x148] sm:$0xf]
    %v8645 = vld [vmem:[#allocation6 + $0x14c] sm:$0xf]
    %v8646 = vld [vmem:[#allocation6 + $0x150] sm:$0xf]
    %v8647 = vld [vmem:[#allocation6 + $0x154] sm:$0xf]
    %v8648 = vld [vmem:[#allocation6 + $0x158] sm:$0xf]
    %v8649 = vld [vmem:[#allocation6 + $0x15c] sm:$0xf]
    %v8650 = vld [vmem:[#allocation6 + $0x160] sm:$0xf]
    %v8651 = vld [vmem:[#allocation6 + $0x164] sm:$0xf]
    %v8652 = vld [vmem:[#allocation6 + $0x168] sm:$0xf]
    %v8653 = vld [vmem:[#allocation6 + $0x16c] sm:$0xf]
    %v8654 = vld [vmem:[#allocation6 + $0x170] sm:$0xf]
    %v8655 = vld [vmem:[#allocation6 + $0x174] sm:$0xf]
    %v8656 = vld [vmem:[#allocation6 + $0x178] sm:$0xf]
    %v8657 = vld [vmem:[#allocation6 + $0x17c] sm:$0xf]
    %v8659 = vunpack.c.l.b16 %v8641
    %v8660 = vpack.c.b16 %v8659, %v8659
    %v8662 = vshrl.u32 %v8545, 16
    %v8664 = vrot.slane %v8662, 2
    %v8665 = vshll.u32 %v8545, 16
    %v8667 = vrot.slane %v8665, 3
    %v8668 = vor.u32 %v8664, %v8667
    %v8670 = vshrl.u32 %v8660, 16
    %v8672 = vrot.slane %v8670, 2
    %v8673 = vshll.u32 %v8660, 16
    %v8675 = vrot.slane %v8673, 3
    %v8676 = vor.u32 %v8672, %v8675
    %v8677 = vsel %vm706, %v8668, %v8676
    %v8695 = vunpack.c.l.b16 %v8642
    %v8696 = vunpack.c.l.b16 %v8643
    %v8697 = vunpack.c.l.b16 %v8644
    %v8698 = vunpack.c.l.b16 %v8645
    %v8699 = vunpack.c.l.b16 %v8646
    %v8700 = vunpack.c.l.b16 %v8647
    %v8701 = vunpack.c.l.b16 %v8648
    %v8702 = vunpack.c.l.b16 %v8649
    %v8703 = vunpack.c.l.b16 %v8650
    %v8704 = vunpack.c.l.b16 %v8651
    %v8705 = vunpack.c.l.b16 %v8652
    %v8706 = vunpack.c.l.b16 %v8653
    %v8707 = vunpack.c.l.b16 %v8654
    %v8708 = vunpack.c.l.b16 %v8655
    %v8709 = vunpack.c.l.b16 %v8656
    %v8710 = vunpack.c.l.b16 %v8657
    %v8711 = vpack.c.b16 %v8696, %v8695
    %v8712 = vpack.c.b16 %v8698, %v8697
    %v8713 = vpack.c.b16 %v8700, %v8699
    %v8714 = vpack.c.b16 %v8702, %v8701
    %v8715 = vpack.c.b16 %v8704, %v8703
    %v8716 = vpack.c.b16 %v8706, %v8705
    %v8717 = vpack.c.b16 %v8708, %v8707
    %v8718 = vpack.c.b16 %v8710, %v8709
    %8727 = vmatprep.subr.bf16.mxu0 0
    %8728 = vmatpush1.bf16.msra.mxu0 %v8711
    %8729 = vmatprep.subr.bf16.mxu0 0
    %8730 = vmatpush1.bf16.msra.mxu0 %v8712
    %8731 = vmatprep.subr.bf16.mxu0 0
    %8732 = vmatpush1.bf16.msra.mxu0 %v8713
    %8733 = vmatprep.subr.bf16.mxu0 0
    %8734 = vmatpush1.bf16.msra.mxu0 %v8714
    %8735 = vmatprep.subr.bf16.mxu0 0
    %8736 = vmatpush1.bf16.msra.mxu0 %v8715
    %8737 = vmatprep.subr.bf16.mxu0 0
    %8738 = vmatpush1.bf16.msra.mxu0 %v8716
    %8739 = vmatprep.subr.bf16.mxu0 0
    %8740 = vmatpush1.bf16.msra.mxu0 %v8717
    %8741 = vmatprep.subr.bf16.mxu0 0
    %8742 = vmatpush1.bf16.msra.mxu0 %v8718
    %8743 = vmatprep.subr.bf16.mxu0 0
    %8744 = vmatpush1.bf16.msra.mxu0 0
    %8745 = vmatprep.subr.bf16.mxu0 0
    %8746 = vmatpush1.bf16.msra.mxu0 0
    %8747 = vmatprep.subr.bf16.mxu0 0
    %8748 = vmatpush1.bf16.msra.mxu0 0
    %8749 = vmatprep.subr.bf16.mxu0 0
    %8750 = vmatpush1.bf16.msra.mxu0 0
    %8751 = vmatprep.subr.bf16.mxu0 0
    %8752 = vmatpush1.bf16.msra.mxu0 0
    %8753 = vmatprep.subr.bf16.mxu0 0
    %8754 = vmatpush1.bf16.msra.mxu0 0
    %8755 = vmatprep.subr.bf16.mxu0 0
    %8756 = vmatpush1.bf16.msra.mxu0 0
    %8757 = vmatprep.subr.bf16.mxu0 0
    %8758 = vmatpush1.bf16.msra.mxu0 0
    %8759 = vmatprep.mubr.bf16.mxu0 0
    %8760 = vmatmul.mubr.bf16.gmra.mrb[0].mxu0 %v8677
    %v8761 = vpop.f32.mrb[0].mxu0
    %v8762 = vadd.f32 0.0, %v8761
    %v8763 = vpop.f32.mrb[0].mxu0
    %v8764 = vpop.f32.mrb[0].mxu0
    %v8765 = vadd.f32 0.0, %v8764
    %v8766 = vpop.f32.mrb[0].mxu0
    %8767 = vdwg.mxu0
    %v8768 = vadd.f32 %v8639, %v8762
    %v8769 = vadd.f32 %v8640, %v8765
    %v8770 = vld [vmem:[#allocation2] sm:$0x8]
    %v8771 = vld [vmem:[#allocation6 + $0x180] sm:$0xf]
    %v8772 = vld [vmem:[#allocation6 + $0x184] sm:$0xf]
    %v8773 = vld [vmem:[#allocation6 + $0x188] sm:$0xf]
    %v8774 = vld [vmem:[#allocation6 + $0x18c] sm:$0xf]
    %v8775 = vld [vmem:[#allocation6 + $0x190] sm:$0xf]
    %v8776 = vld [vmem:[#allocation6 + $0x194] sm:$0xf]
    %v8777 = vld [vmem:[#allocation6 + $0x198] sm:$0xf]
    %v8778 = vld [vmem:[#allocation6 + $0x19c] sm:$0xf]
    %v8779 = vld [vmem:[#allocation6 + $0x1a0] sm:$0xf]
    %v8780 = vld [vmem:[#allocation6 + $0x1a4] sm:$0xf]
    %v8781 = vld [vmem:[#allocation6 + $0x1a8] sm:$0xf]
    %v8782 = vld [vmem:[#allocation6 + $0x1ac] sm:$0xf]
    %v8783 = vld [vmem:[#allocation6 + $0x1b0] sm:$0xf]
    %v8784 = vld [vmem:[#allocation6 + $0x1b4] sm:$0xf]
    %v8785 = vld [vmem:[#allocation6 + $0x1b8] sm:$0xf]
    %v8786 = vld [vmem:[#allocation6 + $0x1bc] sm:$0xf]
    %v8788 = vunpack.c.l.b16 %v8770
    %v8789 = vpack.c.b16 %v8086, %v8788
    %v8790 = vrot.slane %v8789, 3
    %v8791 = vrot.slane %v8660, 3
    %v8792 = vsel %vm836, %v8790, %v8791
    %v8810 = vunpack.c.l.b16 %v8771
    %v8811 = vunpack.c.l.b16 %v8772
    %v8812 = vunpack.c.l.b16 %v8773
    %v8813 = vunpack.c.l.b16 %v8774
    %v8814 = vunpack.c.l.b16 %v8775
    %v8815 = vunpack.c.l.b16 %v8776
    %v8816 = vunpack.c.l.b16 %v8777
    %v8817 = vunpack.c.l.b16 %v8778
    %v8818 = vunpack.c.l.b16 %v8779
    %v8819 = vunpack.c.l.b16 %v8780
    %v8820 = vunpack.c.l.b16 %v8781
    %v8821 = vunpack.c.l.b16 %v8782
    %v8822 = vunpack.c.l.b16 %v8783
    %v8823 = vunpack.c.l.b16 %v8784
    %v8824 = vunpack.c.l.b16 %v8785
    %v8825 = vunpack.c.l.b16 %v8786
    %v8826 = vpack.c.b16 %v8811, %v8810
    %v8827 = vpack.c.b16 %v8813, %v8812
    %v8828 = vpack.c.b16 %v8815, %v8814
    %v8829 = vpack.c.b16 %v8817, %v8816
    %v8830 = vpack.c.b16 %v8819, %v8818
    %v8831 = vpack.c.b16 %v8821, %v8820
    %v8832 = vpack.c.b16 %v8823, %v8822
    %v8833 = vpack.c.b16 %v8825, %v8824
    %8842 = vmatprep.subr.bf16.mxu0 0
    %8843 = vmatpush1.bf16.msra.mxu0 %v8826
    %8844 = vmatprep.subr.bf16.mxu0 0
    %8845 = vmatpush1.bf16.msra.mxu0 %v8827
    %8846 = vmatprep.subr.bf16.mxu0 0
    %8847 = vmatpush1.bf16.msra.mxu0 %v8828
    %8848 = vmatprep.subr.bf16.mxu0 0
    %8849 = vmatpush1.bf16.msra.mxu0 %v8829
    %8850 = vmatprep.subr.bf16.mxu0 0
    %8851 = vmatpush1.bf16.msra.mxu0 %v8830
    %8852 = vmatprep.subr.bf16.mxu0 0
    %8853 = vmatpush1.bf16.msra.mxu0 %v8831
    %8854 = vmatprep.subr.bf16.mxu0 0
    %8855 = vmatpush1.bf16.msra.mxu0 %v8832
    %8856 = vmatprep.subr.bf16.mxu0 0
    %8857 = vmatpush1.bf16.msra.mxu0 %v8833
    %8858 = vmatprep.subr.bf16.mxu0 0
    %8859 = vmatpush1.bf16.msra.mxu0 0
    %8860 = vmatprep.subr.bf16.mxu0 0
    %8861 = vmatpush1.bf16.msra.mxu0 0
    %8862 = vmatprep.subr.bf16.mxu0 0
    %8863 = vmatpush1.bf16.msra.mxu0 0
    %8864 = vmatprep.subr.bf16.mxu0 0
    %8865 = vmatpush1.bf16.msra.mxu0 0
    %8866 = vmatprep.subr.bf16.mxu0 0
    %8867 = vmatpush1.bf16.msra.mxu0 0
    %8868 = vmatprep.subr.bf16.mxu0 0
    %8869 = vmatpush1.bf16.msra.mxu0 0
    %8870 = vmatprep.subr.bf16.mxu0 0
    %8871 = vmatpush1.bf16.msra.mxu0 0
    %8872 = vmatprep.subr.bf16.mxu0 0
    %8873 = vmatpush1.bf16.msra.mxu0 0
    %8874 = vmatprep.mubr.bf16.mxu0 0
    %8875 = vmatmul.mubr.bf16.gmra.mrb[0].mxu0 %v8792
    %v8876 = vpop.f32.mrb[0].mxu0
    %v8877 = vadd.f32 0.0, %v8876
    %v8878 = vpop.f32.mrb[0].mxu0
    %v8879 = vpop.f32.mrb[0].mxu0
    %v8880 = vadd.f32 0.0, %v8879
    %v8881 = vpop.f32.mrb[0].mxu0
    %8882 = vdwg.mxu0
    %v8883 = vadd.f32 %v8768, %v8877
    %v8884 = vadd.f32 %v8769, %v8880
    %v8885 = vadd.f32 %v8883, %v936
    %v8886 = vadd.f32 %v8884, %v936
    %v8887 = vmax.f32 %v8885, 0.0
    %v8888 = vmax.f32 %v8886, 0.0
    %v8889 = vpack.c.bf16 %v8888, %v8887
    %v8891 = vcombine.high %v8889, %v8889
    %v8893 = vunpack.c.l.s4 1966171168
    %v8894 = vunpack.c.0.s8 %v8893
    %v8895 = vlaneseq
    %v8896 = vshrl.u32 %v8895, 7
    %v8897 = vsub.s32 %v8894, %v8896
    %v8898 = vrot.slane %v8889, %v8897
    %v8900 = vunpack.c.l.s4 1966171168
    %v8901 = vunpack.c.0.s8 %v8900
    %v8902 = vlaneseq
    %v8903 = vshrl.u32 %v8902, 7
    %v8904 = vsub.s32 %v8901, %v8903
    %v8905 = vrot.slane %v8891, %v8904
    %v8906 = vcombine.high %v8898, %v8898
    %v8907 = vcombine.high %v8905, %v8905
    %v8909 = vunpack.c.l.s4 1966171168
    %v8910 = vunpack.c.0.s8 %v8909
    %v8911 = vlaneseq
    %v8912 = vshrl.u32 %v8911, 7
    %v8913 = vsub.s32 %v8910, %v8912
    %v8914 = vrot.slane %v8898, %v8913
    %v8916 = vunpack.c.l.s4 1966171168
    %v8917 = vunpack.c.0.s8 %v8916
    %v8918 = vlaneseq
    %v8919 = vshrl.u32 %v8918, 7
    %v8920 = vsub.s32 %v8917, %v8919
    %v8921 = vrot.slane %v8905, %v8920
    %v8923 = vunpack.c.l.s4 1966171168
    %v8924 = vunpack.c.0.s8 %v8923
    %v8925 = vlaneseq
    %v8926 = vshrl.u32 %v8925, 7
    %v8927 = vsub.s32 %v8924, %v8926
    %v8928 = vrot.slane %v8906, %v8927
    %v8930 = vunpack.c.l.s4 1966171168
    %v8931 = vunpack.c.0.s8 %v8930
    %v8932 = vlaneseq
    %v8933 = vshrl.u32 %v8932, 7
    %v8934 = vsub.s32 %v8931, %v8933
    %v8935 = vrot.slane %v8907, %v8934
    %v8936 = vcombine.high %v8914, %v8914
    %v8937 = vcombine.high %v8921, %v8921
    %v8938 = vcombine.high %v8928, %v8928
    %v8939 = vcombine.high %v8935, %v8935
    %v8940 = vunpack.i.l.s16 %v8914
    %v8941 = vunpack.i.h.s16 %v8914
    %v8942 = vunpack.i.l.s16 %v8928
    %v8943 = vunpack.i.h.s16 %v8928
    %v8944 = vunpack.i.l.s16 %v8936
    %v8945 = vunpack.i.h.s16 %v8936
    %v8946 = vunpack.i.l.s16 %v8938
    %v8947 = vunpack.i.h.s16 %v8938
    %v8948 = vunpack.i.l.s16 %v8921
    %v8949 = vunpack.i.h.s16 %v8921
    %v8950 = vunpack.i.l.s16 %v8935
    %v8951 = vunpack.i.h.s16 %v8935
    %v8952 = vunpack.i.l.s16 %v8937
    %v8953 = vunpack.i.h.s16 %v8937
    %v8954 = vunpack.i.l.s16 %v8939
    %v8955 = vunpack.i.h.s16 %v8939
    %v8956 = vpack.i.b16 %v8940, %v8940
    %v8957 = vpack.i.b16 %v8941, %v8941
    %v8958 = vpack.i.b16 %v8942, %v8942
    %v8959 = vpack.i.b16 %v8943, %v8943
    %v8960 = vpack.i.b16 %v8944, %v8944
    %v8961 = vpack.i.b16 %v8945, %v8945
    %v8962 = vpack.i.b16 %v8946, %v8946
    %v8963 = vpack.i.b16 %v8947, %v8947
    %v8964 = vpack.i.b16 %v8948, %v8948
    %v8965 = vpack.i.b16 %v8949, %v8949
    %v8966 = vpack.i.b16 %v8950, %v8950
    %v8967 = vpack.i.b16 %v8951, %v8951
    %v8968 = vpack.i.b16 %v8952, %v8952
    %v8969 = vpack.i.b16 %v8953, %v8953
    %v8970 = vpack.i.b16 %v8954, %v8954
    %v8971 = vpack.i.b16 %v8955, %v8955
    %v8973 = vunpack.c.l.s4 286326784
    %v8974 = vunpack.c.0.s8 %v8973
    %v8975 = vlaneseq
    %v8976 = vshrl.u32 %v8975, 7
    %v8977 = vsub.s32 %v8974, %v8976
    %v8978 = vrot.slane %v8956, %v8977
    %v8980 = vunpack.c.l.s4 286326784
    %v8981 = vunpack.c.0.s8 %v8980
    %v8982 = vlaneseq
    %v8983 = vshrl.u32 %v8982, 7
    %v8984 = vsub.s32 %v8981, %v8983
    %v8985 = vrot.slane %v8957, %v8984
    %v8987 = vunpack.c.l.s4 286326784
    %v8988 = vunpack.c.0.s8 %v8987
    %v8989 = vlaneseq
    %v8990 = vshrl.u32 %v8989, 7
    %v8991 = vsub.s32 %v8988, %v8990
    %v8992 = vrot.slane %v8958, %v8991
    %v8994 = vunpack.c.l.s4 286326784
    %v8995 = vunpack.c.0.s8 %v8994
    %v8996 = vlaneseq
    %v8997 = vshrl.u32 %v8996, 7
    %v8998 = vsub.s32 %v8995, %v8997
    %v8999 = vrot.slane %v8959, %v8998
    %v9001 = vunpack.c.l.s4 286326784
    %v9002 = vunpack.c.0.s8 %v9001
    %v9003 = vlaneseq
    %v9004 = vshrl.u32 %v9003, 7
    %v9005 = vsub.s32 %v9002, %v9004
    %v9006 = vrot.slane %v8960, %v9005
    %v9008 = vunpack.c.l.s4 286326784
    %v9009 = vunpack.c.0.s8 %v9008
    %v9010 = vlaneseq
    %v9011 = vshrl.u32 %v9010, 7
    %v9012 = vsub.s32 %v9009, %v9011
    %v9013 = vrot.slane %v8961, %v9012
    %v9015 = vunpack.c.l.s4 286326784
    %v9016 = vunpack.c.0.s8 %v9015
    %v9017 = vlaneseq
    %v9018 = vshrl.u32 %v9017, 7
    %v9019 = vsub.s32 %v9016, %v9018
    %v9020 = vrot.slane %v8962, %v9019
    %v9022 = vunpack.c.l.s4 286326784
    %v9023 = vunpack.c.0.s8 %v9022
    %v9024 = vlaneseq
    %v9025 = vshrl.u32 %v9024, 7
    %v9026 = vsub.s32 %v9023, %v9025
    %v9027 = vrot.slane %v8963, %v9026
    %v9029 = vunpack.c.l.s4 286326784
    %v9030 = vunpack.c.0.s8 %v9029
    %v9031 = vlaneseq
    %v9032 = vshrl.u32 %v9031, 7
    %v9033 = vsub.s32 %v9030, %v9032
    %v9034 = vrot.slane %v8964, %v9033
    %v9036 = vunpack.c.l.s4 286326784
    %v9037 = vunpack.c.0.s8 %v9036
    %v9038 = vlaneseq
    %v9039 = vshrl.u32 %v9038, 7
    %v9040 = vsub.s32 %v9037, %v9039
    %v9041 = vrot.slane %v8965, %v9040
    %v9043 = vunpack.c.l.s4 286326784
    %v9044 = vunpack.c.0.s8 %v9043
    %v9045 = vlaneseq
    %v9046 = vshrl.u32 %v9045, 7
    %v9047 = vsub.s32 %v9044, %v9046
    %v9048 = vrot.slane %v8966, %v9047
    %v9050 = vunpack.c.l.s4 286326784
    %v9051 = vunpack.c.0.s8 %v9050
    %v9052 = vlaneseq
    %v9053 = vshrl.u32 %v9052, 7
    %v9054 = vsub.s32 %v9051, %v9053
    %v9055 = vrot.slane %v8967, %v9054
    %v9057 = vunpack.c.l.s4 286326784
    %v9058 = vunpack.c.0.s8 %v9057
    %v9059 = vlaneseq
    %v9060 = vshrl.u32 %v9059, 7
    %v9061 = vsub.s32 %v9058, %v9060
    %v9062 = vrot.slane %v8968, %v9061
    %v9064 = vunpack.c.l.s4 286326784
    %v9065 = vunpack.c.0.s8 %v9064
    %v9066 = vlaneseq
    %v9067 = vshrl.u32 %v9066, 7
    %v9068 = vsub.s32 %v9065, %v9067
    %v9069 = vrot.slane %v8969, %v9068
    %v9071 = vunpack.c.l.s4 286326784
    %v9072 = vunpack.c.0.s8 %v9071
    %v9073 = vlaneseq
    %v9074 = vshrl.u32 %v9073, 7
    %v9075 = vsub.s32 %v9072, %v9074
    %v9076 = vrot.slane %v8970, %v9075
    %v9078 = vunpack.c.l.s4 286326784
    %v9079 = vunpack.c.0.s8 %v9078
    %v9080 = vlaneseq
    %v9081 = vshrl.u32 %v9080, 7
    %v9082 = vsub.s32 %v9079, %v9081
    %v9083 = vrot.slane %v8971, %v9082
    %vm9100 = vsmask.f32 7950
    %vm9101 = vmand %vm7964, %vm9100
    %v9102 = vld [vmem:[#allocation8] sm:$0x8]
    %v9103 = vsel %vm9101, %v8978, %v9102
    %9104 = vst [vmem:[#allocation8] sm:$0x8] %v9103
    %v9105 = vld [vmem:[#allocation8 + $0x4] sm:$0x8]
    %v9106 = vsel %vm9101, %v8985, %v9105
    %9107 = vst [vmem:[#allocation8 + $0x4] sm:$0x8] %v9106
    %v9108 = vld [vmem:[#allocation8 + $0x8] sm:$0x8]
    %v9109 = vsel %vm9101, %v8992, %v9108
    %9110 = vst [vmem:[#allocation8 + $0x8] sm:$0x8] %v9109
    %v9111 = vld [vmem:[#allocation8 + $0xc] sm:$0x8]
    %v9112 = vsel %vm9101, %v8999, %v9111
    %9113 = vst [vmem:[#allocation8 + $0xc] sm:$0x8] %v9112
    %v9114 = vld [vmem:[#allocation8 + $0x10] sm:$0x8]
    %v9115 = vsel %vm9101, %v9006, %v9114
    %9116 = vst [vmem:[#allocation8 + $0x10] sm:$0x8] %v9115
    %v9117 = vld [vmem:[#allocation8 + $0x14] sm:$0x8]
    %v9118 = vsel %vm9101, %v9013, %v9117
    %9119 = vst [vmem:[#allocation8 + $0x14] sm:$0x8] %v9118
    %v9120 = vld [vmem:[#allocation8 + $0x18] sm:$0x8]
    %v9121 = vsel %vm9101, %v9020, %v9120
    %9122 = vst [vmem:[#allocation8 + $0x18] sm:$0x8] %v9121
    %v9123 = vld [vmem:[#allocation8 + $0x1c] sm:$0x8]
    %v9124 = vsel %vm9101, %v9027, %v9123
    %9125 = vst [vmem:[#allocation8 + $0x1c] sm:$0x8] %v9124
    %v9126 = vld [vmem:[#allocation8 + $0x20] sm:$0x8]
    %v9127 = vsel %vm9101, %v9034, %v9126
    %9128 = vst [vmem:[#allocation8 + $0x20] sm:$0x8] %v9127
    %v9129 = vld [vmem:[#allocation8 + $0x24] sm:$0x8]
    %v9130 = vsel %vm9101, %v9041, %v9129
    %9131 = vst [vmem:[#allocation8 + $0x24] sm:$0x8] %v9130
    %v9132 = vld [vmem:[#allocation8 + $0x28] sm:$0x8]
    %v9133 = vsel %vm9101, %v9048, %v9132
    %9134 = vst [vmem:[#allocation8 + $0x28] sm:$0x8] %v9133
    %v9135 = vld [vmem:[#allocation8 + $0x2c] sm:$0x8]
    %v9136 = vsel %vm9101, %v9055, %v9135
    %9137 = vst [vmem:[#allocation8 + $0x2c] sm:$0x8] %v9136
    %v9138 = vld [vmem:[#allocation8 + $0x30] sm:$0x8]
    %v9139 = vsel %vm9101, %v9062, %v9138
    %9140 = vst [vmem:[#allocation8 + $0x30] sm:$0x8] %v9139
    %v9141 = vld [vmem:[#allocation8 + $0x34] sm:$0x8]
    %v9142 = vsel %vm9101, %v9069, %v9141
    %9143 = vst [vmem:[#allocation8 + $0x34] sm:$0x8] %v9142
    %v9144 = vld [vmem:[#allocation8 + $0x38] sm:$0x8]
    %v9145 = vsel %vm9101, %v9076, %v9144
    %9146 = vst [vmem:[#allocation8 + $0x38] sm:$0x8] %v9145
    %v9147 = vld [vmem:[#allocation8 + $0x3c] sm:$0x8]
    %v9148 = vsel %vm9101, %v9083, %v9147
    %9149 = vst [vmem:[#allocation8 + $0x3c] sm:$0x8] %v9148
    // Predicated region
    $region22: #{tpu_custom_call.1} parent=1 // pred_check
      _
    $region23: #{tpu_custom_call.1} parent=1 // pred_check_branch
      %9151 = sbr.rel (0) target = $region25
    $region24: #{tpu_custom_call.1} parent=1 // pred_region
      %s9153 = ssub.s32 1024, 1024
      %9154 = vsyncadd [#allocation5], %s9153
      %s9155 = sshll.u32 [#allocation8], 4
      %s9156 = int_to_ptr.vmem [resolvable:$true] %s9155
      %9161 = dma.vmem_to_hbm [thread:$0]  %s9156, 1024, %s3, [#allocation5], 64, 64, 4
    $region25: #{tpu_custom_call.1} parent=1 // pred_fallthru
      _
    // Predicated region
    $region26: #{tpu_custom_call.1} parent=1 // pred_check
      _
    $region27: #{tpu_custom_call.1} parent=1 // pred_check_branch
      %9163 = sbr.rel (0) target = $region29
    $region28: #{tpu_custom_call.1} parent=1 // pred_region
      %9164 = dma.done [#allocation5], 1024
    $region29: #{tpu_custom_call.1} parent=1 // pred_fallthru
      _
    %9165 = vsyncpa [#allocation4], 1
    %9166 = vsyncpa [#allocation7], 1
    %9167 = vsyncpa [#allocation5], 1

</llo_original>
